<compile_context>
chip_gen: v7x
topology: tpu7x:2x2x1
jax: 0.10.0
libtpu: 0.0.40
codegen_flags: <defaults>
</compile_context>

<pallas_src>
import functools

import numpy as np
import jax
import jax.numpy as jnp
from jax import lax
from jax.experimental import pallas as pl
from jax.experimental.pallas import tpu as pltpu

SQRT2 = float(np.sqrt(2.0))
INV_SQRT2 = float(1.0 / np.sqrt(2.0))


def _round8(x):
    return ((int(x) + 7) // 8) * 8


def _softplus100(x):
    # torch.nn.Softplus(beta=100, threshold=20): linear where beta*x > threshold.
    bx = x * 100.0
    sp = jnp.log1p(jnp.exp(jnp.minimum(bx, 20.0))) * 0.01
    return jnp.where(bx > 20.0, x, sp)


def _embed_pieces(pts, multires):
    """Feature-major NeRF embedding pieces [x, sin(2^k x), cos(2^k x), ...]."""
    pieces = [pts]
    for k in range(multires):
        f = float(2.0 ** k)
        pieces.append(jnp.sin(pts * f))
        pieces.append(jnp.cos(pts * f))
    return pieces


def positional_embed(x, multires):
    """Reference-side embedding (point-major, matches NeRF get_embedder order)."""
    if multires <= 0:
        return x
    outs = [x]
    for k in range(multires):
        f = float(2.0 ** k)
        outs.append(jnp.sin(x * f))
        outs.append(jnp.cos(x * f))
    return jnp.concatenate(outs, axis=-1)


# ------------------------- parameter initialization --------------------------
def init_implicit_network_params(key, feature_vector_size, d_in, d_out, dims,
                                 skip_in, multires, bias=1.0):
    """Mirrors ImplicitNetwork.__init__ geometric init (weight_norm is a no-op
    at init time: g = ||v||, so effective weight == initialized weight).
    Returns Ws[l] as [in_dim, out_dim] (x @ W convention), Bs[l] as [1, out]."""
    input_ch = d_in + d_in * 2 * multires if multires > 0 else d_in
    full_dims = [input_ch] + list(dims) + [d_out + feature_vector_size]
    num_layers = len(full_dims)
    Ws, Bs = [], []
    for l in range(num_layers - 1):
        in_dim = full_dims[l]
        out_dim = full_dims[l + 1] - full_dims[0] if (l + 1) in skip_in else full_dims[l + 1]
        key, k1 = jax.random.split(key)
        if l == num_layers - 2:
            w = (-np.sqrt(np.pi) / np.sqrt(in_dim)
                 + 1e-4 * jax.random.normal(k1, (out_dim, in_dim), jnp.float32))
            b = jnp.full((out_dim,), float(bias), jnp.float32)
        elif multires > 0 and l == 0:
            w = jnp.zeros((out_dim, in_dim), jnp.float32)
            w = w.at[:, :3].set(jax.random.normal(k1, (out_dim, 3), jnp.float32)
                                * (np.sqrt(2.0) / np.sqrt(out_dim)))
            b = jnp.zeros((out_dim,), jnp.float32)
        elif multires > 0 and l in skip_in:
            w = jax.random.normal(k1, (out_dim, in_dim), jnp.float32) * (np.sqrt(2.0) / np.sqrt(out_dim))
            w = w.at[:, -(full_dims[0] - 3):].set(0.0)
            b = jnp.zeros((out_dim,), jnp.float32)
        else:
            w = jax.random.normal(k1, (out_dim, in_dim), jnp.float32) * (np.sqrt(2.0) / np.sqrt(out_dim))
            b = jnp.zeros((out_dim,), jnp.float32)
        Ws.append(jnp.asarray(w.T, jnp.float32))               # [in_dim, out_dim]
        Bs.append(jnp.asarray(b, jnp.float32).reshape(1, -1))  # [1, out_dim]
    # self.temperature (only used by beta()/occupancy_function, not forward):
    temperature = jnp.full((1,), np.log(0.1) / 10.0, jnp.float32)
    return Ws, Bs, temperature


# --------------------------- weight packing for kernel ------------------------
def pack_params_for_kernel(Ws, Bs, skip_in, d_in, multires,
                           matmul_dtype=jnp.bfloat16):
    """Pack all layers into 4 padded tensors for the feature-major kernel.

    w_emb  [E*D, K_pad]   : row-stacked embedding weights for layer 0 and every
                            skip layer (1/sqrt(2) folded in for skip layers),
                            columns laid out in d_in_pad-strided pieces.
    w_hid  [L-2, D, D]    : hidden-layer weights applied to the previous
                            activation (skip layers pre-scaled by 1/sqrt(2)).
    w_last [16k, D]       : final layer with only ~d_final output rows.
    bias   [L, D, 1]      : biases (always f32).
    Zero-padded weight columns kill softplus(0) garbage in padded rows."""
    skip = tuple(sorted(int(s) for s in skip_in))
    L = len(Ws)
    assert L >= 3, "expects at least one hidden layer"
    assert all(0 < s < L - 1 for s in skip), "skip layers must be internal"

    n_pieces = 1 + 2 * multires if multires > 0 else 1
    input_ch = d_in * n_pieces
    d_in_pad = _round8(d_in)
    K_used = n_pieces * d_in_pad
    K_pad = -(-K_used // 16) * 16           # 16-aligned: safe for f32 and bf16 tiling
    out_dims = [int(np.asarray(w).shape[1]) for w in Ws]
    D = _round8(max(out_dims[:-1]))
    d_final = out_dims[-1]
    d_final_out = _round8(d_final)          # rows of the lane-dense output block
    d_last_rows = -(-d_final // 16) * 16    # rows of the packed final-layer weight

    emb_layers = [0] + list(skip)
    emb_slot = {l: i for i, l in enumerate(emb_layers)}
    E = len(emb_layers)

    w_emb = np.zeros((E * D, K_pad), np.float32)
    w_hid = np.zeros((max(L - 2, 1), D, D), np.float32)
    w_last = np.zeros((d_last_rows, D), np.float32)
    bias = np.zeros((L, D, 1), np.float32)

    def _set_emb(slot, w_oi, scale):
        out_l = w_oi.shape[0]
        for p in range(n_pieces):
            w_emb[slot * D:slot * D + out_l, p * d_in_pad:p * d_in_pad + d_in] = \
                w_oi[:, p * d_in:(p + 1) * d_in] * scale

    for l in range(L):
        w_io = np.asarray(Ws[l], np.float32)            # [in_l, out_l]
        b = np.asarray(Bs[l], np.float32).reshape(-1)   # [out_l]
        out_l = w_io.shape[1]
        bias[l, :out_l, 0] = b
        if l == 0:
            _set_emb(0, w_io.T, 1.0)
        elif l in skip:
            x_width = w_io.shape[0] - input_ch
            # concat([h, embedding]) / sqrt(2) -> split weights, scale folded in
            w_hid[l - 1, :out_l, :x_width] = w_io[:x_width, :].T * INV_SQRT2
            _set_emb(emb_slot[l], w_io[x_width:, :].T, INV_SQRT2)
        elif l == L - 1:
            w_last[:out_l, :w_io.shape[0]] = w_io.T
        else:
            w_hid[l - 1, :out_l, :w_io.shape[0]] = w_io.T

    params = (jnp.asarray(w_emb, matmul_dtype),
              jnp.asarray(w_hid, matmul_dtype),
              jnp.asarray(w_last, matmul_dtype),
              jnp.asarray(bias, jnp.float32))
    meta = dict(L=L, D=D, d_in=d_in, d_in_pad=d_in_pad, multires=multires,
                n_pieces=n_pieces, K_used=K_used, K_pad=K_pad,
                d_final=d_final, d_final_out=d_final_out,
                skip=skip, emb_slot=emb_slot)
    return params, meta


# ------------------------------ shared MLP math --------------------------------
def _mlp_from_embedding(emb, w_emb, w_hid, w_last, bias, meta):
    """Post-embedding layer stack.  Arguments may be VMEM refs (inside the
    Pallas kernel) or jnp arrays (packed jnp reference) — same indexing."""
    L, D = meta["L"], meta["D"]
    skip, emb_slot = meta["skip"], meta["emb_slot"]

    we = w_emb[...]
    mm = we.dtype                          # bf16 (or f32) operands, f32 accumulation
    # ONE MXU contraction serves layer 0 AND every skip layer.
    emb_out = jnp.dot(we, emb[...], preferred_element_type=jnp.float32)   # [E*D, n]

    h = _softplus100(emb_out[0:D] + bias[0])                              # layer 0
    for l in range(1, L - 1):
        z = jnp.dot(w_hid[l - 1], h.astype(mm),
                    preferred_element_type=jnp.float32) + bias[l]
        if l in skip:
            s = emb_slot[l]
            z = z + emb_out[s * D:(s + 1) * D]
        h = _softplus100(z)
    wl = w_last[...]                       # small final-layer weight (few output rows)
    z = jnp.dot(wl, h.astype(mm),
                preferred_element_type=jnp.float32) + bias[L - 1][:wl.shape[0]]
    return z


# ------------------------------ Pallas kernel ---------------------------------
def _make_kernel(meta):
    multires = meta["multires"]
    d_in_pad = meta["d_in_pad"]
    K_used, K_pad = meta["K_used"], meta["K_pad"]
    d_final_out = meta["d_final_out"]

    def kernel(x_ref, we_ref, wh_ref, wl_ref, b_ref, out_ref, emb_scr):
        mm = we_ref.dtype
        pts = x_ref[...]                                  # [d_in_pad, TILE_N] f32
        # Fused positional embedding, staged feature-major into VMEM scratch at
        # 8-aligned row offsets (sin/cos on the EUP in f32, stored in the matmul
        # dtype).  The slab dies right after the single merged embedding dot.
        for i, piece in enumerate(_embed_pieces(pts, multires)):
            emb_scr[i * d_in_pad:(i + 1) * d_in_pad, :] = piece.astype(mm)
        if K_pad > K_used:
            emb_scr[K_used:, :] = jnp.zeros((K_pad - K_used, pts.shape[1]), mm)

        out = _mlp_from_embedding(emb_scr, we_ref, wh_ref, wl_ref, b_ref, meta)
        out_ref[...] = out[:d_final_out, :]               # lane-dense store

    return kernel


# ------------------------------ wrappers ---------------------------------------
def implicit_network_forward_fm(points_fm, params, meta, *, tile_n=1024):
    """Feature-major forward: points_fm [d_in (or d_in_pad), N] -> [d_final_out, N]
    (f32).  Keep callers feature-major end-to-end to avoid transpose passes."""
    w_emb, w_hid, w_last, bias = params
    d_in_pad = meta["d_in_pad"]
    d_final_out = meta["d_final_out"]
    assert tile_n % 128 == 0, "tile_n must be a multiple of 128 (lane-aligned)"

    dp, n = points_fm.shape
    n_tiles = -(-n // tile_n)
    n_pad = n_tiles * tile_n
    x = points_fm.astype(jnp.float32)
    if (dp, n) != (d_in_pad, n_pad):
        x = jnp.pad(x, ((0, d_in_pad - dp), (0, n_pad - n)))

    out = pl.pallas_call(
        _make_kernel(meta),
        out_shape=jax.ShapeDtypeStruct((d_final_out, n_pad), jnp.float32),
        grid_spec=pltpu.PrefetchScalarGridSpec(
            num_scalar_prefetch=0,
            grid=(n_tiles,),
            in_specs=[
                pl.BlockSpec((d_in_pad, tile_n), lambda i: (0, i)),
                pl.BlockSpec(w_emb.shape, lambda i: (0, 0)),       # constant blocks:
                pl.BlockSpec(w_hid.shape, lambda i: (0, 0, 0)),    # fetched once,
                pl.BlockSpec(w_last.shape, lambda i: (0, 0)),      # never refetched
                pl.BlockSpec(bias.shape, lambda i: (0, 0, 0)),
            ],
            out_specs=pl.BlockSpec((d_final_out, tile_n), lambda i: (0, i)),
            scratch_shapes=[pltpu.VMEM((meta["K_pad"], tile_n), w_emb.dtype)],
        ),
        compiler_params=pltpu.CompilerParams(
            dimension_semantics=("parallel",)),
    )(x, w_emb, w_hid, w_last, bias)

    if n_pad != n:
        out = out[:, :n]
    return out


def implicit_network_forward(points, params, meta, *, tile_n=1024):
    """[N, d_in] -> [N, d_out + feature_vector_size] compatibility wrapper.
    Adds two transpose passes over HBM; prefer implicit_network_forward_fm."""
    out_fm = implicit_network_forward_fm(points.T, params, meta, tile_n=tile_n)
    return out_fm[:meta["d_final"]].T


# ------------------------------ JAX references ---------------------------------
def reference_forward(points, Ws, Bs, skip_in, multires):
    """Exact f32 semantics of ImplicitNetwork.forward."""
    inp = positional_embed(points.astype(jnp.float32), multires)
    x = inp
    for l, (w, b) in enumerate(zip(Ws, Bs)):
        if l in skip_in:
            x = jnp.concatenate([x, inp], axis=-1) / SQRT2
        x = x @ w + b
        if l < len(Ws) - 1:
            x = _softplus100(x)
    return x


def packed_reference_forward_fm(points_fm, params, meta):
    """Plain-jnp twin of the kernel (same packed weights, same matmul dtype):
    used as the tight numerical reference for the bf16-operand configuration."""
    w_emb, w_hid, w_last, bias = params
    x = points_fm.astype(jnp.float32)
    if x.shape[0] != meta["d_in_pad"]:
        x = jnp.pad(x, ((0, meta["d_in_pad"] - x.shape[0]), (0, 0)))
    pieces = [p.astype(w_emb.dtype) for p in _embed_pieces(x, meta["multires"])]
    emb = jnp.concatenate(pieces, axis=0)
    emb = jnp.pad(emb, ((0, meta["K_pad"] - emb.shape[0]), (0, 0)))
    out = _mlp_from_embedding(emb, w_emb, w_hid, w_last, bias, meta)
    return out[:meta["d_final"]]


# ---------------------------------- main ---------------------------------------
if __name__ == "__main__":
    # ImplicitNetwork(feature_vector_size=7, d_in=3, d_out=1, dims=[32,32,32,32],
    #                 skip_in=(2,), multires=2, geometric_init=True, bias=1.0)
    feature_vector_size = 7
    d_in, d_out = 3, 1
    dims = [32, 32, 32, 32]
    skip_in = (2,)
    multires = 2

    key = jax.random.PRNGKey(0)
    k_params, k_pts = jax.random.split(key)
    Ws, Bs, _temperature = init_implicit_network_params(
        k_params, feature_vector_size, d_in, d_out, dims, skip_in, multires, bias=1.0)

    N = 4096                      # -> grid=(4,): even, >= 2 steps per core (v7x)
    points = jax.random.normal(k_pts, (N, d_in), jnp.float32)
    points_fm = points.T          # demo-side conversion only; production callers
                                  # should stay feature-major end-to-end.

    ref = reference_forward(points, Ws, Bs, skip_in, multires)

    # --- exact-semantics gate: f32 matmul operands -----------------------------
    params32, meta32 = pack_params_for_kernel(Ws, Bs, skip_in, d_in, multires,
                                              matmul_dtype=jnp.float32)
    fwd32 = jax.jit(functools.partial(implicit_network_forward_fm,
                                      meta=meta32, tile_n=1024))
    out32 = jax.block_until_ready(fwd32(points_fm, params32))
    np.testing.assert_allclose(np.asarray(out32)[:meta32["d_final"]].T,
                               np.asarray(ref), rtol=1e-4, atol=1e-4)

    # also exercise the N % tile_n != 0 padding / partial-grid path
    out32_small = jax.block_until_ready(fwd32(points_fm[:, :1000], params32))
    np.testing.assert_allclose(np.asarray(out32_small)[:meta32["d_final"]].T,
                               np.asarray(ref)[:1000], rtol=1e-4, atol=1e-4)

    # --- performance configuration: bf16 operands, f32 accumulation ------------
    params_bf, meta_bf = pack_params_for_kernel(Ws, Bs, skip_in, d_in, multires,
                                                matmul_dtype=jnp.bfloat16)
    fwd_bf = jax.jit(functools.partial(implicit_network_forward_fm,
                                       meta=meta_bf, tile_n=1024))
    out_bf = jax.block_until_ready(fwd_bf(points_fm, params_bf))
    ref_bf = packed_reference_forward_fm(points_fm, params_bf, meta_bf)
    np.testing.assert_allclose(np.asarray(out_bf)[:meta_bf["d_final"]],
                               np.asarray(ref_bf), rtol=3e-2, atol=3e-2)

    # TODO(synk): gradient()/beta()/occupancy_function() (autograd + volSDF
    # utils) are not part of forward and are left out of the kernel.
    print("KERNEL_OK")
</pallas_src>

<mosaic_0001>
module attributes {stable_mosaic.version = 11 : i64} {
  func.func @kernel(%arg0: i32, %arg1: memref<8x1024xf32, #tpu.memory_space<vmem>>, %arg2: memref<64x48xf32, #tpu.memory_space<vmem>>, %arg3: memref<3x32x32xf32, #tpu.memory_space<vmem>>, %arg4: memref<16x32xf32, #tpu.memory_space<vmem>>, %arg5: memref<5x32x1xf32, #tpu.memory_space<vmem>>, %arg6: memref<8x1024xf32, #tpu.memory_space<vmem>>, %arg7: memref<48x1024xf32, #tpu.memory_space<vmem>>) attributes {dimension_semantics = [#tpu.dimension_semantics<parallel>], iteration_bounds = array<i64: 4>, scalar_prefetch = 0 : i64, scratch_operands = 1 : i64, tpu.core_type = #tpu.core_type<tc>, window_params = [{transform_indices = @transform_0, window_bounds = array<i64: 8, 1024>}, {pipeline_mode = #tpu.pipeline_mode<synchronous>, transform_indices = @transform_1, window_bounds = array<i64: 64, 48>}, {pipeline_mode = #tpu.pipeline_mode<synchronous>, transform_indices = @transform_2, window_bounds = array<i64: 3, 32, 32>}, {pipeline_mode = #tpu.pipeline_mode<synchronous>, transform_indices = @transform_3, window_bounds = array<i64: 16, 32>}, {pipeline_mode = #tpu.pipeline_mode<synchronous>, transform_indices = @transform_4, window_bounds = array<i64: 5, 32, 1>}, {transform_indices = @transform_5, window_bounds = array<i64: 8, 1024>}]} {
    %c0 = arith.constant 0 : index
    %c0_0 = arith.constant 0 : index
    %0 = vector.load %arg1[%c0, %c0_0] : memref<8x1024xf32, #tpu.memory_space<vmem>>, vector<8x1024xf32>
    %cst = arith.constant 1.000000e+00 : f32
    %1 = vector.broadcast %cst : f32 to vector<8x1024xf32>
    %2 = arith.mulf %0, %1 : vector<8x1024xf32>
    %3 = math.sin %2 : vector<8x1024xf32>
    %cst_1 = arith.constant 1.000000e+00 : f32
    %4 = vector.broadcast %cst_1 : f32 to vector<8x1024xf32>
    %5 = arith.mulf %0, %4 : vector<8x1024xf32>
    %6 = math.cos %5 : vector<8x1024xf32>
    %cst_2 = arith.constant 2.000000e+00 : f32
    %7 = vector.broadcast %cst_2 : f32 to vector<8x1024xf32>
    %8 = arith.mulf %0, %7 : vector<8x1024xf32>
    %9 = math.sin %8 : vector<8x1024xf32>
    %cst_3 = arith.constant 2.000000e+00 : f32
    %10 = vector.broadcast %cst_3 : f32 to vector<8x1024xf32>
    %11 = arith.mulf %0, %10 : vector<8x1024xf32>
    %12 = math.cos %11 : vector<8x1024xf32>
    %c0_4 = arith.constant 0 : index
    %c0_5 = arith.constant 0 : index
    %13 = vector.load %arg7[%c0_4, %c0_5] : memref<48x1024xf32, #tpu.memory_space<vmem>>, vector<8x1024xf32>
    tpu.vector_store %arg7[%c0_4, %c0_5], %0 {strides = array<i32>} : memref<48x1024xf32, #tpu.memory_space<vmem>>, vector<8x1024xf32>,
    %c8 = arith.constant 8 : index
    %c0_6 = arith.constant 0 : index
    %14 = vector.load %arg7[%c8, %c0_6] : memref<48x1024xf32, #tpu.memory_space<vmem>>, vector<8x1024xf32>
    tpu.vector_store %arg7[%c8, %c0_6], %3 {strides = array<i32>} : memref<48x1024xf32, #tpu.memory_space<vmem>>, vector<8x1024xf32>,
    %c16 = arith.constant 16 : index
    %c0_7 = arith.constant 0 : index
    %15 = vector.load %arg7[%c16, %c0_7] : memref<48x1024xf32, #tpu.memory_space<vmem>>, vector<8x1024xf32>
    tpu.vector_store %arg7[%c16, %c0_7], %6 {strides = array<i32>} : memref<48x1024xf32, #tpu.memory_space<vmem>>, vector<8x1024xf32>,
    %c24 = arith.constant 24 : index
    %c0_8 = arith.constant 0 : index
    %16 = vector.load %arg7[%c24, %c0_8] : memref<48x1024xf32, #tpu.memory_space<vmem>>, vector<8x1024xf32>
    tpu.vector_store %arg7[%c24, %c0_8], %9 {strides = array<i32>} : memref<48x1024xf32, #tpu.memory_space<vmem>>, vector<8x1024xf32>,
    %c32 = arith.constant 32 : index
    %c0_9 = arith.constant 0 : index
    %17 = vector.load %arg7[%c32, %c0_9] : memref<48x1024xf32, #tpu.memory_space<vmem>>, vector<8x1024xf32>
    tpu.vector_store %arg7[%c32, %c0_9], %12 {strides = array<i32>} : memref<48x1024xf32, #tpu.memory_space<vmem>>, vector<8x1024xf32>,
    %cst_10 = arith.constant 0.000000e+00 : f32
    %18 = vector.broadcast %cst_10 : f32 to vector<8x1024xf32>
    %c40 = arith.constant 40 : index
    %c0_11 = arith.constant 0 : index
    %19 = vector.load %arg7[%c40, %c0_11] : memref<48x1024xf32, #tpu.memory_space<vmem>>, vector<8x1024xf32>
    tpu.vector_store %arg7[%c40, %c0_11], %18 {strides = array<i32>} : memref<48x1024xf32, #tpu.memory_space<vmem>>, vector<8x1024xf32>,
    %c0_12 = arith.constant 0 : index
    %c0_13 = arith.constant 0 : index
    %20 = vector.load %arg2[%c0_12, %c0_13] : memref<64x48xf32, #tpu.memory_space<vmem>>, vector<64x48xf32>
    %c0_14 = arith.constant 0 : index
    %c0_15 = arith.constant 0 : index
    %21 = vector.load %arg7[%c0_14, %c0_15] : memref<48x1024xf32, #tpu.memory_space<vmem>>, vector<48x1024xf32>
    %cst_16 = arith.constant dense<0.000000e+00> : vector<64x1024xf32>
    %22 = tpu.matmul %20, %21, %cst_16 {dimension_numbers = #tpu.dot_dimension_numbers<[1], [0], [0], [1], [0, 0, 1, 1], [], []>} : vector<64x48xf32>, vector<48x1024xf32>, vector<64x1024xf32> -> vector<64x1024xf32>
    %23 = vector.extract_strided_slice %22 {offsets = [0, 0], sizes = [32, 1024], strides = [1, 1]} : vector<64x1024xf32> to vector<32x1024xf32>
    %c0_17 = arith.constant 0 : index
    %c0_18 = arith.constant 0 : index
    %c0_19 = arith.constant 0 : index
    %24 = vector.load %arg5[%c0_17, %c0_18, %c0_19] : memref<5x32x1xf32, #tpu.memory_space<vmem>>, vector<1x32x1xf32>
    %25 = vector.shape_cast %24 : vector<1x32x1xf32> to vector<32x1xf32>
    %26 = vector.broadcast %25 : vector<32x1xf32> to vector<32x1024xf32>
    %27 = arith.addf %23, %26 : vector<32x1024xf32>
    %cst_20 = arith.constant 1.000000e+02 : f32
    %28 = vector.broadcast %cst_20 : f32 to vector<32x1024xf32>
    %29 = arith.mulf %27, %28 : vector<32x1024xf32>
    %cst_21 = arith.constant 2.000000e+01 : f32
    %30 = vector.broadcast %cst_21 : f32 to vector<32x1024xf32>
    %31 = arith.minimumf %29, %30 : vector<32x1024xf32>
    %32 = math.exp %31 : vector<32x1024xf32>
    %33 = math.log1p %32 : vector<32x1024xf32>
    %cst_22 = arith.constant 0.00999999977 : f32
    %34 = vector.broadcast %cst_22 : f32 to vector<32x1024xf32>
    %35 = arith.mulf %33, %34 : vector<32x1024xf32>
    %cst_23 = arith.constant 2.000000e+01 : f32
    %36 = vector.broadcast %cst_23 : f32 to vector<32x1024xf32>
    %37 = arith.cmpf ogt, %29, %36 : vector<32x1024xf32>
    %38 = arith.select %37, %27, %35 : vector<32x1024xi1>, vector<32x1024xf32>
    %c0_24 = arith.constant 0 : index
    %c0_25 = arith.constant 0 : index
    %c0_26 = arith.constant 0 : index
    %39 = vector.load %arg3[%c0_24, %c0_25, %c0_26] : memref<3x32x32xf32, #tpu.memory_space<vmem>>, vector<1x32x32xf32>
    %40 = vector.shape_cast %39 : vector<1x32x32xf32> to vector<32x32xf32>
    %cst_27 = arith.constant dense<0.000000e+00> : vector<32x1024xf32>
    %41 = tpu.matmul %40, %38, %cst_27 {dimension_numbers = #tpu.dot_dimension_numbers<[1], [0], [0], [1], [0, 0, 1, 1], [], []>} : vector<32x32xf32>, vector<32x1024xf32>, vector<32x1024xf32> -> vector<32x1024xf32>
    %c1 = arith.constant 1 : index
    %c0_28 = arith.constant 0 : index
    %c0_29 = arith.constant 0 : index
    %42 = vector.load %arg5[%c1, %c0_28, %c0_29] : memref<5x32x1xf32, #tpu.memory_space<vmem>>, vector<1x32x1xf32>
    %43 = vector.shape_cast %42 : vector<1x32x1xf32> to vector<32x1xf32>
    %44 = vector.broadcast %43 : vector<32x1xf32> to vector<32x1024xf32>
    %45 = arith.addf %41, %44 : vector<32x1024xf32>
    %cst_30 = arith.constant 1.000000e+02 : f32
    %46 = vector.broadcast %cst_30 : f32 to vector<32x1024xf32>
    %47 = arith.mulf %45, %46 : vector<32x1024xf32>
    %cst_31 = arith.constant 2.000000e+01 : f32
    %48 = vector.broadcast %cst_31 : f32 to vector<32x1024xf32>
    %49 = arith.minimumf %47, %48 : vector<32x1024xf32>
    %50 = math.exp %49 : vector<32x1024xf32>
    %51 = math.log1p %50 : vector<32x1024xf32>
    %cst_32 = arith.constant 0.00999999977 : f32
    %52 = vector.broadcast %cst_32 : f32 to vector<32x1024xf32>
    %53 = arith.mulf %51, %52 : vector<32x1024xf32>
    %cst_33 = arith.constant 2.000000e+01 : f32
    %54 = vector.broadcast %cst_33 : f32 to vector<32x1024xf32>
    %55 = arith.cmpf ogt, %47, %54 : vector<32x1024xf32>
    %56 = arith.select %55, %45, %53 : vector<32x1024xi1>, vector<32x1024xf32>
    %c1_34 = arith.constant 1 : index
    %c0_35 = arith.constant 0 : index
    %c0_36 = arith.constant 0 : index
    %57 = vector.load %arg3[%c1_34, %c0_35, %c0_36] : memref<3x32x32xf32, #tpu.memory_space<vmem>>, vector<1x32x32xf32>
    %58 = vector.shape_cast %57 : vector<1x32x32xf32> to vector<32x32xf32>
    %cst_37 = arith.constant dense<0.000000e+00> : vector<32x1024xf32>
    %59 = tpu.matmul %58, %56, %cst_37 {dimension_numbers = #tpu.dot_dimension_numbers<[1], [0], [0], [1], [0, 0, 1, 1], [], []>} : vector<32x32xf32>, vector<32x1024xf32>, vector<32x1024xf32> -> vector<32x1024xf32>
    %c2 = arith.constant 2 : index
    %c0_38 = arith.constant 0 : index
    %c0_39 = arith.constant 0 : index
    %60 = vector.load %arg5[%c2, %c0_38, %c0_39] : memref<5x32x1xf32, #tpu.memory_space<vmem>>, vector<1x32x1xf32>
    %61 = vector.shape_cast %60 : vector<1x32x1xf32> to vector<32x1xf32>
    %62 = vector.broadcast %61 : vector<32x1xf32> to vector<32x1024xf32>
    %63 = arith.addf %59, %62 : vector<32x1024xf32>
    %64 = vector.extract_strided_slice %22 {offsets = [32, 0], sizes = [32, 1024], strides = [1, 1]} : vector<64x1024xf32> to vector<32x1024xf32>
    %65 = arith.addf %63, %64 : vector<32x1024xf32>
    %cst_40 = arith.constant 1.000000e+02 : f32
    %66 = vector.broadcast %cst_40 : f32 to vector<32x1024xf32>
    %67 = arith.mulf %65, %66 : vector<32x1024xf32>
    %cst_41 = arith.constant 2.000000e+01 : f32
    %68 = vector.broadcast %cst_41 : f32 to vector<32x1024xf32>
    %69 = arith.minimumf %67, %68 : vector<32x1024xf32>
    %70 = math.exp %69 : vector<32x1024xf32>
    %71 = math.log1p %70 : vector<32x1024xf32>
    %cst_42 = arith.constant 0.00999999977 : f32
    %72 = vector.broadcast %cst_42 : f32 to vector<32x1024xf32>
    %73 = arith.mulf %71, %72 : vector<32x1024xf32>
    %cst_43 = arith.constant 2.000000e+01 : f32
    %74 = vector.broadcast %cst_43 : f32 to vector<32x1024xf32>
    %75 = arith.cmpf ogt, %67, %74 : vector<32x1024xf32>
    %76 = arith.select %75, %65, %73 : vector<32x1024xi1>, vector<32x1024xf32>
    %c2_44 = arith.constant 2 : index
    %c0_45 = arith.constant 0 : index
    %c0_46 = arith.constant 0 : index
    %77 = vector.load %arg3[%c2_44, %c0_45, %c0_46] : memref<3x32x32xf32, #tpu.memory_space<vmem>>, vector<1x32x32xf32>
    %78 = vector.shape_cast %77 : vector<1x32x32xf32> to vector<32x32xf32>
    %cst_47 = arith.constant dense<0.000000e+00> : vector<32x1024xf32>
    %79 = tpu.matmul %78, %76, %cst_47 {dimension_numbers = #tpu.dot_dimension_numbers<[1], [0], [0], [1], [0, 0, 1, 1], [], []>} : vector<32x32xf32>, vector<32x1024xf32>, vector<32x1024xf32> -> vector<32x1024xf32>
    %c3 = arith.constant 3 : index
    %c0_48 = arith.constant 0 : index
    %c0_49 = arith.constant 0 : index
    %80 = vector.load %arg5[%c3, %c0_48, %c0_49] : memref<5x32x1xf32, #tpu.memory_space<vmem>>, vector<1x32x1xf32>
    %81 = vector.shape_cast %80 : vector<1x32x1xf32> to vector<32x1xf32>
    %82 = vector.broadcast %81 : vector<32x1xf32> to vector<32x1024xf32>
    %83 = arith.addf %79, %82 : vector<32x1024xf32>
    %cst_50 = arith.constant 1.000000e+02 : f32
    %84 = vector.broadcast %cst_50 : f32 to vector<32x1024xf32>
    %85 = arith.mulf %83, %84 : vector<32x1024xf32>
    %cst_51 = arith.constant 2.000000e+01 : f32
    %86 = vector.broadcast %cst_51 : f32 to vector<32x1024xf32>
    %87 = arith.minimumf %85, %86 : vector<32x1024xf32>
    %88 = math.exp %87 : vector<32x1024xf32>
    %89 = math.log1p %88 : vector<32x1024xf32>
    %cst_52 = arith.constant 0.00999999977 : f32
    %90 = vector.broadcast %cst_52 : f32 to vector<32x1024xf32>
    %91 = arith.mulf %89, %90 : vector<32x1024xf32>
    %cst_53 = arith.constant 2.000000e+01 : f32
    %92 = vector.broadcast %cst_53 : f32 to vector<32x1024xf32>
    %93 = arith.cmpf ogt, %85, %92 : vector<32x1024xf32>
    %94 = arith.select %93, %83, %91 : vector<32x1024xi1>, vector<32x1024xf32>
    %c0_54 = arith.constant 0 : index
    %c0_55 = arith.constant 0 : index
    %95 = vector.load %arg4[%c0_54, %c0_55] : memref<16x32xf32, #tpu.memory_space<vmem>>, vector<16x32xf32>
    %cst_56 = arith.constant dense<0.000000e+00> : vector<16x1024xf32>
    %96 = tpu.matmul %95, %94, %cst_56 {dimension_numbers = #tpu.dot_dimension_numbers<[1], [0], [0], [1], [0, 0, 1, 1], [], []>} : vector<16x32xf32>, vector<32x1024xf32>, vector<16x1024xf32> -> vector<16x1024xf32>
    %c4 = arith.constant 4 : index
    %c0_57 = arith.constant 0 : index
    %c0_58 = arith.constant 0 : index
    %97 = vector.load %arg5[%c4, %c0_57, %c0_58] : memref<5x32x1xf32, #tpu.memory_space<vmem>>, vector<1x32x1xf32>
    %98 = vector.shape_cast %97 : vector<1x32x1xf32> to vector<32x1xf32>
    %99 = vector.extract_strided_slice %98 {offsets = [0, 0], sizes = [16, 1], strides = [1, 1]} : vector<32x1xf32> to vector<16x1xf32>
    %100 = vector.broadcast %99 : vector<16x1xf32> to vector<16x1024xf32>
    %101 = arith.addf %96, %100 : vector<16x1024xf32>
    %102 = vector.extract_strided_slice %101 {offsets = [0, 0], sizes = [8, 1024], strides = [1, 1]} : vector<16x1024xf32> to vector<8x1024xf32>
    %c0_59 = arith.constant 0 : index
    %c0_60 = arith.constant 0 : index
    %103 = vector.load %arg6[%c0_59, %c0_60] : memref<8x1024xf32, #tpu.memory_space<vmem>>, vector<8x1024xf32>
    tpu.vector_store %arg6[%c0_59, %c0_60], %102 {strides = array<i32>} : memref<8x1024xf32, #tpu.memory_space<vmem>>, vector<8x1024xf32>,
    return
  }
  func.func @transform_0(%arg0: i32) -> (i32, i32) {
    %c0_i32 = arith.constant 0 : i32
    %c0_i32_0 = arith.constant 0 : i32
    return %c0_i32, %arg0 : i32, i32
  }
  func.func @transform_1(%arg0: i32) -> (i32, i32) {
    %c0_i32 = arith.constant 0 : i32
    %c0_i32_0 = arith.constant 0 : i32
    %c0_i32_1 = arith.constant 0 : i32
    return %c0_i32, %c0_i32_0 : i32, i32
  }
  func.func @transform_2(%arg0: i32) -> (i32, i32, i32) {
    %c0_i32 = arith.constant 0 : i32
    %c0_i32_0 = arith.constant 0 : i32
    %c0_i32_1 = arith.constant 0 : i32
    %c0_i32_2 = arith.constant 0 : i32
    return %c0_i32, %c0_i32_0, %c0_i32_1 : i32, i32, i32
  }
  func.func @transform_3(%arg0: i32) -> (i32, i32) {
    %c0_i32 = arith.constant 0 : i32
    %c0_i32_0 = arith.constant 0 : i32
    %c0_i32_1 = arith.constant 0 : i32
    return %c0_i32, %c0_i32_0 : i32, i32
  }
  func.func @transform_4(%arg0: i32) -> (i32, i32, i32) {
    %c0_i32 = arith.constant 0 : i32
    %c0_i32_0 = arith.constant 0 : i32
    %c0_i32_1 = arith.constant 0 : i32
    %c0_i32_2 = arith.constant 0 : i32
    return %c0_i32, %c0_i32_0, %c0_i32_1 : i32, i32, i32
  }
  func.func @transform_5(%arg0: i32) -> (i32, i32) {
    %c0_i32 = arith.constant 0 : i32
    %c0_i32_0 = arith.constant 0 : i32
    return %c0_i32, %arg0 : i32, i32
  }
}

</mosaic_0001>

<llo_original>
// kernel: implicit_network_forward_fm.1
$region0: #{implicit_network_forward_fm.1}
  #allocation0 [shape = 'u32[]', space=smem, size = 0x4, offset = 0x4, fixed_abs, tag = 'smem constant byte address 0x4 - core index']
  #allocation1 [shape = 'u32[144,128]{1,0:T(1,128)}', space=vmem, size = 0x12000, scoped, tag = 'internal scratch']
  #allocation2 [shape = 'f32[48,1024]{1,0:T(8,128)}', space=vmem, size = 0x30000, scoped, tag = 'scratch operand']
  %s0 = inlined_call_operand.vmem [shape: f32[8,4096], index: 0, kind: input, shape index: {}]
  %s1 = inlined_call_operand.vmem [shape: f32[64,48], index: 1, kind: input, shape index: {}]
  %s2 = inlined_call_operand.vmem [shape: f32[3,32,32], index: 2, kind: input, shape index: {}]
  %s3 = inlined_call_operand.vmem [shape: f32[16,32], index: 3, kind: input, shape index: {}]
  %s4 = inlined_call_operand.vmem [shape: f32[5,32,1], index: 4, kind: input, shape index: {}]
  %s5 = inlined_call_operand.hbm [shape: f32[8,4096], index: 5, kind: output, shape index: {}]
  %s6 = sld [smem:[#allocation0]]
  $region53: #{implicit_network_forward_fm.1} parent=0
    _
  %s8 = ssub.s32 1, %s6
  %s9 = scalar_select 0, %s8, %s6
  $region1: #{implicit_network_forward_fm.1} parent=0
    #allocation3 [shape = 'u8[65536]{0}', space=vmem, size = 0x10000, scoped, tag = 'output window, operand 0']
    #allocation4 [shape = 's32[2]{0}', space=sflag, size = 0x8, scoped, tag = 'scoped memory for implicit_network_forward_fm.1']
    %10 = vsyncpa [#allocation4], 0
    %s11 = scalar_lea.sflag [#allocation4], 1
    %12 = vsyncpa %s11, 0
    loop: start=0, step=1, limit=6
    $region2: #{implicit_network_forward_fm.1} parent=1 // loop_pre_header
      _
    $region3: #{implicit_network_forward_fm.1} parent=1 // loop_header
      %s14 = sphi 0, %s18
      %p15 = scmp.ge.s32.totalorder %s14, 6
      %s24 = sphi 0, %s26
      %s27 = sphi 0, %s24
      %s28 = sphi 0, %s27
      %s44 = sphi 0, %s28
      %s48 = sphi 0, %s48
      %s50 = sphi 0, %s48
      %s51 = sphi 0, %s50
      %s65 = sphi 0, %s51
      %s69 = sphi 0, %s69
      %s71 = sphi 0, %s69
      %s72 = sphi 0, %s71
      %s86 = sphi 0, %s72
      %s90 = sphi 0, %s90
      %s92 = sphi 0, %s90
      %s93 = sphi 0, %s92
      %s107 = sphi 0, %s93
      %s111 = sphi 0, %s111
      %s113 = sphi 0, %s111
      %s114 = sphi 0, %s113
      %s128 = sphi 0, %s114
      %s134 = sphi 0, %s136
      %s137 = sphi 0, %s134
      %s138 = sphi 0, %s137
      %s154 = sphi 0, %s138
    $region4: #{implicit_network_forward_fm.1} parent=1 // loop_header_branch
      %17 = sbr.rel (%p15) target = $region8
    $region5: #{implicit_network_forward_fm.1} parent=1 // loop_body
      %s19 = ssub.s32 %s14, 1
      %s20 = ssub.s32 %s14, 2
      %s21 = sadd.s32 %s14, 1
      %s22 = ssub.s32 %s14, %s21
      %p23 = scmp.eq.s32.totalorder %s22, 0
      %s25 = sadd.s32 %s24, 1
      %s26 = scalar_select %p23, %s24, %s25
      %p29 = pneg %p23
      %p30 = scmp.eq.s32.totalorder %s14, 3
      %p31 = por %p29, %p30
      %p32 = scmp.ne.s32.totalorder %s24, %s27
      %p33 = scmp.eq.s32.totalorder %s14, 0
      %p34 = por %p32, %p33
      %p35 = scmp.ne.s32.totalorder %s24, %s27
      %p36 = scmp.eq.s32.totalorder %s19, 3
      %p37 = por %p35, %p36
      %p38 = scmp.ne.s32.totalorder %s27, %s28
      %p39 = scmp.eq.s32.totalorder %s19, 0
      %p40 = por %p38, %p39
      %p41 = scmp.ne.s32.totalorder %s27, %s28
      %p42 = scmp.eq.s32.totalorder %s20, 3
      %p43 = por %p41, %p42
      %p45 = scmp.ne.s32.totalorder %s28, %s44
      %p46 = scmp.eq.s32.totalorder %s20, 0
      %p47 = por %p45, %p46
      %s49 = sadd.s32 %s48, 1
      %p52 = scmp.eq.s32.totalorder %s14, 3
      %p53 = scmp.ne.s32.totalorder %s48, %s50
      %p54 = scmp.eq.s32.totalorder %s14, 0
      %p55 = por %p53, %p54
      %p56 = scmp.ne.s32.totalorder %s48, %s50
      %p57 = scmp.eq.s32.totalorder %s19, 3
      %p58 = por %p56, %p57
      %p59 = scmp.ne.s32.totalorder %s50, %s51
      %p60 = scmp.eq.s32.totalorder %s19, 0
      %p61 = por %p59, %p60
      %p62 = scmp.ne.s32.totalorder %s50, %s51
      %p63 = scmp.eq.s32.totalorder %s20, 3
      %p64 = por %p62, %p63
      %p66 = scmp.ne.s32.totalorder %s51, %s65
      %p67 = scmp.eq.s32.totalorder %s20, 0
      %p68 = por %p66, %p67
      %s70 = sadd.s32 %s69, 1
      %p73 = scmp.eq.s32.totalorder %s14, 3
      %p74 = scmp.ne.s32.totalorder %s69, %s71
      %p75 = scmp.eq.s32.totalorder %s14, 0
      %p76 = por %p74, %p75
      %p77 = scmp.ne.s32.totalorder %s69, %s71
      %p78 = scmp.eq.s32.totalorder %s19, 3
      %p79 = por %p77, %p78
      %p80 = scmp.ne.s32.totalorder %s71, %s72
      %p81 = scmp.eq.s32.totalorder %s19, 0
      %p82 = por %p80, %p81
      %p83 = scmp.ne.s32.totalorder %s71, %s72
      %p84 = scmp.eq.s32.totalorder %s20, 3
      %p85 = por %p83, %p84
      %p87 = scmp.ne.s32.totalorder %s72, %s86
      %p88 = scmp.eq.s32.totalorder %s20, 0
      %p89 = por %p87, %p88
      %s91 = sadd.s32 %s90, 1
      %p94 = scmp.eq.s32.totalorder %s14, 3
      %p95 = scmp.ne.s32.totalorder %s90, %s92
      %p96 = scmp.eq.s32.totalorder %s14, 0
      %p97 = por %p95, %p96
      %p98 = scmp.ne.s32.totalorder %s90, %s92
      %p99 = scmp.eq.s32.totalorder %s19, 3
      %p100 = por %p98, %p99
      %p101 = scmp.ne.s32.totalorder %s92, %s93
      %p102 = scmp.eq.s32.totalorder %s19, 0
      %p103 = por %p101, %p102
      %p104 = scmp.ne.s32.totalorder %s92, %s93
      %p105 = scmp.eq.s32.totalorder %s20, 3
      %p106 = por %p104, %p105
      %p108 = scmp.ne.s32.totalorder %s93, %s107
      %p109 = scmp.eq.s32.totalorder %s20, 0
      %p110 = por %p108, %p109
      %s112 = sadd.s32 %s111, 1
      %p115 = scmp.eq.s32.totalorder %s14, 3
      %p116 = scmp.ne.s32.totalorder %s111, %s113
      %p117 = scmp.eq.s32.totalorder %s14, 0
      %p118 = por %p116, %p117
      %p119 = scmp.ne.s32.totalorder %s111, %s113
      %p120 = scmp.eq.s32.totalorder %s19, 3
      %p121 = por %p119, %p120
      %p122 = scmp.ne.s32.totalorder %s113, %s114
      %p123 = scmp.eq.s32.totalorder %s19, 0
      %p124 = por %p122, %p123
      %p125 = scmp.ne.s32.totalorder %s113, %s114
      %p126 = scmp.eq.s32.totalorder %s20, 3
      %p127 = por %p125, %p126
      %p129 = scmp.ne.s32.totalorder %s114, %s128
      %p130 = scmp.eq.s32.totalorder %s20, 0
      %p131 = por %p129, %p130
      %s132 = ssub.s32 %s14, %s21
      %p133 = scmp.eq.s32.totalorder %s132, 0
      %s135 = sadd.s32 %s134, 1
      %s136 = scalar_select %p133, %s134, %s135
      %p139 = pneg %p133
      %p140 = scmp.eq.s32.totalorder %s14, 3
      %p141 = por %p139, %p140
      %p142 = scmp.ne.s32.totalorder %s134, %s137
      %p143 = scmp.eq.s32.totalorder %s14, 0
      %p144 = por %p142, %p143
      %p145 = scmp.ne.s32.totalorder %s134, %s137
      %p146 = scmp.eq.s32.totalorder %s19, 3
      %p147 = por %p145, %p146
      %p148 = scmp.ne.s32.totalorder %s137, %s138
      %p149 = scmp.eq.s32.totalorder %s19, 0
      %p150 = por %p148, %p149
      %p151 = scmp.ne.s32.totalorder %s137, %s138
      %p152 = scmp.eq.s32.totalorder %s20, 3
      %p153 = por %p151, %p152
      %p155 = scmp.ne.s32.totalorder %s138, %s154
      %p156 = scmp.eq.s32.totalorder %s20, 0
      %p157 = por %p155, %p156
      %p158 = scmp.le.s32.totalorder 1, %s14
      %p159 = scmp.lt.s32.totalorder %s14, 5
      %p160 = pnand %p158, %p159
      %p161 = pneg %p160
      // Predicated region
      $region9: #{implicit_network_forward_fm.1} parent=5 // pred_check
        _
      $region10: #{implicit_network_forward_fm.1} parent=5 // pred_check_branch
        %163 = sbr.rel (%p160) target = $region12
      $region11: #{implicit_network_forward_fm.1} parent=5 // pred_region
        %s164 = ssub.s32 %s14, 1
        // Predicated region
        $region13: #{implicit_network_forward_fm.1} parent=11 // pred_check
          %p165 = pneg %p61
        $region14: #{implicit_network_forward_fm.1} parent=11 // pred_check_branch
          %167 = sbr.rel (%p165) target = $region16
        $region15: #{implicit_network_forward_fm.1} parent=11 // pred_region
          _
        $region16: #{implicit_network_forward_fm.1} parent=11 // pred_fallthru
          _
        // Predicated region
        $region17: #{implicit_network_forward_fm.1} parent=11 // pred_check
          %p168 = pneg %p82
        $region18: #{implicit_network_forward_fm.1} parent=11 // pred_check_branch
          %170 = sbr.rel (%p168) target = $region20
        $region19: #{implicit_network_forward_fm.1} parent=11 // pred_region
          _
        $region20: #{implicit_network_forward_fm.1} parent=11 // pred_fallthru
          _
        // Predicated region
        $region21: #{implicit_network_forward_fm.1} parent=11 // pred_check
          %p171 = pneg %p103
        $region22: #{implicit_network_forward_fm.1} parent=11 // pred_check_branch
          %173 = sbr.rel (%p171) target = $region24
        $region23: #{implicit_network_forward_fm.1} parent=11 // pred_region
          _
        $region24: #{implicit_network_forward_fm.1} parent=11 // pred_fallthru
          _
        // Predicated region
        $region25: #{implicit_network_forward_fm.1} parent=11 // pred_check
          %p174 = pneg %p124
        $region26: #{implicit_network_forward_fm.1} parent=11 // pred_check_branch
          %176 = sbr.rel (%p174) target = $region28
        $region27: #{implicit_network_forward_fm.1} parent=11 // pred_region
          _
        $region28: #{implicit_network_forward_fm.1} parent=11 // pred_fallthru
          _
      $region12: #{implicit_network_forward_fm.1} parent=5 // pred_fallthru
        _
      %p177 = scmp.lt.s32.totalorder %s14, 4
      // Predicated region
      $region29: #{implicit_network_forward_fm.1} parent=5 // pred_check
        %p178 = pneg %p177
      $region30: #{implicit_network_forward_fm.1} parent=5 // pred_check_branch
        %180 = sbr.rel (%p178) target = $region32
      $region31: #{implicit_network_forward_fm.1} parent=5 // pred_region
        // Predicated region
        $region33: #{implicit_network_forward_fm.1} parent=31 // pred_check
          %p181 = pneg %p34
        $region34: #{implicit_network_forward_fm.1} parent=31 // pred_check_branch
          %183 = sbr.rel (%p181) target = $region36
        $region35: #{implicit_network_forward_fm.1} parent=31 // pred_region
          %s184 = smul.u32 8, %s14
          %p185 = scmp.lt.s32.totalorder %s184, 31
          %s186 = scalar_select %p185, %s184, 31
          %s187 = smul.addr %s186, 8
          %s188 = scalar_lea.vmem %s0, %s187
          %s189 = smul.u32 8, %s14
        $region36: #{implicit_network_forward_fm.1} parent=31 // pred_fallthru
          _
      $region32: #{implicit_network_forward_fm.1} parent=5 // pred_fallthru
        _
      %p190 = scmp.le.s32.totalorder 1, %s14
      %p191 = scmp.lt.s32.totalorder %s14, 5
      %p192 = pnand %p190, %p191
      %p193 = pneg %p192
      // Predicated region
      $region37: #{implicit_network_forward_fm.1} parent=5 // pred_check
        _
      $region38: #{implicit_network_forward_fm.1} parent=5 // pred_check_branch
        %195 = sbr.rel (%p192) target = $region40
      $region39: #{implicit_network_forward_fm.1} parent=5 // pred_region
        %s196 = ssub.s32 %s14, 1
        %s197 = smul.u32 8, %s19
        %p198 = scmp.lt.s32.totalorder %s197, 31
        %s199 = scalar_select %p198, %s197, 31
        %s200 = smul.addr %s199, 8
        %s201 = scalar_lea.vmem %s0, %s200
        %p202 = pneg %p40
        %p203 = pneg %p37
        %p204 = pneg %p61
        %p205 = pneg %p58
        %p206 = pneg %p82
        %p207 = pneg %p79
        %p208 = pneg %p103
        %p209 = pneg %p100
        %p210 = pneg %p124
        %p211 = pneg %p121
        %p212 = pneg %p150
        %p213 = pneg %p147
        %s214 = sand.u32 %s137, 1
        %s215 = scalar_lea.sflag [#allocation4], %s214
        %s216 = sand.u32 %s137, 1
        %s217 = smul.addr %s216, 64
        %s218 = scalar_lea.vmem [#allocation3], %s217
        %s219 = smul.u32 8, %s19
        %p220 = scmp.lt.s32.totalorder %s219, 31
        %s221 = scalar_select %p220, %s219, 31
        %s222 = smul.addr %s221, 8
        %s223 = scalar_lea.vmem %s0, %s222
        %s224 = smul.u32 8, %s19
        %s225 = smul.u32 8, %s19
        %v226 = vld [vmem:[%s223] sm:$0xff]
        %v227 = vld [vmem:[%s223 + $0x8] sm:$0xff]
        %v228 = vld [vmem:[%s223 + $0x10] sm:$0xff]
        %v229 = vld [vmem:[%s223 + $0x18] sm:$0xff]
        %v230 = vld [vmem:[%s223 + $0x20] sm:$0xff]
        %v231 = vld [vmem:[%s223 + $0x28] sm:$0xff]
        %v232 = vld [vmem:[%s223 + $0x30] sm:$0xff]
        %v233 = vld [vmem:[%s223 + $0x38] sm:$0xff]
        %v234 = vand.u32 2147483647, %v226
        %vm235 = vcmp.le.f32.partialorder %v234, 0.7853982
        %vm236 = vcmp.lt.s32.totalorder %v226, 0
        %v237 = vand.u32 %v226, 2139095040
        %v238 = vshrl.u32 %v237, 23
        %v239 = vsub.s32 %v238, 127
        %v240 = vand.u32 2147483647, %v226
        %v241 = vand.u32 %v240, 8388607
        %v242 = vor.u32 %v241, 8388608
        %v243 = vsub.s32 0, %v242
        %v244 = vadd.s32 %v239, 1
        %vm245 = vcmp.gt.s32.totalorder %v244, 0
        %v246 = vsel %vm245, %v244, 0
        %v247 = vshrl.u32 %v246, 5
        %v248 = vand.u32 %v246, 31
        %v249 = vsub.s32 32, %v248
        %v250 = vshrl.u32 683565275, %v249
        %v251 = vshll.u32 683565275, %v248
        %v252 = vshrl.u32 2475754826, %v249
        %v253 = vor.u32 %v251, %v252
        %v254 = vshll.u32 2475754826, %v248
        %v255 = vshrl.u32 2131351028, %v249
        %v256 = vor.u32 %v254, %v255
        %v257 = vshll.u32 2131351028, %v248
        %v258 = vshrl.u32 2102212464, %v249
        %v259 = vor.u32 %v257, %v258
        %v260 = vshll.u32 2102212464, %v248
        %v261 = vshrl.u32 920167782, %v249
        %v262 = vor.u32 %v260, %v261
        %v263 = vshll.u32 920167782, %v248
        %v264 = vshrl.u32 1326507024, %v249
        %v265 = vor.u32 %v263, %v264
        %vm266 = vcmp.lt.s32.totalorder %v247, 1
        %vm267 = vcmp.lt.s32.totalorder %v247, 2
        %vm268 = vcmp.lt.s32.totalorder %v247, 3
        %vm269 = vcmp.lt.s32.totalorder %v247, 4
        %v270 = vsel %vm266, %v250, %v253
        %v271 = vsel %vm269, %v259, 2102212464
        %v272 = vsel %vm268, %v256, %v271
        %v273 = vsel %vm267, %v270, %v272
        %v274 = vsel %vm266, %v253, %v256
        %v275 = vsel %vm269, %v262, 920167782
        %v276 = vsel %vm268, %v259, %v275
        %v277 = vsel %vm267, %v274, %v276
        %v278 = vsel %vm266, %v256, %v259
        %v279 = vsel %vm269, %v265, 1326507024
        %v280 = vsel %vm268, %v262, %v279
        %v281 = vsel %vm267, %v278, %v280
        %v282 = vshll.u32 %v242, 8
        %v283 = vmul.u32.u64.compose %v282, %v281
        %v284 = vextract.low.u32 %v283
        %v285 = vextract.high.u32 %v283
        %v286 = vmul.u32.u64.compose %v282, %v277
        %v287 = vextract.low.u32 %v286
        %v288 = vextract.high.u32 %v286
        %v289 = vmul.u32 %v282, %v273
        %v290 = vadd.s32 %v285, %v287
        %vm291 = vc.u32 %v285, %v287
        %v292 = vadd.s32 %v288, 1
        %v293 = vsel %vm291, %v292, %v288
        %v294 = vadd.s32 %v289, %v293
        %v295 = vadd.s32 %v294, 536870912
        %v296 = vshrl.u32 %v295, 30
        %v297 = vshll.u32 %v296, 30
        %v298 = vsub.s32 %v294, %v297
        %vm299 = vcmp.lt.s32.totalorder %v298, 0
        %v300 = vsub.s32 0, %v298
        %v301 = vsel %vm299, %v300, %v298
        %v302 = vclz %v301
        %v303 = vsub.s32 %v302, 2
        %vm304 = vcmp.gt.s32.totalorder 0, %v303
        %v305 = vsel %vm304, 0, %v303
        %v306 = vsub.s32 32, %v305
        %v307 = vshll.u32 %v298, %v305
        %v308 = vshrl.u32 %v290, %v306
        %v309 = vor.u32 %v307, %v308
        %v310 = vsub.s32 4294967266, %v305
        %v311 = vadd.s32 %v310, 127
        %v312 = vshll.u32 %v311, 23
        %v313 = vor.u32 4788187, %v312
        %v314 = vand.u32 2147483647, %v313
        %v316 = vcvt.s32.f32 %v309
        %v317 = vmul.f32 %v316, %v314
        %v318 = vxor.u32 %v317, 2147483648
        %v319 = vsel %vm236, %v318, %v317
        %v320 = vsub.s32 4, %v296
        %v321 = vsel %vm236, %v320, %v296
        %v322 = vsel %vm235, %v226, %v319
        %v323 = vsel %vm235, 0, %v321
        %v324 = vcosq.f32.pop %v322
        %v325 = vsinq.f32.pop %v322
        %vm326 = vweird.f32 %v226
        %v327 = vadd.s32 %v323, 3
        %v328 = vand.u32 %v327, 3
        %vm329 = vcmp.lt.s32.totalorder %v328, 2
        %vm330 = vcmp.eq.s32.totalorder %v328, 0
        %v331 = vxor.u32 %v325, 2147483648
        %v332 = vsel %vm330, %v324, %v331
        %vm333 = vcmp.eq.s32.totalorder %v328, 2
        %v334 = vxor.u32 %v324, 2147483648
        %v335 = vsel %vm333, %v334, %v325
        %v336 = vsel %vm329, %v332, %v335
        %v337 = vsel %vm326, nan, %v336
        %v338 = vand.u32 2147483647, %v227
        %vm339 = vcmp.le.f32.partialorder %v338, 0.7853982
        %vm340 = vcmp.lt.s32.totalorder %v227, 0
        %v341 = vand.u32 %v227, 2139095040
        %v342 = vshrl.u32 %v341, 23
        %v343 = vsub.s32 %v342, 127
        %v344 = vand.u32 2147483647, %v227
        %v345 = vand.u32 %v344, 8388607
        %v346 = vor.u32 %v345, 8388608
        %v347 = vsub.s32 0, %v346
        %v348 = vadd.s32 %v343, 1
        %vm349 = vcmp.gt.s32.totalorder %v348, 0
        %v350 = vsel %vm349, %v348, 0
        %v351 = vshrl.u32 %v350, 5
        %v352 = vand.u32 %v350, 31
        %v353 = vsub.s32 32, %v352
        %v354 = vshrl.u32 683565275, %v353
        %v355 = vshll.u32 683565275, %v352
        %v356 = vshrl.u32 2475754826, %v353
        %v357 = vor.u32 %v355, %v356
        %v358 = vshll.u32 2475754826, %v352
        %v359 = vshrl.u32 2131351028, %v353
        %v360 = vor.u32 %v358, %v359
        %v361 = vshll.u32 2131351028, %v352
        %v362 = vshrl.u32 2102212464, %v353
        %v363 = vor.u32 %v361, %v362
        %v364 = vshll.u32 2102212464, %v352
        %v365 = vshrl.u32 920167782, %v353
        %v366 = vor.u32 %v364, %v365
        %v367 = vshll.u32 920167782, %v352
        %v368 = vshrl.u32 1326507024, %v353
        %v369 = vor.u32 %v367, %v368
        %vm370 = vcmp.lt.s32.totalorder %v351, 1
        %vm371 = vcmp.lt.s32.totalorder %v351, 2
        %vm372 = vcmp.lt.s32.totalorder %v351, 3
        %vm373 = vcmp.lt.s32.totalorder %v351, 4
        %v374 = vsel %vm370, %v354, %v357
        %v375 = vsel %vm373, %v363, 2102212464
        %v376 = vsel %vm372, %v360, %v375
        %v377 = vsel %vm371, %v374, %v376
        %v378 = vsel %vm370, %v357, %v360
        %v379 = vsel %vm373, %v366, 920167782
        %v380 = vsel %vm372, %v363, %v379
        %v381 = vsel %vm371, %v378, %v380
        %v382 = vsel %vm370, %v360, %v363
        %v383 = vsel %vm373, %v369, 1326507024
        %v384 = vsel %vm372, %v366, %v383
        %v385 = vsel %vm371, %v382, %v384
        %v386 = vshll.u32 %v346, 8
        %v387 = vmul.u32.u64.compose %v386, %v385
        %v388 = vextract.low.u32 %v387
        %v389 = vextract.high.u32 %v387
        %v390 = vmul.u32.u64.compose %v386, %v381
        %v391 = vextract.low.u32 %v390
        %v392 = vextract.high.u32 %v390
        %v393 = vmul.u32 %v386, %v377
        %v394 = vadd.s32 %v389, %v391
        %vm395 = vc.u32 %v389, %v391
        %v396 = vadd.s32 %v392, 1
        %v397 = vsel %vm395, %v396, %v392
        %v398 = vadd.s32 %v393, %v397
        %v399 = vadd.s32 %v398, 536870912
        %v400 = vshrl.u32 %v399, 30
        %v401 = vshll.u32 %v400, 30
        %v402 = vsub.s32 %v398, %v401
        %vm403 = vcmp.lt.s32.totalorder %v402, 0
        %v404 = vsub.s32 0, %v402
        %v405 = vsel %vm403, %v404, %v402
        %v406 = vclz %v405
        %v407 = vsub.s32 %v406, 2
        %vm408 = vcmp.gt.s32.totalorder 0, %v407
        %v409 = vsel %vm408, 0, %v407
        %v410 = vsub.s32 32, %v409
        %v411 = vshll.u32 %v402, %v409
        %v412 = vshrl.u32 %v394, %v410
        %v413 = vor.u32 %v411, %v412
        %v414 = vsub.s32 4294967266, %v409
        %v415 = vadd.s32 %v414, 127
        %v416 = vshll.u32 %v415, 23
        %v417 = vor.u32 4788187, %v416
        %v418 = vand.u32 2147483647, %v417
        %v420 = vcvt.s32.f32 %v413
        %v421 = vmul.f32 %v420, %v418
        %v422 = vxor.u32 %v421, 2147483648
        %v423 = vsel %vm340, %v422, %v421
        %v424 = vsub.s32 4, %v400
        %v425 = vsel %vm340, %v424, %v400
        %v426 = vsel %vm339, %v227, %v423
        %v427 = vsel %vm339, 0, %v425
        %v428 = vcosq.f32.pop %v426
        %v429 = vsinq.f32.pop %v426
        %vm430 = vweird.f32 %v227
        %v431 = vadd.s32 %v427, 3
        %v432 = vand.u32 %v431, 3
        %vm433 = vcmp.lt.s32.totalorder %v432, 2
        %vm434 = vcmp.eq.s32.totalorder %v432, 0
        %v435 = vxor.u32 %v429, 2147483648
        %v436 = vsel %vm434, %v428, %v435
        %vm437 = vcmp.eq.s32.totalorder %v432, 2
        %v438 = vxor.u32 %v428, 2147483648
        %v439 = vsel %vm437, %v438, %v429
        %v440 = vsel %vm433, %v436, %v439
        %v441 = vsel %vm430, nan, %v440
        %v442 = vand.u32 2147483647, %v228
        %vm443 = vcmp.le.f32.partialorder %v442, 0.7853982
        %vm444 = vcmp.lt.s32.totalorder %v228, 0
        %v445 = vand.u32 %v228, 2139095040
        %v446 = vshrl.u32 %v445, 23
        %v447 = vsub.s32 %v446, 127
        %v448 = vand.u32 2147483647, %v228
        %v449 = vand.u32 %v448, 8388607
        %v450 = vor.u32 %v449, 8388608
        %v451 = vsub.s32 0, %v450
        %v452 = vadd.s32 %v447, 1
        %vm453 = vcmp.gt.s32.totalorder %v452, 0
        %v454 = vsel %vm453, %v452, 0
        %v455 = vshrl.u32 %v454, 5
        %v456 = vand.u32 %v454, 31
        %v457 = vsub.s32 32, %v456
        %v458 = vshrl.u32 683565275, %v457
        %v459 = vshll.u32 683565275, %v456
        %v460 = vshrl.u32 2475754826, %v457
        %v461 = vor.u32 %v459, %v460
        %v462 = vshll.u32 2475754826, %v456
        %v463 = vshrl.u32 2131351028, %v457
        %v464 = vor.u32 %v462, %v463
        %v465 = vshll.u32 2131351028, %v456
        %v466 = vshrl.u32 2102212464, %v457
        %v467 = vor.u32 %v465, %v466
        %v468 = vshll.u32 2102212464, %v456
        %v469 = vshrl.u32 920167782, %v457
        %v470 = vor.u32 %v468, %v469
        %v471 = vshll.u32 920167782, %v456
        %v472 = vshrl.u32 1326507024, %v457
        %v473 = vor.u32 %v471, %v472
        %vm474 = vcmp.lt.s32.totalorder %v455, 1
        %vm475 = vcmp.lt.s32.totalorder %v455, 2
        %vm476 = vcmp.lt.s32.totalorder %v455, 3
        %vm477 = vcmp.lt.s32.totalorder %v455, 4
        %v478 = vsel %vm474, %v458, %v461
        %v479 = vsel %vm477, %v467, 2102212464
        %v480 = vsel %vm476, %v464, %v479
        %v481 = vsel %vm475, %v478, %v480
        %v482 = vsel %vm474, %v461, %v464
        %v483 = vsel %vm477, %v470, 920167782
        %v484 = vsel %vm476, %v467, %v483
        %v485 = vsel %vm475, %v482, %v484
        %v486 = vsel %vm474, %v464, %v467
        %v487 = vsel %vm477, %v473, 1326507024
        %v488 = vsel %vm476, %v470, %v487
        %v489 = vsel %vm475, %v486, %v488
        %v490 = vshll.u32 %v450, 8
        %v491 = vmul.u32.u64.compose %v490, %v489
        %v492 = vextract.low.u32 %v491
        %v493 = vextract.high.u32 %v491
        %v494 = vmul.u32.u64.compose %v490, %v485
        %v495 = vextract.low.u32 %v494
        %v496 = vextract.high.u32 %v494
        %v497 = vmul.u32 %v490, %v481
        %v498 = vadd.s32 %v493, %v495
        %vm499 = vc.u32 %v493, %v495
        %v500 = vadd.s32 %v496, 1
        %v501 = vsel %vm499, %v500, %v496
        %v502 = vadd.s32 %v497, %v501
        %v503 = vadd.s32 %v502, 536870912
        %v504 = vshrl.u32 %v503, 30
        %v505 = vshll.u32 %v504, 30
        %v506 = vsub.s32 %v502, %v505
        %vm507 = vcmp.lt.s32.totalorder %v506, 0
        %v508 = vsub.s32 0, %v506
        %v509 = vsel %vm507, %v508, %v506
        %v510 = vclz %v509
        %v511 = vsub.s32 %v510, 2
        %vm512 = vcmp.gt.s32.totalorder 0, %v511
        %v513 = vsel %vm512, 0, %v511
        %v514 = vsub.s32 32, %v513
        %v515 = vshll.u32 %v506, %v513
        %v516 = vshrl.u32 %v498, %v514
        %v517 = vor.u32 %v515, %v516
        %v518 = vsub.s32 4294967266, %v513
        %v519 = vadd.s32 %v518, 127
        %v520 = vshll.u32 %v519, 23
        %v521 = vor.u32 4788187, %v520
        %v522 = vand.u32 2147483647, %v521
        %v524 = vcvt.s32.f32 %v517
        %v525 = vmul.f32 %v524, %v522
        %v526 = vxor.u32 %v525, 2147483648
        %v527 = vsel %vm444, %v526, %v525
        %v528 = vsub.s32 4, %v504
        %v529 = vsel %vm444, %v528, %v504
        %v530 = vsel %vm443, %v228, %v527
        %v531 = vsel %vm443, 0, %v529
        %v532 = vcosq.f32.pop %v530
        %v533 = vsinq.f32.pop %v530
        %vm534 = vweird.f32 %v228
        %v535 = vadd.s32 %v531, 3
        %v536 = vand.u32 %v535, 3
        %vm537 = vcmp.lt.s32.totalorder %v536, 2
        %vm538 = vcmp.eq.s32.totalorder %v536, 0
        %v539 = vxor.u32 %v533, 2147483648
        %v540 = vsel %vm538, %v532, %v539
        %vm541 = vcmp.eq.s32.totalorder %v536, 2
        %v542 = vxor.u32 %v532, 2147483648
        %v543 = vsel %vm541, %v542, %v533
        %v544 = vsel %vm537, %v540, %v543
        %v545 = vsel %vm534, nan, %v544
        %v546 = vand.u32 2147483647, %v229
        %vm547 = vcmp.le.f32.partialorder %v546, 0.7853982
        %vm548 = vcmp.lt.s32.totalorder %v229, 0
        %v549 = vand.u32 %v229, 2139095040
        %v550 = vshrl.u32 %v549, 23
        %v551 = vsub.s32 %v550, 127
        %v552 = vand.u32 2147483647, %v229
        %v553 = vand.u32 %v552, 8388607
        %v554 = vor.u32 %v553, 8388608
        %v555 = vsub.s32 0, %v554
        %v556 = vadd.s32 %v551, 1
        %vm557 = vcmp.gt.s32.totalorder %v556, 0
        %v558 = vsel %vm557, %v556, 0
        %v559 = vshrl.u32 %v558, 5
        %v560 = vand.u32 %v558, 31
        %v561 = vsub.s32 32, %v560
        %v562 = vshrl.u32 683565275, %v561
        %v563 = vshll.u32 683565275, %v560
        %v564 = vshrl.u32 2475754826, %v561
        %v565 = vor.u32 %v563, %v564
        %v566 = vshll.u32 2475754826, %v560
        %v567 = vshrl.u32 2131351028, %v561
        %v568 = vor.u32 %v566, %v567
        %v569 = vshll.u32 2131351028, %v560
        %v570 = vshrl.u32 2102212464, %v561
        %v571 = vor.u32 %v569, %v570
        %v572 = vshll.u32 2102212464, %v560
        %v573 = vshrl.u32 920167782, %v561
        %v574 = vor.u32 %v572, %v573
        %v575 = vshll.u32 920167782, %v560
        %v576 = vshrl.u32 1326507024, %v561
        %v577 = vor.u32 %v575, %v576
        %vm578 = vcmp.lt.s32.totalorder %v559, 1
        %vm579 = vcmp.lt.s32.totalorder %v559, 2
        %vm580 = vcmp.lt.s32.totalorder %v559, 3
        %vm581 = vcmp.lt.s32.totalorder %v559, 4
        %v582 = vsel %vm578, %v562, %v565
        %v583 = vsel %vm581, %v571, 2102212464
        %v584 = vsel %vm580, %v568, %v583
        %v585 = vsel %vm579, %v582, %v584
        %v586 = vsel %vm578, %v565, %v568
        %v587 = vsel %vm581, %v574, 920167782
        %v588 = vsel %vm580, %v571, %v587
        %v589 = vsel %vm579, %v586, %v588
        %v590 = vsel %vm578, %v568, %v571
        %v591 = vsel %vm581, %v577, 1326507024
        %v592 = vsel %vm580, %v574, %v591
        %v593 = vsel %vm579, %v590, %v592
        %v594 = vshll.u32 %v554, 8
        %v595 = vmul.u32.u64.compose %v594, %v593
        %v596 = vextract.low.u32 %v595
        %v597 = vextract.high.u32 %v595
        %v598 = vmul.u32.u64.compose %v594, %v589
        %v599 = vextract.low.u32 %v598
        %v600 = vextract.high.u32 %v598
        %v601 = vmul.u32 %v594, %v585
        %v602 = vadd.s32 %v597, %v599
        %vm603 = vc.u32 %v597, %v599
        %v604 = vadd.s32 %v600, 1
        %v605 = vsel %vm603, %v604, %v600
        %v606 = vadd.s32 %v601, %v605
        %v607 = vadd.s32 %v606, 536870912
        %v608 = vshrl.u32 %v607, 30
        %v609 = vshll.u32 %v608, 30
        %v610 = vsub.s32 %v606, %v609
        %vm611 = vcmp.lt.s32.totalorder %v610, 0
        %v612 = vsub.s32 0, %v610
        %v613 = vsel %vm611, %v612, %v610
        %v614 = vclz %v613
        %v615 = vsub.s32 %v614, 2
        %vm616 = vcmp.gt.s32.totalorder 0, %v615
        %v617 = vsel %vm616, 0, %v615
        %v618 = vsub.s32 32, %v617
        %v619 = vshll.u32 %v610, %v617
        %v620 = vshrl.u32 %v602, %v618
        %v621 = vor.u32 %v619, %v620
        %v622 = vsub.s32 4294967266, %v617
        %v623 = vadd.s32 %v622, 127
        %v624 = vshll.u32 %v623, 23
        %v625 = vor.u32 4788187, %v624
        %v626 = vand.u32 2147483647, %v625
        %v628 = vcvt.s32.f32 %v621
        %v629 = vmul.f32 %v628, %v626
        %v630 = vxor.u32 %v629, 2147483648
        %v631 = vsel %vm548, %v630, %v629
        %v632 = vsub.s32 4, %v608
        %v633 = vsel %vm548, %v632, %v608
        %v634 = vsel %vm547, %v229, %v631
        %v635 = vsel %vm547, 0, %v633
        %v636 = vcosq.f32.pop %v634
        %v637 = vsinq.f32.pop %v634
        %vm638 = vweird.f32 %v229
        %v639 = vadd.s32 %v635, 3
        %v640 = vand.u32 %v639, 3
        %vm641 = vcmp.lt.s32.totalorder %v640, 2
        %vm642 = vcmp.eq.s32.totalorder %v640, 0
        %v643 = vxor.u32 %v637, 2147483648
        %v644 = vsel %vm642, %v636, %v643
        %vm645 = vcmp.eq.s32.totalorder %v640, 2
        %v646 = vxor.u32 %v636, 2147483648
        %v647 = vsel %vm645, %v646, %v637
        %v648 = vsel %vm641, %v644, %v647
        %v649 = vsel %vm638, nan, %v648
        %v650 = vand.u32 2147483647, %v230
        %vm651 = vcmp.le.f32.partialorder %v650, 0.7853982
        %vm652 = vcmp.lt.s32.totalorder %v230, 0
        %v653 = vand.u32 %v230, 2139095040
        %v654 = vshrl.u32 %v653, 23
        %v655 = vsub.s32 %v654, 127
        %v656 = vand.u32 2147483647, %v230
        %v657 = vand.u32 %v656, 8388607
        %v658 = vor.u32 %v657, 8388608
        %v659 = vsub.s32 0, %v658
        %v660 = vadd.s32 %v655, 1
        %vm661 = vcmp.gt.s32.totalorder %v660, 0
        %v662 = vsel %vm661, %v660, 0
        %v663 = vshrl.u32 %v662, 5
        %v664 = vand.u32 %v662, 31
        %v665 = vsub.s32 32, %v664
        %v666 = vshrl.u32 683565275, %v665
        %v667 = vshll.u32 683565275, %v664
        %v668 = vshrl.u32 2475754826, %v665
        %v669 = vor.u32 %v667, %v668
        %v670 = vshll.u32 2475754826, %v664
        %v671 = vshrl.u32 2131351028, %v665
        %v672 = vor.u32 %v670, %v671
        %v673 = vshll.u32 2131351028, %v664
        %v674 = vshrl.u32 2102212464, %v665
        %v675 = vor.u32 %v673, %v674
        %v676 = vshll.u32 2102212464, %v664
        %v677 = vshrl.u32 920167782, %v665
        %v678 = vor.u32 %v676, %v677
        %v679 = vshll.u32 920167782, %v664
        %v680 = vshrl.u32 1326507024, %v665
        %v681 = vor.u32 %v679, %v680
        %vm682 = vcmp.lt.s32.totalorder %v663, 1
        %vm683 = vcmp.lt.s32.totalorder %v663, 2
        %vm684 = vcmp.lt.s32.totalorder %v663, 3
        %vm685 = vcmp.lt.s32.totalorder %v663, 4
        %v686 = vsel %vm682, %v666, %v669
        %v687 = vsel %vm685, %v675, 2102212464
        %v688 = vsel %vm684, %v672, %v687
        %v689 = vsel %vm683, %v686, %v688
        %v690 = vsel %vm682, %v669, %v672
        %v691 = vsel %vm685, %v678, 920167782
        %v692 = vsel %vm684, %v675, %v691
        %v693 = vsel %vm683, %v690, %v692
        %v694 = vsel %vm682, %v672, %v675
        %v695 = vsel %vm685, %v681, 1326507024
        %v696 = vsel %vm684, %v678, %v695
        %v697 = vsel %vm683, %v694, %v696
        %v698 = vshll.u32 %v658, 8
        %v699 = vmul.u32.u64.compose %v698, %v697
        %v700 = vextract.low.u32 %v699
        %v701 = vextract.high.u32 %v699
        %v702 = vmul.u32.u64.compose %v698, %v693
        %v703 = vextract.low.u32 %v702
        %v704 = vextract.high.u32 %v702
        %v705 = vmul.u32 %v698, %v689
        %v706 = vadd.s32 %v701, %v703
        %vm707 = vc.u32 %v701, %v703
        %v708 = vadd.s32 %v704, 1
        %v709 = vsel %vm707, %v708, %v704
        %v710 = vadd.s32 %v705, %v709
        %v711 = vadd.s32 %v710, 536870912
        %v712 = vshrl.u32 %v711, 30
        %v713 = vshll.u32 %v712, 30
        %v714 = vsub.s32 %v710, %v713
        %vm715 = vcmp.lt.s32.totalorder %v714, 0
        %v716 = vsub.s32 0, %v714
        %v717 = vsel %vm715, %v716, %v714
        %v718 = vclz %v717
        %v719 = vsub.s32 %v718, 2
        %vm720 = vcmp.gt.s32.totalorder 0, %v719
        %v721 = vsel %vm720, 0, %v719
        %v722 = vsub.s32 32, %v721
        %v723 = vshll.u32 %v714, %v721
        %v724 = vshrl.u32 %v706, %v722
        %v725 = vor.u32 %v723, %v724
        %v726 = vsub.s32 4294967266, %v721
        %v727 = vadd.s32 %v726, 127
        %v728 = vshll.u32 %v727, 23
        %v729 = vor.u32 4788187, %v728
        %v730 = vand.u32 2147483647, %v729
        %v732 = vcvt.s32.f32 %v725
        %v733 = vmul.f32 %v732, %v730
        %v734 = vxor.u32 %v733, 2147483648
        %v735 = vsel %vm652, %v734, %v733
        %v736 = vsub.s32 4, %v712
        %v737 = vsel %vm652, %v736, %v712
        %v738 = vsel %vm651, %v230, %v735
        %v739 = vsel %vm651, 0, %v737
        %v740 = vcosq.f32.pop %v738
        %v741 = vsinq.f32.pop %v738
        %vm742 = vweird.f32 %v230
        %v743 = vadd.s32 %v739, 3
        %v744 = vand.u32 %v743, 3
        %vm745 = vcmp.lt.s32.totalorder %v744, 2
        %vm746 = vcmp.eq.s32.totalorder %v744, 0
        %v747 = vxor.u32 %v741, 2147483648
        %v748 = vsel %vm746, %v740, %v747
        %vm749 = vcmp.eq.s32.totalorder %v744, 2
        %v750 = vxor.u32 %v740, 2147483648
        %v751 = vsel %vm749, %v750, %v741
        %v752 = vsel %vm745, %v748, %v751
        %v753 = vsel %vm742, nan, %v752
        %v754 = vand.u32 2147483647, %v231
        %vm755 = vcmp.le.f32.partialorder %v754, 0.7853982
        %vm756 = vcmp.lt.s32.totalorder %v231, 0
        %v757 = vand.u32 %v231, 2139095040
        %v758 = vshrl.u32 %v757, 23
        %v759 = vsub.s32 %v758, 127
        %v760 = vand.u32 2147483647, %v231
        %v761 = vand.u32 %v760, 8388607
        %v762 = vor.u32 %v761, 8388608
        %v763 = vsub.s32 0, %v762
        %v764 = vadd.s32 %v759, 1
        %vm765 = vcmp.gt.s32.totalorder %v764, 0
        %v766 = vsel %vm765, %v764, 0
        %v767 = vshrl.u32 %v766, 5
        %v768 = vand.u32 %v766, 31
        %v769 = vsub.s32 32, %v768
        %v770 = vshrl.u32 683565275, %v769
        %v771 = vshll.u32 683565275, %v768
        %v772 = vshrl.u32 2475754826, %v769
        %v773 = vor.u32 %v771, %v772
        %v774 = vshll.u32 2475754826, %v768
        %v775 = vshrl.u32 2131351028, %v769
        %v776 = vor.u32 %v774, %v775
        %v777 = vshll.u32 2131351028, %v768
        %v778 = vshrl.u32 2102212464, %v769
        %v779 = vor.u32 %v777, %v778
        %v780 = vshll.u32 2102212464, %v768
        %v781 = vshrl.u32 920167782, %v769
        %v782 = vor.u32 %v780, %v781
        %v783 = vshll.u32 920167782, %v768
        %v784 = vshrl.u32 1326507024, %v769
        %v785 = vor.u32 %v783, %v784
        %vm786 = vcmp.lt.s32.totalorder %v767, 1
        %vm787 = vcmp.lt.s32.totalorder %v767, 2
        %vm788 = vcmp.lt.s32.totalorder %v767, 3
        %vm789 = vcmp.lt.s32.totalorder %v767, 4
        %v790 = vsel %vm786, %v770, %v773
        %v791 = vsel %vm789, %v779, 2102212464
        %v792 = vsel %vm788, %v776, %v791
        %v793 = vsel %vm787, %v790, %v792
        %v794 = vsel %vm786, %v773, %v776
        %v795 = vsel %vm789, %v782, 920167782
        %v796 = vsel %vm788, %v779, %v795
        %v797 = vsel %vm787, %v794, %v796
        %v798 = vsel %vm786, %v776, %v779
        %v799 = vsel %vm789, %v785, 1326507024
        %v800 = vsel %vm788, %v782, %v799
        %v801 = vsel %vm787, %v798, %v800
        %v802 = vshll.u32 %v762, 8
        %v803 = vmul.u32.u64.compose %v802, %v801
        %v804 = vextract.low.u32 %v803
        %v805 = vextract.high.u32 %v803
        %v806 = vmul.u32.u64.compose %v802, %v797
        %v807 = vextract.low.u32 %v806
        %v808 = vextract.high.u32 %v806
        %v809 = vmul.u32 %v802, %v793
        %v810 = vadd.s32 %v805, %v807
        %vm811 = vc.u32 %v805, %v807
        %v812 = vadd.s32 %v808, 1
        %v813 = vsel %vm811, %v812, %v808
        %v814 = vadd.s32 %v809, %v813
        %v815 = vadd.s32 %v814, 536870912
        %v816 = vshrl.u32 %v815, 30
        %v817 = vshll.u32 %v816, 30
        %v818 = vsub.s32 %v814, %v817
        %vm819 = vcmp.lt.s32.totalorder %v818, 0
        %v820 = vsub.s32 0, %v818
        %v821 = vsel %vm819, %v820, %v818
        %v822 = vclz %v821
        %v823 = vsub.s32 %v822, 2
        %vm824 = vcmp.gt.s32.totalorder 0, %v823
        %v825 = vsel %vm824, 0, %v823
        %v826 = vsub.s32 32, %v825
        %v827 = vshll.u32 %v818, %v825
        %v828 = vshrl.u32 %v810, %v826
        %v829 = vor.u32 %v827, %v828
        %v830 = vsub.s32 4294967266, %v825
        %v831 = vadd.s32 %v830, 127
        %v832 = vshll.u32 %v831, 23
        %v833 = vor.u32 4788187, %v832
        %v834 = vand.u32 2147483647, %v833
        %v836 = vcvt.s32.f32 %v829
        %v837 = vmul.f32 %v836, %v834
        %v838 = vxor.u32 %v837, 2147483648
        %v839 = vsel %vm756, %v838, %v837
        %v840 = vsub.s32 4, %v816
        %v841 = vsel %vm756, %v840, %v816
        %v842 = vsel %vm755, %v231, %v839
        %v843 = vsel %vm755, 0, %v841
        %v844 = vcosq.f32.pop %v842
        %v845 = vsinq.f32.pop %v842
        %vm846 = vweird.f32 %v231
        %v847 = vadd.s32 %v843, 3
        %v848 = vand.u32 %v847, 3
        %vm849 = vcmp.lt.s32.totalorder %v848, 2
        %vm850 = vcmp.eq.s32.totalorder %v848, 0
        %v851 = vxor.u32 %v845, 2147483648
        %v852 = vsel %vm850, %v844, %v851
        %vm853 = vcmp.eq.s32.totalorder %v848, 2
        %v854 = vxor.u32 %v844, 2147483648
        %v855 = vsel %vm853, %v854, %v845
        %v856 = vsel %vm849, %v852, %v855
        %v857 = vsel %vm846, nan, %v856
        %v858 = vand.u32 2147483647, %v232
        %vm859 = vcmp.le.f32.partialorder %v858, 0.7853982
        %vm860 = vcmp.lt.s32.totalorder %v232, 0
        %v861 = vand.u32 %v232, 2139095040
        %v862 = vshrl.u32 %v861, 23
        %v863 = vsub.s32 %v862, 127
        %v864 = vand.u32 2147483647, %v232
        %v865 = vand.u32 %v864, 8388607
        %v866 = vor.u32 %v865, 8388608
        %v867 = vsub.s32 0, %v866
        %v868 = vadd.s32 %v863, 1
        %vm869 = vcmp.gt.s32.totalorder %v868, 0
        %v870 = vsel %vm869, %v868, 0
        %v871 = vshrl.u32 %v870, 5
        %v872 = vand.u32 %v870, 31
        %v873 = vsub.s32 32, %v872
        %v874 = vshrl.u32 683565275, %v873
        %v875 = vshll.u32 683565275, %v872
        %v876 = vshrl.u32 2475754826, %v873
        %v877 = vor.u32 %v875, %v876
        %v878 = vshll.u32 2475754826, %v872
        %v879 = vshrl.u32 2131351028, %v873
        %v880 = vor.u32 %v878, %v879
        %v881 = vshll.u32 2131351028, %v872
        %v882 = vshrl.u32 2102212464, %v873
        %v883 = vor.u32 %v881, %v882
        %v884 = vshll.u32 2102212464, %v872
        %v885 = vshrl.u32 920167782, %v873
        %v886 = vor.u32 %v884, %v885
        %v887 = vshll.u32 920167782, %v872
        %v888 = vshrl.u32 1326507024, %v873
        %v889 = vor.u32 %v887, %v888
        %vm890 = vcmp.lt.s32.totalorder %v871, 1
        %vm891 = vcmp.lt.s32.totalorder %v871, 2
        %vm892 = vcmp.lt.s32.totalorder %v871, 3
        %vm893 = vcmp.lt.s32.totalorder %v871, 4
        %v894 = vsel %vm890, %v874, %v877
        %v895 = vsel %vm893, %v883, 2102212464
        %v896 = vsel %vm892, %v880, %v895
        %v897 = vsel %vm891, %v894, %v896
        %v898 = vsel %vm890, %v877, %v880
        %v899 = vsel %vm893, %v886, 920167782
        %v900 = vsel %vm892, %v883, %v899
        %v901 = vsel %vm891, %v898, %v900
        %v902 = vsel %vm890, %v880, %v883
        %v903 = vsel %vm893, %v889, 1326507024
        %v904 = vsel %vm892, %v886, %v903
        %v905 = vsel %vm891, %v902, %v904
        %v906 = vshll.u32 %v866, 8
        %v907 = vmul.u32.u64.compose %v906, %v905
        %v908 = vextract.low.u32 %v907
        %v909 = vextract.high.u32 %v907
        %v910 = vmul.u32.u64.compose %v906, %v901
        %v911 = vextract.low.u32 %v910
        %v912 = vextract.high.u32 %v910
        %v913 = vmul.u32 %v906, %v897
        %v914 = vadd.s32 %v909, %v911
        %vm915 = vc.u32 %v909, %v911
        %v916 = vadd.s32 %v912, 1
        %v917 = vsel %vm915, %v916, %v912
        %v918 = vadd.s32 %v913, %v917
        %v919 = vadd.s32 %v918, 536870912
        %v920 = vshrl.u32 %v919, 30
        %v921 = vshll.u32 %v920, 30
        %v922 = vsub.s32 %v918, %v921
        %vm923 = vcmp.lt.s32.totalorder %v922, 0
        %v924 = vsub.s32 0, %v922
        %v925 = vsel %vm923, %v924, %v922
        %v926 = vclz %v925
        %v927 = vsub.s32 %v926, 2
        %vm928 = vcmp.gt.s32.totalorder 0, %v927
        %v929 = vsel %vm928, 0, %v927
        %v930 = vsub.s32 32, %v929
        %v931 = vshll.u32 %v922, %v929
        %v932 = vshrl.u32 %v914, %v930
        %v933 = vor.u32 %v931, %v932
        %v934 = vsub.s32 4294967266, %v929
        %v935 = vadd.s32 %v934, 127
        %v936 = vshll.u32 %v935, 23
        %v937 = vor.u32 4788187, %v936
        %v938 = vand.u32 2147483647, %v937
        %v940 = vcvt.s32.f32 %v933
        %v941 = vmul.f32 %v940, %v938
        %v942 = vxor.u32 %v941, 2147483648
        %v943 = vsel %vm860, %v942, %v941
        %v944 = vsub.s32 4, %v920
        %v945 = vsel %vm860, %v944, %v920
        %v946 = vsel %vm859, %v232, %v943
        %v947 = vsel %vm859, 0, %v945
        %v948 = vcosq.f32.pop %v946
        %v949 = vsinq.f32.pop %v946
        %vm950 = vweird.f32 %v232
        %v951 = vadd.s32 %v947, 3
        %v952 = vand.u32 %v951, 3
        %vm953 = vcmp.lt.s32.totalorder %v952, 2
        %vm954 = vcmp.eq.s32.totalorder %v952, 0
        %v955 = vxor.u32 %v949, 2147483648
        %v956 = vsel %vm954, %v948, %v955
        %vm957 = vcmp.eq.s32.totalorder %v952, 2
        %v958 = vxor.u32 %v948, 2147483648
        %v959 = vsel %vm957, %v958, %v949
        %v960 = vsel %vm953, %v956, %v959
        %v961 = vsel %vm950, nan, %v960
        %v962 = vand.u32 2147483647, %v233
        %vm963 = vcmp.le.f32.partialorder %v962, 0.7853982
        %vm964 = vcmp.lt.s32.totalorder %v233, 0
        %v965 = vand.u32 %v233, 2139095040
        %v966 = vshrl.u32 %v965, 23
        %v967 = vsub.s32 %v966, 127
        %v968 = vand.u32 2147483647, %v233
        %v969 = vand.u32 %v968, 8388607
        %v970 = vor.u32 %v969, 8388608
        %v971 = vsub.s32 0, %v970
        %v972 = vadd.s32 %v967, 1
        %vm973 = vcmp.gt.s32.totalorder %v972, 0
        %v974 = vsel %vm973, %v972, 0
        %v975 = vshrl.u32 %v974, 5
        %v976 = vand.u32 %v974, 31
        %v977 = vsub.s32 32, %v976
        %v978 = vshrl.u32 683565275, %v977
        %v979 = vshll.u32 683565275, %v976
        %v980 = vshrl.u32 2475754826, %v977
        %v981 = vor.u32 %v979, %v980
        %v982 = vshll.u32 2475754826, %v976
        %v983 = vshrl.u32 2131351028, %v977
        %v984 = vor.u32 %v982, %v983
        %v985 = vshll.u32 2131351028, %v976
        %v986 = vshrl.u32 2102212464, %v977
        %v987 = vor.u32 %v985, %v986
        %v988 = vshll.u32 2102212464, %v976
        %v989 = vshrl.u32 920167782, %v977
        %v990 = vor.u32 %v988, %v989
        %v991 = vshll.u32 920167782, %v976
        %v992 = vshrl.u32 1326507024, %v977
        %v993 = vor.u32 %v991, %v992
        %vm994 = vcmp.lt.s32.totalorder %v975, 1
        %vm995 = vcmp.lt.s32.totalorder %v975, 2
        %vm996 = vcmp.lt.s32.totalorder %v975, 3
        %vm997 = vcmp.lt.s32.totalorder %v975, 4
        %v998 = vsel %vm994, %v978, %v981
        %v999 = vsel %vm997, %v987, 2102212464
        %v1000 = vsel %vm996, %v984, %v999
        %v1001 = vsel %vm995, %v998, %v1000
        %v1002 = vsel %vm994, %v981, %v984
        %v1003 = vsel %vm997, %v990, 920167782
        %v1004 = vsel %vm996, %v987, %v1003
        %v1005 = vsel %vm995, %v1002, %v1004
        %v1006 = vsel %vm994, %v984, %v987
        %v1007 = vsel %vm997, %v993, 1326507024
        %v1008 = vsel %vm996, %v990, %v1007
        %v1009 = vsel %vm995, %v1006, %v1008
        %v1010 = vshll.u32 %v970, 8
        %v1011 = vmul.u32.u64.compose %v1010, %v1009
        %v1012 = vextract.low.u32 %v1011
        %v1013 = vextract.high.u32 %v1011
        %v1014 = vmul.u32.u64.compose %v1010, %v1005
        %v1015 = vextract.low.u32 %v1014
        %v1016 = vextract.high.u32 %v1014
        %v1017 = vmul.u32 %v1010, %v1001
        %v1018 = vadd.s32 %v1013, %v1015
        %vm1019 = vc.u32 %v1013, %v1015
        %v1020 = vadd.s32 %v1016, 1
        %v1021 = vsel %vm1019, %v1020, %v1016
        %v1022 = vadd.s32 %v1017, %v1021
        %v1023 = vadd.s32 %v1022, 536870912
        %v1024 = vshrl.u32 %v1023, 30
        %v1025 = vshll.u32 %v1024, 30
        %v1026 = vsub.s32 %v1022, %v1025
        %vm1027 = vcmp.lt.s32.totalorder %v1026, 0
        %v1028 = vsub.s32 0, %v1026
        %v1029 = vsel %vm1027, %v1028, %v1026
        %v1030 = vclz %v1029
        %v1031 = vsub.s32 %v1030, 2
        %vm1032 = vcmp.gt.s32.totalorder 0, %v1031
        %v1033 = vsel %vm1032, 0, %v1031
        %v1034 = vsub.s32 32, %v1033
        %v1035 = vshll.u32 %v1026, %v1033
        %v1036 = vshrl.u32 %v1018, %v1034
        %v1037 = vor.u32 %v1035, %v1036
        %v1038 = vsub.s32 4294967266, %v1033
        %v1039 = vadd.s32 %v1038, 127
        %v1040 = vshll.u32 %v1039, 23
        %v1041 = vor.u32 4788187, %v1040
        %v1042 = vand.u32 2147483647, %v1041
        %v1044 = vcvt.s32.f32 %v1037
        %v1045 = vmul.f32 %v1044, %v1042
        %v1046 = vxor.u32 %v1045, 2147483648
        %v1047 = vsel %vm964, %v1046, %v1045
        %v1048 = vsub.s32 4, %v1024
        %v1049 = vsel %vm964, %v1048, %v1024
        %v1050 = vsel %vm963, %v233, %v1047
        %v1051 = vsel %vm963, 0, %v1049
        %v1052 = vcosq.f32.pop %v1050
        %v1053 = vsinq.f32.pop %v1050
        %vm1054 = vweird.f32 %v233
        %v1055 = vadd.s32 %v1051, 3
        %v1056 = vand.u32 %v1055, 3
        %vm1057 = vcmp.lt.s32.totalorder %v1056, 2
        %vm1058 = vcmp.eq.s32.totalorder %v1056, 0
        %v1059 = vxor.u32 %v1053, 2147483648
        %v1060 = vsel %vm1058, %v1052, %v1059
        %vm1061 = vcmp.eq.s32.totalorder %v1056, 2
        %v1062 = vxor.u32 %v1052, 2147483648
        %v1063 = vsel %vm1061, %v1062, %v1053
        %v1064 = vsel %vm1057, %v1060, %v1063
        %v1065 = vsel %vm1054, nan, %v1064
        %v1066 = vand.u32 2147483647, %v226
        %vm1067 = vcmp.le.f32.partialorder %v1066, 0.7853982
        %vm1068 = vcmp.lt.s32.totalorder %v226, 0
        %v1069 = vand.u32 %v226, 2139095040
        %v1070 = vshrl.u32 %v1069, 23
        %v1071 = vsub.s32 %v1070, 127
        %v1072 = vand.u32 2147483647, %v226
        %v1073 = vand.u32 %v1072, 8388607
        %v1074 = vor.u32 %v1073, 8388608
        %v1075 = vsub.s32 0, %v1074
        %v1076 = vadd.s32 %v1071, 1
        %vm1077 = vcmp.gt.s32.totalorder %v1076, 0
        %v1078 = vsel %vm1077, %v1076, 0
        %v1079 = vshrl.u32 %v1078, 5
        %v1080 = vand.u32 %v1078, 31
        %v1081 = vsub.s32 32, %v1080
        %v1082 = vshrl.u32 683565275, %v1081
        %v1083 = vshll.u32 683565275, %v1080
        %v1084 = vshrl.u32 2475754826, %v1081
        %v1085 = vor.u32 %v1083, %v1084
        %v1086 = vshll.u32 2475754826, %v1080
        %v1087 = vshrl.u32 2131351028, %v1081
        %v1088 = vor.u32 %v1086, %v1087
        %v1089 = vshll.u32 2131351028, %v1080
        %v1090 = vshrl.u32 2102212464, %v1081
        %v1091 = vor.u32 %v1089, %v1090
        %v1092 = vshll.u32 2102212464, %v1080
        %v1093 = vshrl.u32 920167782, %v1081
        %v1094 = vor.u32 %v1092, %v1093
        %v1095 = vshll.u32 920167782, %v1080
        %v1096 = vshrl.u32 1326507024, %v1081
        %v1097 = vor.u32 %v1095, %v1096
        %vm1098 = vcmp.lt.s32.totalorder %v1079, 1
        %vm1099 = vcmp.lt.s32.totalorder %v1079, 2
        %vm1100 = vcmp.lt.s32.totalorder %v1079, 3
        %vm1101 = vcmp.lt.s32.totalorder %v1079, 4
        %v1102 = vsel %vm1098, %v1082, %v1085
        %v1103 = vsel %vm1101, %v1091, 2102212464
        %v1104 = vsel %vm1100, %v1088, %v1103
        %v1105 = vsel %vm1099, %v1102, %v1104
        %v1106 = vsel %vm1098, %v1085, %v1088
        %v1107 = vsel %vm1101, %v1094, 920167782
        %v1108 = vsel %vm1100, %v1091, %v1107
        %v1109 = vsel %vm1099, %v1106, %v1108
        %v1110 = vsel %vm1098, %v1088, %v1091
        %v1111 = vsel %vm1101, %v1097, 1326507024
        %v1112 = vsel %vm1100, %v1094, %v1111
        %v1113 = vsel %vm1099, %v1110, %v1112
        %v1114 = vshll.u32 %v1074, 8
        %v1115 = vmul.u32.u64.compose %v1114, %v1113
        %v1116 = vextract.low.u32 %v1115
        %v1117 = vextract.high.u32 %v1115
        %v1118 = vmul.u32.u64.compose %v1114, %v1109
        %v1119 = vextract.low.u32 %v1118
        %v1120 = vextract.high.u32 %v1118
        %v1121 = vmul.u32 %v1114, %v1105
        %v1122 = vadd.s32 %v1117, %v1119
        %vm1123 = vc.u32 %v1117, %v1119
        %v1124 = vadd.s32 %v1120, 1
        %v1125 = vsel %vm1123, %v1124, %v1120
        %v1126 = vadd.s32 %v1121, %v1125
        %v1127 = vadd.s32 %v1126, 536870912
        %v1128 = vshrl.u32 %v1127, 30
        %v1129 = vshll.u32 %v1128, 30
        %v1130 = vsub.s32 %v1126, %v1129
        %vm1131 = vcmp.lt.s32.totalorder %v1130, 0
        %v1132 = vsub.s32 0, %v1130
        %v1133 = vsel %vm1131, %v1132, %v1130
        %v1134 = vclz %v1133
        %v1135 = vsub.s32 %v1134, 2
        %vm1136 = vcmp.gt.s32.totalorder 0, %v1135
        %v1137 = vsel %vm1136, 0, %v1135
        %v1138 = vsub.s32 32, %v1137
        %v1139 = vshll.u32 %v1130, %v1137
        %v1140 = vshrl.u32 %v1122, %v1138
        %v1141 = vor.u32 %v1139, %v1140
        %v1142 = vsub.s32 4294967266, %v1137
        %v1143 = vadd.s32 %v1142, 127
        %v1144 = vshll.u32 %v1143, 23
        %v1145 = vor.u32 4788187, %v1144
        %v1146 = vand.u32 2147483647, %v1145
        %v1148 = vcvt.s32.f32 %v1141
        %v1149 = vmul.f32 %v1148, %v1146
        %v1150 = vxor.u32 %v1149, 2147483648
        %v1151 = vsel %vm1068, %v1150, %v1149
        %v1152 = vsub.s32 4, %v1128
        %v1153 = vsel %vm1068, %v1152, %v1128
        %v1154 = vsel %vm1067, %v226, %v1151
        %v1155 = vsel %vm1067, 0, %v1153
        %v1156 = vcosq.f32.pop %v1154
        %v1157 = vsinq.f32.pop %v1154
        %vm1158 = vweird.f32 %v226
        %v1159 = vand.u32 %v1155, 3
        %vm1160 = vcmp.lt.s32.totalorder %v1159, 2
        %vm1161 = vcmp.eq.s32.totalorder %v1159, 0
        %v1162 = vxor.u32 %v1157, 2147483648
        %v1163 = vsel %vm1161, %v1156, %v1162
        %vm1164 = vcmp.eq.s32.totalorder %v1159, 2
        %v1165 = vxor.u32 %v1156, 2147483648
        %v1166 = vsel %vm1164, %v1165, %v1157
        %v1167 = vsel %vm1160, %v1163, %v1166
        %v1168 = vsel %vm1158, nan, %v1167
        %v1169 = vand.u32 2147483647, %v227
        %vm1170 = vcmp.le.f32.partialorder %v1169, 0.7853982
        %vm1171 = vcmp.lt.s32.totalorder %v227, 0
        %v1172 = vand.u32 %v227, 2139095040
        %v1173 = vshrl.u32 %v1172, 23
        %v1174 = vsub.s32 %v1173, 127
        %v1175 = vand.u32 2147483647, %v227
        %v1176 = vand.u32 %v1175, 8388607
        %v1177 = vor.u32 %v1176, 8388608
        %v1178 = vsub.s32 0, %v1177
        %v1179 = vadd.s32 %v1174, 1
        %vm1180 = vcmp.gt.s32.totalorder %v1179, 0
        %v1181 = vsel %vm1180, %v1179, 0
        %v1182 = vshrl.u32 %v1181, 5
        %v1183 = vand.u32 %v1181, 31
        %v1184 = vsub.s32 32, %v1183
        %v1185 = vshrl.u32 683565275, %v1184
        %v1186 = vshll.u32 683565275, %v1183
        %v1187 = vshrl.u32 2475754826, %v1184
        %v1188 = vor.u32 %v1186, %v1187
        %v1189 = vshll.u32 2475754826, %v1183
        %v1190 = vshrl.u32 2131351028, %v1184
        %v1191 = vor.u32 %v1189, %v1190
        %v1192 = vshll.u32 2131351028, %v1183
        %v1193 = vshrl.u32 2102212464, %v1184
        %v1194 = vor.u32 %v1192, %v1193
        %v1195 = vshll.u32 2102212464, %v1183
        %v1196 = vshrl.u32 920167782, %v1184
        %v1197 = vor.u32 %v1195, %v1196
        %v1198 = vshll.u32 920167782, %v1183
        %v1199 = vshrl.u32 1326507024, %v1184
        %v1200 = vor.u32 %v1198, %v1199
        %vm1201 = vcmp.lt.s32.totalorder %v1182, 1
        %vm1202 = vcmp.lt.s32.totalorder %v1182, 2
        %vm1203 = vcmp.lt.s32.totalorder %v1182, 3
        %vm1204 = vcmp.lt.s32.totalorder %v1182, 4
        %v1205 = vsel %vm1201, %v1185, %v1188
        %v1206 = vsel %vm1204, %v1194, 2102212464
        %v1207 = vsel %vm1203, %v1191, %v1206
        %v1208 = vsel %vm1202, %v1205, %v1207
        %v1209 = vsel %vm1201, %v1188, %v1191
        %v1210 = vsel %vm1204, %v1197, 920167782
        %v1211 = vsel %vm1203, %v1194, %v1210
        %v1212 = vsel %vm1202, %v1209, %v1211
        %v1213 = vsel %vm1201, %v1191, %v1194
        %v1214 = vsel %vm1204, %v1200, 1326507024
        %v1215 = vsel %vm1203, %v1197, %v1214
        %v1216 = vsel %vm1202, %v1213, %v1215
        %v1217 = vshll.u32 %v1177, 8
        %v1218 = vmul.u32.u64.compose %v1217, %v1216
        %v1219 = vextract.low.u32 %v1218
        %v1220 = vextract.high.u32 %v1218
        %v1221 = vmul.u32.u64.compose %v1217, %v1212
        %v1222 = vextract.low.u32 %v1221
        %v1223 = vextract.high.u32 %v1221
        %v1224 = vmul.u32 %v1217, %v1208
        %v1225 = vadd.s32 %v1220, %v1222
        %vm1226 = vc.u32 %v1220, %v1222
        %v1227 = vadd.s32 %v1223, 1
        %v1228 = vsel %vm1226, %v1227, %v1223
        %v1229 = vadd.s32 %v1224, %v1228
        %v1230 = vadd.s32 %v1229, 536870912
        %v1231 = vshrl.u32 %v1230, 30
        %v1232 = vshll.u32 %v1231, 30
        %v1233 = vsub.s32 %v1229, %v1232
        %vm1234 = vcmp.lt.s32.totalorder %v1233, 0
        %v1235 = vsub.s32 0, %v1233
        %v1236 = vsel %vm1234, %v1235, %v1233
        %v1237 = vclz %v1236
        %v1238 = vsub.s32 %v1237, 2
        %vm1239 = vcmp.gt.s32.totalorder 0, %v1238
        %v1240 = vsel %vm1239, 0, %v1238
        %v1241 = vsub.s32 32, %v1240
        %v1242 = vshll.u32 %v1233, %v1240
        %v1243 = vshrl.u32 %v1225, %v1241
        %v1244 = vor.u32 %v1242, %v1243
        %v1245 = vsub.s32 4294967266, %v1240
        %v1246 = vadd.s32 %v1245, 127
        %v1247 = vshll.u32 %v1246, 23
        %v1248 = vor.u32 4788187, %v1247
        %v1249 = vand.u32 2147483647, %v1248
        %v1251 = vcvt.s32.f32 %v1244
        %v1252 = vmul.f32 %v1251, %v1249
        %v1253 = vxor.u32 %v1252, 2147483648
        %v1254 = vsel %vm1171, %v1253, %v1252
        %v1255 = vsub.s32 4, %v1231
        %v1256 = vsel %vm1171, %v1255, %v1231
        %v1257 = vsel %vm1170, %v227, %v1254
        %v1258 = vsel %vm1170, 0, %v1256
        %v1259 = vcosq.f32.pop %v1257
        %v1260 = vsinq.f32.pop %v1257
        %vm1261 = vweird.f32 %v227
        %v1262 = vand.u32 %v1258, 3
        %vm1263 = vcmp.lt.s32.totalorder %v1262, 2
        %vm1264 = vcmp.eq.s32.totalorder %v1262, 0
        %v1265 = vxor.u32 %v1260, 2147483648
        %v1266 = vsel %vm1264, %v1259, %v1265
        %vm1267 = vcmp.eq.s32.totalorder %v1262, 2
        %v1268 = vxor.u32 %v1259, 2147483648
        %v1269 = vsel %vm1267, %v1268, %v1260
        %v1270 = vsel %vm1263, %v1266, %v1269
        %v1271 = vsel %vm1261, nan, %v1270
        %v1272 = vand.u32 2147483647, %v228
        %vm1273 = vcmp.le.f32.partialorder %v1272, 0.7853982
        %vm1274 = vcmp.lt.s32.totalorder %v228, 0
        %v1275 = vand.u32 %v228, 2139095040
        %v1276 = vshrl.u32 %v1275, 23
        %v1277 = vsub.s32 %v1276, 127
        %v1278 = vand.u32 2147483647, %v228
        %v1279 = vand.u32 %v1278, 8388607
        %v1280 = vor.u32 %v1279, 8388608
        %v1281 = vsub.s32 0, %v1280
        %v1282 = vadd.s32 %v1277, 1
        %vm1283 = vcmp.gt.s32.totalorder %v1282, 0
        %v1284 = vsel %vm1283, %v1282, 0
        %v1285 = vshrl.u32 %v1284, 5
        %v1286 = vand.u32 %v1284, 31
        %v1287 = vsub.s32 32, %v1286
        %v1288 = vshrl.u32 683565275, %v1287
        %v1289 = vshll.u32 683565275, %v1286
        %v1290 = vshrl.u32 2475754826, %v1287
        %v1291 = vor.u32 %v1289, %v1290
        %v1292 = vshll.u32 2475754826, %v1286
        %v1293 = vshrl.u32 2131351028, %v1287
        %v1294 = vor.u32 %v1292, %v1293
        %v1295 = vshll.u32 2131351028, %v1286
        %v1296 = vshrl.u32 2102212464, %v1287
        %v1297 = vor.u32 %v1295, %v1296
        %v1298 = vshll.u32 2102212464, %v1286
        %v1299 = vshrl.u32 920167782, %v1287
        %v1300 = vor.u32 %v1298, %v1299
        %v1301 = vshll.u32 920167782, %v1286
        %v1302 = vshrl.u32 1326507024, %v1287
        %v1303 = vor.u32 %v1301, %v1302
        %vm1304 = vcmp.lt.s32.totalorder %v1285, 1
        %vm1305 = vcmp.lt.s32.totalorder %v1285, 2
        %vm1306 = vcmp.lt.s32.totalorder %v1285, 3
        %vm1307 = vcmp.lt.s32.totalorder %v1285, 4
        %v1308 = vsel %vm1304, %v1288, %v1291
        %v1309 = vsel %vm1307, %v1297, 2102212464
        %v1310 = vsel %vm1306, %v1294, %v1309
        %v1311 = vsel %vm1305, %v1308, %v1310
        %v1312 = vsel %vm1304, %v1291, %v1294
        %v1313 = vsel %vm1307, %v1300, 920167782
        %v1314 = vsel %vm1306, %v1297, %v1313
        %v1315 = vsel %vm1305, %v1312, %v1314
        %v1316 = vsel %vm1304, %v1294, %v1297
        %v1317 = vsel %vm1307, %v1303, 1326507024
        %v1318 = vsel %vm1306, %v1300, %v1317
        %v1319 = vsel %vm1305, %v1316, %v1318
        %v1320 = vshll.u32 %v1280, 8
        %v1321 = vmul.u32.u64.compose %v1320, %v1319
        %v1322 = vextract.low.u32 %v1321
        %v1323 = vextract.high.u32 %v1321
        %v1324 = vmul.u32.u64.compose %v1320, %v1315
        %v1325 = vextract.low.u32 %v1324
        %v1326 = vextract.high.u32 %v1324
        %v1327 = vmul.u32 %v1320, %v1311
        %v1328 = vadd.s32 %v1323, %v1325
        %vm1329 = vc.u32 %v1323, %v1325
        %v1330 = vadd.s32 %v1326, 1
        %v1331 = vsel %vm1329, %v1330, %v1326
        %v1332 = vadd.s32 %v1327, %v1331
        %v1333 = vadd.s32 %v1332, 536870912
        %v1334 = vshrl.u32 %v1333, 30
        %v1335 = vshll.u32 %v1334, 30
        %v1336 = vsub.s32 %v1332, %v1335
        %vm1337 = vcmp.lt.s32.totalorder %v1336, 0
        %v1338 = vsub.s32 0, %v1336
        %v1339 = vsel %vm1337, %v1338, %v1336
        %v1340 = vclz %v1339
        %v1341 = vsub.s32 %v1340, 2
        %vm1342 = vcmp.gt.s32.totalorder 0, %v1341
        %v1343 = vsel %vm1342, 0, %v1341
        %v1344 = vsub.s32 32, %v1343
        %v1345 = vshll.u32 %v1336, %v1343
        %v1346 = vshrl.u32 %v1328, %v1344
        %v1347 = vor.u32 %v1345, %v1346
        %v1348 = vsub.s32 4294967266, %v1343
        %v1349 = vadd.s32 %v1348, 127
        %v1350 = vshll.u32 %v1349, 23
        %v1351 = vor.u32 4788187, %v1350
        %v1352 = vand.u32 2147483647, %v1351
        %v1354 = vcvt.s32.f32 %v1347
        %v1355 = vmul.f32 %v1354, %v1352
        %v1356 = vxor.u32 %v1355, 2147483648
        %v1357 = vsel %vm1274, %v1356, %v1355
        %v1358 = vsub.s32 4, %v1334
        %v1359 = vsel %vm1274, %v1358, %v1334
        %v1360 = vsel %vm1273, %v228, %v1357
        %v1361 = vsel %vm1273, 0, %v1359
        %v1362 = vcosq.f32.pop %v1360
        %v1363 = vsinq.f32.pop %v1360
        %vm1364 = vweird.f32 %v228
        %v1365 = vand.u32 %v1361, 3
        %vm1366 = vcmp.lt.s32.totalorder %v1365, 2
        %vm1367 = vcmp.eq.s32.totalorder %v1365, 0
        %v1368 = vxor.u32 %v1363, 2147483648
        %v1369 = vsel %vm1367, %v1362, %v1368
        %vm1370 = vcmp.eq.s32.totalorder %v1365, 2
        %v1371 = vxor.u32 %v1362, 2147483648
        %v1372 = vsel %vm1370, %v1371, %v1363
        %v1373 = vsel %vm1366, %v1369, %v1372
        %v1374 = vsel %vm1364, nan, %v1373
        %v1375 = vand.u32 2147483647, %v229
        %vm1376 = vcmp.le.f32.partialorder %v1375, 0.7853982
        %vm1377 = vcmp.lt.s32.totalorder %v229, 0
        %v1378 = vand.u32 %v229, 2139095040
        %v1379 = vshrl.u32 %v1378, 23
        %v1380 = vsub.s32 %v1379, 127
        %v1381 = vand.u32 2147483647, %v229
        %v1382 = vand.u32 %v1381, 8388607
        %v1383 = vor.u32 %v1382, 8388608
        %v1384 = vsub.s32 0, %v1383
        %v1385 = vadd.s32 %v1380, 1
        %vm1386 = vcmp.gt.s32.totalorder %v1385, 0
        %v1387 = vsel %vm1386, %v1385, 0
        %v1388 = vshrl.u32 %v1387, 5
        %v1389 = vand.u32 %v1387, 31
        %v1390 = vsub.s32 32, %v1389
        %v1391 = vshrl.u32 683565275, %v1390
        %v1392 = vshll.u32 683565275, %v1389
        %v1393 = vshrl.u32 2475754826, %v1390
        %v1394 = vor.u32 %v1392, %v1393
        %v1395 = vshll.u32 2475754826, %v1389
        %v1396 = vshrl.u32 2131351028, %v1390
        %v1397 = vor.u32 %v1395, %v1396
        %v1398 = vshll.u32 2131351028, %v1389
        %v1399 = vshrl.u32 2102212464, %v1390
        %v1400 = vor.u32 %v1398, %v1399
        %v1401 = vshll.u32 2102212464, %v1389
        %v1402 = vshrl.u32 920167782, %v1390
        %v1403 = vor.u32 %v1401, %v1402
        %v1404 = vshll.u32 920167782, %v1389
        %v1405 = vshrl.u32 1326507024, %v1390
        %v1406 = vor.u32 %v1404, %v1405
        %vm1407 = vcmp.lt.s32.totalorder %v1388, 1
        %vm1408 = vcmp.lt.s32.totalorder %v1388, 2
        %vm1409 = vcmp.lt.s32.totalorder %v1388, 3
        %vm1410 = vcmp.lt.s32.totalorder %v1388, 4
        %v1411 = vsel %vm1407, %v1391, %v1394
        %v1412 = vsel %vm1410, %v1400, 2102212464
        %v1413 = vsel %vm1409, %v1397, %v1412
        %v1414 = vsel %vm1408, %v1411, %v1413
        %v1415 = vsel %vm1407, %v1394, %v1397
        %v1416 = vsel %vm1410, %v1403, 920167782
        %v1417 = vsel %vm1409, %v1400, %v1416
        %v1418 = vsel %vm1408, %v1415, %v1417
        %v1419 = vsel %vm1407, %v1397, %v1400
        %v1420 = vsel %vm1410, %v1406, 1326507024
        %v1421 = vsel %vm1409, %v1403, %v1420
        %v1422 = vsel %vm1408, %v1419, %v1421
        %v1423 = vshll.u32 %v1383, 8
        %v1424 = vmul.u32.u64.compose %v1423, %v1422
        %v1425 = vextract.low.u32 %v1424
        %v1426 = vextract.high.u32 %v1424
        %v1427 = vmul.u32.u64.compose %v1423, %v1418
        %v1428 = vextract.low.u32 %v1427
        %v1429 = vextract.high.u32 %v1427
        %v1430 = vmul.u32 %v1423, %v1414
        %v1431 = vadd.s32 %v1426, %v1428
        %vm1432 = vc.u32 %v1426, %v1428
        %v1433 = vadd.s32 %v1429, 1
        %v1434 = vsel %vm1432, %v1433, %v1429
        %v1435 = vadd.s32 %v1430, %v1434
        %v1436 = vadd.s32 %v1435, 536870912
        %v1437 = vshrl.u32 %v1436, 30
        %v1438 = vshll.u32 %v1437, 30
        %v1439 = vsub.s32 %v1435, %v1438
        %vm1440 = vcmp.lt.s32.totalorder %v1439, 0
        %v1441 = vsub.s32 0, %v1439
        %v1442 = vsel %vm1440, %v1441, %v1439
        %v1443 = vclz %v1442
        %v1444 = vsub.s32 %v1443, 2
        %vm1445 = vcmp.gt.s32.totalorder 0, %v1444
        %v1446 = vsel %vm1445, 0, %v1444
        %v1447 = vsub.s32 32, %v1446
        %v1448 = vshll.u32 %v1439, %v1446
        %v1449 = vshrl.u32 %v1431, %v1447
        %v1450 = vor.u32 %v1448, %v1449
        %v1451 = vsub.s32 4294967266, %v1446
        %v1452 = vadd.s32 %v1451, 127
        %v1453 = vshll.u32 %v1452, 23
        %v1454 = vor.u32 4788187, %v1453
        %v1455 = vand.u32 2147483647, %v1454
        %v1457 = vcvt.s32.f32 %v1450
        %v1458 = vmul.f32 %v1457, %v1455
        %v1459 = vxor.u32 %v1458, 2147483648
        %v1460 = vsel %vm1377, %v1459, %v1458
        %v1461 = vsub.s32 4, %v1437
        %v1462 = vsel %vm1377, %v1461, %v1437
        %v1463 = vsel %vm1376, %v229, %v1460
        %v1464 = vsel %vm1376, 0, %v1462
        %v1465 = vcosq.f32.pop %v1463
        %v1466 = vsinq.f32.pop %v1463
        %vm1467 = vweird.f32 %v229
        %v1468 = vand.u32 %v1464, 3
        %vm1469 = vcmp.lt.s32.totalorder %v1468, 2
        %vm1470 = vcmp.eq.s32.totalorder %v1468, 0
        %v1471 = vxor.u32 %v1466, 2147483648
        %v1472 = vsel %vm1470, %v1465, %v1471
        %vm1473 = vcmp.eq.s32.totalorder %v1468, 2
        %v1474 = vxor.u32 %v1465, 2147483648
        %v1475 = vsel %vm1473, %v1474, %v1466
        %v1476 = vsel %vm1469, %v1472, %v1475
        %v1477 = vsel %vm1467, nan, %v1476
        %v1478 = vand.u32 2147483647, %v230
        %vm1479 = vcmp.le.f32.partialorder %v1478, 0.7853982
        %vm1480 = vcmp.lt.s32.totalorder %v230, 0
        %v1481 = vand.u32 %v230, 2139095040
        %v1482 = vshrl.u32 %v1481, 23
        %v1483 = vsub.s32 %v1482, 127
        %v1484 = vand.u32 2147483647, %v230
        %v1485 = vand.u32 %v1484, 8388607
        %v1486 = vor.u32 %v1485, 8388608
        %v1487 = vsub.s32 0, %v1486
        %v1488 = vadd.s32 %v1483, 1
        %vm1489 = vcmp.gt.s32.totalorder %v1488, 0
        %v1490 = vsel %vm1489, %v1488, 0
        %v1491 = vshrl.u32 %v1490, 5
        %v1492 = vand.u32 %v1490, 31
        %v1493 = vsub.s32 32, %v1492
        %v1494 = vshrl.u32 683565275, %v1493
        %v1495 = vshll.u32 683565275, %v1492
        %v1496 = vshrl.u32 2475754826, %v1493
        %v1497 = vor.u32 %v1495, %v1496
        %v1498 = vshll.u32 2475754826, %v1492
        %v1499 = vshrl.u32 2131351028, %v1493
        %v1500 = vor.u32 %v1498, %v1499
        %v1501 = vshll.u32 2131351028, %v1492
        %v1502 = vshrl.u32 2102212464, %v1493
        %v1503 = vor.u32 %v1501, %v1502
        %v1504 = vshll.u32 2102212464, %v1492
        %v1505 = vshrl.u32 920167782, %v1493
        %v1506 = vor.u32 %v1504, %v1505
        %v1507 = vshll.u32 920167782, %v1492
        %v1508 = vshrl.u32 1326507024, %v1493
        %v1509 = vor.u32 %v1507, %v1508
        %vm1510 = vcmp.lt.s32.totalorder %v1491, 1
        %vm1511 = vcmp.lt.s32.totalorder %v1491, 2
        %vm1512 = vcmp.lt.s32.totalorder %v1491, 3
        %vm1513 = vcmp.lt.s32.totalorder %v1491, 4
        %v1514 = vsel %vm1510, %v1494, %v1497
        %v1515 = vsel %vm1513, %v1503, 2102212464
        %v1516 = vsel %vm1512, %v1500, %v1515
        %v1517 = vsel %vm1511, %v1514, %v1516
        %v1518 = vsel %vm1510, %v1497, %v1500
        %v1519 = vsel %vm1513, %v1506, 920167782
        %v1520 = vsel %vm1512, %v1503, %v1519
        %v1521 = vsel %vm1511, %v1518, %v1520
        %v1522 = vsel %vm1510, %v1500, %v1503
        %v1523 = vsel %vm1513, %v1509, 1326507024
        %v1524 = vsel %vm1512, %v1506, %v1523
        %v1525 = vsel %vm1511, %v1522, %v1524
        %v1526 = vshll.u32 %v1486, 8
        %v1527 = vmul.u32.u64.compose %v1526, %v1525
        %v1528 = vextract.low.u32 %v1527
        %v1529 = vextract.high.u32 %v1527
        %v1530 = vmul.u32.u64.compose %v1526, %v1521
        %v1531 = vextract.low.u32 %v1530
        %v1532 = vextract.high.u32 %v1530
        %v1533 = vmul.u32 %v1526, %v1517
        %v1534 = vadd.s32 %v1529, %v1531
        %vm1535 = vc.u32 %v1529, %v1531
        %v1536 = vadd.s32 %v1532, 1
        %v1537 = vsel %vm1535, %v1536, %v1532
        %v1538 = vadd.s32 %v1533, %v1537
        %v1539 = vadd.s32 %v1538, 536870912
        %v1540 = vshrl.u32 %v1539, 30
        %v1541 = vshll.u32 %v1540, 30
        %v1542 = vsub.s32 %v1538, %v1541
        %vm1543 = vcmp.lt.s32.totalorder %v1542, 0
        %v1544 = vsub.s32 0, %v1542
        %v1545 = vsel %vm1543, %v1544, %v1542
        %v1546 = vclz %v1545
        %v1547 = vsub.s32 %v1546, 2
        %vm1548 = vcmp.gt.s32.totalorder 0, %v1547
        %v1549 = vsel %vm1548, 0, %v1547
        %v1550 = vsub.s32 32, %v1549
        %v1551 = vshll.u32 %v1542, %v1549
        %v1552 = vshrl.u32 %v1534, %v1550
        %v1553 = vor.u32 %v1551, %v1552
        %v1554 = vsub.s32 4294967266, %v1549
        %v1555 = vadd.s32 %v1554, 127
        %v1556 = vshll.u32 %v1555, 23
        %v1557 = vor.u32 4788187, %v1556
        %v1558 = vand.u32 2147483647, %v1557
        %v1560 = vcvt.s32.f32 %v1553
        %v1561 = vmul.f32 %v1560, %v1558
        %v1562 = vxor.u32 %v1561, 2147483648
        %v1563 = vsel %vm1480, %v1562, %v1561
        %v1564 = vsub.s32 4, %v1540
        %v1565 = vsel %vm1480, %v1564, %v1540
        %v1566 = vsel %vm1479, %v230, %v1563
        %v1567 = vsel %vm1479, 0, %v1565
        %v1568 = vcosq.f32.pop %v1566
        %v1569 = vsinq.f32.pop %v1566
        %vm1570 = vweird.f32 %v230
        %v1571 = vand.u32 %v1567, 3
        %vm1572 = vcmp.lt.s32.totalorder %v1571, 2
        %vm1573 = vcmp.eq.s32.totalorder %v1571, 0
        %v1574 = vxor.u32 %v1569, 2147483648
        %v1575 = vsel %vm1573, %v1568, %v1574
        %vm1576 = vcmp.eq.s32.totalorder %v1571, 2
        %v1577 = vxor.u32 %v1568, 2147483648
        %v1578 = vsel %vm1576, %v1577, %v1569
        %v1579 = vsel %vm1572, %v1575, %v1578
        %v1580 = vsel %vm1570, nan, %v1579
        %v1581 = vand.u32 2147483647, %v231
        %vm1582 = vcmp.le.f32.partialorder %v1581, 0.7853982
        %vm1583 = vcmp.lt.s32.totalorder %v231, 0
        %v1584 = vand.u32 %v231, 2139095040
        %v1585 = vshrl.u32 %v1584, 23
        %v1586 = vsub.s32 %v1585, 127
        %v1587 = vand.u32 2147483647, %v231
        %v1588 = vand.u32 %v1587, 8388607
        %v1589 = vor.u32 %v1588, 8388608
        %v1590 = vsub.s32 0, %v1589
        %v1591 = vadd.s32 %v1586, 1
        %vm1592 = vcmp.gt.s32.totalorder %v1591, 0
        %v1593 = vsel %vm1592, %v1591, 0
        %v1594 = vshrl.u32 %v1593, 5
        %v1595 = vand.u32 %v1593, 31
        %v1596 = vsub.s32 32, %v1595
        %v1597 = vshrl.u32 683565275, %v1596
        %v1598 = vshll.u32 683565275, %v1595
        %v1599 = vshrl.u32 2475754826, %v1596
        %v1600 = vor.u32 %v1598, %v1599
        %v1601 = vshll.u32 2475754826, %v1595
        %v1602 = vshrl.u32 2131351028, %v1596
        %v1603 = vor.u32 %v1601, %v1602
        %v1604 = vshll.u32 2131351028, %v1595
        %v1605 = vshrl.u32 2102212464, %v1596
        %v1606 = vor.u32 %v1604, %v1605
        %v1607 = vshll.u32 2102212464, %v1595
        %v1608 = vshrl.u32 920167782, %v1596
        %v1609 = vor.u32 %v1607, %v1608
        %v1610 = vshll.u32 920167782, %v1595
        %v1611 = vshrl.u32 1326507024, %v1596
        %v1612 = vor.u32 %v1610, %v1611
        %vm1613 = vcmp.lt.s32.totalorder %v1594, 1
        %vm1614 = vcmp.lt.s32.totalorder %v1594, 2
        %vm1615 = vcmp.lt.s32.totalorder %v1594, 3
        %vm1616 = vcmp.lt.s32.totalorder %v1594, 4
        %v1617 = vsel %vm1613, %v1597, %v1600
        %v1618 = vsel %vm1616, %v1606, 2102212464
        %v1619 = vsel %vm1615, %v1603, %v1618
        %v1620 = vsel %vm1614, %v1617, %v1619
        %v1621 = vsel %vm1613, %v1600, %v1603
        %v1622 = vsel %vm1616, %v1609, 920167782
        %v1623 = vsel %vm1615, %v1606, %v1622
        %v1624 = vsel %vm1614, %v1621, %v1623
        %v1625 = vsel %vm1613, %v1603, %v1606
        %v1626 = vsel %vm1616, %v1612, 1326507024
        %v1627 = vsel %vm1615, %v1609, %v1626
        %v1628 = vsel %vm1614, %v1625, %v1627
        %v1629 = vshll.u32 %v1589, 8
        %v1630 = vmul.u32.u64.compose %v1629, %v1628
        %v1631 = vextract.low.u32 %v1630
        %v1632 = vextract.high.u32 %v1630
        %v1633 = vmul.u32.u64.compose %v1629, %v1624
        %v1634 = vextract.low.u32 %v1633
        %v1635 = vextract.high.u32 %v1633
        %v1636 = vmul.u32 %v1629, %v1620
        %v1637 = vadd.s32 %v1632, %v1634
        %vm1638 = vc.u32 %v1632, %v1634
        %v1639 = vadd.s32 %v1635, 1
        %v1640 = vsel %vm1638, %v1639, %v1635
        %v1641 = vadd.s32 %v1636, %v1640
        %v1642 = vadd.s32 %v1641, 536870912
        %v1643 = vshrl.u32 %v1642, 30
        %v1644 = vshll.u32 %v1643, 30
        %v1645 = vsub.s32 %v1641, %v1644
        %vm1646 = vcmp.lt.s32.totalorder %v1645, 0
        %v1647 = vsub.s32 0, %v1645
        %v1648 = vsel %vm1646, %v1647, %v1645
        %v1649 = vclz %v1648
        %v1650 = vsub.s32 %v1649, 2
        %vm1651 = vcmp.gt.s32.totalorder 0, %v1650
        %v1652 = vsel %vm1651, 0, %v1650
        %v1653 = vsub.s32 32, %v1652
        %v1654 = vshll.u32 %v1645, %v1652
        %v1655 = vshrl.u32 %v1637, %v1653
        %v1656 = vor.u32 %v1654, %v1655
        %v1657 = vsub.s32 4294967266, %v1652
        %v1658 = vadd.s32 %v1657, 127
        %v1659 = vshll.u32 %v1658, 23
        %v1660 = vor.u32 4788187, %v1659
        %v1661 = vand.u32 2147483647, %v1660
        %v1663 = vcvt.s32.f32 %v1656
        %v1664 = vmul.f32 %v1663, %v1661
        %v1665 = vxor.u32 %v1664, 2147483648
        %v1666 = vsel %vm1583, %v1665, %v1664
        %v1667 = vsub.s32 4, %v1643
        %v1668 = vsel %vm1583, %v1667, %v1643
        %v1669 = vsel %vm1582, %v231, %v1666
        %v1670 = vsel %vm1582, 0, %v1668
        %v1671 = vcosq.f32.pop %v1669
        %v1672 = vsinq.f32.pop %v1669
        %vm1673 = vweird.f32 %v231
        %v1674 = vand.u32 %v1670, 3
        %vm1675 = vcmp.lt.s32.totalorder %v1674, 2
        %vm1676 = vcmp.eq.s32.totalorder %v1674, 0
        %v1677 = vxor.u32 %v1672, 2147483648
        %v1678 = vsel %vm1676, %v1671, %v1677
        %vm1679 = vcmp.eq.s32.totalorder %v1674, 2
        %v1680 = vxor.u32 %v1671, 2147483648
        %v1681 = vsel %vm1679, %v1680, %v1672
        %v1682 = vsel %vm1675, %v1678, %v1681
        %v1683 = vsel %vm1673, nan, %v1682
        %v1684 = vand.u32 2147483647, %v232
        %vm1685 = vcmp.le.f32.partialorder %v1684, 0.7853982
        %vm1686 = vcmp.lt.s32.totalorder %v232, 0
        %v1687 = vand.u32 %v232, 2139095040
        %v1688 = vshrl.u32 %v1687, 23
        %v1689 = vsub.s32 %v1688, 127
        %v1690 = vand.u32 2147483647, %v232
        %v1691 = vand.u32 %v1690, 8388607
        %v1692 = vor.u32 %v1691, 8388608
        %v1693 = vsub.s32 0, %v1692
        %v1694 = vadd.s32 %v1689, 1
        %vm1695 = vcmp.gt.s32.totalorder %v1694, 0
        %v1696 = vsel %vm1695, %v1694, 0
        %v1697 = vshrl.u32 %v1696, 5
        %v1698 = vand.u32 %v1696, 31
        %v1699 = vsub.s32 32, %v1698
        %v1700 = vshrl.u32 683565275, %v1699
        %v1701 = vshll.u32 683565275, %v1698
        %v1702 = vshrl.u32 2475754826, %v1699
        %v1703 = vor.u32 %v1701, %v1702
        %v1704 = vshll.u32 2475754826, %v1698
        %v1705 = vshrl.u32 2131351028, %v1699
        %v1706 = vor.u32 %v1704, %v1705
        %v1707 = vshll.u32 2131351028, %v1698
        %v1708 = vshrl.u32 2102212464, %v1699
        %v1709 = vor.u32 %v1707, %v1708
        %v1710 = vshll.u32 2102212464, %v1698
        %v1711 = vshrl.u32 920167782, %v1699
        %v1712 = vor.u32 %v1710, %v1711
        %v1713 = vshll.u32 920167782, %v1698
        %v1714 = vshrl.u32 1326507024, %v1699
        %v1715 = vor.u32 %v1713, %v1714
        %vm1716 = vcmp.lt.s32.totalorder %v1697, 1
        %vm1717 = vcmp.lt.s32.totalorder %v1697, 2
        %vm1718 = vcmp.lt.s32.totalorder %v1697, 3
        %vm1719 = vcmp.lt.s32.totalorder %v1697, 4
        %v1720 = vsel %vm1716, %v1700, %v1703
        %v1721 = vsel %vm1719, %v1709, 2102212464
        %v1722 = vsel %vm1718, %v1706, %v1721
        %v1723 = vsel %vm1717, %v1720, %v1722
        %v1724 = vsel %vm1716, %v1703, %v1706
        %v1725 = vsel %vm1719, %v1712, 920167782
        %v1726 = vsel %vm1718, %v1709, %v1725
        %v1727 = vsel %vm1717, %v1724, %v1726
        %v1728 = vsel %vm1716, %v1706, %v1709
        %v1729 = vsel %vm1719, %v1715, 1326507024
        %v1730 = vsel %vm1718, %v1712, %v1729
        %v1731 = vsel %vm1717, %v1728, %v1730
        %v1732 = vshll.u32 %v1692, 8
        %v1733 = vmul.u32.u64.compose %v1732, %v1731
        %v1734 = vextract.low.u32 %v1733
        %v1735 = vextract.high.u32 %v1733
        %v1736 = vmul.u32.u64.compose %v1732, %v1727
        %v1737 = vextract.low.u32 %v1736
        %v1738 = vextract.high.u32 %v1736
        %v1739 = vmul.u32 %v1732, %v1723
        %v1740 = vadd.s32 %v1735, %v1737
        %vm1741 = vc.u32 %v1735, %v1737
        %v1742 = vadd.s32 %v1738, 1
        %v1743 = vsel %vm1741, %v1742, %v1738
        %v1744 = vadd.s32 %v1739, %v1743
        %v1745 = vadd.s32 %v1744, 536870912
        %v1746 = vshrl.u32 %v1745, 30
        %v1747 = vshll.u32 %v1746, 30
        %v1748 = vsub.s32 %v1744, %v1747
        %vm1749 = vcmp.lt.s32.totalorder %v1748, 0
        %v1750 = vsub.s32 0, %v1748
        %v1751 = vsel %vm1749, %v1750, %v1748
        %v1752 = vclz %v1751
        %v1753 = vsub.s32 %v1752, 2
        %vm1754 = vcmp.gt.s32.totalorder 0, %v1753
        %v1755 = vsel %vm1754, 0, %v1753
        %v1756 = vsub.s32 32, %v1755
        %v1757 = vshll.u32 %v1748, %v1755
        %v1758 = vshrl.u32 %v1740, %v1756
        %v1759 = vor.u32 %v1757, %v1758
        %v1760 = vsub.s32 4294967266, %v1755
        %v1761 = vadd.s32 %v1760, 127
        %v1762 = vshll.u32 %v1761, 23
        %v1763 = vor.u32 4788187, %v1762
        %v1764 = vand.u32 2147483647, %v1763
        %v1766 = vcvt.s32.f32 %v1759
        %v1767 = vmul.f32 %v1766, %v1764
        %v1768 = vxor.u32 %v1767, 2147483648
        %v1769 = vsel %vm1686, %v1768, %v1767
        %v1770 = vsub.s32 4, %v1746
        %v1771 = vsel %vm1686, %v1770, %v1746
        %v1772 = vsel %vm1685, %v232, %v1769
        %v1773 = vsel %vm1685, 0, %v1771
        %v1774 = vcosq.f32.pop %v1772
        %v1775 = vsinq.f32.pop %v1772
        %vm1776 = vweird.f32 %v232
        %v1777 = vand.u32 %v1773, 3
        %vm1778 = vcmp.lt.s32.totalorder %v1777, 2
        %vm1779 = vcmp.eq.s32.totalorder %v1777, 0
        %v1780 = vxor.u32 %v1775, 2147483648
        %v1781 = vsel %vm1779, %v1774, %v1780
        %vm1782 = vcmp.eq.s32.totalorder %v1777, 2
        %v1783 = vxor.u32 %v1774, 2147483648
        %v1784 = vsel %vm1782, %v1783, %v1775
        %v1785 = vsel %vm1778, %v1781, %v1784
        %v1786 = vsel %vm1776, nan, %v1785
        %v1787 = vand.u32 2147483647, %v233
        %vm1788 = vcmp.le.f32.partialorder %v1787, 0.7853982
        %vm1789 = vcmp.lt.s32.totalorder %v233, 0
        %v1790 = vand.u32 %v233, 2139095040
        %v1791 = vshrl.u32 %v1790, 23
        %v1792 = vsub.s32 %v1791, 127
        %v1793 = vand.u32 2147483647, %v233
        %v1794 = vand.u32 %v1793, 8388607
        %v1795 = vor.u32 %v1794, 8388608
        %v1796 = vsub.s32 0, %v1795
        %v1797 = vadd.s32 %v1792, 1
        %vm1798 = vcmp.gt.s32.totalorder %v1797, 0
        %v1799 = vsel %vm1798, %v1797, 0
        %v1800 = vshrl.u32 %v1799, 5
        %v1801 = vand.u32 %v1799, 31
        %v1802 = vsub.s32 32, %v1801
        %v1803 = vshrl.u32 683565275, %v1802
        %v1804 = vshll.u32 683565275, %v1801
        %v1805 = vshrl.u32 2475754826, %v1802
        %v1806 = vor.u32 %v1804, %v1805
        %v1807 = vshll.u32 2475754826, %v1801
        %v1808 = vshrl.u32 2131351028, %v1802
        %v1809 = vor.u32 %v1807, %v1808
        %v1810 = vshll.u32 2131351028, %v1801
        %v1811 = vshrl.u32 2102212464, %v1802
        %v1812 = vor.u32 %v1810, %v1811
        %v1813 = vshll.u32 2102212464, %v1801
        %v1814 = vshrl.u32 920167782, %v1802
        %v1815 = vor.u32 %v1813, %v1814
        %v1816 = vshll.u32 920167782, %v1801
        %v1817 = vshrl.u32 1326507024, %v1802
        %v1818 = vor.u32 %v1816, %v1817
        %vm1819 = vcmp.lt.s32.totalorder %v1800, 1
        %vm1820 = vcmp.lt.s32.totalorder %v1800, 2
        %vm1821 = vcmp.lt.s32.totalorder %v1800, 3
        %vm1822 = vcmp.lt.s32.totalorder %v1800, 4
        %v1823 = vsel %vm1819, %v1803, %v1806
        %v1824 = vsel %vm1822, %v1812, 2102212464
        %v1825 = vsel %vm1821, %v1809, %v1824
        %v1826 = vsel %vm1820, %v1823, %v1825
        %v1827 = vsel %vm1819, %v1806, %v1809
        %v1828 = vsel %vm1822, %v1815, 920167782
        %v1829 = vsel %vm1821, %v1812, %v1828
        %v1830 = vsel %vm1820, %v1827, %v1829
        %v1831 = vsel %vm1819, %v1809, %v1812
        %v1832 = vsel %vm1822, %v1818, 1326507024
        %v1833 = vsel %vm1821, %v1815, %v1832
        %v1834 = vsel %vm1820, %v1831, %v1833
        %v1835 = vshll.u32 %v1795, 8
        %v1836 = vmul.u32.u64.compose %v1835, %v1834
        %v1837 = vextract.low.u32 %v1836
        %v1838 = vextract.high.u32 %v1836
        %v1839 = vmul.u32.u64.compose %v1835, %v1830
        %v1840 = vextract.low.u32 %v1839
        %v1841 = vextract.high.u32 %v1839
        %v1842 = vmul.u32 %v1835, %v1826
        %v1843 = vadd.s32 %v1838, %v1840
        %vm1844 = vc.u32 %v1838, %v1840
        %v1845 = vadd.s32 %v1841, 1
        %v1846 = vsel %vm1844, %v1845, %v1841
        %v1847 = vadd.s32 %v1842, %v1846
        %v1848 = vadd.s32 %v1847, 536870912
        %v1849 = vshrl.u32 %v1848, 30
        %v1850 = vshll.u32 %v1849, 30
        %v1851 = vsub.s32 %v1847, %v1850
        %vm1852 = vcmp.lt.s32.totalorder %v1851, 0
        %v1853 = vsub.s32 0, %v1851
        %v1854 = vsel %vm1852, %v1853, %v1851
        %v1855 = vclz %v1854
        %v1856 = vsub.s32 %v1855, 2
        %vm1857 = vcmp.gt.s32.totalorder 0, %v1856
        %v1858 = vsel %vm1857, 0, %v1856
        %v1859 = vsub.s32 32, %v1858
        %v1860 = vshll.u32 %v1851, %v1858
        %v1861 = vshrl.u32 %v1843, %v1859
        %v1862 = vor.u32 %v1860, %v1861
        %v1863 = vsub.s32 4294967266, %v1858
        %v1864 = vadd.s32 %v1863, 127
        %v1865 = vshll.u32 %v1864, 23
        %v1866 = vor.u32 4788187, %v1865
        %v1867 = vand.u32 2147483647, %v1866
        %v1869 = vcvt.s32.f32 %v1862
        %v1870 = vmul.f32 %v1869, %v1867
        %v1871 = vxor.u32 %v1870, 2147483648
        %v1872 = vsel %vm1789, %v1871, %v1870
        %v1873 = vsub.s32 4, %v1849
        %v1874 = vsel %vm1789, %v1873, %v1849
        %v1875 = vsel %vm1788, %v233, %v1872
        %v1876 = vsel %vm1788, 0, %v1874
        %v1877 = vcosq.f32.pop %v1875
        %v1878 = vsinq.f32.pop %v1875
        %vm1879 = vweird.f32 %v233
        %v1880 = vand.u32 %v1876, 3
        %vm1881 = vcmp.lt.s32.totalorder %v1880, 2
        %vm1882 = vcmp.eq.s32.totalorder %v1880, 0
        %v1883 = vxor.u32 %v1878, 2147483648
        %v1884 = vsel %vm1882, %v1877, %v1883
        %vm1885 = vcmp.eq.s32.totalorder %v1880, 2
        %v1886 = vxor.u32 %v1877, 2147483648
        %v1887 = vsel %vm1885, %v1886, %v1878
        %v1888 = vsel %vm1881, %v1884, %v1887
        %v1889 = vsel %vm1879, nan, %v1888
        %v1890 = vmul.f32 %v226, 2.0
        %v1891 = vmul.f32 %v227, 2.0
        %v1892 = vmul.f32 %v228, 2.0
        %v1893 = vmul.f32 %v229, 2.0
        %v1894 = vmul.f32 %v230, 2.0
        %v1895 = vmul.f32 %v231, 2.0
        %v1896 = vmul.f32 %v232, 2.0
        %v1897 = vmul.f32 %v233, 2.0
        %v1898 = vand.u32 2147483647, %v1890
        %vm1899 = vcmp.le.f32.partialorder %v1898, 0.7853982
        %vm1900 = vcmp.lt.s32.totalorder %v1890, 0
        %v1901 = vand.u32 %v1890, 2139095040
        %v1902 = vshrl.u32 %v1901, 23
        %v1903 = vsub.s32 %v1902, 127
        %v1904 = vand.u32 2147483647, %v1890
        %v1905 = vand.u32 %v1904, 8388607
        %v1906 = vor.u32 %v1905, 8388608
        %v1907 = vsub.s32 0, %v1906
        %v1908 = vadd.s32 %v1903, 1
        %vm1909 = vcmp.gt.s32.totalorder %v1908, 0
        %v1910 = vsel %vm1909, %v1908, 0
        %v1911 = vshrl.u32 %v1910, 5
        %v1912 = vand.u32 %v1910, 31
        %v1913 = vsub.s32 32, %v1912
        %v1914 = vshrl.u32 683565275, %v1913
        %v1915 = vshll.u32 683565275, %v1912
        %v1916 = vshrl.u32 2475754826, %v1913
        %v1917 = vor.u32 %v1915, %v1916
        %v1918 = vshll.u32 2475754826, %v1912
        %v1919 = vshrl.u32 2131351028, %v1913
        %v1920 = vor.u32 %v1918, %v1919
        %v1921 = vshll.u32 2131351028, %v1912
        %v1922 = vshrl.u32 2102212464, %v1913
        %v1923 = vor.u32 %v1921, %v1922
        %v1924 = vshll.u32 2102212464, %v1912
        %v1925 = vshrl.u32 920167782, %v1913
        %v1926 = vor.u32 %v1924, %v1925
        %v1927 = vshll.u32 920167782, %v1912
        %v1928 = vshrl.u32 1326507024, %v1913
        %v1929 = vor.u32 %v1927, %v1928
        %vm1930 = vcmp.lt.s32.totalorder %v1911, 1
        %vm1931 = vcmp.lt.s32.totalorder %v1911, 2
        %vm1932 = vcmp.lt.s32.totalorder %v1911, 3
        %vm1933 = vcmp.lt.s32.totalorder %v1911, 4
        %v1934 = vsel %vm1930, %v1914, %v1917
        %v1935 = vsel %vm1933, %v1923, 2102212464
        %v1936 = vsel %vm1932, %v1920, %v1935
        %v1937 = vsel %vm1931, %v1934, %v1936
        %v1938 = vsel %vm1930, %v1917, %v1920
        %v1939 = vsel %vm1933, %v1926, 920167782
        %v1940 = vsel %vm1932, %v1923, %v1939
        %v1941 = vsel %vm1931, %v1938, %v1940
        %v1942 = vsel %vm1930, %v1920, %v1923
        %v1943 = vsel %vm1933, %v1929, 1326507024
        %v1944 = vsel %vm1932, %v1926, %v1943
        %v1945 = vsel %vm1931, %v1942, %v1944
        %v1946 = vshll.u32 %v1906, 8
        %v1947 = vmul.u32.u64.compose %v1946, %v1945
        %v1948 = vextract.low.u32 %v1947
        %v1949 = vextract.high.u32 %v1947
        %v1950 = vmul.u32.u64.compose %v1946, %v1941
        %v1951 = vextract.low.u32 %v1950
        %v1952 = vextract.high.u32 %v1950
        %v1953 = vmul.u32 %v1946, %v1937
        %v1954 = vadd.s32 %v1949, %v1951
        %vm1955 = vc.u32 %v1949, %v1951
        %v1956 = vadd.s32 %v1952, 1
        %v1957 = vsel %vm1955, %v1956, %v1952
        %v1958 = vadd.s32 %v1953, %v1957
        %v1959 = vadd.s32 %v1958, 536870912
        %v1960 = vshrl.u32 %v1959, 30
        %v1961 = vshll.u32 %v1960, 30
        %v1962 = vsub.s32 %v1958, %v1961
        %vm1963 = vcmp.lt.s32.totalorder %v1962, 0
        %v1964 = vsub.s32 0, %v1962
        %v1965 = vsel %vm1963, %v1964, %v1962
        %v1966 = vclz %v1965
        %v1967 = vsub.s32 %v1966, 2
        %vm1968 = vcmp.gt.s32.totalorder 0, %v1967
        %v1969 = vsel %vm1968, 0, %v1967
        %v1970 = vsub.s32 32, %v1969
        %v1971 = vshll.u32 %v1962, %v1969
        %v1972 = vshrl.u32 %v1954, %v1970
        %v1973 = vor.u32 %v1971, %v1972
        %v1974 = vsub.s32 4294967266, %v1969
        %v1975 = vadd.s32 %v1974, 127
        %v1976 = vshll.u32 %v1975, 23
        %v1977 = vor.u32 4788187, %v1976
        %v1978 = vand.u32 2147483647, %v1977
        %v1980 = vcvt.s32.f32 %v1973
        %v1981 = vmul.f32 %v1980, %v1978
        %v1982 = vxor.u32 %v1981, 2147483648
        %v1983 = vsel %vm1900, %v1982, %v1981
        %v1984 = vsub.s32 4, %v1960
        %v1985 = vsel %vm1900, %v1984, %v1960
        %v1986 = vsel %vm1899, %v1890, %v1983
        %v1987 = vsel %vm1899, 0, %v1985
        %v1988 = vcosq.f32.pop %v1986
        %v1989 = vsinq.f32.pop %v1986
        %vm1990 = vweird.f32 %v1890
        %v1991 = vadd.s32 %v1987, 3
        %v1992 = vand.u32 %v1991, 3
        %vm1993 = vcmp.lt.s32.totalorder %v1992, 2
        %vm1994 = vcmp.eq.s32.totalorder %v1992, 0
        %v1995 = vxor.u32 %v1989, 2147483648
        %v1996 = vsel %vm1994, %v1988, %v1995
        %vm1997 = vcmp.eq.s32.totalorder %v1992, 2
        %v1998 = vxor.u32 %v1988, 2147483648
        %v1999 = vsel %vm1997, %v1998, %v1989
        %v2000 = vsel %vm1993, %v1996, %v1999
        %v2001 = vsel %vm1990, nan, %v2000
        %v2002 = vand.u32 2147483647, %v1891
        %vm2003 = vcmp.le.f32.partialorder %v2002, 0.7853982
        %vm2004 = vcmp.lt.s32.totalorder %v1891, 0
        %v2005 = vand.u32 %v1891, 2139095040
        %v2006 = vshrl.u32 %v2005, 23
        %v2007 = vsub.s32 %v2006, 127
        %v2008 = vand.u32 2147483647, %v1891
        %v2009 = vand.u32 %v2008, 8388607
        %v2010 = vor.u32 %v2009, 8388608
        %v2011 = vsub.s32 0, %v2010
        %v2012 = vadd.s32 %v2007, 1
        %vm2013 = vcmp.gt.s32.totalorder %v2012, 0
        %v2014 = vsel %vm2013, %v2012, 0
        %v2015 = vshrl.u32 %v2014, 5
        %v2016 = vand.u32 %v2014, 31
        %v2017 = vsub.s32 32, %v2016
        %v2018 = vshrl.u32 683565275, %v2017
        %v2019 = vshll.u32 683565275, %v2016
        %v2020 = vshrl.u32 2475754826, %v2017
        %v2021 = vor.u32 %v2019, %v2020
        %v2022 = vshll.u32 2475754826, %v2016
        %v2023 = vshrl.u32 2131351028, %v2017
        %v2024 = vor.u32 %v2022, %v2023
        %v2025 = vshll.u32 2131351028, %v2016
        %v2026 = vshrl.u32 2102212464, %v2017
        %v2027 = vor.u32 %v2025, %v2026
        %v2028 = vshll.u32 2102212464, %v2016
        %v2029 = vshrl.u32 920167782, %v2017
        %v2030 = vor.u32 %v2028, %v2029
        %v2031 = vshll.u32 920167782, %v2016
        %v2032 = vshrl.u32 1326507024, %v2017
        %v2033 = vor.u32 %v2031, %v2032
        %vm2034 = vcmp.lt.s32.totalorder %v2015, 1
        %vm2035 = vcmp.lt.s32.totalorder %v2015, 2
        %vm2036 = vcmp.lt.s32.totalorder %v2015, 3
        %vm2037 = vcmp.lt.s32.totalorder %v2015, 4
        %v2038 = vsel %vm2034, %v2018, %v2021
        %v2039 = vsel %vm2037, %v2027, 2102212464
        %v2040 = vsel %vm2036, %v2024, %v2039
        %v2041 = vsel %vm2035, %v2038, %v2040
        %v2042 = vsel %vm2034, %v2021, %v2024
        %v2043 = vsel %vm2037, %v2030, 920167782
        %v2044 = vsel %vm2036, %v2027, %v2043
        %v2045 = vsel %vm2035, %v2042, %v2044
        %v2046 = vsel %vm2034, %v2024, %v2027
        %v2047 = vsel %vm2037, %v2033, 1326507024
        %v2048 = vsel %vm2036, %v2030, %v2047
        %v2049 = vsel %vm2035, %v2046, %v2048
        %v2050 = vshll.u32 %v2010, 8
        %v2051 = vmul.u32.u64.compose %v2050, %v2049
        %v2052 = vextract.low.u32 %v2051
        %v2053 = vextract.high.u32 %v2051
        %v2054 = vmul.u32.u64.compose %v2050, %v2045
        %v2055 = vextract.low.u32 %v2054
        %v2056 = vextract.high.u32 %v2054
        %v2057 = vmul.u32 %v2050, %v2041
        %v2058 = vadd.s32 %v2053, %v2055
        %vm2059 = vc.u32 %v2053, %v2055
        %v2060 = vadd.s32 %v2056, 1
        %v2061 = vsel %vm2059, %v2060, %v2056
        %v2062 = vadd.s32 %v2057, %v2061
        %v2063 = vadd.s32 %v2062, 536870912
        %v2064 = vshrl.u32 %v2063, 30
        %v2065 = vshll.u32 %v2064, 30
        %v2066 = vsub.s32 %v2062, %v2065
        %vm2067 = vcmp.lt.s32.totalorder %v2066, 0
        %v2068 = vsub.s32 0, %v2066
        %v2069 = vsel %vm2067, %v2068, %v2066
        %v2070 = vclz %v2069
        %v2071 = vsub.s32 %v2070, 2
        %vm2072 = vcmp.gt.s32.totalorder 0, %v2071
        %v2073 = vsel %vm2072, 0, %v2071
        %v2074 = vsub.s32 32, %v2073
        %v2075 = vshll.u32 %v2066, %v2073
        %v2076 = vshrl.u32 %v2058, %v2074
        %v2077 = vor.u32 %v2075, %v2076
        %v2078 = vsub.s32 4294967266, %v2073
        %v2079 = vadd.s32 %v2078, 127
        %v2080 = vshll.u32 %v2079, 23
        %v2081 = vor.u32 4788187, %v2080
        %v2082 = vand.u32 2147483647, %v2081
        %v2084 = vcvt.s32.f32 %v2077
        %v2085 = vmul.f32 %v2084, %v2082
        %v2086 = vxor.u32 %v2085, 2147483648
        %v2087 = vsel %vm2004, %v2086, %v2085
        %v2088 = vsub.s32 4, %v2064
        %v2089 = vsel %vm2004, %v2088, %v2064
        %v2090 = vsel %vm2003, %v1891, %v2087
        %v2091 = vsel %vm2003, 0, %v2089
        %v2092 = vcosq.f32.pop %v2090
        %v2093 = vsinq.f32.pop %v2090
        %vm2094 = vweird.f32 %v1891
        %v2095 = vadd.s32 %v2091, 3
        %v2096 = vand.u32 %v2095, 3
        %vm2097 = vcmp.lt.s32.totalorder %v2096, 2
        %vm2098 = vcmp.eq.s32.totalorder %v2096, 0
        %v2099 = vxor.u32 %v2093, 2147483648
        %v2100 = vsel %vm2098, %v2092, %v2099
        %vm2101 = vcmp.eq.s32.totalorder %v2096, 2
        %v2102 = vxor.u32 %v2092, 2147483648
        %v2103 = vsel %vm2101, %v2102, %v2093
        %v2104 = vsel %vm2097, %v2100, %v2103
        %v2105 = vsel %vm2094, nan, %v2104
        %v2106 = vand.u32 2147483647, %v1892
        %vm2107 = vcmp.le.f32.partialorder %v2106, 0.7853982
        %vm2108 = vcmp.lt.s32.totalorder %v1892, 0
        %v2109 = vand.u32 %v1892, 2139095040
        %v2110 = vshrl.u32 %v2109, 23
        %v2111 = vsub.s32 %v2110, 127
        %v2112 = vand.u32 2147483647, %v1892
        %v2113 = vand.u32 %v2112, 8388607
        %v2114 = vor.u32 %v2113, 8388608
        %v2115 = vsub.s32 0, %v2114
        %v2116 = vadd.s32 %v2111, 1
        %vm2117 = vcmp.gt.s32.totalorder %v2116, 0
        %v2118 = vsel %vm2117, %v2116, 0
        %v2119 = vshrl.u32 %v2118, 5
        %v2120 = vand.u32 %v2118, 31
        %v2121 = vsub.s32 32, %v2120
        %v2122 = vshrl.u32 683565275, %v2121
        %v2123 = vshll.u32 683565275, %v2120
        %v2124 = vshrl.u32 2475754826, %v2121
        %v2125 = vor.u32 %v2123, %v2124
        %v2126 = vshll.u32 2475754826, %v2120
        %v2127 = vshrl.u32 2131351028, %v2121
        %v2128 = vor.u32 %v2126, %v2127
        %v2129 = vshll.u32 2131351028, %v2120
        %v2130 = vshrl.u32 2102212464, %v2121
        %v2131 = vor.u32 %v2129, %v2130
        %v2132 = vshll.u32 2102212464, %v2120
        %v2133 = vshrl.u32 920167782, %v2121
        %v2134 = vor.u32 %v2132, %v2133
        %v2135 = vshll.u32 920167782, %v2120
        %v2136 = vshrl.u32 1326507024, %v2121
        %v2137 = vor.u32 %v2135, %v2136
        %vm2138 = vcmp.lt.s32.totalorder %v2119, 1
        %vm2139 = vcmp.lt.s32.totalorder %v2119, 2
        %vm2140 = vcmp.lt.s32.totalorder %v2119, 3
        %vm2141 = vcmp.lt.s32.totalorder %v2119, 4
        %v2142 = vsel %vm2138, %v2122, %v2125
        %v2143 = vsel %vm2141, %v2131, 2102212464
        %v2144 = vsel %vm2140, %v2128, %v2143
        %v2145 = vsel %vm2139, %v2142, %v2144
        %v2146 = vsel %vm2138, %v2125, %v2128
        %v2147 = vsel %vm2141, %v2134, 920167782
        %v2148 = vsel %vm2140, %v2131, %v2147
        %v2149 = vsel %vm2139, %v2146, %v2148
        %v2150 = vsel %vm2138, %v2128, %v2131
        %v2151 = vsel %vm2141, %v2137, 1326507024
        %v2152 = vsel %vm2140, %v2134, %v2151
        %v2153 = vsel %vm2139, %v2150, %v2152
        %v2154 = vshll.u32 %v2114, 8
        %v2155 = vmul.u32.u64.compose %v2154, %v2153
        %v2156 = vextract.low.u32 %v2155
        %v2157 = vextract.high.u32 %v2155
        %v2158 = vmul.u32.u64.compose %v2154, %v2149
        %v2159 = vextract.low.u32 %v2158
        %v2160 = vextract.high.u32 %v2158
        %v2161 = vmul.u32 %v2154, %v2145
        %v2162 = vadd.s32 %v2157, %v2159
        %vm2163 = vc.u32 %v2157, %v2159
        %v2164 = vadd.s32 %v2160, 1
        %v2165 = vsel %vm2163, %v2164, %v2160
        %v2166 = vadd.s32 %v2161, %v2165
        %v2167 = vadd.s32 %v2166, 536870912
        %v2168 = vshrl.u32 %v2167, 30
        %v2169 = vshll.u32 %v2168, 30
        %v2170 = vsub.s32 %v2166, %v2169
        %vm2171 = vcmp.lt.s32.totalorder %v2170, 0
        %v2172 = vsub.s32 0, %v2170
        %v2173 = vsel %vm2171, %v2172, %v2170
        %v2174 = vclz %v2173
        %v2175 = vsub.s32 %v2174, 2
        %vm2176 = vcmp.gt.s32.totalorder 0, %v2175
        %v2177 = vsel %vm2176, 0, %v2175
        %v2178 = vsub.s32 32, %v2177
        %v2179 = vshll.u32 %v2170, %v2177
        %v2180 = vshrl.u32 %v2162, %v2178
        %v2181 = vor.u32 %v2179, %v2180
        %v2182 = vsub.s32 4294967266, %v2177
        %v2183 = vadd.s32 %v2182, 127
        %v2184 = vshll.u32 %v2183, 23
        %v2185 = vor.u32 4788187, %v2184
        %v2186 = vand.u32 2147483647, %v2185
        %v2188 = vcvt.s32.f32 %v2181
        %v2189 = vmul.f32 %v2188, %v2186
        %v2190 = vxor.u32 %v2189, 2147483648
        %v2191 = vsel %vm2108, %v2190, %v2189
        %v2192 = vsub.s32 4, %v2168
        %v2193 = vsel %vm2108, %v2192, %v2168
        %v2194 = vsel %vm2107, %v1892, %v2191
        %v2195 = vsel %vm2107, 0, %v2193
        %v2196 = vcosq.f32.pop %v2194
        %v2197 = vsinq.f32.pop %v2194
        %vm2198 = vweird.f32 %v1892
        %v2199 = vadd.s32 %v2195, 3
        %v2200 = vand.u32 %v2199, 3
        %vm2201 = vcmp.lt.s32.totalorder %v2200, 2
        %vm2202 = vcmp.eq.s32.totalorder %v2200, 0
        %v2203 = vxor.u32 %v2197, 2147483648
        %v2204 = vsel %vm2202, %v2196, %v2203
        %vm2205 = vcmp.eq.s32.totalorder %v2200, 2
        %v2206 = vxor.u32 %v2196, 2147483648
        %v2207 = vsel %vm2205, %v2206, %v2197
        %v2208 = vsel %vm2201, %v2204, %v2207
        %v2209 = vsel %vm2198, nan, %v2208
        %v2210 = vand.u32 2147483647, %v1893
        %vm2211 = vcmp.le.f32.partialorder %v2210, 0.7853982
        %vm2212 = vcmp.lt.s32.totalorder %v1893, 0
        %v2213 = vand.u32 %v1893, 2139095040
        %v2214 = vshrl.u32 %v2213, 23
        %v2215 = vsub.s32 %v2214, 127
        %v2216 = vand.u32 2147483647, %v1893
        %v2217 = vand.u32 %v2216, 8388607
        %v2218 = vor.u32 %v2217, 8388608
        %v2219 = vsub.s32 0, %v2218
        %v2220 = vadd.s32 %v2215, 1
        %vm2221 = vcmp.gt.s32.totalorder %v2220, 0
        %v2222 = vsel %vm2221, %v2220, 0
        %v2223 = vshrl.u32 %v2222, 5
        %v2224 = vand.u32 %v2222, 31
        %v2225 = vsub.s32 32, %v2224
        %v2226 = vshrl.u32 683565275, %v2225
        %v2227 = vshll.u32 683565275, %v2224
        %v2228 = vshrl.u32 2475754826, %v2225
        %v2229 = vor.u32 %v2227, %v2228
        %v2230 = vshll.u32 2475754826, %v2224
        %v2231 = vshrl.u32 2131351028, %v2225
        %v2232 = vor.u32 %v2230, %v2231
        %v2233 = vshll.u32 2131351028, %v2224
        %v2234 = vshrl.u32 2102212464, %v2225
        %v2235 = vor.u32 %v2233, %v2234
        %v2236 = vshll.u32 2102212464, %v2224
        %v2237 = vshrl.u32 920167782, %v2225
        %v2238 = vor.u32 %v2236, %v2237
        %v2239 = vshll.u32 920167782, %v2224
        %v2240 = vshrl.u32 1326507024, %v2225
        %v2241 = vor.u32 %v2239, %v2240
        %vm2242 = vcmp.lt.s32.totalorder %v2223, 1
        %vm2243 = vcmp.lt.s32.totalorder %v2223, 2
        %vm2244 = vcmp.lt.s32.totalorder %v2223, 3
        %vm2245 = vcmp.lt.s32.totalorder %v2223, 4
        %v2246 = vsel %vm2242, %v2226, %v2229
        %v2247 = vsel %vm2245, %v2235, 2102212464
        %v2248 = vsel %vm2244, %v2232, %v2247
        %v2249 = vsel %vm2243, %v2246, %v2248
        %v2250 = vsel %vm2242, %v2229, %v2232
        %v2251 = vsel %vm2245, %v2238, 920167782
        %v2252 = vsel %vm2244, %v2235, %v2251
        %v2253 = vsel %vm2243, %v2250, %v2252
        %v2254 = vsel %vm2242, %v2232, %v2235
        %v2255 = vsel %vm2245, %v2241, 1326507024
        %v2256 = vsel %vm2244, %v2238, %v2255
        %v2257 = vsel %vm2243, %v2254, %v2256
        %v2258 = vshll.u32 %v2218, 8
        %v2259 = vmul.u32.u64.compose %v2258, %v2257
        %v2260 = vextract.low.u32 %v2259
        %v2261 = vextract.high.u32 %v2259
        %v2262 = vmul.u32.u64.compose %v2258, %v2253
        %v2263 = vextract.low.u32 %v2262
        %v2264 = vextract.high.u32 %v2262
        %v2265 = vmul.u32 %v2258, %v2249
        %v2266 = vadd.s32 %v2261, %v2263
        %vm2267 = vc.u32 %v2261, %v2263
        %v2268 = vadd.s32 %v2264, 1
        %v2269 = vsel %vm2267, %v2268, %v2264
        %v2270 = vadd.s32 %v2265, %v2269
        %v2271 = vadd.s32 %v2270, 536870912
        %v2272 = vshrl.u32 %v2271, 30
        %v2273 = vshll.u32 %v2272, 30
        %v2274 = vsub.s32 %v2270, %v2273
        %vm2275 = vcmp.lt.s32.totalorder %v2274, 0
        %v2276 = vsub.s32 0, %v2274
        %v2277 = vsel %vm2275, %v2276, %v2274
        %v2278 = vclz %v2277
        %v2279 = vsub.s32 %v2278, 2
        %vm2280 = vcmp.gt.s32.totalorder 0, %v2279
        %v2281 = vsel %vm2280, 0, %v2279
        %v2282 = vsub.s32 32, %v2281
        %v2283 = vshll.u32 %v2274, %v2281
        %v2284 = vshrl.u32 %v2266, %v2282
        %v2285 = vor.u32 %v2283, %v2284
        %v2286 = vsub.s32 4294967266, %v2281
        %v2287 = vadd.s32 %v2286, 127
        %v2288 = vshll.u32 %v2287, 23
        %v2289 = vor.u32 4788187, %v2288
        %v2290 = vand.u32 2147483647, %v2289
        %v2292 = vcvt.s32.f32 %v2285
        %v2293 = vmul.f32 %v2292, %v2290
        %v2294 = vxor.u32 %v2293, 2147483648
        %v2295 = vsel %vm2212, %v2294, %v2293
        %v2296 = vsub.s32 4, %v2272
        %v2297 = vsel %vm2212, %v2296, %v2272
        %v2298 = vsel %vm2211, %v1893, %v2295
        %v2299 = vsel %vm2211, 0, %v2297
        %v2300 = vcosq.f32.pop %v2298
        %v2301 = vsinq.f32.pop %v2298
        %vm2302 = vweird.f32 %v1893
        %v2303 = vadd.s32 %v2299, 3
        %v2304 = vand.u32 %v2303, 3
        %vm2305 = vcmp.lt.s32.totalorder %v2304, 2
        %vm2306 = vcmp.eq.s32.totalorder %v2304, 0
        %v2307 = vxor.u32 %v2301, 2147483648
        %v2308 = vsel %vm2306, %v2300, %v2307
        %vm2309 = vcmp.eq.s32.totalorder %v2304, 2
        %v2310 = vxor.u32 %v2300, 2147483648
        %v2311 = vsel %vm2309, %v2310, %v2301
        %v2312 = vsel %vm2305, %v2308, %v2311
        %v2313 = vsel %vm2302, nan, %v2312
        %v2314 = vand.u32 2147483647, %v1894
        %vm2315 = vcmp.le.f32.partialorder %v2314, 0.7853982
        %vm2316 = vcmp.lt.s32.totalorder %v1894, 0
        %v2317 = vand.u32 %v1894, 2139095040
        %v2318 = vshrl.u32 %v2317, 23
        %v2319 = vsub.s32 %v2318, 127
        %v2320 = vand.u32 2147483647, %v1894
        %v2321 = vand.u32 %v2320, 8388607
        %v2322 = vor.u32 %v2321, 8388608
        %v2323 = vsub.s32 0, %v2322
        %v2324 = vadd.s32 %v2319, 1
        %vm2325 = vcmp.gt.s32.totalorder %v2324, 0
        %v2326 = vsel %vm2325, %v2324, 0
        %v2327 = vshrl.u32 %v2326, 5
        %v2328 = vand.u32 %v2326, 31
        %v2329 = vsub.s32 32, %v2328
        %v2330 = vshrl.u32 683565275, %v2329
        %v2331 = vshll.u32 683565275, %v2328
        %v2332 = vshrl.u32 2475754826, %v2329
        %v2333 = vor.u32 %v2331, %v2332
        %v2334 = vshll.u32 2475754826, %v2328
        %v2335 = vshrl.u32 2131351028, %v2329
        %v2336 = vor.u32 %v2334, %v2335
        %v2337 = vshll.u32 2131351028, %v2328
        %v2338 = vshrl.u32 2102212464, %v2329
        %v2339 = vor.u32 %v2337, %v2338
        %v2340 = vshll.u32 2102212464, %v2328
        %v2341 = vshrl.u32 920167782, %v2329
        %v2342 = vor.u32 %v2340, %v2341
        %v2343 = vshll.u32 920167782, %v2328
        %v2344 = vshrl.u32 1326507024, %v2329
        %v2345 = vor.u32 %v2343, %v2344
        %vm2346 = vcmp.lt.s32.totalorder %v2327, 1
        %vm2347 = vcmp.lt.s32.totalorder %v2327, 2
        %vm2348 = vcmp.lt.s32.totalorder %v2327, 3
        %vm2349 = vcmp.lt.s32.totalorder %v2327, 4
        %v2350 = vsel %vm2346, %v2330, %v2333
        %v2351 = vsel %vm2349, %v2339, 2102212464
        %v2352 = vsel %vm2348, %v2336, %v2351
        %v2353 = vsel %vm2347, %v2350, %v2352
        %v2354 = vsel %vm2346, %v2333, %v2336
        %v2355 = vsel %vm2349, %v2342, 920167782
        %v2356 = vsel %vm2348, %v2339, %v2355
        %v2357 = vsel %vm2347, %v2354, %v2356
        %v2358 = vsel %vm2346, %v2336, %v2339
        %v2359 = vsel %vm2349, %v2345, 1326507024
        %v2360 = vsel %vm2348, %v2342, %v2359
        %v2361 = vsel %vm2347, %v2358, %v2360
        %v2362 = vshll.u32 %v2322, 8
        %v2363 = vmul.u32.u64.compose %v2362, %v2361
        %v2364 = vextract.low.u32 %v2363
        %v2365 = vextract.high.u32 %v2363
        %v2366 = vmul.u32.u64.compose %v2362, %v2357
        %v2367 = vextract.low.u32 %v2366
        %v2368 = vextract.high.u32 %v2366
        %v2369 = vmul.u32 %v2362, %v2353
        %v2370 = vadd.s32 %v2365, %v2367
        %vm2371 = vc.u32 %v2365, %v2367
        %v2372 = vadd.s32 %v2368, 1
        %v2373 = vsel %vm2371, %v2372, %v2368
        %v2374 = vadd.s32 %v2369, %v2373
        %v2375 = vadd.s32 %v2374, 536870912
        %v2376 = vshrl.u32 %v2375, 30
        %v2377 = vshll.u32 %v2376, 30
        %v2378 = vsub.s32 %v2374, %v2377
        %vm2379 = vcmp.lt.s32.totalorder %v2378, 0
        %v2380 = vsub.s32 0, %v2378
        %v2381 = vsel %vm2379, %v2380, %v2378
        %v2382 = vclz %v2381
        %v2383 = vsub.s32 %v2382, 2
        %vm2384 = vcmp.gt.s32.totalorder 0, %v2383
        %v2385 = vsel %vm2384, 0, %v2383
        %v2386 = vsub.s32 32, %v2385
        %v2387 = vshll.u32 %v2378, %v2385
        %v2388 = vshrl.u32 %v2370, %v2386
        %v2389 = vor.u32 %v2387, %v2388
        %v2390 = vsub.s32 4294967266, %v2385
        %v2391 = vadd.s32 %v2390, 127
        %v2392 = vshll.u32 %v2391, 23
        %v2393 = vor.u32 4788187, %v2392
        %v2394 = vand.u32 2147483647, %v2393
        %v2396 = vcvt.s32.f32 %v2389
        %v2397 = vmul.f32 %v2396, %v2394
        %v2398 = vxor.u32 %v2397, 2147483648
        %v2399 = vsel %vm2316, %v2398, %v2397
        %v2400 = vsub.s32 4, %v2376
        %v2401 = vsel %vm2316, %v2400, %v2376
        %v2402 = vsel %vm2315, %v1894, %v2399
        %v2403 = vsel %vm2315, 0, %v2401
        %v2404 = vcosq.f32.pop %v2402
        %v2405 = vsinq.f32.pop %v2402
        %vm2406 = vweird.f32 %v1894
        %v2407 = vadd.s32 %v2403, 3
        %v2408 = vand.u32 %v2407, 3
        %vm2409 = vcmp.lt.s32.totalorder %v2408, 2
        %vm2410 = vcmp.eq.s32.totalorder %v2408, 0
        %v2411 = vxor.u32 %v2405, 2147483648
        %v2412 = vsel %vm2410, %v2404, %v2411
        %vm2413 = vcmp.eq.s32.totalorder %v2408, 2
        %v2414 = vxor.u32 %v2404, 2147483648
        %v2415 = vsel %vm2413, %v2414, %v2405
        %v2416 = vsel %vm2409, %v2412, %v2415
        %v2417 = vsel %vm2406, nan, %v2416
        %v2418 = vand.u32 2147483647, %v1895
        %vm2419 = vcmp.le.f32.partialorder %v2418, 0.7853982
        %vm2420 = vcmp.lt.s32.totalorder %v1895, 0
        %v2421 = vand.u32 %v1895, 2139095040
        %v2422 = vshrl.u32 %v2421, 23
        %v2423 = vsub.s32 %v2422, 127
        %v2424 = vand.u32 2147483647, %v1895
        %v2425 = vand.u32 %v2424, 8388607
        %v2426 = vor.u32 %v2425, 8388608
        %v2427 = vsub.s32 0, %v2426
        %v2428 = vadd.s32 %v2423, 1
        %vm2429 = vcmp.gt.s32.totalorder %v2428, 0
        %v2430 = vsel %vm2429, %v2428, 0
        %v2431 = vshrl.u32 %v2430, 5
        %v2432 = vand.u32 %v2430, 31
        %v2433 = vsub.s32 32, %v2432
        %v2434 = vshrl.u32 683565275, %v2433
        %v2435 = vshll.u32 683565275, %v2432
        %v2436 = vshrl.u32 2475754826, %v2433
        %v2437 = vor.u32 %v2435, %v2436
        %v2438 = vshll.u32 2475754826, %v2432
        %v2439 = vshrl.u32 2131351028, %v2433
        %v2440 = vor.u32 %v2438, %v2439
        %v2441 = vshll.u32 2131351028, %v2432
        %v2442 = vshrl.u32 2102212464, %v2433
        %v2443 = vor.u32 %v2441, %v2442
        %v2444 = vshll.u32 2102212464, %v2432
        %v2445 = vshrl.u32 920167782, %v2433
        %v2446 = vor.u32 %v2444, %v2445
        %v2447 = vshll.u32 920167782, %v2432
        %v2448 = vshrl.u32 1326507024, %v2433
        %v2449 = vor.u32 %v2447, %v2448
        %vm2450 = vcmp.lt.s32.totalorder %v2431, 1
        %vm2451 = vcmp.lt.s32.totalorder %v2431, 2
        %vm2452 = vcmp.lt.s32.totalorder %v2431, 3
        %vm2453 = vcmp.lt.s32.totalorder %v2431, 4
        %v2454 = vsel %vm2450, %v2434, %v2437
        %v2455 = vsel %vm2453, %v2443, 2102212464
        %v2456 = vsel %vm2452, %v2440, %v2455
        %v2457 = vsel %vm2451, %v2454, %v2456
        %v2458 = vsel %vm2450, %v2437, %v2440
        %v2459 = vsel %vm2453, %v2446, 920167782
        %v2460 = vsel %vm2452, %v2443, %v2459
        %v2461 = vsel %vm2451, %v2458, %v2460
        %v2462 = vsel %vm2450, %v2440, %v2443
        %v2463 = vsel %vm2453, %v2449, 1326507024
        %v2464 = vsel %vm2452, %v2446, %v2463
        %v2465 = vsel %vm2451, %v2462, %v2464
        %v2466 = vshll.u32 %v2426, 8
        %v2467 = vmul.u32.u64.compose %v2466, %v2465
        %v2468 = vextract.low.u32 %v2467
        %v2469 = vextract.high.u32 %v2467
        %v2470 = vmul.u32.u64.compose %v2466, %v2461
        %v2471 = vextract.low.u32 %v2470
        %v2472 = vextract.high.u32 %v2470
        %v2473 = vmul.u32 %v2466, %v2457
        %v2474 = vadd.s32 %v2469, %v2471
        %vm2475 = vc.u32 %v2469, %v2471
        %v2476 = vadd.s32 %v2472, 1
        %v2477 = vsel %vm2475, %v2476, %v2472
        %v2478 = vadd.s32 %v2473, %v2477
        %v2479 = vadd.s32 %v2478, 536870912
        %v2480 = vshrl.u32 %v2479, 30
        %v2481 = vshll.u32 %v2480, 30
        %v2482 = vsub.s32 %v2478, %v2481
        %vm2483 = vcmp.lt.s32.totalorder %v2482, 0
        %v2484 = vsub.s32 0, %v2482
        %v2485 = vsel %vm2483, %v2484, %v2482
        %v2486 = vclz %v2485
        %v2487 = vsub.s32 %v2486, 2
        %vm2488 = vcmp.gt.s32.totalorder 0, %v2487
        %v2489 = vsel %vm2488, 0, %v2487
        %v2490 = vsub.s32 32, %v2489
        %v2491 = vshll.u32 %v2482, %v2489
        %v2492 = vshrl.u32 %v2474, %v2490
        %v2493 = vor.u32 %v2491, %v2492
        %v2494 = vsub.s32 4294967266, %v2489
        %v2495 = vadd.s32 %v2494, 127
        %v2496 = vshll.u32 %v2495, 23
        %v2497 = vor.u32 4788187, %v2496
        %v2498 = vand.u32 2147483647, %v2497
        %v2500 = vcvt.s32.f32 %v2493
        %v2501 = vmul.f32 %v2500, %v2498
        %v2502 = vxor.u32 %v2501, 2147483648
        %v2503 = vsel %vm2420, %v2502, %v2501
        %v2504 = vsub.s32 4, %v2480
        %v2505 = vsel %vm2420, %v2504, %v2480
        %v2506 = vsel %vm2419, %v1895, %v2503
        %v2507 = vsel %vm2419, 0, %v2505
        %v2508 = vcosq.f32.pop %v2506
        %v2509 = vsinq.f32.pop %v2506
        %vm2510 = vweird.f32 %v1895
        %v2511 = vadd.s32 %v2507, 3
        %v2512 = vand.u32 %v2511, 3
        %vm2513 = vcmp.lt.s32.totalorder %v2512, 2
        %vm2514 = vcmp.eq.s32.totalorder %v2512, 0
        %v2515 = vxor.u32 %v2509, 2147483648
        %v2516 = vsel %vm2514, %v2508, %v2515
        %vm2517 = vcmp.eq.s32.totalorder %v2512, 2
        %v2518 = vxor.u32 %v2508, 2147483648
        %v2519 = vsel %vm2517, %v2518, %v2509
        %v2520 = vsel %vm2513, %v2516, %v2519
        %v2521 = vsel %vm2510, nan, %v2520
        %v2522 = vand.u32 2147483647, %v1896
        %vm2523 = vcmp.le.f32.partialorder %v2522, 0.7853982
        %vm2524 = vcmp.lt.s32.totalorder %v1896, 0
        %v2525 = vand.u32 %v1896, 2139095040
        %v2526 = vshrl.u32 %v2525, 23
        %v2527 = vsub.s32 %v2526, 127
        %v2528 = vand.u32 2147483647, %v1896
        %v2529 = vand.u32 %v2528, 8388607
        %v2530 = vor.u32 %v2529, 8388608
        %v2531 = vsub.s32 0, %v2530
        %v2532 = vadd.s32 %v2527, 1
        %vm2533 = vcmp.gt.s32.totalorder %v2532, 0
        %v2534 = vsel %vm2533, %v2532, 0
        %v2535 = vshrl.u32 %v2534, 5
        %v2536 = vand.u32 %v2534, 31
        %v2537 = vsub.s32 32, %v2536
        %v2538 = vshrl.u32 683565275, %v2537
        %v2539 = vshll.u32 683565275, %v2536
        %v2540 = vshrl.u32 2475754826, %v2537
        %v2541 = vor.u32 %v2539, %v2540
        %v2542 = vshll.u32 2475754826, %v2536
        %v2543 = vshrl.u32 2131351028, %v2537
        %v2544 = vor.u32 %v2542, %v2543
        %v2545 = vshll.u32 2131351028, %v2536
        %v2546 = vshrl.u32 2102212464, %v2537
        %v2547 = vor.u32 %v2545, %v2546
        %v2548 = vshll.u32 2102212464, %v2536
        %v2549 = vshrl.u32 920167782, %v2537
        %v2550 = vor.u32 %v2548, %v2549
        %v2551 = vshll.u32 920167782, %v2536
        %v2552 = vshrl.u32 1326507024, %v2537
        %v2553 = vor.u32 %v2551, %v2552
        %vm2554 = vcmp.lt.s32.totalorder %v2535, 1
        %vm2555 = vcmp.lt.s32.totalorder %v2535, 2
        %vm2556 = vcmp.lt.s32.totalorder %v2535, 3
        %vm2557 = vcmp.lt.s32.totalorder %v2535, 4
        %v2558 = vsel %vm2554, %v2538, %v2541
        %v2559 = vsel %vm2557, %v2547, 2102212464
        %v2560 = vsel %vm2556, %v2544, %v2559
        %v2561 = vsel %vm2555, %v2558, %v2560
        %v2562 = vsel %vm2554, %v2541, %v2544
        %v2563 = vsel %vm2557, %v2550, 920167782
        %v2564 = vsel %vm2556, %v2547, %v2563
        %v2565 = vsel %vm2555, %v2562, %v2564
        %v2566 = vsel %vm2554, %v2544, %v2547
        %v2567 = vsel %vm2557, %v2553, 1326507024
        %v2568 = vsel %vm2556, %v2550, %v2567
        %v2569 = vsel %vm2555, %v2566, %v2568
        %v2570 = vshll.u32 %v2530, 8
        %v2571 = vmul.u32.u64.compose %v2570, %v2569
        %v2572 = vextract.low.u32 %v2571
        %v2573 = vextract.high.u32 %v2571
        %v2574 = vmul.u32.u64.compose %v2570, %v2565
        %v2575 = vextract.low.u32 %v2574
        %v2576 = vextract.high.u32 %v2574
        %v2577 = vmul.u32 %v2570, %v2561
        %v2578 = vadd.s32 %v2573, %v2575
        %vm2579 = vc.u32 %v2573, %v2575
        %v2580 = vadd.s32 %v2576, 1
        %v2581 = vsel %vm2579, %v2580, %v2576
        %v2582 = vadd.s32 %v2577, %v2581
        %v2583 = vadd.s32 %v2582, 536870912
        %v2584 = vshrl.u32 %v2583, 30
        %v2585 = vshll.u32 %v2584, 30
        %v2586 = vsub.s32 %v2582, %v2585
        %vm2587 = vcmp.lt.s32.totalorder %v2586, 0
        %v2588 = vsub.s32 0, %v2586
        %v2589 = vsel %vm2587, %v2588, %v2586
        %v2590 = vclz %v2589
        %v2591 = vsub.s32 %v2590, 2
        %vm2592 = vcmp.gt.s32.totalorder 0, %v2591
        %v2593 = vsel %vm2592, 0, %v2591
        %v2594 = vsub.s32 32, %v2593
        %v2595 = vshll.u32 %v2586, %v2593
        %v2596 = vshrl.u32 %v2578, %v2594
        %v2597 = vor.u32 %v2595, %v2596
        %v2598 = vsub.s32 4294967266, %v2593
        %v2599 = vadd.s32 %v2598, 127
        %v2600 = vshll.u32 %v2599, 23
        %v2601 = vor.u32 4788187, %v2600
        %v2602 = vand.u32 2147483647, %v2601
        %v2604 = vcvt.s32.f32 %v2597
        %v2605 = vmul.f32 %v2604, %v2602
        %v2606 = vxor.u32 %v2605, 2147483648
        %v2607 = vsel %vm2524, %v2606, %v2605
        %v2608 = vsub.s32 4, %v2584
        %v2609 = vsel %vm2524, %v2608, %v2584
        %v2610 = vsel %vm2523, %v1896, %v2607
        %v2611 = vsel %vm2523, 0, %v2609
        %v2612 = vcosq.f32.pop %v2610
        %v2613 = vsinq.f32.pop %v2610
        %vm2614 = vweird.f32 %v1896
        %v2615 = vadd.s32 %v2611, 3
        %v2616 = vand.u32 %v2615, 3
        %vm2617 = vcmp.lt.s32.totalorder %v2616, 2
        %vm2618 = vcmp.eq.s32.totalorder %v2616, 0
        %v2619 = vxor.u32 %v2613, 2147483648
        %v2620 = vsel %vm2618, %v2612, %v2619
        %vm2621 = vcmp.eq.s32.totalorder %v2616, 2
        %v2622 = vxor.u32 %v2612, 2147483648
        %v2623 = vsel %vm2621, %v2622, %v2613
        %v2624 = vsel %vm2617, %v2620, %v2623
        %v2625 = vsel %vm2614, nan, %v2624
        %v2626 = vand.u32 2147483647, %v1897
        %vm2627 = vcmp.le.f32.partialorder %v2626, 0.7853982
        %vm2628 = vcmp.lt.s32.totalorder %v1897, 0
        %v2629 = vand.u32 %v1897, 2139095040
        %v2630 = vshrl.u32 %v2629, 23
        %v2631 = vsub.s32 %v2630, 127
        %v2632 = vand.u32 2147483647, %v1897
        %v2633 = vand.u32 %v2632, 8388607
        %v2634 = vor.u32 %v2633, 8388608
        %v2635 = vsub.s32 0, %v2634
        %v2636 = vadd.s32 %v2631, 1
        %vm2637 = vcmp.gt.s32.totalorder %v2636, 0
        %v2638 = vsel %vm2637, %v2636, 0
        %v2639 = vshrl.u32 %v2638, 5
        %v2640 = vand.u32 %v2638, 31
        %v2641 = vsub.s32 32, %v2640
        %v2642 = vshrl.u32 683565275, %v2641
        %v2643 = vshll.u32 683565275, %v2640
        %v2644 = vshrl.u32 2475754826, %v2641
        %v2645 = vor.u32 %v2643, %v2644
        %v2646 = vshll.u32 2475754826, %v2640
        %v2647 = vshrl.u32 2131351028, %v2641
        %v2648 = vor.u32 %v2646, %v2647
        %v2649 = vshll.u32 2131351028, %v2640
        %v2650 = vshrl.u32 2102212464, %v2641
        %v2651 = vor.u32 %v2649, %v2650
        %v2652 = vshll.u32 2102212464, %v2640
        %v2653 = vshrl.u32 920167782, %v2641
        %v2654 = vor.u32 %v2652, %v2653
        %v2655 = vshll.u32 920167782, %v2640
        %v2656 = vshrl.u32 1326507024, %v2641
        %v2657 = vor.u32 %v2655, %v2656
        %vm2658 = vcmp.lt.s32.totalorder %v2639, 1
        %vm2659 = vcmp.lt.s32.totalorder %v2639, 2
        %vm2660 = vcmp.lt.s32.totalorder %v2639, 3
        %vm2661 = vcmp.lt.s32.totalorder %v2639, 4
        %v2662 = vsel %vm2658, %v2642, %v2645
        %v2663 = vsel %vm2661, %v2651, 2102212464
        %v2664 = vsel %vm2660, %v2648, %v2663
        %v2665 = vsel %vm2659, %v2662, %v2664
        %v2666 = vsel %vm2658, %v2645, %v2648
        %v2667 = vsel %vm2661, %v2654, 920167782
        %v2668 = vsel %vm2660, %v2651, %v2667
        %v2669 = vsel %vm2659, %v2666, %v2668
        %v2670 = vsel %vm2658, %v2648, %v2651
        %v2671 = vsel %vm2661, %v2657, 1326507024
        %v2672 = vsel %vm2660, %v2654, %v2671
        %v2673 = vsel %vm2659, %v2670, %v2672
        %v2674 = vshll.u32 %v2634, 8
        %v2675 = vmul.u32.u64.compose %v2674, %v2673
        %v2676 = vextract.low.u32 %v2675
        %v2677 = vextract.high.u32 %v2675
        %v2678 = vmul.u32.u64.compose %v2674, %v2669
        %v2679 = vextract.low.u32 %v2678
        %v2680 = vextract.high.u32 %v2678
        %v2681 = vmul.u32 %v2674, %v2665
        %v2682 = vadd.s32 %v2677, %v2679
        %vm2683 = vc.u32 %v2677, %v2679
        %v2684 = vadd.s32 %v2680, 1
        %v2685 = vsel %vm2683, %v2684, %v2680
        %v2686 = vadd.s32 %v2681, %v2685
        %v2687 = vadd.s32 %v2686, 536870912
        %v2688 = vshrl.u32 %v2687, 30
        %v2689 = vshll.u32 %v2688, 30
        %v2690 = vsub.s32 %v2686, %v2689
        %vm2691 = vcmp.lt.s32.totalorder %v2690, 0
        %v2692 = vsub.s32 0, %v2690
        %v2693 = vsel %vm2691, %v2692, %v2690
        %v2694 = vclz %v2693
        %v2695 = vsub.s32 %v2694, 2
        %vm2696 = vcmp.gt.s32.totalorder 0, %v2695
        %v2697 = vsel %vm2696, 0, %v2695
        %v2698 = vsub.s32 32, %v2697
        %v2699 = vshll.u32 %v2690, %v2697
        %v2700 = vshrl.u32 %v2682, %v2698
        %v2701 = vor.u32 %v2699, %v2700
        %v2702 = vsub.s32 4294967266, %v2697
        %v2703 = vadd.s32 %v2702, 127
        %v2704 = vshll.u32 %v2703, 23
        %v2705 = vor.u32 4788187, %v2704
        %v2706 = vand.u32 2147483647, %v2705
        %v2708 = vcvt.s32.f32 %v2701
        %v2709 = vmul.f32 %v2708, %v2706
        %v2710 = vxor.u32 %v2709, 2147483648
        %v2711 = vsel %vm2628, %v2710, %v2709
        %v2712 = vsub.s32 4, %v2688
        %v2713 = vsel %vm2628, %v2712, %v2688
        %v2714 = vsel %vm2627, %v1897, %v2711
        %v2715 = vsel %vm2627, 0, %v2713
        %v2716 = vcosq.f32.pop %v2714
        %v2717 = vsinq.f32.pop %v2714
        %vm2718 = vweird.f32 %v1897
        %v2719 = vadd.s32 %v2715, 3
        %v2720 = vand.u32 %v2719, 3
        %vm2721 = vcmp.lt.s32.totalorder %v2720, 2
        %vm2722 = vcmp.eq.s32.totalorder %v2720, 0
        %v2723 = vxor.u32 %v2717, 2147483648
        %v2724 = vsel %vm2722, %v2716, %v2723
        %vm2725 = vcmp.eq.s32.totalorder %v2720, 2
        %v2726 = vxor.u32 %v2716, 2147483648
        %v2727 = vsel %vm2725, %v2726, %v2717
        %v2728 = vsel %vm2721, %v2724, %v2727
        %v2729 = vsel %vm2718, nan, %v2728
        %v2730 = vand.u32 2147483647, %v1890
        %vm2731 = vcmp.le.f32.partialorder %v2730, 0.7853982
        %vm2732 = vcmp.lt.s32.totalorder %v1890, 0
        %v2733 = vand.u32 %v1890, 2139095040
        %v2734 = vshrl.u32 %v2733, 23
        %v2735 = vsub.s32 %v2734, 127
        %v2736 = vand.u32 2147483647, %v1890
        %v2737 = vand.u32 %v2736, 8388607
        %v2738 = vor.u32 %v2737, 8388608
        %v2739 = vsub.s32 0, %v2738
        %v2740 = vadd.s32 %v2735, 1
        %vm2741 = vcmp.gt.s32.totalorder %v2740, 0
        %v2742 = vsel %vm2741, %v2740, 0
        %v2743 = vshrl.u32 %v2742, 5
        %v2744 = vand.u32 %v2742, 31
        %v2745 = vsub.s32 32, %v2744
        %v2746 = vshrl.u32 683565275, %v2745
        %v2747 = vshll.u32 683565275, %v2744
        %v2748 = vshrl.u32 2475754826, %v2745
        %v2749 = vor.u32 %v2747, %v2748
        %v2750 = vshll.u32 2475754826, %v2744
        %v2751 = vshrl.u32 2131351028, %v2745
        %v2752 = vor.u32 %v2750, %v2751
        %v2753 = vshll.u32 2131351028, %v2744
        %v2754 = vshrl.u32 2102212464, %v2745
        %v2755 = vor.u32 %v2753, %v2754
        %v2756 = vshll.u32 2102212464, %v2744
        %v2757 = vshrl.u32 920167782, %v2745
        %v2758 = vor.u32 %v2756, %v2757
        %v2759 = vshll.u32 920167782, %v2744
        %v2760 = vshrl.u32 1326507024, %v2745
        %v2761 = vor.u32 %v2759, %v2760
        %vm2762 = vcmp.lt.s32.totalorder %v2743, 1
        %vm2763 = vcmp.lt.s32.totalorder %v2743, 2
        %vm2764 = vcmp.lt.s32.totalorder %v2743, 3
        %vm2765 = vcmp.lt.s32.totalorder %v2743, 4
        %v2766 = vsel %vm2762, %v2746, %v2749
        %v2767 = vsel %vm2765, %v2755, 2102212464
        %v2768 = vsel %vm2764, %v2752, %v2767
        %v2769 = vsel %vm2763, %v2766, %v2768
        %v2770 = vsel %vm2762, %v2749, %v2752
        %v2771 = vsel %vm2765, %v2758, 920167782
        %v2772 = vsel %vm2764, %v2755, %v2771
        %v2773 = vsel %vm2763, %v2770, %v2772
        %v2774 = vsel %vm2762, %v2752, %v2755
        %v2775 = vsel %vm2765, %v2761, 1326507024
        %v2776 = vsel %vm2764, %v2758, %v2775
        %v2777 = vsel %vm2763, %v2774, %v2776
        %v2778 = vshll.u32 %v2738, 8
        %v2779 = vmul.u32.u64.compose %v2778, %v2777
        %v2780 = vextract.low.u32 %v2779
        %v2781 = vextract.high.u32 %v2779
        %v2782 = vmul.u32.u64.compose %v2778, %v2773
        %v2783 = vextract.low.u32 %v2782
        %v2784 = vextract.high.u32 %v2782
        %v2785 = vmul.u32 %v2778, %v2769
        %v2786 = vadd.s32 %v2781, %v2783
        %vm2787 = vc.u32 %v2781, %v2783
        %v2788 = vadd.s32 %v2784, 1
        %v2789 = vsel %vm2787, %v2788, %v2784
        %v2790 = vadd.s32 %v2785, %v2789
        %v2791 = vadd.s32 %v2790, 536870912
        %v2792 = vshrl.u32 %v2791, 30
        %v2793 = vshll.u32 %v2792, 30
        %v2794 = vsub.s32 %v2790, %v2793
        %vm2795 = vcmp.lt.s32.totalorder %v2794, 0
        %v2796 = vsub.s32 0, %v2794
        %v2797 = vsel %vm2795, %v2796, %v2794
        %v2798 = vclz %v2797
        %v2799 = vsub.s32 %v2798, 2
        %vm2800 = vcmp.gt.s32.totalorder 0, %v2799
        %v2801 = vsel %vm2800, 0, %v2799
        %v2802 = vsub.s32 32, %v2801
        %v2803 = vshll.u32 %v2794, %v2801
        %v2804 = vshrl.u32 %v2786, %v2802
        %v2805 = vor.u32 %v2803, %v2804
        %v2806 = vsub.s32 4294967266, %v2801
        %v2807 = vadd.s32 %v2806, 127
        %v2808 = vshll.u32 %v2807, 23
        %v2809 = vor.u32 4788187, %v2808
        %v2810 = vand.u32 2147483647, %v2809
        %v2812 = vcvt.s32.f32 %v2805
        %v2813 = vmul.f32 %v2812, %v2810
        %v2814 = vxor.u32 %v2813, 2147483648
        %v2815 = vsel %vm2732, %v2814, %v2813
        %v2816 = vsub.s32 4, %v2792
        %v2817 = vsel %vm2732, %v2816, %v2792
        %v2818 = vsel %vm2731, %v1890, %v2815
        %v2819 = vsel %vm2731, 0, %v2817
        %v2820 = vcosq.f32.pop %v2818
        %v2821 = vsinq.f32.pop %v2818
        %vm2822 = vweird.f32 %v1890
        %v2823 = vand.u32 %v2819, 3
        %vm2824 = vcmp.lt.s32.totalorder %v2823, 2
        %vm2825 = vcmp.eq.s32.totalorder %v2823, 0
        %v2826 = vxor.u32 %v2821, 2147483648
        %v2827 = vsel %vm2825, %v2820, %v2826
        %vm2828 = vcmp.eq.s32.totalorder %v2823, 2
        %v2829 = vxor.u32 %v2820, 2147483648
        %v2830 = vsel %vm2828, %v2829, %v2821
        %v2831 = vsel %vm2824, %v2827, %v2830
        %v2832 = vsel %vm2822, nan, %v2831
        %v2833 = vand.u32 2147483647, %v1891
        %vm2834 = vcmp.le.f32.partialorder %v2833, 0.7853982
        %vm2835 = vcmp.lt.s32.totalorder %v1891, 0
        %v2836 = vand.u32 %v1891, 2139095040
        %v2837 = vshrl.u32 %v2836, 23
        %v2838 = vsub.s32 %v2837, 127
        %v2839 = vand.u32 2147483647, %v1891
        %v2840 = vand.u32 %v2839, 8388607
        %v2841 = vor.u32 %v2840, 8388608
        %v2842 = vsub.s32 0, %v2841
        %v2843 = vadd.s32 %v2838, 1
        %vm2844 = vcmp.gt.s32.totalorder %v2843, 0
        %v2845 = vsel %vm2844, %v2843, 0
        %v2846 = vshrl.u32 %v2845, 5
        %v2847 = vand.u32 %v2845, 31
        %v2848 = vsub.s32 32, %v2847
        %v2849 = vshrl.u32 683565275, %v2848
        %v2850 = vshll.u32 683565275, %v2847
        %v2851 = vshrl.u32 2475754826, %v2848
        %v2852 = vor.u32 %v2850, %v2851
        %v2853 = vshll.u32 2475754826, %v2847
        %v2854 = vshrl.u32 2131351028, %v2848
        %v2855 = vor.u32 %v2853, %v2854
        %v2856 = vshll.u32 2131351028, %v2847
        %v2857 = vshrl.u32 2102212464, %v2848
        %v2858 = vor.u32 %v2856, %v2857
        %v2859 = vshll.u32 2102212464, %v2847
        %v2860 = vshrl.u32 920167782, %v2848
        %v2861 = vor.u32 %v2859, %v2860
        %v2862 = vshll.u32 920167782, %v2847
        %v2863 = vshrl.u32 1326507024, %v2848
        %v2864 = vor.u32 %v2862, %v2863
        %vm2865 = vcmp.lt.s32.totalorder %v2846, 1
        %vm2866 = vcmp.lt.s32.totalorder %v2846, 2
        %vm2867 = vcmp.lt.s32.totalorder %v2846, 3
        %vm2868 = vcmp.lt.s32.totalorder %v2846, 4
        %v2869 = vsel %vm2865, %v2849, %v2852
        %v2870 = vsel %vm2868, %v2858, 2102212464
        %v2871 = vsel %vm2867, %v2855, %v2870
        %v2872 = vsel %vm2866, %v2869, %v2871
        %v2873 = vsel %vm2865, %v2852, %v2855
        %v2874 = vsel %vm2868, %v2861, 920167782
        %v2875 = vsel %vm2867, %v2858, %v2874
        %v2876 = vsel %vm2866, %v2873, %v2875
        %v2877 = vsel %vm2865, %v2855, %v2858
        %v2878 = vsel %vm2868, %v2864, 1326507024
        %v2879 = vsel %vm2867, %v2861, %v2878
        %v2880 = vsel %vm2866, %v2877, %v2879
        %v2881 = vshll.u32 %v2841, 8
        %v2882 = vmul.u32.u64.compose %v2881, %v2880
        %v2883 = vextract.low.u32 %v2882
        %v2884 = vextract.high.u32 %v2882
        %v2885 = vmul.u32.u64.compose %v2881, %v2876
        %v2886 = vextract.low.u32 %v2885
        %v2887 = vextract.high.u32 %v2885
        %v2888 = vmul.u32 %v2881, %v2872
        %v2889 = vadd.s32 %v2884, %v2886
        %vm2890 = vc.u32 %v2884, %v2886
        %v2891 = vadd.s32 %v2887, 1
        %v2892 = vsel %vm2890, %v2891, %v2887
        %v2893 = vadd.s32 %v2888, %v2892
        %v2894 = vadd.s32 %v2893, 536870912
        %v2895 = vshrl.u32 %v2894, 30
        %v2896 = vshll.u32 %v2895, 30
        %v2897 = vsub.s32 %v2893, %v2896
        %vm2898 = vcmp.lt.s32.totalorder %v2897, 0
        %v2899 = vsub.s32 0, %v2897
        %v2900 = vsel %vm2898, %v2899, %v2897
        %v2901 = vclz %v2900
        %v2902 = vsub.s32 %v2901, 2
        %vm2903 = vcmp.gt.s32.totalorder 0, %v2902
        %v2904 = vsel %vm2903, 0, %v2902
        %v2905 = vsub.s32 32, %v2904
        %v2906 = vshll.u32 %v2897, %v2904
        %v2907 = vshrl.u32 %v2889, %v2905
        %v2908 = vor.u32 %v2906, %v2907
        %v2909 = vsub.s32 4294967266, %v2904
        %v2910 = vadd.s32 %v2909, 127
        %v2911 = vshll.u32 %v2910, 23
        %v2912 = vor.u32 4788187, %v2911
        %v2913 = vand.u32 2147483647, %v2912
        %v2915 = vcvt.s32.f32 %v2908
        %v2916 = vmul.f32 %v2915, %v2913
        %v2917 = vxor.u32 %v2916, 2147483648
        %v2918 = vsel %vm2835, %v2917, %v2916
        %v2919 = vsub.s32 4, %v2895
        %v2920 = vsel %vm2835, %v2919, %v2895
        %v2921 = vsel %vm2834, %v1891, %v2918
        %v2922 = vsel %vm2834, 0, %v2920
        %v2923 = vcosq.f32.pop %v2921
        %v2924 = vsinq.f32.pop %v2921
        %vm2925 = vweird.f32 %v1891
        %v2926 = vand.u32 %v2922, 3
        %vm2927 = vcmp.lt.s32.totalorder %v2926, 2
        %vm2928 = vcmp.eq.s32.totalorder %v2926, 0
        %v2929 = vxor.u32 %v2924, 2147483648
        %v2930 = vsel %vm2928, %v2923, %v2929
        %vm2931 = vcmp.eq.s32.totalorder %v2926, 2
        %v2932 = vxor.u32 %v2923, 2147483648
        %v2933 = vsel %vm2931, %v2932, %v2924
        %v2934 = vsel %vm2927, %v2930, %v2933
        %v2935 = vsel %vm2925, nan, %v2934
        %v2936 = vand.u32 2147483647, %v1892
        %vm2937 = vcmp.le.f32.partialorder %v2936, 0.7853982
        %vm2938 = vcmp.lt.s32.totalorder %v1892, 0
        %v2939 = vand.u32 %v1892, 2139095040
        %v2940 = vshrl.u32 %v2939, 23
        %v2941 = vsub.s32 %v2940, 127
        %v2942 = vand.u32 2147483647, %v1892
        %v2943 = vand.u32 %v2942, 8388607
        %v2944 = vor.u32 %v2943, 8388608
        %v2945 = vsub.s32 0, %v2944
        %v2946 = vadd.s32 %v2941, 1
        %vm2947 = vcmp.gt.s32.totalorder %v2946, 0
        %v2948 = vsel %vm2947, %v2946, 0
        %v2949 = vshrl.u32 %v2948, 5
        %v2950 = vand.u32 %v2948, 31
        %v2951 = vsub.s32 32, %v2950
        %v2952 = vshrl.u32 683565275, %v2951
        %v2953 = vshll.u32 683565275, %v2950
        %v2954 = vshrl.u32 2475754826, %v2951
        %v2955 = vor.u32 %v2953, %v2954
        %v2956 = vshll.u32 2475754826, %v2950
        %v2957 = vshrl.u32 2131351028, %v2951
        %v2958 = vor.u32 %v2956, %v2957
        %v2959 = vshll.u32 2131351028, %v2950
        %v2960 = vshrl.u32 2102212464, %v2951
        %v2961 = vor.u32 %v2959, %v2960
        %v2962 = vshll.u32 2102212464, %v2950
        %v2963 = vshrl.u32 920167782, %v2951
        %v2964 = vor.u32 %v2962, %v2963
        %v2965 = vshll.u32 920167782, %v2950
        %v2966 = vshrl.u32 1326507024, %v2951
        %v2967 = vor.u32 %v2965, %v2966
        %vm2968 = vcmp.lt.s32.totalorder %v2949, 1
        %vm2969 = vcmp.lt.s32.totalorder %v2949, 2
        %vm2970 = vcmp.lt.s32.totalorder %v2949, 3
        %vm2971 = vcmp.lt.s32.totalorder %v2949, 4
        %v2972 = vsel %vm2968, %v2952, %v2955
        %v2973 = vsel %vm2971, %v2961, 2102212464
        %v2974 = vsel %vm2970, %v2958, %v2973
        %v2975 = vsel %vm2969, %v2972, %v2974
        %v2976 = vsel %vm2968, %v2955, %v2958
        %v2977 = vsel %vm2971, %v2964, 920167782
        %v2978 = vsel %vm2970, %v2961, %v2977
        %v2979 = vsel %vm2969, %v2976, %v2978
        %v2980 = vsel %vm2968, %v2958, %v2961
        %v2981 = vsel %vm2971, %v2967, 1326507024
        %v2982 = vsel %vm2970, %v2964, %v2981
        %v2983 = vsel %vm2969, %v2980, %v2982
        %v2984 = vshll.u32 %v2944, 8
        %v2985 = vmul.u32.u64.compose %v2984, %v2983
        %v2986 = vextract.low.u32 %v2985
        %v2987 = vextract.high.u32 %v2985
        %v2988 = vmul.u32.u64.compose %v2984, %v2979
        %v2989 = vextract.low.u32 %v2988
        %v2990 = vextract.high.u32 %v2988
        %v2991 = vmul.u32 %v2984, %v2975
        %v2992 = vadd.s32 %v2987, %v2989
        %vm2993 = vc.u32 %v2987, %v2989
        %v2994 = vadd.s32 %v2990, 1
        %v2995 = vsel %vm2993, %v2994, %v2990
        %v2996 = vadd.s32 %v2991, %v2995
        %v2997 = vadd.s32 %v2996, 536870912
        %v2998 = vshrl.u32 %v2997, 30
        %v2999 = vshll.u32 %v2998, 30
        %v3000 = vsub.s32 %v2996, %v2999
        %vm3001 = vcmp.lt.s32.totalorder %v3000, 0
        %v3002 = vsub.s32 0, %v3000
        %v3003 = vsel %vm3001, %v3002, %v3000
        %v3004 = vclz %v3003
        %v3005 = vsub.s32 %v3004, 2
        %vm3006 = vcmp.gt.s32.totalorder 0, %v3005
        %v3007 = vsel %vm3006, 0, %v3005
        %v3008 = vsub.s32 32, %v3007
        %v3009 = vshll.u32 %v3000, %v3007
        %v3010 = vshrl.u32 %v2992, %v3008
        %v3011 = vor.u32 %v3009, %v3010
        %v3012 = vsub.s32 4294967266, %v3007
        %v3013 = vadd.s32 %v3012, 127
        %v3014 = vshll.u32 %v3013, 23
        %v3015 = vor.u32 4788187, %v3014
        %v3016 = vand.u32 2147483647, %v3015
        %v3018 = vcvt.s32.f32 %v3011
        %v3019 = vmul.f32 %v3018, %v3016
        %v3020 = vxor.u32 %v3019, 2147483648
        %v3021 = vsel %vm2938, %v3020, %v3019
        %v3022 = vsub.s32 4, %v2998
        %v3023 = vsel %vm2938, %v3022, %v2998
        %v3024 = vsel %vm2937, %v1892, %v3021
        %v3025 = vsel %vm2937, 0, %v3023
        %v3026 = vcosq.f32.pop %v3024
        %v3027 = vsinq.f32.pop %v3024
        %vm3028 = vweird.f32 %v1892
        %v3029 = vand.u32 %v3025, 3
        %vm3030 = vcmp.lt.s32.totalorder %v3029, 2
        %vm3031 = vcmp.eq.s32.totalorder %v3029, 0
        %v3032 = vxor.u32 %v3027, 2147483648
        %v3033 = vsel %vm3031, %v3026, %v3032
        %vm3034 = vcmp.eq.s32.totalorder %v3029, 2
        %v3035 = vxor.u32 %v3026, 2147483648
        %v3036 = vsel %vm3034, %v3035, %v3027
        %v3037 = vsel %vm3030, %v3033, %v3036
        %v3038 = vsel %vm3028, nan, %v3037
        %v3039 = vand.u32 2147483647, %v1893
        %vm3040 = vcmp.le.f32.partialorder %v3039, 0.7853982
        %vm3041 = vcmp.lt.s32.totalorder %v1893, 0
        %v3042 = vand.u32 %v1893, 2139095040
        %v3043 = vshrl.u32 %v3042, 23
        %v3044 = vsub.s32 %v3043, 127
        %v3045 = vand.u32 2147483647, %v1893
        %v3046 = vand.u32 %v3045, 8388607
        %v3047 = vor.u32 %v3046, 8388608
        %v3048 = vsub.s32 0, %v3047
        %v3049 = vadd.s32 %v3044, 1
        %vm3050 = vcmp.gt.s32.totalorder %v3049, 0
        %v3051 = vsel %vm3050, %v3049, 0
        %v3052 = vshrl.u32 %v3051, 5
        %v3053 = vand.u32 %v3051, 31
        %v3054 = vsub.s32 32, %v3053
        %v3055 = vshrl.u32 683565275, %v3054
        %v3056 = vshll.u32 683565275, %v3053
        %v3057 = vshrl.u32 2475754826, %v3054
        %v3058 = vor.u32 %v3056, %v3057
        %v3059 = vshll.u32 2475754826, %v3053
        %v3060 = vshrl.u32 2131351028, %v3054
        %v3061 = vor.u32 %v3059, %v3060
        %v3062 = vshll.u32 2131351028, %v3053
        %v3063 = vshrl.u32 2102212464, %v3054
        %v3064 = vor.u32 %v3062, %v3063
        %v3065 = vshll.u32 2102212464, %v3053
        %v3066 = vshrl.u32 920167782, %v3054
        %v3067 = vor.u32 %v3065, %v3066
        %v3068 = vshll.u32 920167782, %v3053
        %v3069 = vshrl.u32 1326507024, %v3054
        %v3070 = vor.u32 %v3068, %v3069
        %vm3071 = vcmp.lt.s32.totalorder %v3052, 1
        %vm3072 = vcmp.lt.s32.totalorder %v3052, 2
        %vm3073 = vcmp.lt.s32.totalorder %v3052, 3
        %vm3074 = vcmp.lt.s32.totalorder %v3052, 4
        %v3075 = vsel %vm3071, %v3055, %v3058
        %v3076 = vsel %vm3074, %v3064, 2102212464
        %v3077 = vsel %vm3073, %v3061, %v3076
        %v3078 = vsel %vm3072, %v3075, %v3077
        %v3079 = vsel %vm3071, %v3058, %v3061
        %v3080 = vsel %vm3074, %v3067, 920167782
        %v3081 = vsel %vm3073, %v3064, %v3080
        %v3082 = vsel %vm3072, %v3079, %v3081
        %v3083 = vsel %vm3071, %v3061, %v3064
        %v3084 = vsel %vm3074, %v3070, 1326507024
        %v3085 = vsel %vm3073, %v3067, %v3084
        %v3086 = vsel %vm3072, %v3083, %v3085
        %v3087 = vshll.u32 %v3047, 8
        %v3088 = vmul.u32.u64.compose %v3087, %v3086
        %v3089 = vextract.low.u32 %v3088
        %v3090 = vextract.high.u32 %v3088
        %v3091 = vmul.u32.u64.compose %v3087, %v3082
        %v3092 = vextract.low.u32 %v3091
        %v3093 = vextract.high.u32 %v3091
        %v3094 = vmul.u32 %v3087, %v3078
        %v3095 = vadd.s32 %v3090, %v3092
        %vm3096 = vc.u32 %v3090, %v3092
        %v3097 = vadd.s32 %v3093, 1
        %v3098 = vsel %vm3096, %v3097, %v3093
        %v3099 = vadd.s32 %v3094, %v3098
        %v3100 = vadd.s32 %v3099, 536870912
        %v3101 = vshrl.u32 %v3100, 30
        %v3102 = vshll.u32 %v3101, 30
        %v3103 = vsub.s32 %v3099, %v3102
        %vm3104 = vcmp.lt.s32.totalorder %v3103, 0
        %v3105 = vsub.s32 0, %v3103
        %v3106 = vsel %vm3104, %v3105, %v3103
        %v3107 = vclz %v3106
        %v3108 = vsub.s32 %v3107, 2
        %vm3109 = vcmp.gt.s32.totalorder 0, %v3108
        %v3110 = vsel %vm3109, 0, %v3108
        %v3111 = vsub.s32 32, %v3110
        %v3112 = vshll.u32 %v3103, %v3110
        %v3113 = vshrl.u32 %v3095, %v3111
        %v3114 = vor.u32 %v3112, %v3113
        %v3115 = vsub.s32 4294967266, %v3110
        %v3116 = vadd.s32 %v3115, 127
        %v3117 = vshll.u32 %v3116, 23
        %v3118 = vor.u32 4788187, %v3117
        %v3119 = vand.u32 2147483647, %v3118
        %v3121 = vcvt.s32.f32 %v3114
        %v3122 = vmul.f32 %v3121, %v3119
        %v3123 = vxor.u32 %v3122, 2147483648
        %v3124 = vsel %vm3041, %v3123, %v3122
        %v3125 = vsub.s32 4, %v3101
        %v3126 = vsel %vm3041, %v3125, %v3101
        %v3127 = vsel %vm3040, %v1893, %v3124
        %v3128 = vsel %vm3040, 0, %v3126
        %v3129 = vcosq.f32.pop %v3127
        %v3130 = vsinq.f32.pop %v3127
        %vm3131 = vweird.f32 %v1893
        %v3132 = vand.u32 %v3128, 3
        %vm3133 = vcmp.lt.s32.totalorder %v3132, 2
        %vm3134 = vcmp.eq.s32.totalorder %v3132, 0
        %v3135 = vxor.u32 %v3130, 2147483648
        %v3136 = vsel %vm3134, %v3129, %v3135
        %vm3137 = vcmp.eq.s32.totalorder %v3132, 2
        %v3138 = vxor.u32 %v3129, 2147483648
        %v3139 = vsel %vm3137, %v3138, %v3130
        %v3140 = vsel %vm3133, %v3136, %v3139
        %v3141 = vsel %vm3131, nan, %v3140
        %v3142 = vand.u32 2147483647, %v1894
        %vm3143 = vcmp.le.f32.partialorder %v3142, 0.7853982
        %vm3144 = vcmp.lt.s32.totalorder %v1894, 0
        %v3145 = vand.u32 %v1894, 2139095040
        %v3146 = vshrl.u32 %v3145, 23
        %v3147 = vsub.s32 %v3146, 127
        %v3148 = vand.u32 2147483647, %v1894
        %v3149 = vand.u32 %v3148, 8388607
        %v3150 = vor.u32 %v3149, 8388608
        %v3151 = vsub.s32 0, %v3150
        %v3152 = vadd.s32 %v3147, 1
        %vm3153 = vcmp.gt.s32.totalorder %v3152, 0
        %v3154 = vsel %vm3153, %v3152, 0
        %v3155 = vshrl.u32 %v3154, 5
        %v3156 = vand.u32 %v3154, 31
        %v3157 = vsub.s32 32, %v3156
        %v3158 = vshrl.u32 683565275, %v3157
        %v3159 = vshll.u32 683565275, %v3156
        %v3160 = vshrl.u32 2475754826, %v3157
        %v3161 = vor.u32 %v3159, %v3160
        %v3162 = vshll.u32 2475754826, %v3156
        %v3163 = vshrl.u32 2131351028, %v3157
        %v3164 = vor.u32 %v3162, %v3163
        %v3165 = vshll.u32 2131351028, %v3156
        %v3166 = vshrl.u32 2102212464, %v3157
        %v3167 = vor.u32 %v3165, %v3166
        %v3168 = vshll.u32 2102212464, %v3156
        %v3169 = vshrl.u32 920167782, %v3157
        %v3170 = vor.u32 %v3168, %v3169
        %v3171 = vshll.u32 920167782, %v3156
        %v3172 = vshrl.u32 1326507024, %v3157
        %v3173 = vor.u32 %v3171, %v3172
        %vm3174 = vcmp.lt.s32.totalorder %v3155, 1
        %vm3175 = vcmp.lt.s32.totalorder %v3155, 2
        %vm3176 = vcmp.lt.s32.totalorder %v3155, 3
        %vm3177 = vcmp.lt.s32.totalorder %v3155, 4
        %v3178 = vsel %vm3174, %v3158, %v3161
        %v3179 = vsel %vm3177, %v3167, 2102212464
        %v3180 = vsel %vm3176, %v3164, %v3179
        %v3181 = vsel %vm3175, %v3178, %v3180
        %v3182 = vsel %vm3174, %v3161, %v3164
        %v3183 = vsel %vm3177, %v3170, 920167782
        %v3184 = vsel %vm3176, %v3167, %v3183
        %v3185 = vsel %vm3175, %v3182, %v3184
        %v3186 = vsel %vm3174, %v3164, %v3167
        %v3187 = vsel %vm3177, %v3173, 1326507024
        %v3188 = vsel %vm3176, %v3170, %v3187
        %v3189 = vsel %vm3175, %v3186, %v3188
        %v3190 = vshll.u32 %v3150, 8
        %v3191 = vmul.u32.u64.compose %v3190, %v3189
        %v3192 = vextract.low.u32 %v3191
        %v3193 = vextract.high.u32 %v3191
        %v3194 = vmul.u32.u64.compose %v3190, %v3185
        %v3195 = vextract.low.u32 %v3194
        %v3196 = vextract.high.u32 %v3194
        %v3197 = vmul.u32 %v3190, %v3181
        %v3198 = vadd.s32 %v3193, %v3195
        %vm3199 = vc.u32 %v3193, %v3195
        %v3200 = vadd.s32 %v3196, 1
        %v3201 = vsel %vm3199, %v3200, %v3196
        %v3202 = vadd.s32 %v3197, %v3201
        %v3203 = vadd.s32 %v3202, 536870912
        %v3204 = vshrl.u32 %v3203, 30
        %v3205 = vshll.u32 %v3204, 30
        %v3206 = vsub.s32 %v3202, %v3205
        %vm3207 = vcmp.lt.s32.totalorder %v3206, 0
        %v3208 = vsub.s32 0, %v3206
        %v3209 = vsel %vm3207, %v3208, %v3206
        %v3210 = vclz %v3209
        %v3211 = vsub.s32 %v3210, 2
        %vm3212 = vcmp.gt.s32.totalorder 0, %v3211
        %v3213 = vsel %vm3212, 0, %v3211
        %v3214 = vsub.s32 32, %v3213
        %v3215 = vshll.u32 %v3206, %v3213
        %v3216 = vshrl.u32 %v3198, %v3214
        %v3217 = vor.u32 %v3215, %v3216
        %v3218 = vsub.s32 4294967266, %v3213
        %v3219 = vadd.s32 %v3218, 127
        %v3220 = vshll.u32 %v3219, 23
        %v3221 = vor.u32 4788187, %v3220
        %v3222 = vand.u32 2147483647, %v3221
        %v3224 = vcvt.s32.f32 %v3217
        %v3225 = vmul.f32 %v3224, %v3222
        %v3226 = vxor.u32 %v3225, 2147483648
        %v3227 = vsel %vm3144, %v3226, %v3225
        %v3228 = vsub.s32 4, %v3204
        %v3229 = vsel %vm3144, %v3228, %v3204
        %v3230 = vsel %vm3143, %v1894, %v3227
        %v3231 = vsel %vm3143, 0, %v3229
        %v3232 = vcosq.f32.pop %v3230
        %v3233 = vsinq.f32.pop %v3230
        %vm3234 = vweird.f32 %v1894
        %v3235 = vand.u32 %v3231, 3
        %vm3236 = vcmp.lt.s32.totalorder %v3235, 2
        %vm3237 = vcmp.eq.s32.totalorder %v3235, 0
        %v3238 = vxor.u32 %v3233, 2147483648
        %v3239 = vsel %vm3237, %v3232, %v3238
        %vm3240 = vcmp.eq.s32.totalorder %v3235, 2
        %v3241 = vxor.u32 %v3232, 2147483648
        %v3242 = vsel %vm3240, %v3241, %v3233
        %v3243 = vsel %vm3236, %v3239, %v3242
        %v3244 = vsel %vm3234, nan, %v3243
        %v3245 = vand.u32 2147483647, %v1895
        %vm3246 = vcmp.le.f32.partialorder %v3245, 0.7853982
        %vm3247 = vcmp.lt.s32.totalorder %v1895, 0
        %v3248 = vand.u32 %v1895, 2139095040
        %v3249 = vshrl.u32 %v3248, 23
        %v3250 = vsub.s32 %v3249, 127
        %v3251 = vand.u32 2147483647, %v1895
        %v3252 = vand.u32 %v3251, 8388607
        %v3253 = vor.u32 %v3252, 8388608
        %v3254 = vsub.s32 0, %v3253
        %v3255 = vadd.s32 %v3250, 1
        %vm3256 = vcmp.gt.s32.totalorder %v3255, 0
        %v3257 = vsel %vm3256, %v3255, 0
        %v3258 = vshrl.u32 %v3257, 5
        %v3259 = vand.u32 %v3257, 31
        %v3260 = vsub.s32 32, %v3259
        %v3261 = vshrl.u32 683565275, %v3260
        %v3262 = vshll.u32 683565275, %v3259
        %v3263 = vshrl.u32 2475754826, %v3260
        %v3264 = vor.u32 %v3262, %v3263
        %v3265 = vshll.u32 2475754826, %v3259
        %v3266 = vshrl.u32 2131351028, %v3260
        %v3267 = vor.u32 %v3265, %v3266
        %v3268 = vshll.u32 2131351028, %v3259
        %v3269 = vshrl.u32 2102212464, %v3260
        %v3270 = vor.u32 %v3268, %v3269
        %v3271 = vshll.u32 2102212464, %v3259
        %v3272 = vshrl.u32 920167782, %v3260
        %v3273 = vor.u32 %v3271, %v3272
        %v3274 = vshll.u32 920167782, %v3259
        %v3275 = vshrl.u32 1326507024, %v3260
        %v3276 = vor.u32 %v3274, %v3275
        %vm3277 = vcmp.lt.s32.totalorder %v3258, 1
        %vm3278 = vcmp.lt.s32.totalorder %v3258, 2
        %vm3279 = vcmp.lt.s32.totalorder %v3258, 3
        %vm3280 = vcmp.lt.s32.totalorder %v3258, 4
        %v3281 = vsel %vm3277, %v3261, %v3264
        %v3282 = vsel %vm3280, %v3270, 2102212464
        %v3283 = vsel %vm3279, %v3267, %v3282
        %v3284 = vsel %vm3278, %v3281, %v3283
        %v3285 = vsel %vm3277, %v3264, %v3267
        %v3286 = vsel %vm3280, %v3273, 920167782
        %v3287 = vsel %vm3279, %v3270, %v3286
        %v3288 = vsel %vm3278, %v3285, %v3287
        %v3289 = vsel %vm3277, %v3267, %v3270
        %v3290 = vsel %vm3280, %v3276, 1326507024
        %v3291 = vsel %vm3279, %v3273, %v3290
        %v3292 = vsel %vm3278, %v3289, %v3291
        %v3293 = vshll.u32 %v3253, 8
        %v3294 = vmul.u32.u64.compose %v3293, %v3292
        %v3295 = vextract.low.u32 %v3294
        %v3296 = vextract.high.u32 %v3294
        %v3297 = vmul.u32.u64.compose %v3293, %v3288
        %v3298 = vextract.low.u32 %v3297
        %v3299 = vextract.high.u32 %v3297
        %v3300 = vmul.u32 %v3293, %v3284
        %v3301 = vadd.s32 %v3296, %v3298
        %vm3302 = vc.u32 %v3296, %v3298
        %v3303 = vadd.s32 %v3299, 1
        %v3304 = vsel %vm3302, %v3303, %v3299
        %v3305 = vadd.s32 %v3300, %v3304
        %v3306 = vadd.s32 %v3305, 536870912
        %v3307 = vshrl.u32 %v3306, 30
        %v3308 = vshll.u32 %v3307, 30
        %v3309 = vsub.s32 %v3305, %v3308
        %vm3310 = vcmp.lt.s32.totalorder %v3309, 0
        %v3311 = vsub.s32 0, %v3309
        %v3312 = vsel %vm3310, %v3311, %v3309
        %v3313 = vclz %v3312
        %v3314 = vsub.s32 %v3313, 2
        %vm3315 = vcmp.gt.s32.totalorder 0, %v3314
        %v3316 = vsel %vm3315, 0, %v3314
        %v3317 = vsub.s32 32, %v3316
        %v3318 = vshll.u32 %v3309, %v3316
        %v3319 = vshrl.u32 %v3301, %v3317
        %v3320 = vor.u32 %v3318, %v3319
        %v3321 = vsub.s32 4294967266, %v3316
        %v3322 = vadd.s32 %v3321, 127
        %v3323 = vshll.u32 %v3322, 23
        %v3324 = vor.u32 4788187, %v3323
        %v3325 = vand.u32 2147483647, %v3324
        %v3327 = vcvt.s32.f32 %v3320
        %v3328 = vmul.f32 %v3327, %v3325
        %v3329 = vxor.u32 %v3328, 2147483648
        %v3330 = vsel %vm3247, %v3329, %v3328
        %v3331 = vsub.s32 4, %v3307
        %v3332 = vsel %vm3247, %v3331, %v3307
        %v3333 = vsel %vm3246, %v1895, %v3330
        %v3334 = vsel %vm3246, 0, %v3332
        %v3335 = vcosq.f32.pop %v3333
        %v3336 = vsinq.f32.pop %v3333
        %vm3337 = vweird.f32 %v1895
        %v3338 = vand.u32 %v3334, 3
        %vm3339 = vcmp.lt.s32.totalorder %v3338, 2
        %vm3340 = vcmp.eq.s32.totalorder %v3338, 0
        %v3341 = vxor.u32 %v3336, 2147483648
        %v3342 = vsel %vm3340, %v3335, %v3341
        %vm3343 = vcmp.eq.s32.totalorder %v3338, 2
        %v3344 = vxor.u32 %v3335, 2147483648
        %v3345 = vsel %vm3343, %v3344, %v3336
        %v3346 = vsel %vm3339, %v3342, %v3345
        %v3347 = vsel %vm3337, nan, %v3346
        %v3348 = vand.u32 2147483647, %v1896
        %vm3349 = vcmp.le.f32.partialorder %v3348, 0.7853982
        %vm3350 = vcmp.lt.s32.totalorder %v1896, 0
        %v3351 = vand.u32 %v1896, 2139095040
        %v3352 = vshrl.u32 %v3351, 23
        %v3353 = vsub.s32 %v3352, 127
        %v3354 = vand.u32 2147483647, %v1896
        %v3355 = vand.u32 %v3354, 8388607
        %v3356 = vor.u32 %v3355, 8388608
        %v3357 = vsub.s32 0, %v3356
        %v3358 = vadd.s32 %v3353, 1
        %vm3359 = vcmp.gt.s32.totalorder %v3358, 0
        %v3360 = vsel %vm3359, %v3358, 0
        %v3361 = vshrl.u32 %v3360, 5
        %v3362 = vand.u32 %v3360, 31
        %v3363 = vsub.s32 32, %v3362
        %v3364 = vshrl.u32 683565275, %v3363
        %v3365 = vshll.u32 683565275, %v3362
        %v3366 = vshrl.u32 2475754826, %v3363
        %v3367 = vor.u32 %v3365, %v3366
        %v3368 = vshll.u32 2475754826, %v3362
        %v3369 = vshrl.u32 2131351028, %v3363
        %v3370 = vor.u32 %v3368, %v3369
        %v3371 = vshll.u32 2131351028, %v3362
        %v3372 = vshrl.u32 2102212464, %v3363
        %v3373 = vor.u32 %v3371, %v3372
        %v3374 = vshll.u32 2102212464, %v3362
        %v3375 = vshrl.u32 920167782, %v3363
        %v3376 = vor.u32 %v3374, %v3375
        %v3377 = vshll.u32 920167782, %v3362
        %v3378 = vshrl.u32 1326507024, %v3363
        %v3379 = vor.u32 %v3377, %v3378
        %vm3380 = vcmp.lt.s32.totalorder %v3361, 1
        %vm3381 = vcmp.lt.s32.totalorder %v3361, 2
        %vm3382 = vcmp.lt.s32.totalorder %v3361, 3
        %vm3383 = vcmp.lt.s32.totalorder %v3361, 4
        %v3384 = vsel %vm3380, %v3364, %v3367
        %v3385 = vsel %vm3383, %v3373, 2102212464
        %v3386 = vsel %vm3382, %v3370, %v3385
        %v3387 = vsel %vm3381, %v3384, %v3386
        %v3388 = vsel %vm3380, %v3367, %v3370
        %v3389 = vsel %vm3383, %v3376, 920167782
        %v3390 = vsel %vm3382, %v3373, %v3389
        %v3391 = vsel %vm3381, %v3388, %v3390
        %v3392 = vsel %vm3380, %v3370, %v3373
        %v3393 = vsel %vm3383, %v3379, 1326507024
        %v3394 = vsel %vm3382, %v3376, %v3393
        %v3395 = vsel %vm3381, %v3392, %v3394
        %v3396 = vshll.u32 %v3356, 8
        %v3397 = vmul.u32.u64.compose %v3396, %v3395
        %v3398 = vextract.low.u32 %v3397
        %v3399 = vextract.high.u32 %v3397
        %v3400 = vmul.u32.u64.compose %v3396, %v3391
        %v3401 = vextract.low.u32 %v3400
        %v3402 = vextract.high.u32 %v3400
        %v3403 = vmul.u32 %v3396, %v3387
        %v3404 = vadd.s32 %v3399, %v3401
        %vm3405 = vc.u32 %v3399, %v3401
        %v3406 = vadd.s32 %v3402, 1
        %v3407 = vsel %vm3405, %v3406, %v3402
        %v3408 = vadd.s32 %v3403, %v3407
        %v3409 = vadd.s32 %v3408, 536870912
        %v3410 = vshrl.u32 %v3409, 30
        %v3411 = vshll.u32 %v3410, 30
        %v3412 = vsub.s32 %v3408, %v3411
        %vm3413 = vcmp.lt.s32.totalorder %v3412, 0
        %v3414 = vsub.s32 0, %v3412
        %v3415 = vsel %vm3413, %v3414, %v3412
        %v3416 = vclz %v3415
        %v3417 = vsub.s32 %v3416, 2
        %vm3418 = vcmp.gt.s32.totalorder 0, %v3417
        %v3419 = vsel %vm3418, 0, %v3417
        %v3420 = vsub.s32 32, %v3419
        %v3421 = vshll.u32 %v3412, %v3419
        %v3422 = vshrl.u32 %v3404, %v3420
        %v3423 = vor.u32 %v3421, %v3422
        %v3424 = vsub.s32 4294967266, %v3419
        %v3425 = vadd.s32 %v3424, 127
        %v3426 = vshll.u32 %v3425, 23
        %v3427 = vor.u32 4788187, %v3426
        %v3428 = vand.u32 2147483647, %v3427
        %v3430 = vcvt.s32.f32 %v3423
        %v3431 = vmul.f32 %v3430, %v3428
        %v3432 = vxor.u32 %v3431, 2147483648
        %v3433 = vsel %vm3350, %v3432, %v3431
        %v3434 = vsub.s32 4, %v3410
        %v3435 = vsel %vm3350, %v3434, %v3410
        %v3436 = vsel %vm3349, %v1896, %v3433
        %v3437 = vsel %vm3349, 0, %v3435
        %v3438 = vcosq.f32.pop %v3436
        %v3439 = vsinq.f32.pop %v3436
        %vm3440 = vweird.f32 %v1896
        %v3441 = vand.u32 %v3437, 3
        %vm3442 = vcmp.lt.s32.totalorder %v3441, 2
        %vm3443 = vcmp.eq.s32.totalorder %v3441, 0
        %v3444 = vxor.u32 %v3439, 2147483648
        %v3445 = vsel %vm3443, %v3438, %v3444
        %vm3446 = vcmp.eq.s32.totalorder %v3441, 2
        %v3447 = vxor.u32 %v3438, 2147483648
        %v3448 = vsel %vm3446, %v3447, %v3439
        %v3449 = vsel %vm3442, %v3445, %v3448
        %v3450 = vsel %vm3440, nan, %v3449
        %v3451 = vand.u32 2147483647, %v1897
        %vm3452 = vcmp.le.f32.partialorder %v3451, 0.7853982
        %vm3453 = vcmp.lt.s32.totalorder %v1897, 0
        %v3454 = vand.u32 %v1897, 2139095040
        %v3455 = vshrl.u32 %v3454, 23
        %v3456 = vsub.s32 %v3455, 127
        %v3457 = vand.u32 2147483647, %v1897
        %v3458 = vand.u32 %v3457, 8388607
        %v3459 = vor.u32 %v3458, 8388608
        %v3460 = vsub.s32 0, %v3459
        %v3461 = vadd.s32 %v3456, 1
        %vm3462 = vcmp.gt.s32.totalorder %v3461, 0
        %v3463 = vsel %vm3462, %v3461, 0
        %v3464 = vshrl.u32 %v3463, 5
        %v3465 = vand.u32 %v3463, 31
        %v3466 = vsub.s32 32, %v3465
        %v3467 = vshrl.u32 683565275, %v3466
        %v3468 = vshll.u32 683565275, %v3465
        %v3469 = vshrl.u32 2475754826, %v3466
        %v3470 = vor.u32 %v3468, %v3469
        %v3471 = vshll.u32 2475754826, %v3465
        %v3472 = vshrl.u32 2131351028, %v3466
        %v3473 = vor.u32 %v3471, %v3472
        %v3474 = vshll.u32 2131351028, %v3465
        %v3475 = vshrl.u32 2102212464, %v3466
        %v3476 = vor.u32 %v3474, %v3475
        %v3477 = vshll.u32 2102212464, %v3465
        %v3478 = vshrl.u32 920167782, %v3466
        %v3479 = vor.u32 %v3477, %v3478
        %v3480 = vshll.u32 920167782, %v3465
        %v3481 = vshrl.u32 1326507024, %v3466
        %v3482 = vor.u32 %v3480, %v3481
        %vm3483 = vcmp.lt.s32.totalorder %v3464, 1
        %vm3484 = vcmp.lt.s32.totalorder %v3464, 2
        %vm3485 = vcmp.lt.s32.totalorder %v3464, 3
        %vm3486 = vcmp.lt.s32.totalorder %v3464, 4
        %v3487 = vsel %vm3483, %v3467, %v3470
        %v3488 = vsel %vm3486, %v3476, 2102212464
        %v3489 = vsel %vm3485, %v3473, %v3488
        %v3490 = vsel %vm3484, %v3487, %v3489
        %v3491 = vsel %vm3483, %v3470, %v3473
        %v3492 = vsel %vm3486, %v3479, 920167782
        %v3493 = vsel %vm3485, %v3476, %v3492
        %v3494 = vsel %vm3484, %v3491, %v3493
        %v3495 = vsel %vm3483, %v3473, %v3476
        %v3496 = vsel %vm3486, %v3482, 1326507024
        %v3497 = vsel %vm3485, %v3479, %v3496
        %v3498 = vsel %vm3484, %v3495, %v3497
        %v3499 = vshll.u32 %v3459, 8
        %v3500 = vmul.u32.u64.compose %v3499, %v3498
        %v3501 = vextract.low.u32 %v3500
        %v3502 = vextract.high.u32 %v3500
        %v3503 = vmul.u32.u64.compose %v3499, %v3494
        %v3504 = vextract.low.u32 %v3503
        %v3505 = vextract.high.u32 %v3503
        %v3506 = vmul.u32 %v3499, %v3490
        %v3507 = vadd.s32 %v3502, %v3504
        %vm3508 = vc.u32 %v3502, %v3504
        %v3509 = vadd.s32 %v3505, 1
        %v3510 = vsel %vm3508, %v3509, %v3505
        %v3511 = vadd.s32 %v3506, %v3510
        %v3512 = vadd.s32 %v3511, 536870912
        %v3513 = vshrl.u32 %v3512, 30
        %v3514 = vshll.u32 %v3513, 30
        %v3515 = vsub.s32 %v3511, %v3514
        %vm3516 = vcmp.lt.s32.totalorder %v3515, 0
        %v3517 = vsub.s32 0, %v3515
        %v3518 = vsel %vm3516, %v3517, %v3515
        %v3519 = vclz %v3518
        %v3520 = vsub.s32 %v3519, 2
        %vm3521 = vcmp.gt.s32.totalorder 0, %v3520
        %v3522 = vsel %vm3521, 0, %v3520
        %v3523 = vsub.s32 32, %v3522
        %v3524 = vshll.u32 %v3515, %v3522
        %v3525 = vshrl.u32 %v3507, %v3523
        %v3526 = vor.u32 %v3524, %v3525
        %v3527 = vsub.s32 4294967266, %v3522
        %v3528 = vadd.s32 %v3527, 127
        %v3529 = vshll.u32 %v3528, 23
        %v3530 = vor.u32 4788187, %v3529
        %v3531 = vand.u32 2147483647, %v3530
        %v3533 = vcvt.s32.f32 %v3526
        %v3534 = vmul.f32 %v3533, %v3531
        %v3535 = vxor.u32 %v3534, 2147483648
        %v3536 = vsel %vm3453, %v3535, %v3534
        %v3537 = vsub.s32 4, %v3513
        %v3538 = vsel %vm3453, %v3537, %v3513
        %v3539 = vsel %vm3452, %v1897, %v3536
        %v3540 = vsel %vm3452, 0, %v3538
        %v3541 = vcosq.f32.pop %v3539
        %v3542 = vsinq.f32.pop %v3539
        %vm3543 = vweird.f32 %v1897
        %v3544 = vand.u32 %v3540, 3
        %vm3545 = vcmp.lt.s32.totalorder %v3544, 2
        %vm3546 = vcmp.eq.s32.totalorder %v3544, 0
        %v3547 = vxor.u32 %v3542, 2147483648
        %v3548 = vsel %vm3546, %v3541, %v3547
        %vm3549 = vcmp.eq.s32.totalorder %v3544, 2
        %v3550 = vxor.u32 %v3541, 2147483648
        %v3551 = vsel %vm3549, %v3550, %v3542
        %v3552 = vsel %vm3545, %v3548, %v3551
        %v3553 = vsel %vm3543, nan, %v3552
        %3554 = vst [vmem:[#allocation2] sm:$0xff] %v226
        %3555 = vst [vmem:[#allocation2 + $0x8] sm:$0xff] %v227
        %3556 = vst [vmem:[#allocation2 + $0x10] sm:$0xff] %v228
        %3557 = vst [vmem:[#allocation2 + $0x18] sm:$0xff] %v229
        %3558 = vst [vmem:[#allocation2 + $0x20] sm:$0xff] %v230
        %3559 = vst [vmem:[#allocation2 + $0x28] sm:$0xff] %v231
        %3560 = vst [vmem:[#allocation2 + $0x30] sm:$0xff] %v232
        %3561 = vst [vmem:[#allocation2 + $0x38] sm:$0xff] %v233
        %3562 = vst [vmem:[#allocation2 + $0x40] sm:$0xff] %v337
        %3563 = vst [vmem:[#allocation2 + $0x48] sm:$0xff] %v441
        %3564 = vst [vmem:[#allocation2 + $0x50] sm:$0xff] %v545
        %3565 = vst [vmem:[#allocation2 + $0x58] sm:$0xff] %v649
        %3566 = vst [vmem:[#allocation2 + $0x60] sm:$0xff] %v753
        %3567 = vst [vmem:[#allocation2 + $0x68] sm:$0xff] %v857
        %3568 = vst [vmem:[#allocation2 + $0x70] sm:$0xff] %v961
        %3569 = vst [vmem:[#allocation2 + $0x78] sm:$0xff] %v1065
        %3570 = vst [vmem:[#allocation2 + $0x80] sm:$0xff] %v1168
        %3571 = vst [vmem:[#allocation2 + $0x88] sm:$0xff] %v1271
        %3572 = vst [vmem:[#allocation2 + $0x90] sm:$0xff] %v1374
        %3573 = vst [vmem:[#allocation2 + $0x98] sm:$0xff] %v1477
        %3574 = vst [vmem:[#allocation2 + $0xa0] sm:$0xff] %v1580
        %3575 = vst [vmem:[#allocation2 + $0xa8] sm:$0xff] %v1683
        %3576 = vst [vmem:[#allocation2 + $0xb0] sm:$0xff] %v1786
        %3577 = vst [vmem:[#allocation2 + $0xb8] sm:$0xff] %v1889
        %3578 = vst [vmem:[#allocation2 + $0xc0] sm:$0xff] %v2001
        %3579 = vst [vmem:[#allocation2 + $0xc8] sm:$0xff] %v2105
        %3580 = vst [vmem:[#allocation2 + $0xd0] sm:$0xff] %v2209
        %3581 = vst [vmem:[#allocation2 + $0xd8] sm:$0xff] %v2313
        %3582 = vst [vmem:[#allocation2 + $0xe0] sm:$0xff] %v2417
        %3583 = vst [vmem:[#allocation2 + $0xe8] sm:$0xff] %v2521
        %3584 = vst [vmem:[#allocation2 + $0xf0] sm:$0xff] %v2625
        %3585 = vst [vmem:[#allocation2 + $0xf8] sm:$0xff] %v2729
        %3586 = vst [vmem:[#allocation2 + $0x100] sm:$0xff] %v2832
        %3587 = vst [vmem:[#allocation2 + $0x108] sm:$0xff] %v2935
        %3588 = vst [vmem:[#allocation2 + $0x110] sm:$0xff] %v3038
        %3589 = vst [vmem:[#allocation2 + $0x118] sm:$0xff] %v3141
        %3590 = vst [vmem:[#allocation2 + $0x120] sm:$0xff] %v3244
        %3591 = vst [vmem:[#allocation2 + $0x128] sm:$0xff] %v3347
        %3592 = vst [vmem:[#allocation2 + $0x130] sm:$0xff] %v3450
        %3593 = vst [vmem:[#allocation2 + $0x138] sm:$0xff] %v3553
        %3594 = vst [vmem:[#allocation2 + $0x140] sm:$0xff] 0.0
        %3595 = vst [vmem:[#allocation2 + $0x148] sm:$0xff] 0.0
        %3596 = vst [vmem:[#allocation2 + $0x150] sm:$0xff] 0.0
        %3597 = vst [vmem:[#allocation2 + $0x158] sm:$0xff] 0.0
        %3598 = vst [vmem:[#allocation2 + $0x160] sm:$0xff] 0.0
        %3599 = vst [vmem:[#allocation2 + $0x168] sm:$0xff] 0.0
        %3600 = vst [vmem:[#allocation2 + $0x170] sm:$0xff] 0.0
        %3601 = vst [vmem:[#allocation2 + $0x178] sm:$0xff] 0.0
        %v3602 = vld [vmem:[%s1] sm:$0xff]
        %v3603 = vld [vmem:[%s1 + $0x8] sm:$0xff]
        %v3604 = vld [vmem:[%s1 + $0x10] sm:$0xff]
        %v3605 = vld [vmem:[%s1 + $0x18] sm:$0xff]
        %v3606 = vld [vmem:[%s1 + $0x20] sm:$0xff]
        %v3607 = vld [vmem:[%s1 + $0x28] sm:$0xff]
        %v3608 = vld [vmem:[%s1 + $0x30] sm:$0xff]
        %v3609 = vld [vmem:[%s1 + $0x38] sm:$0xff]
        %v3610 = vld [vmem:[#allocation2] sm:$0xff]
        %v3611 = vld [vmem:[#allocation2 + $0x8] sm:$0xff]
        %v3612 = vld [vmem:[#allocation2 + $0x10] sm:$0xff]
        %v3613 = vld [vmem:[#allocation2 + $0x18] sm:$0xff]
        %v3614 = vld [vmem:[#allocation2 + $0x20] sm:$0xff]
        %v3615 = vld [vmem:[#allocation2 + $0x28] sm:$0xff]
        %v3616 = vld [vmem:[#allocation2 + $0x30] sm:$0xff]
        %v3617 = vld [vmem:[#allocation2 + $0x38] sm:$0xff]
        %v3618 = vld [vmem:[#allocation2 + $0x40] sm:$0xff]
        %v3619 = vld [vmem:[#allocation2 + $0x48] sm:$0xff]
        %v3620 = vld [vmem:[#allocation2 + $0x50] sm:$0xff]
        %v3621 = vld [vmem:[#allocation2 + $0x58] sm:$0xff]
        %v3622 = vld [vmem:[#allocation2 + $0x60] sm:$0xff]
        %v3623 = vld [vmem:[#allocation2 + $0x68] sm:$0xff]
        %v3624 = vld [vmem:[#allocation2 + $0x70] sm:$0xff]
        %v3625 = vld [vmem:[#allocation2 + $0x78] sm:$0xff]
        %v3626 = vld [vmem:[#allocation2 + $0x80] sm:$0xff]
        %v3627 = vld [vmem:[#allocation2 + $0x88] sm:$0xff]
        %v3628 = vld [vmem:[#allocation2 + $0x90] sm:$0xff]
        %v3629 = vld [vmem:[#allocation2 + $0x98] sm:$0xff]
        %v3630 = vld [vmem:[#allocation2 + $0xa0] sm:$0xff]
        %v3631 = vld [vmem:[#allocation2 + $0xa8] sm:$0xff]
        %v3632 = vld [vmem:[#allocation2 + $0xb0] sm:$0xff]
        %v3633 = vld [vmem:[#allocation2 + $0xb8] sm:$0xff]
        %v3634 = vld [vmem:[#allocation2 + $0xc0] sm:$0xff]
        %v3635 = vld [vmem:[#allocation2 + $0xc8] sm:$0xff]
        %v3636 = vld [vmem:[#allocation2 + $0xd0] sm:$0xff]
        %v3637 = vld [vmem:[#allocation2 + $0xd8] sm:$0xff]
        %v3638 = vld [vmem:[#allocation2 + $0xe0] sm:$0xff]
        %v3639 = vld [vmem:[#allocation2 + $0xe8] sm:$0xff]
        %v3640 = vld [vmem:[#allocation2 + $0xf0] sm:$0xff]
        %v3641 = vld [vmem:[#allocation2 + $0xf8] sm:$0xff]
        %v3642 = vld [vmem:[#allocation2 + $0x100] sm:$0xff]
        %v3643 = vld [vmem:[#allocation2 + $0x108] sm:$0xff]
        %v3644 = vld [vmem:[#allocation2 + $0x110] sm:$0xff]
        %v3645 = vld [vmem:[#allocation2 + $0x118] sm:$0xff]
        %v3646 = vld [vmem:[#allocation2 + $0x120] sm:$0xff]
        %v3647 = vld [vmem:[#allocation2 + $0x128] sm:$0xff]
        %v3648 = vld [vmem:[#allocation2 + $0x130] sm:$0xff]
        %v3649 = vld [vmem:[#allocation2 + $0x138] sm:$0xff]
        %v3650 = vld [vmem:[#allocation2 + $0x140] sm:$0xff]
        %v3651 = vld [vmem:[#allocation2 + $0x148] sm:$0xff]
        %v3652 = vld [vmem:[#allocation2 + $0x150] sm:$0xff]
        %v3653 = vld [vmem:[#allocation2 + $0x158] sm:$0xff]
        %v3654 = vld [vmem:[#allocation2 + $0x160] sm:$0xff]
        %v3655 = vld [vmem:[#allocation2 + $0x168] sm:$0xff]
        %v3656 = vld [vmem:[#allocation2 + $0x170] sm:$0xff]
        %v3657 = vld [vmem:[#allocation2 + $0x178] sm:$0xff]
        %vm3658 = vcmask 392192
        %v3660 = vsel %vm3658, %v3602, 0
        %v3663 = vsel %vm3658, %v3603, 0
        %v3666 = vsel %vm3658, %v3604, 0
        %v3669 = vsel %vm3658, %v3605, 0
        %v3672 = vsel %vm3658, %v3606, 0
        %v3675 = vsel %vm3658, %v3607, 0
        %v3678 = vsel %vm3658, %v3608, 0
        %v3681 = vsel %vm3658, %v3609, 0
        %3683 = vmatprep.subr.mxu0 %v3611
        %3684 = vmatpush1.msra.mxu0 %v3610
        %3685 = vmatprep.subr.mxu0 %v3619
        %3686 = vmatpush1.msra.mxu0 %v3618
        %3687 = vmatprep.subr.mxu0 %v3627
        %3688 = vmatpush1.msra.mxu0 %v3626
        %3689 = vmatprep.subr.mxu0 %v3635
        %3690 = vmatpush1.msra.mxu0 %v3634
        %3691 = vmatprep.subr.mxu0 %v3643
        %3692 = vmatpush1.msra.mxu0 %v3642
        %3693 = vmatprep.subr.mxu0 %v3651
        %3694 = vmatpush1.msra.mxu0 %v3650
        %3695 = vmatprep.subr.mxu0 0.0
        %3696 = vmatpush1.msra.mxu0 0.0
        %3697 = vmatprep.subr.mxu0 0.0
        %3698 = vmatpush1.msra.mxu0 0.0
        %3699 = vmatprep.subr.mxu0 0.0
        %3700 = vmatpush1.msra.mxu0 0.0
        %3701 = vmatprep.subr.mxu0 0.0
        %3702 = vmatpush1.msra.mxu0 0.0
        %3703 = vmatprep.subr.mxu0 0.0
        %3704 = vmatpush1.msra.mxu0 0.0
        %3705 = vmatprep.subr.mxu0 0.0
        %3706 = vmatpush1.msra.mxu0 0.0
        %3707 = vmatprep.subr.mxu0 0.0
        %3708 = vmatpush1.msra.mxu0 0.0
        %3709 = vmatprep.subr.mxu0 0.0
        %3710 = vmatpush1.msra.mxu0 0.0
        %3711 = vmatprep.subr.mxu0 0.0
        %3712 = vmatpush1.msra.mxu0 0.0
        %3713 = vmatprep.subr.mxu0 0.0
        %3714 = vmatpush1.msra.mxu0 0.0
        %3715 = vmatprep.subr.mxu0 0.0
        %3716 = vmatpush1.msra.mxu0 0.0
        %3717 = vmatprep.subr.mxu0 0.0
        %3718 = vmatpush1.msra.mxu0 0.0
        %3719 = vmatprep.subr.mxu0 0.0
        %3720 = vmatpush1.msra.mxu0 0.0
        %3721 = vmatprep.subr.mxu0 0.0
        %3722 = vmatpush1.msra.mxu0 0.0
        %3723 = vmatprep.subr.mxu0 0.0
        %3724 = vmatpush1.msra.mxu0 0.0
        %3725 = vmatprep.subr.mxu0 0.0
        %3726 = vmatpush1.msra.mxu0 0.0
        %3727 = vmatprep.subr.mxu0 0.0
        %3728 = vmatpush1.msra.mxu0 0.0
        %3729 = vmatprep.subr.mxu0 0.0
        %3730 = vmatpush1.msra.mxu0 0.0
        %3731 = vmatprep.subr.mxu0 0.0
        %3732 = vmatpush1.msra.mxu0 0.0
        %3733 = vmatprep.subr.mxu0 0.0
        %3734 = vmatpush1.msra.mxu0 0.0
        %3735 = vmatprep.subr.mxu0 0.0
        %3736 = vmatpush1.msra.mxu0 0.0
        %3737 = vmatprep.subr.mxu0 0.0
        %3738 = vmatpush1.msra.mxu0 0.0
        %3739 = vmatprep.subr.mxu0 0.0
        %3740 = vmatpush1.msra.mxu0 0.0
        %3741 = vmatprep.subr.mxu0 0.0
        %3742 = vmatpush1.msra.mxu0 0.0
        %3743 = vmatprep.subr.mxu0 0.0
        %3744 = vmatpush1.msra.mxu0 0.0
        %3745 = vmatprep.subr.mxu0 0.0
        %3746 = vmatpush1.msra.mxu0 0.0
        %3747 = vmatprep.mubr.f32.mxu0 0.0
        %3748 = vmatmul.mubr.f32.gmra.mrb[0].mxu0 %v3660
        %v3749 = vpop.f32.mrb[0].mxu0
        %v3750 = vadd.f32 0.0, %v3749
        %v3751 = vpop.f32.mrb[0].mxu0
        %v3752 = vadd.f32 0.0, %v3751
        %3753 = vmatprep.mubr.f32.mxu0 0.0
        %3754 = vmatmul.mubr.f32.gmra.mrb[0].mxu0 %v3663
        %v3755 = vpop.f32.mrb[0].mxu0
        %v3756 = vadd.f32 0.0, %v3755
        %v3757 = vpop.f32.mrb[0].mxu0
        %v3758 = vadd.f32 0.0, %v3757
        %3759 = vmatprep.mubr.f32.mxu0 0.0
        %3760 = vmatmul.mubr.f32.gmra.mrb[0].mxu0 %v3666
        %v3761 = vpop.f32.mrb[0].mxu0
        %v3762 = vadd.f32 0.0, %v3761
        %v3763 = vpop.f32.mrb[0].mxu0
        %v3764 = vadd.f32 0.0, %v3763
        %3765 = vmatprep.mubr.f32.mxu0 0.0
        %3766 = vmatmul.mubr.f32.gmra.mrb[0].mxu0 %v3669
        %v3767 = vpop.f32.mrb[0].mxu0
        %v3768 = vadd.f32 0.0, %v3767
        %v3769 = vpop.f32.mrb[0].mxu0
        %v3770 = vadd.f32 0.0, %v3769
        %3771 = vmatprep.mubr.f32.mxu0 0.0
        %3772 = vmatmul.mubr.f32.gmra.mrb[0].mxu0 %v3672
        %v3773 = vpop.f32.mrb[0].mxu0
        %v3774 = vadd.f32 0.0, %v3773
        %v3775 = vpop.f32.mrb[0].mxu0
        %v3776 = vadd.f32 0.0, %v3775
        %3777 = vmatprep.mubr.f32.mxu0 0.0
        %3778 = vmatmul.mubr.f32.gmra.mrb[0].mxu0 %v3675
        %v3779 = vpop.f32.mrb[0].mxu0
        %v3780 = vadd.f32 0.0, %v3779
        %v3781 = vpop.f32.mrb[0].mxu0
        %v3782 = vadd.f32 0.0, %v3781
        %3783 = vmatprep.mubr.f32.mxu0 0.0
        %3784 = vmatmul.mubr.f32.gmra.mrb[0].mxu0 %v3678
        %v3785 = vpop.f32.mrb[0].mxu0
        %v3786 = vadd.f32 0.0, %v3785
        %v3787 = vpop.f32.mrb[0].mxu0
        %v3788 = vadd.f32 0.0, %v3787
        %3789 = vmatprep.mubr.f32.mxu0 0.0
        %3790 = vmatmul.mubr.f32.gmra.mrb[0].mxu0 %v3681
        %v3791 = vpop.f32.mrb[0].mxu0
        %v3792 = vadd.f32 0.0, %v3791
        %v3793 = vpop.f32.mrb[0].mxu0
        %v3794 = vadd.f32 0.0, %v3793
        %3795 = vdwg.mxu0
        %3796 = vmatprep.subr.mxu0 %v3613
        %3797 = vmatpush1.msra.mxu0 %v3612
        %3798 = vmatprep.subr.mxu0 %v3621
        %3799 = vmatpush1.msra.mxu0 %v3620
        %3800 = vmatprep.subr.mxu0 %v3629
        %3801 = vmatpush1.msra.mxu0 %v3628
        %3802 = vmatprep.subr.mxu0 %v3637
        %3803 = vmatpush1.msra.mxu0 %v3636
        %3804 = vmatprep.subr.mxu0 %v3645
        %3805 = vmatpush1.msra.mxu0 %v3644
        %3806 = vmatprep.subr.mxu0 %v3653
        %3807 = vmatpush1.msra.mxu0 %v3652
        %3808 = vmatprep.subr.mxu0 0.0
        %3809 = vmatpush1.msra.mxu0 0.0
        %3810 = vmatprep.subr.mxu0 0.0
        %3811 = vmatpush1.msra.mxu0 0.0
        %3812 = vmatprep.subr.mxu0 0.0
        %3813 = vmatpush1.msra.mxu0 0.0
        %3814 = vmatprep.subr.mxu0 0.0
        %3815 = vmatpush1.msra.mxu0 0.0
        %3816 = vmatprep.subr.mxu0 0.0
        %3817 = vmatpush1.msra.mxu0 0.0
        %3818 = vmatprep.subr.mxu0 0.0
        %3819 = vmatpush1.msra.mxu0 0.0
        %3820 = vmatprep.subr.mxu0 0.0
        %3821 = vmatpush1.msra.mxu0 0.0
        %3822 = vmatprep.subr.mxu0 0.0
        %3823 = vmatpush1.msra.mxu0 0.0
        %3824 = vmatprep.subr.mxu0 0.0
        %3825 = vmatpush1.msra.mxu0 0.0
        %3826 = vmatprep.subr.mxu0 0.0
        %3827 = vmatpush1.msra.mxu0 0.0
        %3828 = vmatprep.subr.mxu0 0.0
        %3829 = vmatpush1.msra.mxu0 0.0
        %3830 = vmatprep.subr.mxu0 0.0
        %3831 = vmatpush1.msra.mxu0 0.0
        %3832 = vmatprep.subr.mxu0 0.0
        %3833 = vmatpush1.msra.mxu0 0.0
        %3834 = vmatprep.subr.mxu0 0.0
        %3835 = vmatpush1.msra.mxu0 0.0
        %3836 = vmatprep.subr.mxu0 0.0
        %3837 = vmatpush1.msra.mxu0 0.0
        %3838 = vmatprep.subr.mxu0 0.0
        %3839 = vmatpush1.msra.mxu0 0.0
        %3840 = vmatprep.subr.mxu0 0.0
        %3841 = vmatpush1.msra.mxu0 0.0
        %3842 = vmatprep.subr.mxu0 0.0
        %3843 = vmatpush1.msra.mxu0 0.0
        %3844 = vmatprep.subr.mxu0 0.0
        %3845 = vmatpush1.msra.mxu0 0.0
        %3846 = vmatprep.subr.mxu0 0.0
        %3847 = vmatpush1.msra.mxu0 0.0
        %3848 = vmatprep.subr.mxu0 0.0
        %3849 = vmatpush1.msra.mxu0 0.0
        %3850 = vmatprep.subr.mxu0 0.0
        %3851 = vmatpush1.msra.mxu0 0.0
        %3852 = vmatprep.subr.mxu0 0.0
        %3853 = vmatpush1.msra.mxu0 0.0
        %3854 = vmatprep.subr.mxu0 0.0
        %3855 = vmatpush1.msra.mxu0 0.0
        %3856 = vmatprep.subr.mxu0 0.0
        %3857 = vmatpush1.msra.mxu0 0.0
        %3858 = vmatprep.subr.mxu0 0.0
        %3859 = vmatpush1.msra.mxu0 0.0
        %3860 = vmatprep.mubr.f32.mxu0 0.0
        %3861 = vmatmul.mubr.f32.gmra.mrb[0].mxu0 %v3660
        %v3862 = vpop.f32.mrb[0].mxu0
        %v3863 = vadd.f32 0.0, %v3862
        %v3864 = vpop.f32.mrb[0].mxu0
        %v3865 = vadd.f32 0.0, %v3864
        %3866 = vmatprep.mubr.f32.mxu0 0.0
        %3867 = vmatmul.mubr.f32.gmra.mrb[0].mxu0 %v3663
        %v3868 = vpop.f32.mrb[0].mxu0
        %v3869 = vadd.f32 0.0, %v3868
        %v3870 = vpop.f32.mrb[0].mxu0
        %v3871 = vadd.f32 0.0, %v3870
        %3872 = vmatprep.mubr.f32.mxu0 0.0
        %3873 = vmatmul.mubr.f32.gmra.mrb[0].mxu0 %v3666
        %v3874 = vpop.f32.mrb[0].mxu0
        %v3875 = vadd.f32 0.0, %v3874
        %v3876 = vpop.f32.mrb[0].mxu0
        %v3877 = vadd.f32 0.0, %v3876
        %3878 = vmatprep.mubr.f32.mxu0 0.0
        %3879 = vmatmul.mubr.f32.gmra.mrb[0].mxu0 %v3669
        %v3880 = vpop.f32.mrb[0].mxu0
        %v3881 = vadd.f32 0.0, %v3880
        %v3882 = vpop.f32.mrb[0].mxu0
        %v3883 = vadd.f32 0.0, %v3882
        %3884 = vmatprep.mubr.f32.mxu0 0.0
        %3885 = vmatmul.mubr.f32.gmra.mrb[0].mxu0 %v3672
        %v3886 = vpop.f32.mrb[0].mxu0
        %v3887 = vadd.f32 0.0, %v3886
        %v3888 = vpop.f32.mrb[0].mxu0
        %v3889 = vadd.f32 0.0, %v3888
        %3890 = vmatprep.mubr.f32.mxu0 0.0
        %3891 = vmatmul.mubr.f32.gmra.mrb[0].mxu0 %v3675
        %v3892 = vpop.f32.mrb[0].mxu0
        %v3893 = vadd.f32 0.0, %v3892
        %v3894 = vpop.f32.mrb[0].mxu0
        %v3895 = vadd.f32 0.0, %v3894
        %3896 = vmatprep.mubr.f32.mxu0 0.0
        %3897 = vmatmul.mubr.f32.gmra.mrb[0].mxu0 %v3678
        %v3898 = vpop.f32.mrb[0].mxu0
        %v3899 = vadd.f32 0.0, %v3898
        %v3900 = vpop.f32.mrb[0].mxu0
        %v3901 = vadd.f32 0.0, %v3900
        %3902 = vmatprep.mubr.f32.mxu0 0.0
        %3903 = vmatmul.mubr.f32.gmra.mrb[0].mxu0 %v3681
        %v3904 = vpop.f32.mrb[0].mxu0
        %v3905 = vadd.f32 0.0, %v3904
        %v3906 = vpop.f32.mrb[0].mxu0
        %v3907 = vadd.f32 0.0, %v3906
        %3908 = vdwg.mxu0
        %3909 = vmatprep.subr.mxu0 %v3615
        %3910 = vmatpush1.msra.mxu0 %v3614
        %3911 = vmatprep.subr.mxu0 %v3623
        %3912 = vmatpush1.msra.mxu0 %v3622
        %3913 = vmatprep.subr.mxu0 %v3631
        %3914 = vmatpush1.msra.mxu0 %v3630
        %3915 = vmatprep.subr.mxu0 %v3639
        %3916 = vmatpush1.msra.mxu0 %v3638
        %3917 = vmatprep.subr.mxu0 %v3647
        %3918 = vmatpush1.msra.mxu0 %v3646
        %3919 = vmatprep.subr.mxu0 %v3655
        %3920 = vmatpush1.msra.mxu0 %v3654
        %3921 = vmatprep.subr.mxu0 0.0
        %3922 = vmatpush1.msra.mxu0 0.0
        %3923 = vmatprep.subr.mxu0 0.0
        %3924 = vmatpush1.msra.mxu0 0.0
        %3925 = vmatprep.subr.mxu0 0.0
        %3926 = vmatpush1.msra.mxu0 0.0
        %3927 = vmatprep.subr.mxu0 0.0
        %3928 = vmatpush1.msra.mxu0 0.0
        %3929 = vmatprep.subr.mxu0 0.0
        %3930 = vmatpush1.msra.mxu0 0.0
        %3931 = vmatprep.subr.mxu0 0.0
        %3932 = vmatpush1.msra.mxu0 0.0
        %3933 = vmatprep.subr.mxu0 0.0
        %3934 = vmatpush1.msra.mxu0 0.0
        %3935 = vmatprep.subr.mxu0 0.0
        %3936 = vmatpush1.msra.mxu0 0.0
        %3937 = vmatprep.subr.mxu0 0.0
        %3938 = vmatpush1.msra.mxu0 0.0
        %3939 = vmatprep.subr.mxu0 0.0
        %3940 = vmatpush1.msra.mxu0 0.0
        %3941 = vmatprep.subr.mxu0 0.0
        %3942 = vmatpush1.msra.mxu0 0.0
        %3943 = vmatprep.subr.mxu0 0.0
        %3944 = vmatpush1.msra.mxu0 0.0
        %3945 = vmatprep.subr.mxu0 0.0
        %3946 = vmatpush1.msra.mxu0 0.0
        %3947 = vmatprep.subr.mxu0 0.0
        %3948 = vmatpush1.msra.mxu0 0.0
        %3949 = vmatprep.subr.mxu0 0.0
        %3950 = vmatpush1.msra.mxu0 0.0
        %3951 = vmatprep.subr.mxu0 0.0
        %3952 = vmatpush1.msra.mxu0 0.0
        %3953 = vmatprep.subr.mxu0 0.0
        %3954 = vmatpush1.msra.mxu0 0.0
        %3955 = vmatprep.subr.mxu0 0.0
        %3956 = vmatpush1.msra.mxu0 0.0
        %3957 = vmatprep.subr.mxu0 0.0
        %3958 = vmatpush1.msra.mxu0 0.0
        %3959 = vmatprep.subr.mxu0 0.0
        %3960 = vmatpush1.msra.mxu0 0.0
        %3961 = vmatprep.subr.mxu0 0.0
        %3962 = vmatpush1.msra.mxu0 0.0
        %3963 = vmatprep.subr.mxu0 0.0
        %3964 = vmatpush1.msra.mxu0 0.0
        %3965 = vmatprep.subr.mxu0 0.0
        %3966 = vmatpush1.msra.mxu0 0.0
        %3967 = vmatprep.subr.mxu0 0.0
        %3968 = vmatpush1.msra.mxu0 0.0
        %3969 = vmatprep.subr.mxu0 0.0
        %3970 = vmatpush1.msra.mxu0 0.0
        %3971 = vmatprep.subr.mxu0 0.0
        %3972 = vmatpush1.msra.mxu0 0.0
        %3973 = vmatprep.mubr.f32.mxu0 0.0
        %3974 = vmatmul.mubr.f32.gmra.mrb[0].mxu0 %v3660
        %v3975 = vpop.f32.mrb[0].mxu0
        %v3976 = vadd.f32 0.0, %v3975
        %v3977 = vpop.f32.mrb[0].mxu0
        %v3978 = vadd.f32 0.0, %v3977
        %3979 = vmatprep.mubr.f32.mxu0 0.0
        %3980 = vmatmul.mubr.f32.gmra.mrb[0].mxu0 %v3663
        %v3981 = vpop.f32.mrb[0].mxu0
        %v3982 = vadd.f32 0.0, %v3981
        %v3983 = vpop.f32.mrb[0].mxu0
        %v3984 = vadd.f32 0.0, %v3983
        %3985 = vmatprep.mubr.f32.mxu0 0.0
        %3986 = vmatmul.mubr.f32.gmra.mrb[0].mxu0 %v3666
        %v3987 = vpop.f32.mrb[0].mxu0
        %v3988 = vadd.f32 0.0, %v3987
        %v3989 = vpop.f32.mrb[0].mxu0
        %v3990 = vadd.f32 0.0, %v3989
        %3991 = vmatprep.mubr.f32.mxu0 0.0
        %3992 = vmatmul.mubr.f32.gmra.mrb[0].mxu0 %v3669
        %v3993 = vpop.f32.mrb[0].mxu0
        %v3994 = vadd.f32 0.0, %v3993
        %v3995 = vpop.f32.mrb[0].mxu0
        %v3996 = vadd.f32 0.0, %v3995
        %3997 = vmatprep.mubr.f32.mxu0 0.0
        %3998 = vmatmul.mubr.f32.gmra.mrb[0].mxu0 %v3672
        %v3999 = vpop.f32.mrb[0].mxu0
        %v4000 = vadd.f32 0.0, %v3999
        %v4001 = vpop.f32.mrb[0].mxu0
        %v4002 = vadd.f32 0.0, %v4001
        %4003 = vmatprep.mubr.f32.mxu0 0.0
        %4004 = vmatmul.mubr.f32.gmra.mrb[0].mxu0 %v3675
        %v4005 = vpop.f32.mrb[0].mxu0
        %v4006 = vadd.f32 0.0, %v4005
        %v4007 = vpop.f32.mrb[0].mxu0
        %v4008 = vadd.f32 0.0, %v4007
        %4009 = vmatprep.mubr.f32.mxu0 0.0
        %4010 = vmatmul.mubr.f32.gmra.mrb[0].mxu0 %v3678
        %v4011 = vpop.f32.mrb[0].mxu0
        %v4012 = vadd.f32 0.0, %v4011
        %v4013 = vpop.f32.mrb[0].mxu0
        %v4014 = vadd.f32 0.0, %v4013
        %4015 = vmatprep.mubr.f32.mxu0 0.0
        %4016 = vmatmul.mubr.f32.gmra.mrb[0].mxu0 %v3681
        %v4017 = vpop.f32.mrb[0].mxu0
        %v4018 = vadd.f32 0.0, %v4017
        %v4019 = vpop.f32.mrb[0].mxu0
        %v4020 = vadd.f32 0.0, %v4019
        %4021 = vdwg.mxu0
        %4022 = vmatprep.subr.mxu0 %v3617
        %4023 = vmatpush1.msra.mxu0 %v3616
        %4024 = vmatprep.subr.mxu0 %v3625
        %4025 = vmatpush1.msra.mxu0 %v3624
        %4026 = vmatprep.subr.mxu0 %v3633
        %4027 = vmatpush1.msra.mxu0 %v3632
        %4028 = vmatprep.subr.mxu0 %v3641
        %4029 = vmatpush1.msra.mxu0 %v3640
        %4030 = vmatprep.subr.mxu0 %v3649
        %4031 = vmatpush1.msra.mxu0 %v3648
        %4032 = vmatprep.subr.mxu0 %v3657
        %4033 = vmatpush1.msra.mxu0 %v3656
        %4034 = vmatprep.subr.mxu0 0.0
        %4035 = vmatpush1.msra.mxu0 0.0
        %4036 = vmatprep.subr.mxu0 0.0
        %4037 = vmatpush1.msra.mxu0 0.0
        %4038 = vmatprep.subr.mxu0 0.0
        %4039 = vmatpush1.msra.mxu0 0.0
        %4040 = vmatprep.subr.mxu0 0.0
        %4041 = vmatpush1.msra.mxu0 0.0
        %4042 = vmatprep.subr.mxu0 0.0
        %4043 = vmatpush1.msra.mxu0 0.0
        %4044 = vmatprep.subr.mxu0 0.0
        %4045 = vmatpush1.msra.mxu0 0.0
        %4046 = vmatprep.subr.mxu0 0.0
        %4047 = vmatpush1.msra.mxu0 0.0
        %4048 = vmatprep.subr.mxu0 0.0
        %4049 = vmatpush1.msra.mxu0 0.0
        %4050 = vmatprep.subr.mxu0 0.0
        %4051 = vmatpush1.msra.mxu0 0.0
        %4052 = vmatprep.subr.mxu0 0.0
        %4053 = vmatpush1.msra.mxu0 0.0
        %4054 = vmatprep.subr.mxu0 0.0
        %4055 = vmatpush1.msra.mxu0 0.0
        %4056 = vmatprep.subr.mxu0 0.0
        %4057 = vmatpush1.msra.mxu0 0.0
        %4058 = vmatprep.subr.mxu0 0.0
        %4059 = vmatpush1.msra.mxu0 0.0
        %4060 = vmatprep.subr.mxu0 0.0
        %4061 = vmatpush1.msra.mxu0 0.0
        %4062 = vmatprep.subr.mxu0 0.0
        %4063 = vmatpush1.msra.mxu0 0.0
        %4064 = vmatprep.subr.mxu0 0.0
        %4065 = vmatpush1.msra.mxu0 0.0
        %4066 = vmatprep.subr.mxu0 0.0
        %4067 = vmatpush1.msra.mxu0 0.0
        %4068 = vmatprep.subr.mxu0 0.0
        %4069 = vmatpush1.msra.mxu0 0.0
        %4070 = vmatprep.subr.mxu0 0.0
        %4071 = vmatpush1.msra.mxu0 0.0
        %4072 = vmatprep.subr.mxu0 0.0
        %4073 = vmatpush1.msra.mxu0 0.0
        %4074 = vmatprep.subr.mxu0 0.0
        %4075 = vmatpush1.msra.mxu0 0.0
        %4076 = vmatprep.subr.mxu0 0.0
        %4077 = vmatpush1.msra.mxu0 0.0
        %4078 = vmatprep.subr.mxu0 0.0
        %4079 = vmatpush1.msra.mxu0 0.0
        %4080 = vmatprep.subr.mxu0 0.0
        %4081 = vmatpush1.msra.mxu0 0.0
        %4082 = vmatprep.subr.mxu0 0.0
        %4083 = vmatpush1.msra.mxu0 0.0
        %4084 = vmatprep.subr.mxu0 0.0
        %4085 = vmatpush1.msra.mxu0 0.0
        %4086 = vmatprep.mubr.f32.mxu0 0.0
        %4087 = vmatmul.mubr.f32.gmra.mrb[0].mxu0 %v3660
        %v4088 = vpop.f32.mrb[0].mxu0
        %v4089 = vadd.f32 0.0, %v4088
        %v4090 = vpop.f32.mrb[0].mxu0
        %v4091 = vadd.f32 0.0, %v4090
        %4092 = vmatprep.mubr.f32.mxu0 0.0
        %4093 = vmatmul.mubr.f32.gmra.mrb[0].mxu0 %v3663
        %v4094 = vpop.f32.mrb[0].mxu0
        %v4095 = vadd.f32 0.0, %v4094
        %v4096 = vpop.f32.mrb[0].mxu0
        %v4097 = vadd.f32 0.0, %v4096
        %4098 = vmatprep.mubr.f32.mxu0 0.0
        %4099 = vmatmul.mubr.f32.gmra.mrb[0].mxu0 %v3666
        %v4100 = vpop.f32.mrb[0].mxu0
        %v4101 = vadd.f32 0.0, %v4100
        %v4102 = vpop.f32.mrb[0].mxu0
        %v4103 = vadd.f32 0.0, %v4102
        %4104 = vmatprep.mubr.f32.mxu0 0.0
        %4105 = vmatmul.mubr.f32.gmra.mrb[0].mxu0 %v3669
        %v4106 = vpop.f32.mrb[0].mxu0
        %v4107 = vadd.f32 0.0, %v4106
        %v4108 = vpop.f32.mrb[0].mxu0
        %v4109 = vadd.f32 0.0, %v4108
        %4110 = vmatprep.mubr.f32.mxu0 0.0
        %4111 = vmatmul.mubr.f32.gmra.mrb[0].mxu0 %v3672
        %v4112 = vpop.f32.mrb[0].mxu0
        %v4113 = vadd.f32 0.0, %v4112
        %v4114 = vpop.f32.mrb[0].mxu0
        %v4115 = vadd.f32 0.0, %v4114
        %4116 = vmatprep.mubr.f32.mxu0 0.0
        %4117 = vmatmul.mubr.f32.gmra.mrb[0].mxu0 %v3675
        %v4118 = vpop.f32.mrb[0].mxu0
        %v4119 = vadd.f32 0.0, %v4118
        %v4120 = vpop.f32.mrb[0].mxu0
        %v4121 = vadd.f32 0.0, %v4120
        %4122 = vmatprep.mubr.f32.mxu0 0.0
        %4123 = vmatmul.mubr.f32.gmra.mrb[0].mxu0 %v3678
        %v4124 = vpop.f32.mrb[0].mxu0
        %v4125 = vadd.f32 0.0, %v4124
        %v4126 = vpop.f32.mrb[0].mxu0
        %v4127 = vadd.f32 0.0, %v4126
        %4128 = vmatprep.mubr.f32.mxu0 0.0
        %4129 = vmatmul.mubr.f32.gmra.mrb[0].mxu0 %v3681
        %v4130 = vpop.f32.mrb[0].mxu0
        %v4131 = vadd.f32 0.0, %v4130
        %v4132 = vpop.f32.mrb[0].mxu0
        %v4133 = vadd.f32 0.0, %v4132
        %4134 = vdwg.mxu0
        %v4135 = vld [vmem:[%s4] sm:$0xff]
        %v4136 = vld [vmem:[%s4 + $0x8] sm:$0xff]
        %v4137 = vld [vmem:[%s4 + $0x10] sm:$0xff]
        %v4138 = vld [vmem:[%s4 + $0x18] sm:$0xff]
        %4140 = vset.pattern.permute.xlu0 0
        %4141 = vperm.xlu0 %4140, %v4135
        %v4142 = vpop.permute.xlu0 %4141
        %4145 = vset.pattern.permute.xlu0 0
        %4146 = vperm.xlu0 %4145, %v4136
        %v4147 = vpop.permute.xlu0 %4146
        %4150 = vset.pattern.permute.xlu0 0
        %4151 = vperm.xlu0 %4150, %v4137
        %v4152 = vpop.permute.xlu0 %4151
        %4155 = vset.pattern.permute.xlu0 0
        %4156 = vperm.xlu0 %4155, %v4138
        %v4157 = vpop.permute.xlu0 %4156
        %v4159 = vadd.f32 %v3750, %v4142
        %v4160 = vadd.f32 %v3752, %v4142
        %v4161 = vadd.f32 %v3863, %v4142
        %v4162 = vadd.f32 %v3865, %v4142
        %v4163 = vadd.f32 %v3976, %v4142
        %v4164 = vadd.f32 %v3978, %v4142
        %v4165 = vadd.f32 %v4089, %v4142
        %v4166 = vadd.f32 %v4091, %v4142
        %v4167 = vadd.f32 %v3756, %v4147
        %v4168 = vadd.f32 %v3758, %v4147
        %v4169 = vadd.f32 %v3869, %v4147
        %v4170 = vadd.f32 %v3871, %v4147
        %v4171 = vadd.f32 %v3982, %v4147
        %v4172 = vadd.f32 %v3984, %v4147
        %v4173 = vadd.f32 %v4095, %v4147
        %v4174 = vadd.f32 %v4097, %v4147
        %v4175 = vadd.f32 %v3762, %v4152
        %v4176 = vadd.f32 %v3764, %v4152
        %v4177 = vadd.f32 %v3875, %v4152
        %v4178 = vadd.f32 %v3877, %v4152
        %v4179 = vadd.f32 %v3988, %v4152
        %v4180 = vadd.f32 %v3990, %v4152
        %v4181 = vadd.f32 %v4101, %v4152
        %v4182 = vadd.f32 %v4103, %v4152
        %v4183 = vadd.f32 %v3768, %v4157
        %v4184 = vadd.f32 %v3770, %v4157
        %v4185 = vadd.f32 %v3881, %v4157
        %v4186 = vadd.f32 %v3883, %v4157
        %v4187 = vadd.f32 %v3994, %v4157
        %v4188 = vadd.f32 %v3996, %v4157
        %v4189 = vadd.f32 %v4107, %v4157
        %v4190 = vadd.f32 %v4109, %v4157
        %v4191 = vmul.f32 %v4159, 100.0
        %v4192 = vmul.f32 %v4160, 100.0
        %v4193 = vmul.f32 %v4161, 100.0
        %v4194 = vmul.f32 %v4162, 100.0
        %v4195 = vmul.f32 %v4163, 100.0
        %v4196 = vmul.f32 %v4164, 100.0
        %v4197 = vmul.f32 %v4165, 100.0
        %v4198 = vmul.f32 %v4166, 100.0
        %v4199 = vmul.f32 %v4167, 100.0
        %v4200 = vmul.f32 %v4168, 100.0
        %v4201 = vmul.f32 %v4169, 100.0
        %v4202 = vmul.f32 %v4170, 100.0
        %v4203 = vmul.f32 %v4171, 100.0
        %v4204 = vmul.f32 %v4172, 100.0
        %v4205 = vmul.f32 %v4173, 100.0
        %v4206 = vmul.f32 %v4174, 100.0
        %v4207 = vmul.f32 %v4175, 100.0
        %v4208 = vmul.f32 %v4176, 100.0
        %v4209 = vmul.f32 %v4177, 100.0
        %v4210 = vmul.f32 %v4178, 100.0
        %v4211 = vmul.f32 %v4179, 100.0
        %v4212 = vmul.f32 %v4180, 100.0
        %v4213 = vmul.f32 %v4181, 100.0
        %v4214 = vmul.f32 %v4182, 100.0
        %v4215 = vmul.f32 %v4183, 100.0
        %v4216 = vmul.f32 %v4184, 100.0
        %v4217 = vmul.f32 %v4185, 100.0
        %v4218 = vmul.f32 %v4186, 100.0
        %v4219 = vmul.f32 %v4187, 100.0
        %v4220 = vmul.f32 %v4188, 100.0
        %v4221 = vmul.f32 %v4189, 100.0
        %v4222 = vmul.f32 %v4190, 100.0
        %v4223 = vmin.f32 %v4191, 20.0
        %v4224 = vmin.f32 %v4192, 20.0
        %v4225 = vmin.f32 %v4193, 20.0
        %v4226 = vmin.f32 %v4194, 20.0
        %v4227 = vmin.f32 %v4195, 20.0
        %v4228 = vmin.f32 %v4196, 20.0
        %v4229 = vmin.f32 %v4197, 20.0
        %v4230 = vmin.f32 %v4198, 20.0
        %v4231 = vmin.f32 %v4199, 20.0
        %v4232 = vmin.f32 %v4200, 20.0
        %v4233 = vmin.f32 %v4201, 20.0
        %v4234 = vmin.f32 %v4202, 20.0
        %v4235 = vmin.f32 %v4203, 20.0
        %v4236 = vmin.f32 %v4204, 20.0
        %v4237 = vmin.f32 %v4205, 20.0
        %v4238 = vmin.f32 %v4206, 20.0
        %v4239 = vmin.f32 %v4207, 20.0
        %v4240 = vmin.f32 %v4208, 20.0
        %v4241 = vmin.f32 %v4209, 20.0
        %v4242 = vmin.f32 %v4210, 20.0
        %v4243 = vmin.f32 %v4211, 20.0
        %v4244 = vmin.f32 %v4212, 20.0
        %v4245 = vmin.f32 %v4213, 20.0
        %v4246 = vmin.f32 %v4214, 20.0
        %v4247 = vmin.f32 %v4215, 20.0
        %v4248 = vmin.f32 %v4216, 20.0
        %v4249 = vmin.f32 %v4217, 20.0
        %v4250 = vmin.f32 %v4218, 20.0
        %v4251 = vmin.f32 %v4219, 20.0
        %v4252 = vmin.f32 %v4220, 20.0
        %v4253 = vmin.f32 %v4221, 20.0
        %v4254 = vmin.f32 %v4222, 20.0
        %v4255 = vmul.f32 %v4223, 1.442695
        %v4256 = vpow.pop %v4255
        %v4257 = vmul.f32 %v4224, 1.442695
        %v4258 = vpow.pop %v4257
        %v4259 = vmul.f32 %v4225, 1.442695
        %v4260 = vpow.pop %v4259
        %v4261 = vmul.f32 %v4226, 1.442695
        %v4262 = vpow.pop %v4261
        %v4263 = vmul.f32 %v4227, 1.442695
        %v4264 = vpow.pop %v4263
        %v4265 = vmul.f32 %v4228, 1.442695
        %v4266 = vpow.pop %v4265
        %v4267 = vmul.f32 %v4229, 1.442695
        %v4268 = vpow.pop %v4267
        %v4269 = vmul.f32 %v4230, 1.442695
        %v4270 = vpow.pop %v4269
        %v4271 = vmul.f32 %v4231, 1.442695
        %v4272 = vpow.pop %v4271
        %v4273 = vmul.f32 %v4232, 1.442695
        %v4274 = vpow.pop %v4273
        %v4275 = vmul.f32 %v4233, 1.442695
        %v4276 = vpow.pop %v4275
        %v4277 = vmul.f32 %v4234, 1.442695
        %v4278 = vpow.pop %v4277
        %v4279 = vmul.f32 %v4235, 1.442695
        %v4280 = vpow.pop %v4279
        %v4281 = vmul.f32 %v4236, 1.442695
        %v4282 = vpow.pop %v4281
        %v4283 = vmul.f32 %v4237, 1.442695
        %v4284 = vpow.pop %v4283
        %v4285 = vmul.f32 %v4238, 1.442695
        %v4286 = vpow.pop %v4285
        %v4287 = vmul.f32 %v4239, 1.442695
        %v4288 = vpow.pop %v4287
        %v4289 = vmul.f32 %v4240, 1.442695
        %v4290 = vpow.pop %v4289
        %v4291 = vmul.f32 %v4241, 1.442695
        %v4292 = vpow.pop %v4291
        %v4293 = vmul.f32 %v4242, 1.442695
        %v4294 = vpow.pop %v4293
        %v4295 = vmul.f32 %v4243, 1.442695
        %v4296 = vpow.pop %v4295
        %v4297 = vmul.f32 %v4244, 1.442695
        %v4298 = vpow.pop %v4297
        %v4299 = vmul.f32 %v4245, 1.442695
        %v4300 = vpow.pop %v4299
        %v4301 = vmul.f32 %v4246, 1.442695
        %v4302 = vpow.pop %v4301
        %v4303 = vmul.f32 %v4247, 1.442695
        %v4304 = vpow.pop %v4303
        %v4305 = vmul.f32 %v4248, 1.442695
        %v4306 = vpow.pop %v4305
        %v4307 = vmul.f32 %v4249, 1.442695
        %v4308 = vpow.pop %v4307
        %v4309 = vmul.f32 %v4250, 1.442695
        %v4310 = vpow.pop %v4309
        %v4311 = vmul.f32 %v4251, 1.442695
        %v4312 = vpow.pop %v4311
        %v4313 = vmul.f32 %v4252, 1.442695
        %v4314 = vpow.pop %v4313
        %v4315 = vmul.f32 %v4253, 1.442695
        %v4316 = vpow.pop %v4315
        %v4317 = vmul.f32 %v4254, 1.442695
        %v4318 = vpow.pop %v4317
        %v4319 = vadd.f32 %v4256, 1.0
        %v4320 = vlog2.pop %v4319
        %v4321 = vmul.f32 %v4320, 0.6931472
        %v4322 = vmul.f32 -0.5, %v4256
        %v4323 = vadd.f32 %v4322, 1.0
        %v4324 = vmul.f32 %v4323, %v4256
        %v4325 = vand.u32 2147483647, %v4256
        %vm4326 = vcmp.lt.f32.partialorder %v4325, 0.0004427343
        %v4327 = vsel %vm4326, %v4324, %v4321
        %v4328 = vadd.f32 %v4258, 1.0
        %v4329 = vlog2.pop %v4328
        %v4330 = vmul.f32 %v4329, 0.6931472
        %v4331 = vmul.f32 -0.5, %v4258
        %v4332 = vadd.f32 %v4331, 1.0
        %v4333 = vmul.f32 %v4332, %v4258
        %v4334 = vand.u32 2147483647, %v4258
        %vm4335 = vcmp.lt.f32.partialorder %v4334, 0.0004427343
        %v4336 = vsel %vm4335, %v4333, %v4330
        %v4337 = vadd.f32 %v4260, 1.0
        %v4338 = vlog2.pop %v4337
        %v4339 = vmul.f32 %v4338, 0.6931472
        %v4340 = vmul.f32 -0.5, %v4260
        %v4341 = vadd.f32 %v4340, 1.0
        %v4342 = vmul.f32 %v4341, %v4260
        %v4343 = vand.u32 2147483647, %v4260
        %vm4344 = vcmp.lt.f32.partialorder %v4343, 0.0004427343
        %v4345 = vsel %vm4344, %v4342, %v4339
        %v4346 = vadd.f32 %v4262, 1.0
        %v4347 = vlog2.pop %v4346
        %v4348 = vmul.f32 %v4347, 0.6931472
        %v4349 = vmul.f32 -0.5, %v4262
        %v4350 = vadd.f32 %v4349, 1.0
        %v4351 = vmul.f32 %v4350, %v4262
        %v4352 = vand.u32 2147483647, %v4262
        %vm4353 = vcmp.lt.f32.partialorder %v4352, 0.0004427343
        %v4354 = vsel %vm4353, %v4351, %v4348
        %v4355 = vadd.f32 %v4264, 1.0
        %v4356 = vlog2.pop %v4355
        %v4357 = vmul.f32 %v4356, 0.6931472
        %v4358 = vmul.f32 -0.5, %v4264
        %v4359 = vadd.f32 %v4358, 1.0
        %v4360 = vmul.f32 %v4359, %v4264
        %v4361 = vand.u32 2147483647, %v4264
        %vm4362 = vcmp.lt.f32.partialorder %v4361, 0.0004427343
        %v4363 = vsel %vm4362, %v4360, %v4357
        %v4364 = vadd.f32 %v4266, 1.0
        %v4365 = vlog2.pop %v4364
        %v4366 = vmul.f32 %v4365, 0.6931472
        %v4367 = vmul.f32 -0.5, %v4266
        %v4368 = vadd.f32 %v4367, 1.0
        %v4369 = vmul.f32 %v4368, %v4266
        %v4370 = vand.u32 2147483647, %v4266
        %vm4371 = vcmp.lt.f32.partialorder %v4370, 0.0004427343
        %v4372 = vsel %vm4371, %v4369, %v4366
        %v4373 = vadd.f32 %v4268, 1.0
        %v4374 = vlog2.pop %v4373
        %v4375 = vmul.f32 %v4374, 0.6931472
        %v4376 = vmul.f32 -0.5, %v4268
        %v4377 = vadd.f32 %v4376, 1.0
        %v4378 = vmul.f32 %v4377, %v4268
        %v4379 = vand.u32 2147483647, %v4268
        %vm4380 = vcmp.lt.f32.partialorder %v4379, 0.0004427343
        %v4381 = vsel %vm4380, %v4378, %v4375
        %v4382 = vadd.f32 %v4270, 1.0
        %v4383 = vlog2.pop %v4382
        %v4384 = vmul.f32 %v4383, 0.6931472
        %v4385 = vmul.f32 -0.5, %v4270
        %v4386 = vadd.f32 %v4385, 1.0
        %v4387 = vmul.f32 %v4386, %v4270
        %v4388 = vand.u32 2147483647, %v4270
        %vm4389 = vcmp.lt.f32.partialorder %v4388, 0.0004427343
        %v4390 = vsel %vm4389, %v4387, %v4384
        %v4391 = vadd.f32 %v4272, 1.0
        %v4392 = vlog2.pop %v4391
        %v4393 = vmul.f32 %v4392, 0.6931472
        %v4394 = vmul.f32 -0.5, %v4272
        %v4395 = vadd.f32 %v4394, 1.0
        %v4396 = vmul.f32 %v4395, %v4272
        %v4397 = vand.u32 2147483647, %v4272
        %vm4398 = vcmp.lt.f32.partialorder %v4397, 0.0004427343
        %v4399 = vsel %vm4398, %v4396, %v4393
        %v4400 = vadd.f32 %v4274, 1.0
        %v4401 = vlog2.pop %v4400
        %v4402 = vmul.f32 %v4401, 0.6931472
        %v4403 = vmul.f32 -0.5, %v4274
        %v4404 = vadd.f32 %v4403, 1.0
        %v4405 = vmul.f32 %v4404, %v4274
        %v4406 = vand.u32 2147483647, %v4274
        %vm4407 = vcmp.lt.f32.partialorder %v4406, 0.0004427343
        %v4408 = vsel %vm4407, %v4405, %v4402
        %v4409 = vadd.f32 %v4276, 1.0
        %v4410 = vlog2.pop %v4409
        %v4411 = vmul.f32 %v4410, 0.6931472
        %v4412 = vmul.f32 -0.5, %v4276
        %v4413 = vadd.f32 %v4412, 1.0
        %v4414 = vmul.f32 %v4413, %v4276
        %v4415 = vand.u32 2147483647, %v4276
        %vm4416 = vcmp.lt.f32.partialorder %v4415, 0.0004427343
        %v4417 = vsel %vm4416, %v4414, %v4411
        %v4418 = vadd.f32 %v4278, 1.0
        %v4419 = vlog2.pop %v4418
        %v4420 = vmul.f32 %v4419, 0.6931472
        %v4421 = vmul.f32 -0.5, %v4278
        %v4422 = vadd.f32 %v4421, 1.0
        %v4423 = vmul.f32 %v4422, %v4278
        %v4424 = vand.u32 2147483647, %v4278
        %vm4425 = vcmp.lt.f32.partialorder %v4424, 0.0004427343
        %v4426 = vsel %vm4425, %v4423, %v4420
        %v4427 = vadd.f32 %v4280, 1.0
        %v4428 = vlog2.pop %v4427
        %v4429 = vmul.f32 %v4428, 0.6931472
        %v4430 = vmul.f32 -0.5, %v4280
        %v4431 = vadd.f32 %v4430, 1.0
        %v4432 = vmul.f32 %v4431, %v4280
        %v4433 = vand.u32 2147483647, %v4280
        %vm4434 = vcmp.lt.f32.partialorder %v4433, 0.0004427343
        %v4435 = vsel %vm4434, %v4432, %v4429
        %v4436 = vadd.f32 %v4282, 1.0
        %v4437 = vlog2.pop %v4436
        %v4438 = vmul.f32 %v4437, 0.6931472
        %v4439 = vmul.f32 -0.5, %v4282
        %v4440 = vadd.f32 %v4439, 1.0
        %v4441 = vmul.f32 %v4440, %v4282
        %v4442 = vand.u32 2147483647, %v4282
        %vm4443 = vcmp.lt.f32.partialorder %v4442, 0.0004427343
        %v4444 = vsel %vm4443, %v4441, %v4438
        %v4445 = vadd.f32 %v4284, 1.0
        %v4446 = vlog2.pop %v4445
        %v4447 = vmul.f32 %v4446, 0.6931472
        %v4448 = vmul.f32 -0.5, %v4284
        %v4449 = vadd.f32 %v4448, 1.0
        %v4450 = vmul.f32 %v4449, %v4284
        %v4451 = vand.u32 2147483647, %v4284
        %vm4452 = vcmp.lt.f32.partialorder %v4451, 0.0004427343
        %v4453 = vsel %vm4452, %v4450, %v4447
        %v4454 = vadd.f32 %v4286, 1.0
        %v4455 = vlog2.pop %v4454
        %v4456 = vmul.f32 %v4455, 0.6931472
        %v4457 = vmul.f32 -0.5, %v4286
        %v4458 = vadd.f32 %v4457, 1.0
        %v4459 = vmul.f32 %v4458, %v4286
        %v4460 = vand.u32 2147483647, %v4286
        %vm4461 = vcmp.lt.f32.partialorder %v4460, 0.0004427343
        %v4462 = vsel %vm4461, %v4459, %v4456
        %v4463 = vadd.f32 %v4288, 1.0
        %v4464 = vlog2.pop %v4463
        %v4465 = vmul.f32 %v4464, 0.6931472
        %v4466 = vmul.f32 -0.5, %v4288
        %v4467 = vadd.f32 %v4466, 1.0
        %v4468 = vmul.f32 %v4467, %v4288
        %v4469 = vand.u32 2147483647, %v4288
        %vm4470 = vcmp.lt.f32.partialorder %v4469, 0.0004427343
        %v4471 = vsel %vm4470, %v4468, %v4465
        %v4472 = vadd.f32 %v4290, 1.0
        %v4473 = vlog2.pop %v4472
        %v4474 = vmul.f32 %v4473, 0.6931472
        %v4475 = vmul.f32 -0.5, %v4290
        %v4476 = vadd.f32 %v4475, 1.0
        %v4477 = vmul.f32 %v4476, %v4290
        %v4478 = vand.u32 2147483647, %v4290
        %vm4479 = vcmp.lt.f32.partialorder %v4478, 0.0004427343
        %v4480 = vsel %vm4479, %v4477, %v4474
        %v4481 = vadd.f32 %v4292, 1.0
        %v4482 = vlog2.pop %v4481
        %v4483 = vmul.f32 %v4482, 0.6931472
        %v4484 = vmul.f32 -0.5, %v4292
        %v4485 = vadd.f32 %v4484, 1.0
        %v4486 = vmul.f32 %v4485, %v4292
        %v4487 = vand.u32 2147483647, %v4292
        %vm4488 = vcmp.lt.f32.partialorder %v4487, 0.0004427343
        %v4489 = vsel %vm4488, %v4486, %v4483
        %v4490 = vadd.f32 %v4294, 1.0
        %v4491 = vlog2.pop %v4490
        %v4492 = vmul.f32 %v4491, 0.6931472
        %v4493 = vmul.f32 -0.5, %v4294
        %v4494 = vadd.f32 %v4493, 1.0
        %v4495 = vmul.f32 %v4494, %v4294
        %v4496 = vand.u32 2147483647, %v4294
        %vm4497 = vcmp.lt.f32.partialorder %v4496, 0.0004427343
        %v4498 = vsel %vm4497, %v4495, %v4492
        %v4499 = vadd.f32 %v4296, 1.0
        %v4500 = vlog2.pop %v4499
        %v4501 = vmul.f32 %v4500, 0.6931472
        %v4502 = vmul.f32 -0.5, %v4296
        %v4503 = vadd.f32 %v4502, 1.0
        %v4504 = vmul.f32 %v4503, %v4296
        %v4505 = vand.u32 2147483647, %v4296
        %vm4506 = vcmp.lt.f32.partialorder %v4505, 0.0004427343
        %v4507 = vsel %vm4506, %v4504, %v4501
        %v4508 = vadd.f32 %v4298, 1.0
        %v4509 = vlog2.pop %v4508
        %v4510 = vmul.f32 %v4509, 0.6931472
        %v4511 = vmul.f32 -0.5, %v4298
        %v4512 = vadd.f32 %v4511, 1.0
        %v4513 = vmul.f32 %v4512, %v4298
        %v4514 = vand.u32 2147483647, %v4298
        %vm4515 = vcmp.lt.f32.partialorder %v4514, 0.0004427343
        %v4516 = vsel %vm4515, %v4513, %v4510
        %v4517 = vadd.f32 %v4300, 1.0
        %v4518 = vlog2.pop %v4517
        %v4519 = vmul.f32 %v4518, 0.6931472
        %v4520 = vmul.f32 -0.5, %v4300
        %v4521 = vadd.f32 %v4520, 1.0
        %v4522 = vmul.f32 %v4521, %v4300
        %v4523 = vand.u32 2147483647, %v4300
        %vm4524 = vcmp.lt.f32.partialorder %v4523, 0.0004427343
        %v4525 = vsel %vm4524, %v4522, %v4519
        %v4526 = vadd.f32 %v4302, 1.0
        %v4527 = vlog2.pop %v4526
        %v4528 = vmul.f32 %v4527, 0.6931472
        %v4529 = vmul.f32 -0.5, %v4302
        %v4530 = vadd.f32 %v4529, 1.0
        %v4531 = vmul.f32 %v4530, %v4302
        %v4532 = vand.u32 2147483647, %v4302
        %vm4533 = vcmp.lt.f32.partialorder %v4532, 0.0004427343
        %v4534 = vsel %vm4533, %v4531, %v4528
        %v4535 = vadd.f32 %v4304, 1.0
        %v4536 = vlog2.pop %v4535
        %v4537 = vmul.f32 %v4536, 0.6931472
        %v4538 = vmul.f32 -0.5, %v4304
        %v4539 = vadd.f32 %v4538, 1.0
        %v4540 = vmul.f32 %v4539, %v4304
        %v4541 = vand.u32 2147483647, %v4304
        %vm4542 = vcmp.lt.f32.partialorder %v4541, 0.0004427343
        %v4543 = vsel %vm4542, %v4540, %v4537
        %v4544 = vadd.f32 %v4306, 1.0
        %v4545 = vlog2.pop %v4544
        %v4546 = vmul.f32 %v4545, 0.6931472
        %v4547 = vmul.f32 -0.5, %v4306
        %v4548 = vadd.f32 %v4547, 1.0
        %v4549 = vmul.f32 %v4548, %v4306
        %v4550 = vand.u32 2147483647, %v4306
        %vm4551 = vcmp.lt.f32.partialorder %v4550, 0.0004427343
        %v4552 = vsel %vm4551, %v4549, %v4546
        %v4553 = vadd.f32 %v4308, 1.0
        %v4554 = vlog2.pop %v4553
        %v4555 = vmul.f32 %v4554, 0.6931472
        %v4556 = vmul.f32 -0.5, %v4308
        %v4557 = vadd.f32 %v4556, 1.0
        %v4558 = vmul.f32 %v4557, %v4308
        %v4559 = vand.u32 2147483647, %v4308
        %vm4560 = vcmp.lt.f32.partialorder %v4559, 0.0004427343
        %v4561 = vsel %vm4560, %v4558, %v4555
        %v4562 = vadd.f32 %v4310, 1.0
        %v4563 = vlog2.pop %v4562
        %v4564 = vmul.f32 %v4563, 0.6931472
        %v4565 = vmul.f32 -0.5, %v4310
        %v4566 = vadd.f32 %v4565, 1.0
        %v4567 = vmul.f32 %v4566, %v4310
        %v4568 = vand.u32 2147483647, %v4310
        %vm4569 = vcmp.lt.f32.partialorder %v4568, 0.0004427343
        %v4570 = vsel %vm4569, %v4567, %v4564
        %v4571 = vadd.f32 %v4312, 1.0
        %v4572 = vlog2.pop %v4571
        %v4573 = vmul.f32 %v4572, 0.6931472
        %v4574 = vmul.f32 -0.5, %v4312
        %v4575 = vadd.f32 %v4574, 1.0
        %v4576 = vmul.f32 %v4575, %v4312
        %v4577 = vand.u32 2147483647, %v4312
        %vm4578 = vcmp.lt.f32.partialorder %v4577, 0.0004427343
        %v4579 = vsel %vm4578, %v4576, %v4573
        %v4580 = vadd.f32 %v4314, 1.0
        %v4581 = vlog2.pop %v4580
        %v4582 = vmul.f32 %v4581, 0.6931472
        %v4583 = vmul.f32 -0.5, %v4314
        %v4584 = vadd.f32 %v4583, 1.0
        %v4585 = vmul.f32 %v4584, %v4314
        %v4586 = vand.u32 2147483647, %v4314
        %vm4587 = vcmp.lt.f32.partialorder %v4586, 0.0004427343
        %v4588 = vsel %vm4587, %v4585, %v4582
        %v4589 = vadd.f32 %v4316, 1.0
        %v4590 = vlog2.pop %v4589
        %v4591 = vmul.f32 %v4590, 0.6931472
        %v4592 = vmul.f32 -0.5, %v4316
        %v4593 = vadd.f32 %v4592, 1.0
        %v4594 = vmul.f32 %v4593, %v4316
        %v4595 = vand.u32 2147483647, %v4316
        %vm4596 = vcmp.lt.f32.partialorder %v4595, 0.0004427343
        %v4597 = vsel %vm4596, %v4594, %v4591
        %v4598 = vadd.f32 %v4318, 1.0
        %v4599 = vlog2.pop %v4598
        %v4600 = vmul.f32 %v4599, 0.6931472
        %v4601 = vmul.f32 -0.5, %v4318
        %v4602 = vadd.f32 %v4601, 1.0
        %v4603 = vmul.f32 %v4602, %v4318
        %v4604 = vand.u32 2147483647, %v4318
        %vm4605 = vcmp.lt.f32.partialorder %v4604, 0.0004427343
        %v4606 = vsel %vm4605, %v4603, %v4600
        %v4607 = vmul.f32 %v4327, 0.01
        %v4608 = vmul.f32 %v4336, 0.01
        %v4609 = vmul.f32 %v4345, 0.01
        %v4610 = vmul.f32 %v4354, 0.01
        %v4611 = vmul.f32 %v4363, 0.01
        %v4612 = vmul.f32 %v4372, 0.01
        %v4613 = vmul.f32 %v4381, 0.01
        %v4614 = vmul.f32 %v4390, 0.01
        %v4615 = vmul.f32 %v4399, 0.01
        %v4616 = vmul.f32 %v4408, 0.01
        %v4617 = vmul.f32 %v4417, 0.01
        %v4618 = vmul.f32 %v4426, 0.01
        %v4619 = vmul.f32 %v4435, 0.01
        %v4620 = vmul.f32 %v4444, 0.01
        %v4621 = vmul.f32 %v4453, 0.01
        %v4622 = vmul.f32 %v4462, 0.01
        %v4623 = vmul.f32 %v4471, 0.01
        %v4624 = vmul.f32 %v4480, 0.01
        %v4625 = vmul.f32 %v4489, 0.01
        %v4626 = vmul.f32 %v4498, 0.01
        %v4627 = vmul.f32 %v4507, 0.01
        %v4628 = vmul.f32 %v4516, 0.01
        %v4629 = vmul.f32 %v4525, 0.01
        %v4630 = vmul.f32 %v4534, 0.01
        %v4631 = vmul.f32 %v4543, 0.01
        %v4632 = vmul.f32 %v4552, 0.01
        %v4633 = vmul.f32 %v4561, 0.01
        %v4634 = vmul.f32 %v4570, 0.01
        %v4635 = vmul.f32 %v4579, 0.01
        %v4636 = vmul.f32 %v4588, 0.01
        %v4637 = vmul.f32 %v4597, 0.01
        %v4638 = vmul.f32 %v4606, 0.01
        %vm4639 = vcmp.gt.f32.partialorder %v4191, 20.0
        %vm4640 = vcmp.gt.f32.partialorder %v4192, 20.0
        %vm4641 = vcmp.gt.f32.partialorder %v4193, 20.0
        %vm4642 = vcmp.gt.f32.partialorder %v4194, 20.0
        %vm4643 = vcmp.gt.f32.partialorder %v4195, 20.0
        %vm4644 = vcmp.gt.f32.partialorder %v4196, 20.0
        %vm4645 = vcmp.gt.f32.partialorder %v4197, 20.0
        %vm4646 = vcmp.gt.f32.partialorder %v4198, 20.0
        %vm4647 = vcmp.gt.f32.partialorder %v4199, 20.0
        %vm4648 = vcmp.gt.f32.partialorder %v4200, 20.0
        %vm4649 = vcmp.gt.f32.partialorder %v4201, 20.0
        %vm4650 = vcmp.gt.f32.partialorder %v4202, 20.0
        %vm4651 = vcmp.gt.f32.partialorder %v4203, 20.0
        %vm4652 = vcmp.gt.f32.partialorder %v4204, 20.0
        %vm4653 = vcmp.gt.f32.partialorder %v4205, 20.0
        %vm4654 = vcmp.gt.f32.partialorder %v4206, 20.0
        %vm4655 = vcmp.gt.f32.partialorder %v4207, 20.0
        %vm4656 = vcmp.gt.f32.partialorder %v4208, 20.0
        %vm4657 = vcmp.gt.f32.partialorder %v4209, 20.0
        %vm4658 = vcmp.gt.f32.partialorder %v4210, 20.0
        %vm4659 = vcmp.gt.f32.partialorder %v4211, 20.0
        %vm4660 = vcmp.gt.f32.partialorder %v4212, 20.0
        %vm4661 = vcmp.gt.f32.partialorder %v4213, 20.0
        %vm4662 = vcmp.gt.f32.partialorder %v4214, 20.0
        %vm4663 = vcmp.gt.f32.partialorder %v4215, 20.0
        %vm4664 = vcmp.gt.f32.partialorder %v4216, 20.0
        %vm4665 = vcmp.gt.f32.partialorder %v4217, 20.0
        %vm4666 = vcmp.gt.f32.partialorder %v4218, 20.0
        %vm4667 = vcmp.gt.f32.partialorder %v4219, 20.0
        %vm4668 = vcmp.gt.f32.partialorder %v4220, 20.0
        %vm4669 = vcmp.gt.f32.partialorder %v4221, 20.0
        %vm4670 = vcmp.gt.f32.partialorder %v4222, 20.0
        %v4671 = vsel %vm4639, %v4159, %v4607
        %v4672 = vsel %vm4640, %v4160, %v4608
        %v4673 = vsel %vm4641, %v4161, %v4609
        %v4674 = vsel %vm4642, %v4162, %v4610
        %v4675 = vsel %vm4643, %v4163, %v4611
        %v4676 = vsel %vm4644, %v4164, %v4612
        %v4677 = vsel %vm4645, %v4165, %v4613
        %v4678 = vsel %vm4646, %v4166, %v4614
        %v4679 = vsel %vm4647, %v4167, %v4615
        %v4680 = vsel %vm4648, %v4168, %v4616
        %v4681 = vsel %vm4649, %v4169, %v4617
        %v4682 = vsel %vm4650, %v4170, %v4618
        %v4683 = vsel %vm4651, %v4171, %v4619
        %v4684 = vsel %vm4652, %v4172, %v4620
        %v4685 = vsel %vm4653, %v4173, %v4621
        %v4686 = vsel %vm4654, %v4174, %v4622
        %v4687 = vsel %vm4655, %v4175, %v4623
        %v4688 = vsel %vm4656, %v4176, %v4624
        %v4689 = vsel %vm4657, %v4177, %v4625
        %v4690 = vsel %vm4658, %v4178, %v4626
        %v4691 = vsel %vm4659, %v4179, %v4627
        %v4692 = vsel %vm4660, %v4180, %v4628
        %v4693 = vsel %vm4661, %v4181, %v4629
        %v4694 = vsel %vm4662, %v4182, %v4630
        %v4695 = vsel %vm4663, %v4183, %v4631
        %v4696 = vsel %vm4664, %v4184, %v4632
        %v4697 = vsel %vm4665, %v4185, %v4633
        %v4698 = vsel %vm4666, %v4186, %v4634
        %v4699 = vsel %vm4667, %v4187, %v4635
        %v4700 = vsel %vm4668, %v4188, %v4636
        %v4701 = vsel %vm4669, %v4189, %v4637
        %v4702 = vsel %vm4670, %v4190, %v4638
        %v4703 = vld [vmem:[%s2] sm:$0xff]
        %v4704 = vld [vmem:[%s2 + $0x8] sm:$0xff]
        %v4705 = vld [vmem:[%s2 + $0x10] sm:$0xff]
        %v4706 = vld [vmem:[%s2 + $0x18] sm:$0xff]
        %s4707 = scalar_lea.vmem %s4, 32
        %v4708 = vld [vmem:[%s4707] sm:$0xff]
        %v4709 = vld [vmem:[%s4707 + $0x8] sm:$0xff]
        %v4710 = vld [vmem:[%s4707 + $0x10] sm:$0xff]
        %v4711 = vld [vmem:[%s4707 + $0x18] sm:$0xff]
        %4713 = vset.pattern.permute.xlu0 0
        %4714 = vperm.xlu0 %4713, %v4708
        %v4715 = vpop.permute.xlu0 %4714
        %4718 = vset.pattern.permute.xlu0 0
        %4719 = vperm.xlu0 %4718, %v4709
        %v4720 = vpop.permute.xlu0 %4719
        %4723 = vset.pattern.permute.xlu0 0
        %4724 = vperm.xlu0 %4723, %v4710
        %v4725 = vpop.permute.xlu0 %4724
        %4728 = vset.pattern.permute.xlu0 0
        %4729 = vperm.xlu0 %4728, %v4711
        %v4730 = vpop.permute.xlu0 %4729
        %vm4732 = vcmask 261120
        %v4734 = vsel %vm4732, %v4703, 0
        %v4737 = vsel %vm4732, %v4704, 0
        %v4740 = vsel %vm4732, %v4705, 0
        %v4743 = vsel %vm4732, %v4706, 0
        %4745 = vmatprep.subr.mxu0 %v4672
        %4746 = vmatpush1.msra.mxu0 %v4671
        %4747 = vmatprep.subr.mxu0 %v4680
        %4748 = vmatpush1.msra.mxu0 %v4679
        %4749 = vmatprep.subr.mxu0 %v4688
        %4750 = vmatpush1.msra.mxu0 %v4687
        %4751 = vmatprep.subr.mxu0 %v4696
        %4752 = vmatpush1.msra.mxu0 %v4695
        %4753 = vmatprep.subr.mxu0 0.0
        %4754 = vmatpush1.msra.mxu0 0.0
        %4755 = vmatprep.subr.mxu0 0.0
        %4756 = vmatpush1.msra.mxu0 0.0
        %4757 = vmatprep.subr.mxu0 0.0
        %4758 = vmatpush1.msra.mxu0 0.0
        %4759 = vmatprep.subr.mxu0 0.0
        %4760 = vmatpush1.msra.mxu0 0.0
        %4761 = vmatprep.subr.mxu0 0.0
        %4762 = vmatpush1.msra.mxu0 0.0
        %4763 = vmatprep.subr.mxu0 0.0
        %4764 = vmatpush1.msra.mxu0 0.0
        %4765 = vmatprep.subr.mxu0 0.0
        %4766 = vmatpush1.msra.mxu0 0.0
        %4767 = vmatprep.subr.mxu0 0.0
        %4768 = vmatpush1.msra.mxu0 0.0
        %4769 = vmatprep.subr.mxu0 0.0
        %4770 = vmatpush1.msra.mxu0 0.0
        %4771 = vmatprep.subr.mxu0 0.0
        %4772 = vmatpush1.msra.mxu0 0.0
        %4773 = vmatprep.subr.mxu0 0.0
        %4774 = vmatpush1.msra.mxu0 0.0
        %4775 = vmatprep.subr.mxu0 0.0
        %4776 = vmatpush1.msra.mxu0 0.0
        %4777 = vmatprep.subr.mxu0 0.0
        %4778 = vmatpush1.msra.mxu0 0.0
        %4779 = vmatprep.subr.mxu0 0.0
        %4780 = vmatpush1.msra.mxu0 0.0
        %4781 = vmatprep.subr.mxu0 0.0
        %4782 = vmatpush1.msra.mxu0 0.0
        %4783 = vmatprep.subr.mxu0 0.0
        %4784 = vmatpush1.msra.mxu0 0.0
        %4785 = vmatprep.subr.mxu0 0.0
        %4786 = vmatpush1.msra.mxu0 0.0
        %4787 = vmatprep.subr.mxu0 0.0
        %4788 = vmatpush1.msra.mxu0 0.0
        %4789 = vmatprep.subr.mxu0 0.0
        %4790 = vmatpush1.msra.mxu0 0.0
        %4791 = vmatprep.subr.mxu0 0.0
        %4792 = vmatpush1.msra.mxu0 0.0
        %4793 = vmatprep.subr.mxu0 0.0
        %4794 = vmatpush1.msra.mxu0 0.0
        %4795 = vmatprep.subr.mxu0 0.0
        %4796 = vmatpush1.msra.mxu0 0.0
        %4797 = vmatprep.subr.mxu0 0.0
        %4798 = vmatpush1.msra.mxu0 0.0
        %4799 = vmatprep.subr.mxu0 0.0
        %4800 = vmatpush1.msra.mxu0 0.0
        %4801 = vmatprep.subr.mxu0 0.0
        %4802 = vmatpush1.msra.mxu0 0.0
        %4803 = vmatprep.subr.mxu0 0.0
        %4804 = vmatpush1.msra.mxu0 0.0
        %4805 = vmatprep.subr.mxu0 0.0
        %4806 = vmatpush1.msra.mxu0 0.0
        %4807 = vmatprep.subr.mxu0 0.0
        %4808 = vmatpush1.msra.mxu0 0.0
        %4809 = vmatprep.mubr.f32.mxu0 0.0
        %4810 = vmatmul.mubr.f32.gmra.mrb[0].mxu0 %v4734
        %v4811 = vpop.f32.mrb[0].mxu0
        %v4812 = vadd.f32 %v4715, %v4811
        %v4813 = vpop.f32.mrb[0].mxu0
        %v4814 = vadd.f32 %v4715, %v4813
        %4815 = vmatprep.mubr.f32.mxu0 0.0
        %4816 = vmatmul.mubr.f32.gmra.mrb[0].mxu0 %v4737
        %v4817 = vpop.f32.mrb[0].mxu0
        %v4818 = vadd.f32 %v4720, %v4817
        %v4819 = vpop.f32.mrb[0].mxu0
        %v4820 = vadd.f32 %v4720, %v4819
        %4821 = vmatprep.mubr.f32.mxu0 0.0
        %4822 = vmatmul.mubr.f32.gmra.mrb[0].mxu0 %v4740
        %v4823 = vpop.f32.mrb[0].mxu0
        %v4824 = vadd.f32 %v4725, %v4823
        %v4825 = vpop.f32.mrb[0].mxu0
        %v4826 = vadd.f32 %v4725, %v4825
        %4827 = vmatprep.mubr.f32.mxu0 0.0
        %4828 = vmatmul.mubr.f32.gmra.mrb[0].mxu0 %v4743
        %v4829 = vpop.f32.mrb[0].mxu0
        %v4830 = vadd.f32 %v4730, %v4829
        %v4831 = vpop.f32.mrb[0].mxu0
        %v4832 = vadd.f32 %v4730, %v4831
        %4833 = vdwg.mxu0
        %4834 = vmatprep.subr.mxu0 %v4674
        %4835 = vmatpush1.msra.mxu0 %v4673
        %4836 = vmatprep.subr.mxu0 %v4682
        %4837 = vmatpush1.msra.mxu0 %v4681
        %4838 = vmatprep.subr.mxu0 %v4690
        %4839 = vmatpush1.msra.mxu0 %v4689
        %4840 = vmatprep.subr.mxu0 %v4698
        %4841 = vmatpush1.msra.mxu0 %v4697
        %4842 = vmatprep.subr.mxu0 0.0
        %4843 = vmatpush1.msra.mxu0 0.0
        %4844 = vmatprep.subr.mxu0 0.0
        %4845 = vmatpush1.msra.mxu0 0.0
        %4846 = vmatprep.subr.mxu0 0.0
        %4847 = vmatpush1.msra.mxu0 0.0
        %4848 = vmatprep.subr.mxu0 0.0
        %4849 = vmatpush1.msra.mxu0 0.0
        %4850 = vmatprep.subr.mxu0 0.0
        %4851 = vmatpush1.msra.mxu0 0.0
        %4852 = vmatprep.subr.mxu0 0.0
        %4853 = vmatpush1.msra.mxu0 0.0
        %4854 = vmatprep.subr.mxu0 0.0
        %4855 = vmatpush1.msra.mxu0 0.0
        %4856 = vmatprep.subr.mxu0 0.0
        %4857 = vmatpush1.msra.mxu0 0.0
        %4858 = vmatprep.subr.mxu0 0.0
        %4859 = vmatpush1.msra.mxu0 0.0
        %4860 = vmatprep.subr.mxu0 0.0
        %4861 = vmatpush1.msra.mxu0 0.0
        %4862 = vmatprep.subr.mxu0 0.0
        %4863 = vmatpush1.msra.mxu0 0.0
        %4864 = vmatprep.subr.mxu0 0.0
        %4865 = vmatpush1.msra.mxu0 0.0
        %4866 = vmatprep.subr.mxu0 0.0
        %4867 = vmatpush1.msra.mxu0 0.0
        %4868 = vmatprep.subr.mxu0 0.0
        %4869 = vmatpush1.msra.mxu0 0.0
        %4870 = vmatprep.subr.mxu0 0.0
        %4871 = vmatpush1.msra.mxu0 0.0
        %4872 = vmatprep.subr.mxu0 0.0
        %4873 = vmatpush1.msra.mxu0 0.0
        %4874 = vmatprep.subr.mxu0 0.0
        %4875 = vmatpush1.msra.mxu0 0.0
        %4876 = vmatprep.subr.mxu0 0.0
        %4877 = vmatpush1.msra.mxu0 0.0
        %4878 = vmatprep.subr.mxu0 0.0
        %4879 = vmatpush1.msra.mxu0 0.0
        %4880 = vmatprep.subr.mxu0 0.0
        %4881 = vmatpush1.msra.mxu0 0.0
        %4882 = vmatprep.subr.mxu0 0.0
        %4883 = vmatpush1.msra.mxu0 0.0
        %4884 = vmatprep.subr.mxu0 0.0
        %4885 = vmatpush1.msra.mxu0 0.0
        %4886 = vmatprep.subr.mxu0 0.0
        %4887 = vmatpush1.msra.mxu0 0.0
        %4888 = vmatprep.subr.mxu0 0.0
        %4889 = vmatpush1.msra.mxu0 0.0
        %4890 = vmatprep.subr.mxu0 0.0
        %4891 = vmatpush1.msra.mxu0 0.0
        %4892 = vmatprep.subr.mxu0 0.0
        %4893 = vmatpush1.msra.mxu0 0.0
        %4894 = vmatprep.subr.mxu0 0.0
        %4895 = vmatpush1.msra.mxu0 0.0
        %4896 = vmatprep.subr.mxu0 0.0
        %4897 = vmatpush1.msra.mxu0 0.0
        %4898 = vmatprep.mubr.f32.mxu0 0.0
        %4899 = vmatmul.mubr.f32.gmra.mrb[0].mxu0 %v4734
        %v4900 = vpop.f32.mrb[0].mxu0
        %v4901 = vadd.f32 %v4715, %v4900
        %v4902 = vpop.f32.mrb[0].mxu0
        %v4903 = vadd.f32 %v4715, %v4902
        %4904 = vmatprep.mubr.f32.mxu0 0.0
        %4905 = vmatmul.mubr.f32.gmra.mrb[0].mxu0 %v4737
        %v4906 = vpop.f32.mrb[0].mxu0
        %v4907 = vadd.f32 %v4720, %v4906
        %v4908 = vpop.f32.mrb[0].mxu0
        %v4909 = vadd.f32 %v4720, %v4908
        %4910 = vmatprep.mubr.f32.mxu0 0.0
        %4911 = vmatmul.mubr.f32.gmra.mrb[0].mxu0 %v4740
        %v4912 = vpop.f32.mrb[0].mxu0
        %v4913 = vadd.f32 %v4725, %v4912
        %v4914 = vpop.f32.mrb[0].mxu0
        %v4915 = vadd.f32 %v4725, %v4914
        %4916 = vmatprep.mubr.f32.mxu0 0.0
        %4917 = vmatmul.mubr.f32.gmra.mrb[0].mxu0 %v4743
        %v4918 = vpop.f32.mrb[0].mxu0
        %v4919 = vadd.f32 %v4730, %v4918
        %v4920 = vpop.f32.mrb[0].mxu0
        %v4921 = vadd.f32 %v4730, %v4920
        %4922 = vdwg.mxu0
        %4923 = vmatprep.subr.mxu0 %v4676
        %4924 = vmatpush1.msra.mxu0 %v4675
        %4925 = vmatprep.subr.mxu0 %v4684
        %4926 = vmatpush1.msra.mxu0 %v4683
        %4927 = vmatprep.subr.mxu0 %v4692
        %4928 = vmatpush1.msra.mxu0 %v4691
        %4929 = vmatprep.subr.mxu0 %v4700
        %4930 = vmatpush1.msra.mxu0 %v4699
        %4931 = vmatprep.subr.mxu0 0.0
        %4932 = vmatpush1.msra.mxu0 0.0
        %4933 = vmatprep.subr.mxu0 0.0
        %4934 = vmatpush1.msra.mxu0 0.0
        %4935 = vmatprep.subr.mxu0 0.0
        %4936 = vmatpush1.msra.mxu0 0.0
        %4937 = vmatprep.subr.mxu0 0.0
        %4938 = vmatpush1.msra.mxu0 0.0
        %4939 = vmatprep.subr.mxu0 0.0
        %4940 = vmatpush1.msra.mxu0 0.0
        %4941 = vmatprep.subr.mxu0 0.0
        %4942 = vmatpush1.msra.mxu0 0.0
        %4943 = vmatprep.subr.mxu0 0.0
        %4944 = vmatpush1.msra.mxu0 0.0
        %4945 = vmatprep.subr.mxu0 0.0
        %4946 = vmatpush1.msra.mxu0 0.0
        %4947 = vmatprep.subr.mxu0 0.0
        %4948 = vmatpush1.msra.mxu0 0.0
        %4949 = vmatprep.subr.mxu0 0.0
        %4950 = vmatpush1.msra.mxu0 0.0
        %4951 = vmatprep.subr.mxu0 0.0
        %4952 = vmatpush1.msra.mxu0 0.0
        %4953 = vmatprep.subr.mxu0 0.0
        %4954 = vmatpush1.msra.mxu0 0.0
        %4955 = vmatprep.subr.mxu0 0.0
        %4956 = vmatpush1.msra.mxu0 0.0
        %4957 = vmatprep.subr.mxu0 0.0
        %4958 = vmatpush1.msra.mxu0 0.0
        %4959 = vmatprep.subr.mxu0 0.0
        %4960 = vmatpush1.msra.mxu0 0.0
        %4961 = vmatprep.subr.mxu0 0.0
        %4962 = vmatpush1.msra.mxu0 0.0
        %4963 = vmatprep.subr.mxu0 0.0
        %4964 = vmatpush1.msra.mxu0 0.0
        %4965 = vmatprep.subr.mxu0 0.0
        %4966 = vmatpush1.msra.mxu0 0.0
        %4967 = vmatprep.subr.mxu0 0.0
        %4968 = vmatpush1.msra.mxu0 0.0
        %4969 = vmatprep.subr.mxu0 0.0
        %4970 = vmatpush1.msra.mxu0 0.0
        %4971 = vmatprep.subr.mxu0 0.0
        %4972 = vmatpush1.msra.mxu0 0.0
        %4973 = vmatprep.subr.mxu0 0.0
        %4974 = vmatpush1.msra.mxu0 0.0
        %4975 = vmatprep.subr.mxu0 0.0
        %4976 = vmatpush1.msra.mxu0 0.0
        %4977 = vmatprep.subr.mxu0 0.0
        %4978 = vmatpush1.msra.mxu0 0.0
        %4979 = vmatprep.subr.mxu0 0.0
        %4980 = vmatpush1.msra.mxu0 0.0
        %4981 = vmatprep.subr.mxu0 0.0
        %4982 = vmatpush1.msra.mxu0 0.0
        %4983 = vmatprep.subr.mxu0 0.0
        %4984 = vmatpush1.msra.mxu0 0.0
        %4985 = vmatprep.subr.mxu0 0.0
        %4986 = vmatpush1.msra.mxu0 0.0
        %4987 = vmatprep.mubr.f32.mxu0 0.0
        %4988 = vmatmul.mubr.f32.gmra.mrb[0].mxu0 %v4734
        %v4989 = vpop.f32.mrb[0].mxu0
        %v4990 = vadd.f32 %v4715, %v4989
        %v4991 = vpop.f32.mrb[0].mxu0
        %v4992 = vadd.f32 %v4715, %v4991
        %4993 = vmatprep.mubr.f32.mxu0 0.0
        %4994 = vmatmul.mubr.f32.gmra.mrb[0].mxu0 %v4737
        %v4995 = vpop.f32.mrb[0].mxu0
        %v4996 = vadd.f32 %v4720, %v4995
        %v4997 = vpop.f32.mrb[0].mxu0
        %v4998 = vadd.f32 %v4720, %v4997
        %4999 = vmatprep.mubr.f32.mxu0 0.0
        %5000 = vmatmul.mubr.f32.gmra.mrb[0].mxu0 %v4740
        %v5001 = vpop.f32.mrb[0].mxu0
        %v5002 = vadd.f32 %v4725, %v5001
        %v5003 = vpop.f32.mrb[0].mxu0
        %v5004 = vadd.f32 %v4725, %v5003
        %5005 = vmatprep.mubr.f32.mxu0 0.0
        %5006 = vmatmul.mubr.f32.gmra.mrb[0].mxu0 %v4743
        %v5007 = vpop.f32.mrb[0].mxu0
        %v5008 = vadd.f32 %v4730, %v5007
        %v5009 = vpop.f32.mrb[0].mxu0
        %v5010 = vadd.f32 %v4730, %v5009
        %5011 = vdwg.mxu0
        %5012 = vmatprep.subr.mxu0 %v4678
        %5013 = vmatpush1.msra.mxu0 %v4677
        %5014 = vmatprep.subr.mxu0 %v4686
        %5015 = vmatpush1.msra.mxu0 %v4685
        %5016 = vmatprep.subr.mxu0 %v4694
        %5017 = vmatpush1.msra.mxu0 %v4693
        %5018 = vmatprep.subr.mxu0 %v4702
        %5019 = vmatpush1.msra.mxu0 %v4701
        %5020 = vmatprep.subr.mxu0 0.0
        %5021 = vmatpush1.msra.mxu0 0.0
        %5022 = vmatprep.subr.mxu0 0.0
        %5023 = vmatpush1.msra.mxu0 0.0
        %5024 = vmatprep.subr.mxu0 0.0
        %5025 = vmatpush1.msra.mxu0 0.0
        %5026 = vmatprep.subr.mxu0 0.0
        %5027 = vmatpush1.msra.mxu0 0.0
        %5028 = vmatprep.subr.mxu0 0.0
        %5029 = vmatpush1.msra.mxu0 0.0
        %5030 = vmatprep.subr.mxu0 0.0
        %5031 = vmatpush1.msra.mxu0 0.0
        %5032 = vmatprep.subr.mxu0 0.0
        %5033 = vmatpush1.msra.mxu0 0.0
        %5034 = vmatprep.subr.mxu0 0.0
        %5035 = vmatpush1.msra.mxu0 0.0
        %5036 = vmatprep.subr.mxu0 0.0
        %5037 = vmatpush1.msra.mxu0 0.0
        %5038 = vmatprep.subr.mxu0 0.0
        %5039 = vmatpush1.msra.mxu0 0.0
        %5040 = vmatprep.subr.mxu0 0.0
        %5041 = vmatpush1.msra.mxu0 0.0
        %5042 = vmatprep.subr.mxu0 0.0
        %5043 = vmatpush1.msra.mxu0 0.0
        %5044 = vmatprep.subr.mxu0 0.0
        %5045 = vmatpush1.msra.mxu0 0.0
        %5046 = vmatprep.subr.mxu0 0.0
        %5047 = vmatpush1.msra.mxu0 0.0
        %5048 = vmatprep.subr.mxu0 0.0
        %5049 = vmatpush1.msra.mxu0 0.0
        %5050 = vmatprep.subr.mxu0 0.0
        %5051 = vmatpush1.msra.mxu0 0.0
        %5052 = vmatprep.subr.mxu0 0.0
        %5053 = vmatpush1.msra.mxu0 0.0
        %5054 = vmatprep.subr.mxu0 0.0
        %5055 = vmatpush1.msra.mxu0 0.0
        %5056 = vmatprep.subr.mxu0 0.0
        %5057 = vmatpush1.msra.mxu0 0.0
        %5058 = vmatprep.subr.mxu0 0.0
        %5059 = vmatpush1.msra.mxu0 0.0
        %5060 = vmatprep.subr.mxu0 0.0
        %5061 = vmatpush1.msra.mxu0 0.0
        %5062 = vmatprep.subr.mxu0 0.0
        %5063 = vmatpush1.msra.mxu0 0.0
        %5064 = vmatprep.subr.mxu0 0.0
        %5065 = vmatpush1.msra.mxu0 0.0
        %5066 = vmatprep.subr.mxu0 0.0
        %5067 = vmatpush1.msra.mxu0 0.0
        %5068 = vmatprep.subr.mxu0 0.0
        %5069 = vmatpush1.msra.mxu0 0.0
        %5070 = vmatprep.subr.mxu0 0.0
        %5071 = vmatpush1.msra.mxu0 0.0
        %5072 = vmatprep.subr.mxu0 0.0
        %5073 = vmatpush1.msra.mxu0 0.0
        %5074 = vmatprep.subr.mxu0 0.0
        %5075 = vmatpush1.msra.mxu0 0.0
        %5076 = vmatprep.mubr.f32.mxu0 0.0
        %5077 = vmatmul.mubr.f32.gmra.mrb[0].mxu0 %v4734
        %v5078 = vpop.f32.mrb[0].mxu0
        %v5079 = vadd.f32 %v4715, %v5078
        %v5080 = vpop.f32.mrb[0].mxu0
        %v5081 = vadd.f32 %v4715, %v5080
        %5082 = vmatprep.mubr.f32.mxu0 0.0
        %5083 = vmatmul.mubr.f32.gmra.mrb[0].mxu0 %v4737
        %v5084 = vpop.f32.mrb[0].mxu0
        %v5085 = vadd.f32 %v4720, %v5084
        %v5086 = vpop.f32.mrb[0].mxu0
        %v5087 = vadd.f32 %v4720, %v5086
        %5088 = vmatprep.mubr.f32.mxu0 0.0
        %5089 = vmatmul.mubr.f32.gmra.mrb[0].mxu0 %v4740
        %v5090 = vpop.f32.mrb[0].mxu0
        %v5091 = vadd.f32 %v4725, %v5090
        %v5092 = vpop.f32.mrb[0].mxu0
        %v5093 = vadd.f32 %v4725, %v5092
        %5094 = vmatprep.mubr.f32.mxu0 0.0
        %5095 = vmatmul.mubr.f32.gmra.mrb[0].mxu0 %v4743
        %v5096 = vpop.f32.mrb[0].mxu0
        %v5097 = vadd.f32 %v4730, %v5096
        %v5098 = vpop.f32.mrb[0].mxu0
        %v5099 = vadd.f32 %v4730, %v5098
        %5100 = vdwg.mxu0
        %v5101 = vmul.f32 %v4812, 100.0
        %v5102 = vmul.f32 %v4814, 100.0
        %v5103 = vmul.f32 %v4901, 100.0
        %v5104 = vmul.f32 %v4903, 100.0
        %v5105 = vmul.f32 %v4990, 100.0
        %v5106 = vmul.f32 %v4992, 100.0
        %v5107 = vmul.f32 %v5079, 100.0
        %v5108 = vmul.f32 %v5081, 100.0
        %v5109 = vmul.f32 %v4818, 100.0
        %v5110 = vmul.f32 %v4820, 100.0
        %v5111 = vmul.f32 %v4907, 100.0
        %v5112 = vmul.f32 %v4909, 100.0
        %v5113 = vmul.f32 %v4996, 100.0
        %v5114 = vmul.f32 %v4998, 100.0
        %v5115 = vmul.f32 %v5085, 100.0
        %v5116 = vmul.f32 %v5087, 100.0
        %v5117 = vmul.f32 %v4824, 100.0
        %v5118 = vmul.f32 %v4826, 100.0
        %v5119 = vmul.f32 %v4913, 100.0
        %v5120 = vmul.f32 %v4915, 100.0
        %v5121 = vmul.f32 %v5002, 100.0
        %v5122 = vmul.f32 %v5004, 100.0
        %v5123 = vmul.f32 %v5091, 100.0
        %v5124 = vmul.f32 %v5093, 100.0
        %v5125 = vmul.f32 %v4830, 100.0
        %v5126 = vmul.f32 %v4832, 100.0
        %v5127 = vmul.f32 %v4919, 100.0
        %v5128 = vmul.f32 %v4921, 100.0
        %v5129 = vmul.f32 %v5008, 100.0
        %v5130 = vmul.f32 %v5010, 100.0
        %v5131 = vmul.f32 %v5097, 100.0
        %v5132 = vmul.f32 %v5099, 100.0
        %v5133 = vmin.f32 %v5101, 20.0
        %v5134 = vmin.f32 %v5102, 20.0
        %v5135 = vmin.f32 %v5103, 20.0
        %v5136 = vmin.f32 %v5104, 20.0
        %v5137 = vmin.f32 %v5105, 20.0
        %v5138 = vmin.f32 %v5106, 20.0
        %v5139 = vmin.f32 %v5107, 20.0
        %v5140 = vmin.f32 %v5108, 20.0
        %v5141 = vmin.f32 %v5109, 20.0
        %v5142 = vmin.f32 %v5110, 20.0
        %v5143 = vmin.f32 %v5111, 20.0
        %v5144 = vmin.f32 %v5112, 20.0
        %v5145 = vmin.f32 %v5113, 20.0
        %v5146 = vmin.f32 %v5114, 20.0
        %v5147 = vmin.f32 %v5115, 20.0
        %v5148 = vmin.f32 %v5116, 20.0
        %v5149 = vmin.f32 %v5117, 20.0
        %v5150 = vmin.f32 %v5118, 20.0
        %v5151 = vmin.f32 %v5119, 20.0
        %v5152 = vmin.f32 %v5120, 20.0
        %v5153 = vmin.f32 %v5121, 20.0
        %v5154 = vmin.f32 %v5122, 20.0
        %v5155 = vmin.f32 %v5123, 20.0
        %v5156 = vmin.f32 %v5124, 20.0
        %v5157 = vmin.f32 %v5125, 20.0
        %v5158 = vmin.f32 %v5126, 20.0
        %v5159 = vmin.f32 %v5127, 20.0
        %v5160 = vmin.f32 %v5128, 20.0
        %v5161 = vmin.f32 %v5129, 20.0
        %v5162 = vmin.f32 %v5130, 20.0
        %v5163 = vmin.f32 %v5131, 20.0
        %v5164 = vmin.f32 %v5132, 20.0
        %v5165 = vmul.f32 %v5133, 1.442695
        %v5166 = vpow.pop %v5165
        %v5167 = vmul.f32 %v5134, 1.442695
        %v5168 = vpow.pop %v5167
        %v5169 = vmul.f32 %v5135, 1.442695
        %v5170 = vpow.pop %v5169
        %v5171 = vmul.f32 %v5136, 1.442695
        %v5172 = vpow.pop %v5171
        %v5173 = vmul.f32 %v5137, 1.442695
        %v5174 = vpow.pop %v5173
        %v5175 = vmul.f32 %v5138, 1.442695
        %v5176 = vpow.pop %v5175
        %v5177 = vmul.f32 %v5139, 1.442695
        %v5178 = vpow.pop %v5177
        %v5179 = vmul.f32 %v5140, 1.442695
        %v5180 = vpow.pop %v5179
        %v5181 = vmul.f32 %v5141, 1.442695
        %v5182 = vpow.pop %v5181
        %v5183 = vmul.f32 %v5142, 1.442695
        %v5184 = vpow.pop %v5183
        %v5185 = vmul.f32 %v5143, 1.442695
        %v5186 = vpow.pop %v5185
        %v5187 = vmul.f32 %v5144, 1.442695
        %v5188 = vpow.pop %v5187
        %v5189 = vmul.f32 %v5145, 1.442695
        %v5190 = vpow.pop %v5189
        %v5191 = vmul.f32 %v5146, 1.442695
        %v5192 = vpow.pop %v5191
        %v5193 = vmul.f32 %v5147, 1.442695
        %v5194 = vpow.pop %v5193
        %v5195 = vmul.f32 %v5148, 1.442695
        %v5196 = vpow.pop %v5195
        %v5197 = vmul.f32 %v5149, 1.442695
        %v5198 = vpow.pop %v5197
        %v5199 = vmul.f32 %v5150, 1.442695
        %v5200 = vpow.pop %v5199
        %v5201 = vmul.f32 %v5151, 1.442695
        %v5202 = vpow.pop %v5201
        %v5203 = vmul.f32 %v5152, 1.442695
        %v5204 = vpow.pop %v5203
        %v5205 = vmul.f32 %v5153, 1.442695
        %v5206 = vpow.pop %v5205
        %v5207 = vmul.f32 %v5154, 1.442695
        %v5208 = vpow.pop %v5207
        %v5209 = vmul.f32 %v5155, 1.442695
        %v5210 = vpow.pop %v5209
        %v5211 = vmul.f32 %v5156, 1.442695
        %v5212 = vpow.pop %v5211
        %v5213 = vmul.f32 %v5157, 1.442695
        %v5214 = vpow.pop %v5213
        %v5215 = vmul.f32 %v5158, 1.442695
        %v5216 = vpow.pop %v5215
        %v5217 = vmul.f32 %v5159, 1.442695
        %v5218 = vpow.pop %v5217
        %v5219 = vmul.f32 %v5160, 1.442695
        %v5220 = vpow.pop %v5219
        %v5221 = vmul.f32 %v5161, 1.442695
        %v5222 = vpow.pop %v5221
        %v5223 = vmul.f32 %v5162, 1.442695
        %v5224 = vpow.pop %v5223
        %v5225 = vmul.f32 %v5163, 1.442695
        %v5226 = vpow.pop %v5225
        %v5227 = vmul.f32 %v5164, 1.442695
        %v5228 = vpow.pop %v5227
        %v5229 = vadd.f32 %v5166, 1.0
        %v5230 = vlog2.pop %v5229
        %v5231 = vmul.f32 %v5230, 0.6931472
        %v5232 = vmul.f32 -0.5, %v5166
        %v5233 = vadd.f32 %v5232, 1.0
        %v5234 = vmul.f32 %v5233, %v5166
        %v5235 = vand.u32 2147483647, %v5166
        %vm5236 = vcmp.lt.f32.partialorder %v5235, 0.0004427343
        %v5237 = vsel %vm5236, %v5234, %v5231
        %v5238 = vadd.f32 %v5168, 1.0
        %v5239 = vlog2.pop %v5238
        %v5240 = vmul.f32 %v5239, 0.6931472
        %v5241 = vmul.f32 -0.5, %v5168
        %v5242 = vadd.f32 %v5241, 1.0
        %v5243 = vmul.f32 %v5242, %v5168
        %v5244 = vand.u32 2147483647, %v5168
        %vm5245 = vcmp.lt.f32.partialorder %v5244, 0.0004427343
        %v5246 = vsel %vm5245, %v5243, %v5240
        %v5247 = vadd.f32 %v5170, 1.0
        %v5248 = vlog2.pop %v5247
        %v5249 = vmul.f32 %v5248, 0.6931472
        %v5250 = vmul.f32 -0.5, %v5170
        %v5251 = vadd.f32 %v5250, 1.0
        %v5252 = vmul.f32 %v5251, %v5170
        %v5253 = vand.u32 2147483647, %v5170
        %vm5254 = vcmp.lt.f32.partialorder %v5253, 0.0004427343
        %v5255 = vsel %vm5254, %v5252, %v5249
        %v5256 = vadd.f32 %v5172, 1.0
        %v5257 = vlog2.pop %v5256
        %v5258 = vmul.f32 %v5257, 0.6931472
        %v5259 = vmul.f32 -0.5, %v5172
        %v5260 = vadd.f32 %v5259, 1.0
        %v5261 = vmul.f32 %v5260, %v5172
        %v5262 = vand.u32 2147483647, %v5172
        %vm5263 = vcmp.lt.f32.partialorder %v5262, 0.0004427343
        %v5264 = vsel %vm5263, %v5261, %v5258
        %v5265 = vadd.f32 %v5174, 1.0
        %v5266 = vlog2.pop %v5265
        %v5267 = vmul.f32 %v5266, 0.6931472
        %v5268 = vmul.f32 -0.5, %v5174
        %v5269 = vadd.f32 %v5268, 1.0
        %v5270 = vmul.f32 %v5269, %v5174
        %v5271 = vand.u32 2147483647, %v5174
        %vm5272 = vcmp.lt.f32.partialorder %v5271, 0.0004427343
        %v5273 = vsel %vm5272, %v5270, %v5267
        %v5274 = vadd.f32 %v5176, 1.0
        %v5275 = vlog2.pop %v5274
        %v5276 = vmul.f32 %v5275, 0.6931472
        %v5277 = vmul.f32 -0.5, %v5176
        %v5278 = vadd.f32 %v5277, 1.0
        %v5279 = vmul.f32 %v5278, %v5176
        %v5280 = vand.u32 2147483647, %v5176
        %vm5281 = vcmp.lt.f32.partialorder %v5280, 0.0004427343
        %v5282 = vsel %vm5281, %v5279, %v5276
        %v5283 = vadd.f32 %v5178, 1.0
        %v5284 = vlog2.pop %v5283
        %v5285 = vmul.f32 %v5284, 0.6931472
        %v5286 = vmul.f32 -0.5, %v5178
        %v5287 = vadd.f32 %v5286, 1.0
        %v5288 = vmul.f32 %v5287, %v5178
        %v5289 = vand.u32 2147483647, %v5178
        %vm5290 = vcmp.lt.f32.partialorder %v5289, 0.0004427343
        %v5291 = vsel %vm5290, %v5288, %v5285
        %v5292 = vadd.f32 %v5180, 1.0
        %v5293 = vlog2.pop %v5292
        %v5294 = vmul.f32 %v5293, 0.6931472
        %v5295 = vmul.f32 -0.5, %v5180
        %v5296 = vadd.f32 %v5295, 1.0
        %v5297 = vmul.f32 %v5296, %v5180
        %v5298 = vand.u32 2147483647, %v5180
        %vm5299 = vcmp.lt.f32.partialorder %v5298, 0.0004427343
        %v5300 = vsel %vm5299, %v5297, %v5294
        %v5301 = vadd.f32 %v5182, 1.0
        %v5302 = vlog2.pop %v5301
        %v5303 = vmul.f32 %v5302, 0.6931472
        %v5304 = vmul.f32 -0.5, %v5182
        %v5305 = vadd.f32 %v5304, 1.0
        %v5306 = vmul.f32 %v5305, %v5182
        %v5307 = vand.u32 2147483647, %v5182
        %vm5308 = vcmp.lt.f32.partialorder %v5307, 0.0004427343
        %v5309 = vsel %vm5308, %v5306, %v5303
        %v5310 = vadd.f32 %v5184, 1.0
        %v5311 = vlog2.pop %v5310
        %v5312 = vmul.f32 %v5311, 0.6931472
        %v5313 = vmul.f32 -0.5, %v5184
        %v5314 = vadd.f32 %v5313, 1.0
        %v5315 = vmul.f32 %v5314, %v5184
        %v5316 = vand.u32 2147483647, %v5184
        %vm5317 = vcmp.lt.f32.partialorder %v5316, 0.0004427343
        %v5318 = vsel %vm5317, %v5315, %v5312
        %v5319 = vadd.f32 %v5186, 1.0
        %v5320 = vlog2.pop %v5319
        %v5321 = vmul.f32 %v5320, 0.6931472
        %v5322 = vmul.f32 -0.5, %v5186
        %v5323 = vadd.f32 %v5322, 1.0
        %v5324 = vmul.f32 %v5323, %v5186
        %v5325 = vand.u32 2147483647, %v5186
        %vm5326 = vcmp.lt.f32.partialorder %v5325, 0.0004427343
        %v5327 = vsel %vm5326, %v5324, %v5321
        %v5328 = vadd.f32 %v5188, 1.0
        %v5329 = vlog2.pop %v5328
        %v5330 = vmul.f32 %v5329, 0.6931472
        %v5331 = vmul.f32 -0.5, %v5188
        %v5332 = vadd.f32 %v5331, 1.0
        %v5333 = vmul.f32 %v5332, %v5188
        %v5334 = vand.u32 2147483647, %v5188
        %vm5335 = vcmp.lt.f32.partialorder %v5334, 0.0004427343
        %v5336 = vsel %vm5335, %v5333, %v5330
        %v5337 = vadd.f32 %v5190, 1.0
        %v5338 = vlog2.pop %v5337
        %v5339 = vmul.f32 %v5338, 0.6931472
        %v5340 = vmul.f32 -0.5, %v5190
        %v5341 = vadd.f32 %v5340, 1.0
        %v5342 = vmul.f32 %v5341, %v5190
        %v5343 = vand.u32 2147483647, %v5190
        %vm5344 = vcmp.lt.f32.partialorder %v5343, 0.0004427343
        %v5345 = vsel %vm5344, %v5342, %v5339
        %v5346 = vadd.f32 %v5192, 1.0
        %v5347 = vlog2.pop %v5346
        %v5348 = vmul.f32 %v5347, 0.6931472
        %v5349 = vmul.f32 -0.5, %v5192
        %v5350 = vadd.f32 %v5349, 1.0
        %v5351 = vmul.f32 %v5350, %v5192
        %v5352 = vand.u32 2147483647, %v5192
        %vm5353 = vcmp.lt.f32.partialorder %v5352, 0.0004427343
        %v5354 = vsel %vm5353, %v5351, %v5348
        %v5355 = vadd.f32 %v5194, 1.0
        %v5356 = vlog2.pop %v5355
        %v5357 = vmul.f32 %v5356, 0.6931472
        %v5358 = vmul.f32 -0.5, %v5194
        %v5359 = vadd.f32 %v5358, 1.0
        %v5360 = vmul.f32 %v5359, %v5194
        %v5361 = vand.u32 2147483647, %v5194
        %vm5362 = vcmp.lt.f32.partialorder %v5361, 0.0004427343
        %v5363 = vsel %vm5362, %v5360, %v5357
        %v5364 = vadd.f32 %v5196, 1.0
        %v5365 = vlog2.pop %v5364
        %v5366 = vmul.f32 %v5365, 0.6931472
        %v5367 = vmul.f32 -0.5, %v5196
        %v5368 = vadd.f32 %v5367, 1.0
        %v5369 = vmul.f32 %v5368, %v5196
        %v5370 = vand.u32 2147483647, %v5196
        %vm5371 = vcmp.lt.f32.partialorder %v5370, 0.0004427343
        %v5372 = vsel %vm5371, %v5369, %v5366
        %v5373 = vadd.f32 %v5198, 1.0
        %v5374 = vlog2.pop %v5373
        %v5375 = vmul.f32 %v5374, 0.6931472
        %v5376 = vmul.f32 -0.5, %v5198
        %v5377 = vadd.f32 %v5376, 1.0
        %v5378 = vmul.f32 %v5377, %v5198
        %v5379 = vand.u32 2147483647, %v5198
        %vm5380 = vcmp.lt.f32.partialorder %v5379, 0.0004427343
        %v5381 = vsel %vm5380, %v5378, %v5375
        %v5382 = vadd.f32 %v5200, 1.0
        %v5383 = vlog2.pop %v5382
        %v5384 = vmul.f32 %v5383, 0.6931472
        %v5385 = vmul.f32 -0.5, %v5200
        %v5386 = vadd.f32 %v5385, 1.0
        %v5387 = vmul.f32 %v5386, %v5200
        %v5388 = vand.u32 2147483647, %v5200
        %vm5389 = vcmp.lt.f32.partialorder %v5388, 0.0004427343
        %v5390 = vsel %vm5389, %v5387, %v5384
        %v5391 = vadd.f32 %v5202, 1.0
        %v5392 = vlog2.pop %v5391
        %v5393 = vmul.f32 %v5392, 0.6931472
        %v5394 = vmul.f32 -0.5, %v5202
        %v5395 = vadd.f32 %v5394, 1.0
        %v5396 = vmul.f32 %v5395, %v5202
        %v5397 = vand.u32 2147483647, %v5202
        %vm5398 = vcmp.lt.f32.partialorder %v5397, 0.0004427343
        %v5399 = vsel %vm5398, %v5396, %v5393
        %v5400 = vadd.f32 %v5204, 1.0
        %v5401 = vlog2.pop %v5400
        %v5402 = vmul.f32 %v5401, 0.6931472
        %v5403 = vmul.f32 -0.5, %v5204
        %v5404 = vadd.f32 %v5403, 1.0
        %v5405 = vmul.f32 %v5404, %v5204
        %v5406 = vand.u32 2147483647, %v5204
        %vm5407 = vcmp.lt.f32.partialorder %v5406, 0.0004427343
        %v5408 = vsel %vm5407, %v5405, %v5402
        %v5409 = vadd.f32 %v5206, 1.0
        %v5410 = vlog2.pop %v5409
        %v5411 = vmul.f32 %v5410, 0.6931472
        %v5412 = vmul.f32 -0.5, %v5206
        %v5413 = vadd.f32 %v5412, 1.0
        %v5414 = vmul.f32 %v5413, %v5206
        %v5415 = vand.u32 2147483647, %v5206
        %vm5416 = vcmp.lt.f32.partialorder %v5415, 0.0004427343
        %v5417 = vsel %vm5416, %v5414, %v5411
        %v5418 = vadd.f32 %v5208, 1.0
        %v5419 = vlog2.pop %v5418
        %v5420 = vmul.f32 %v5419, 0.6931472
        %v5421 = vmul.f32 -0.5, %v5208
        %v5422 = vadd.f32 %v5421, 1.0
        %v5423 = vmul.f32 %v5422, %v5208
        %v5424 = vand.u32 2147483647, %v5208
        %vm5425 = vcmp.lt.f32.partialorder %v5424, 0.0004427343
        %v5426 = vsel %vm5425, %v5423, %v5420
        %v5427 = vadd.f32 %v5210, 1.0
        %v5428 = vlog2.pop %v5427
        %v5429 = vmul.f32 %v5428, 0.6931472
        %v5430 = vmul.f32 -0.5, %v5210
        %v5431 = vadd.f32 %v5430, 1.0
        %v5432 = vmul.f32 %v5431, %v5210
        %v5433 = vand.u32 2147483647, %v5210
        %vm5434 = vcmp.lt.f32.partialorder %v5433, 0.0004427343
        %v5435 = vsel %vm5434, %v5432, %v5429
        %v5436 = vadd.f32 %v5212, 1.0
        %v5437 = vlog2.pop %v5436
        %v5438 = vmul.f32 %v5437, 0.6931472
        %v5439 = vmul.f32 -0.5, %v5212
        %v5440 = vadd.f32 %v5439, 1.0
        %v5441 = vmul.f32 %v5440, %v5212
        %v5442 = vand.u32 2147483647, %v5212
        %vm5443 = vcmp.lt.f32.partialorder %v5442, 0.0004427343
        %v5444 = vsel %vm5443, %v5441, %v5438
        %v5445 = vadd.f32 %v5214, 1.0
        %v5446 = vlog2.pop %v5445
        %v5447 = vmul.f32 %v5446, 0.6931472
        %v5448 = vmul.f32 -0.5, %v5214
        %v5449 = vadd.f32 %v5448, 1.0
        %v5450 = vmul.f32 %v5449, %v5214
        %v5451 = vand.u32 2147483647, %v5214
        %vm5452 = vcmp.lt.f32.partialorder %v5451, 0.0004427343
        %v5453 = vsel %vm5452, %v5450, %v5447
        %v5454 = vadd.f32 %v5216, 1.0
        %v5455 = vlog2.pop %v5454
        %v5456 = vmul.f32 %v5455, 0.6931472
        %v5457 = vmul.f32 -0.5, %v5216
        %v5458 = vadd.f32 %v5457, 1.0
        %v5459 = vmul.f32 %v5458, %v5216
        %v5460 = vand.u32 2147483647, %v5216
        %vm5461 = vcmp.lt.f32.partialorder %v5460, 0.0004427343
        %v5462 = vsel %vm5461, %v5459, %v5456
        %v5463 = vadd.f32 %v5218, 1.0
        %v5464 = vlog2.pop %v5463
        %v5465 = vmul.f32 %v5464, 0.6931472
        %v5466 = vmul.f32 -0.5, %v5218
        %v5467 = vadd.f32 %v5466, 1.0
        %v5468 = vmul.f32 %v5467, %v5218
        %v5469 = vand.u32 2147483647, %v5218
        %vm5470 = vcmp.lt.f32.partialorder %v5469, 0.0004427343
        %v5471 = vsel %vm5470, %v5468, %v5465
        %v5472 = vadd.f32 %v5220, 1.0
        %v5473 = vlog2.pop %v5472
        %v5474 = vmul.f32 %v5473, 0.6931472
        %v5475 = vmul.f32 -0.5, %v5220
        %v5476 = vadd.f32 %v5475, 1.0
        %v5477 = vmul.f32 %v5476, %v5220
        %v5478 = vand.u32 2147483647, %v5220
        %vm5479 = vcmp.lt.f32.partialorder %v5478, 0.0004427343
        %v5480 = vsel %vm5479, %v5477, %v5474
        %v5481 = vadd.f32 %v5222, 1.0
        %v5482 = vlog2.pop %v5481
        %v5483 = vmul.f32 %v5482, 0.6931472
        %v5484 = vmul.f32 -0.5, %v5222
        %v5485 = vadd.f32 %v5484, 1.0
        %v5486 = vmul.f32 %v5485, %v5222
        %v5487 = vand.u32 2147483647, %v5222
        %vm5488 = vcmp.lt.f32.partialorder %v5487, 0.0004427343
        %v5489 = vsel %vm5488, %v5486, %v5483
        %v5490 = vadd.f32 %v5224, 1.0
        %v5491 = vlog2.pop %v5490
        %v5492 = vmul.f32 %v5491, 0.6931472
        %v5493 = vmul.f32 -0.5, %v5224
        %v5494 = vadd.f32 %v5493, 1.0
        %v5495 = vmul.f32 %v5494, %v5224
        %v5496 = vand.u32 2147483647, %v5224
        %vm5497 = vcmp.lt.f32.partialorder %v5496, 0.0004427343
        %v5498 = vsel %vm5497, %v5495, %v5492
        %v5499 = vadd.f32 %v5226, 1.0
        %v5500 = vlog2.pop %v5499
        %v5501 = vmul.f32 %v5500, 0.6931472
        %v5502 = vmul.f32 -0.5, %v5226
        %v5503 = vadd.f32 %v5502, 1.0
        %v5504 = vmul.f32 %v5503, %v5226
        %v5505 = vand.u32 2147483647, %v5226
        %vm5506 = vcmp.lt.f32.partialorder %v5505, 0.0004427343
        %v5507 = vsel %vm5506, %v5504, %v5501
        %v5508 = vadd.f32 %v5228, 1.0
        %v5509 = vlog2.pop %v5508
        %v5510 = vmul.f32 %v5509, 0.6931472
        %v5511 = vmul.f32 -0.5, %v5228
        %v5512 = vadd.f32 %v5511, 1.0
        %v5513 = vmul.f32 %v5512, %v5228
        %v5514 = vand.u32 2147483647, %v5228
        %vm5515 = vcmp.lt.f32.partialorder %v5514, 0.0004427343
        %v5516 = vsel %vm5515, %v5513, %v5510
        %v5517 = vmul.f32 %v5237, 0.01
        %v5518 = vmul.f32 %v5246, 0.01
        %v5519 = vmul.f32 %v5255, 0.01
        %v5520 = vmul.f32 %v5264, 0.01
        %v5521 = vmul.f32 %v5273, 0.01
        %v5522 = vmul.f32 %v5282, 0.01
        %v5523 = vmul.f32 %v5291, 0.01
        %v5524 = vmul.f32 %v5300, 0.01
        %v5525 = vmul.f32 %v5309, 0.01
        %v5526 = vmul.f32 %v5318, 0.01
        %v5527 = vmul.f32 %v5327, 0.01
        %v5528 = vmul.f32 %v5336, 0.01
        %v5529 = vmul.f32 %v5345, 0.01
        %v5530 = vmul.f32 %v5354, 0.01
        %v5531 = vmul.f32 %v5363, 0.01
        %v5532 = vmul.f32 %v5372, 0.01
        %v5533 = vmul.f32 %v5381, 0.01
        %v5534 = vmul.f32 %v5390, 0.01
        %v5535 = vmul.f32 %v5399, 0.01
        %v5536 = vmul.f32 %v5408, 0.01
        %v5537 = vmul.f32 %v5417, 0.01
        %v5538 = vmul.f32 %v5426, 0.01
        %v5539 = vmul.f32 %v5435, 0.01
        %v5540 = vmul.f32 %v5444, 0.01
        %v5541 = vmul.f32 %v5453, 0.01
        %v5542 = vmul.f32 %v5462, 0.01
        %v5543 = vmul.f32 %v5471, 0.01
        %v5544 = vmul.f32 %v5480, 0.01
        %v5545 = vmul.f32 %v5489, 0.01
        %v5546 = vmul.f32 %v5498, 0.01
        %v5547 = vmul.f32 %v5507, 0.01
        %v5548 = vmul.f32 %v5516, 0.01
        %vm5549 = vcmp.gt.f32.partialorder %v5101, 20.0
        %vm5550 = vcmp.gt.f32.partialorder %v5102, 20.0
        %vm5551 = vcmp.gt.f32.partialorder %v5103, 20.0
        %vm5552 = vcmp.gt.f32.partialorder %v5104, 20.0
        %vm5553 = vcmp.gt.f32.partialorder %v5105, 20.0
        %vm5554 = vcmp.gt.f32.partialorder %v5106, 20.0
        %vm5555 = vcmp.gt.f32.partialorder %v5107, 20.0
        %vm5556 = vcmp.gt.f32.partialorder %v5108, 20.0
        %vm5557 = vcmp.gt.f32.partialorder %v5109, 20.0
        %vm5558 = vcmp.gt.f32.partialorder %v5110, 20.0
        %vm5559 = vcmp.gt.f32.partialorder %v5111, 20.0
        %vm5560 = vcmp.gt.f32.partialorder %v5112, 20.0
        %vm5561 = vcmp.gt.f32.partialorder %v5113, 20.0
        %vm5562 = vcmp.gt.f32.partialorder %v5114, 20.0
        %vm5563 = vcmp.gt.f32.partialorder %v5115, 20.0
        %vm5564 = vcmp.gt.f32.partialorder %v5116, 20.0
        %vm5565 = vcmp.gt.f32.partialorder %v5117, 20.0
        %vm5566 = vcmp.gt.f32.partialorder %v5118, 20.0
        %vm5567 = vcmp.gt.f32.partialorder %v5119, 20.0
        %vm5568 = vcmp.gt.f32.partialorder %v5120, 20.0
        %vm5569 = vcmp.gt.f32.partialorder %v5121, 20.0
        %vm5570 = vcmp.gt.f32.partialorder %v5122, 20.0
        %vm5571 = vcmp.gt.f32.partialorder %v5123, 20.0
        %vm5572 = vcmp.gt.f32.partialorder %v5124, 20.0
        %vm5573 = vcmp.gt.f32.partialorder %v5125, 20.0
        %vm5574 = vcmp.gt.f32.partialorder %v5126, 20.0
        %vm5575 = vcmp.gt.f32.partialorder %v5127, 20.0
        %vm5576 = vcmp.gt.f32.partialorder %v5128, 20.0
        %vm5577 = vcmp.gt.f32.partialorder %v5129, 20.0
        %vm5578 = vcmp.gt.f32.partialorder %v5130, 20.0
        %vm5579 = vcmp.gt.f32.partialorder %v5131, 20.0
        %vm5580 = vcmp.gt.f32.partialorder %v5132, 20.0
        %v5581 = vsel %vm5549, %v4812, %v5517
        %v5582 = vsel %vm5550, %v4814, %v5518
        %v5583 = vsel %vm5551, %v4901, %v5519
        %v5584 = vsel %vm5552, %v4903, %v5520
        %v5585 = vsel %vm5553, %v4990, %v5521
        %v5586 = vsel %vm5554, %v4992, %v5522
        %v5587 = vsel %vm5555, %v5079, %v5523
        %v5588 = vsel %vm5556, %v5081, %v5524
        %v5589 = vsel %vm5557, %v4818, %v5525
        %v5590 = vsel %vm5558, %v4820, %v5526
        %v5591 = vsel %vm5559, %v4907, %v5527
        %v5592 = vsel %vm5560, %v4909, %v5528
        %v5593 = vsel %vm5561, %v4996, %v5529
        %v5594 = vsel %vm5562, %v4998, %v5530
        %v5595 = vsel %vm5563, %v5085, %v5531
        %v5596 = vsel %vm5564, %v5087, %v5532
        %v5597 = vsel %vm5565, %v4824, %v5533
        %v5598 = vsel %vm5566, %v4826, %v5534
        %v5599 = vsel %vm5567, %v4913, %v5535
        %v5600 = vsel %vm5568, %v4915, %v5536
        %v5601 = vsel %vm5569, %v5002, %v5537
        %v5602 = vsel %vm5570, %v5004, %v5538
        %v5603 = vsel %vm5571, %v5091, %v5539
        %v5604 = vsel %vm5572, %v5093, %v5540
        %v5605 = vsel %vm5573, %v4830, %v5541
        %v5606 = vsel %vm5574, %v4832, %v5542
        %v5607 = vsel %vm5575, %v4919, %v5543
        %v5608 = vsel %vm5576, %v4921, %v5544
        %v5609 = vsel %vm5577, %v5008, %v5545
        %v5610 = vsel %vm5578, %v5010, %v5546
        %v5611 = vsel %vm5579, %v5097, %v5547
        %v5612 = vsel %vm5580, %v5099, %v5548
        %s5613 = scalar_lea.vmem %s2, 32
        %v5614 = vld [vmem:[%s5613] sm:$0xff]
        %v5615 = vld [vmem:[%s5613 + $0x8] sm:$0xff]
        %v5616 = vld [vmem:[%s5613 + $0x10] sm:$0xff]
        %v5617 = vld [vmem:[%s5613 + $0x18] sm:$0xff]
        %s5618 = scalar_lea.vmem %s4, 64
        %v5619 = vld [vmem:[%s5618] sm:$0xff]
        %v5620 = vld [vmem:[%s5618 + $0x8] sm:$0xff]
        %v5621 = vld [vmem:[%s5618 + $0x10] sm:$0xff]
        %v5622 = vld [vmem:[%s5618 + $0x18] sm:$0xff]
        %5624 = vset.pattern.permute.xlu0 0
        %5625 = vperm.xlu0 %5624, %v5619
        %v5626 = vpop.permute.xlu0 %5625
        %5629 = vset.pattern.permute.xlu0 0
        %5630 = vperm.xlu0 %5629, %v5620
        %v5631 = vpop.permute.xlu0 %5630
        %5634 = vset.pattern.permute.xlu0 0
        %5635 = vperm.xlu0 %5634, %v5621
        %v5636 = vpop.permute.xlu0 %5635
        %5639 = vset.pattern.permute.xlu0 0
        %5640 = vperm.xlu0 %5639, %v5622
        %v5641 = vpop.permute.xlu0 %5640
        %v5644 = vsel %vm4732, %v5614, 0
        %v5647 = vsel %vm4732, %v5615, 0
        %v5650 = vsel %vm4732, %v5616, 0
        %v5653 = vsel %vm4732, %v5617, 0
        %5655 = vmatprep.subr.mxu0 %v5582
        %5656 = vmatpush1.msra.mxu0 %v5581
        %5657 = vmatprep.subr.mxu0 %v5590
        %5658 = vmatpush1.msra.mxu0 %v5589
        %5659 = vmatprep.subr.mxu0 %v5598
        %5660 = vmatpush1.msra.mxu0 %v5597
        %5661 = vmatprep.subr.mxu0 %v5606
        %5662 = vmatpush1.msra.mxu0 %v5605
        %5663 = vmatprep.subr.mxu0 0.0
        %5664 = vmatpush1.msra.mxu0 0.0
        %5665 = vmatprep.subr.mxu0 0.0
        %5666 = vmatpush1.msra.mxu0 0.0
        %5667 = vmatprep.subr.mxu0 0.0
        %5668 = vmatpush1.msra.mxu0 0.0
        %5669 = vmatprep.subr.mxu0 0.0
        %5670 = vmatpush1.msra.mxu0 0.0
        %5671 = vmatprep.subr.mxu0 0.0
        %5672 = vmatpush1.msra.mxu0 0.0
        %5673 = vmatprep.subr.mxu0 0.0
        %5674 = vmatpush1.msra.mxu0 0.0
        %5675 = vmatprep.subr.mxu0 0.0
        %5676 = vmatpush1.msra.mxu0 0.0
        %5677 = vmatprep.subr.mxu0 0.0
        %5678 = vmatpush1.msra.mxu0 0.0
        %5679 = vmatprep.subr.mxu0 0.0
        %5680 = vmatpush1.msra.mxu0 0.0
        %5681 = vmatprep.subr.mxu0 0.0
        %5682 = vmatpush1.msra.mxu0 0.0
        %5683 = vmatprep.subr.mxu0 0.0
        %5684 = vmatpush1.msra.mxu0 0.0
        %5685 = vmatprep.subr.mxu0 0.0
        %5686 = vmatpush1.msra.mxu0 0.0
        %5687 = vmatprep.subr.mxu0 0.0
        %5688 = vmatpush1.msra.mxu0 0.0
        %5689 = vmatprep.subr.mxu0 0.0
        %5690 = vmatpush1.msra.mxu0 0.0
        %5691 = vmatprep.subr.mxu0 0.0
        %5692 = vmatpush1.msra.mxu0 0.0
        %5693 = vmatprep.subr.mxu0 0.0
        %5694 = vmatpush1.msra.mxu0 0.0
        %5695 = vmatprep.subr.mxu0 0.0
        %5696 = vmatpush1.msra.mxu0 0.0
        %5697 = vmatprep.subr.mxu0 0.0
        %5698 = vmatpush1.msra.mxu0 0.0
        %5699 = vmatprep.subr.mxu0 0.0
        %5700 = vmatpush1.msra.mxu0 0.0
        %5701 = vmatprep.subr.mxu0 0.0
        %5702 = vmatpush1.msra.mxu0 0.0
        %5703 = vmatprep.subr.mxu0 0.0
        %5704 = vmatpush1.msra.mxu0 0.0
        %5705 = vmatprep.subr.mxu0 0.0
        %5706 = vmatpush1.msra.mxu0 0.0
        %5707 = vmatprep.subr.mxu0 0.0
        %5708 = vmatpush1.msra.mxu0 0.0
        %5709 = vmatprep.subr.mxu0 0.0
        %5710 = vmatpush1.msra.mxu0 0.0
        %5711 = vmatprep.subr.mxu0 0.0
        %5712 = vmatpush1.msra.mxu0 0.0
        %5713 = vmatprep.subr.mxu0 0.0
        %5714 = vmatpush1.msra.mxu0 0.0
        %5715 = vmatprep.subr.mxu0 0.0
        %5716 = vmatpush1.msra.mxu0 0.0
        %5717 = vmatprep.subr.mxu0 0.0
        %5718 = vmatpush1.msra.mxu0 0.0
        %5719 = vmatprep.mubr.f32.mxu0 0.0
        %5720 = vmatmul.mubr.f32.gmra.mrb[0].mxu0 %v5644
        %v5721 = vpop.f32.mrb[0].mxu0
        %v5722 = vadd.f32 %v5626, %v5721
        %v5723 = vpop.f32.mrb[0].mxu0
        %v5724 = vadd.f32 %v5626, %v5723
        %5725 = vmatprep.mubr.f32.mxu0 0.0
        %5726 = vmatmul.mubr.f32.gmra.mrb[0].mxu0 %v5647
        %v5727 = vpop.f32.mrb[0].mxu0
        %v5728 = vadd.f32 %v5631, %v5727
        %v5729 = vpop.f32.mrb[0].mxu0
        %v5730 = vadd.f32 %v5631, %v5729
        %5731 = vmatprep.mubr.f32.mxu0 0.0
        %5732 = vmatmul.mubr.f32.gmra.mrb[0].mxu0 %v5650
        %v5733 = vpop.f32.mrb[0].mxu0
        %v5734 = vadd.f32 %v5636, %v5733
        %v5735 = vpop.f32.mrb[0].mxu0
        %v5736 = vadd.f32 %v5636, %v5735
        %5737 = vmatprep.mubr.f32.mxu0 0.0
        %5738 = vmatmul.mubr.f32.gmra.mrb[0].mxu0 %v5653
        %v5739 = vpop.f32.mrb[0].mxu0
        %v5740 = vadd.f32 %v5641, %v5739
        %v5741 = vpop.f32.mrb[0].mxu0
        %v5742 = vadd.f32 %v5641, %v5741
        %5743 = vdwg.mxu0
        %5744 = vmatprep.subr.mxu0 %v5584
        %5745 = vmatpush1.msra.mxu0 %v5583
        %5746 = vmatprep.subr.mxu0 %v5592
        %5747 = vmatpush1.msra.mxu0 %v5591
        %5748 = vmatprep.subr.mxu0 %v5600
        %5749 = vmatpush1.msra.mxu0 %v5599
        %5750 = vmatprep.subr.mxu0 %v5608
        %5751 = vmatpush1.msra.mxu0 %v5607
        %5752 = vmatprep.subr.mxu0 0.0
        %5753 = vmatpush1.msra.mxu0 0.0
        %5754 = vmatprep.subr.mxu0 0.0
        %5755 = vmatpush1.msra.mxu0 0.0
        %5756 = vmatprep.subr.mxu0 0.0
        %5757 = vmatpush1.msra.mxu0 0.0
        %5758 = vmatprep.subr.mxu0 0.0
        %5759 = vmatpush1.msra.mxu0 0.0
        %5760 = vmatprep.subr.mxu0 0.0
        %5761 = vmatpush1.msra.mxu0 0.0
        %5762 = vmatprep.subr.mxu0 0.0
        %5763 = vmatpush1.msra.mxu0 0.0
        %5764 = vmatprep.subr.mxu0 0.0
        %5765 = vmatpush1.msra.mxu0 0.0
        %5766 = vmatprep.subr.mxu0 0.0
        %5767 = vmatpush1.msra.mxu0 0.0
        %5768 = vmatprep.subr.mxu0 0.0
        %5769 = vmatpush1.msra.mxu0 0.0
        %5770 = vmatprep.subr.mxu0 0.0
        %5771 = vmatpush1.msra.mxu0 0.0
        %5772 = vmatprep.subr.mxu0 0.0
        %5773 = vmatpush1.msra.mxu0 0.0
        %5774 = vmatprep.subr.mxu0 0.0
        %5775 = vmatpush1.msra.mxu0 0.0
        %5776 = vmatprep.subr.mxu0 0.0
        %5777 = vmatpush1.msra.mxu0 0.0
        %5778 = vmatprep.subr.mxu0 0.0
        %5779 = vmatpush1.msra.mxu0 0.0
        %5780 = vmatprep.subr.mxu0 0.0
        %5781 = vmatpush1.msra.mxu0 0.0
        %5782 = vmatprep.subr.mxu0 0.0
        %5783 = vmatpush1.msra.mxu0 0.0
        %5784 = vmatprep.subr.mxu0 0.0
        %5785 = vmatpush1.msra.mxu0 0.0
        %5786 = vmatprep.subr.mxu0 0.0
        %5787 = vmatpush1.msra.mxu0 0.0
        %5788 = vmatprep.subr.mxu0 0.0
        %5789 = vmatpush1.msra.mxu0 0.0
        %5790 = vmatprep.subr.mxu0 0.0
        %5791 = vmatpush1.msra.mxu0 0.0
        %5792 = vmatprep.subr.mxu0 0.0
        %5793 = vmatpush1.msra.mxu0 0.0
        %5794 = vmatprep.subr.mxu0 0.0
        %5795 = vmatpush1.msra.mxu0 0.0
        %5796 = vmatprep.subr.mxu0 0.0
        %5797 = vmatpush1.msra.mxu0 0.0
        %5798 = vmatprep.subr.mxu0 0.0
        %5799 = vmatpush1.msra.mxu0 0.0
        %5800 = vmatprep.subr.mxu0 0.0
        %5801 = vmatpush1.msra.mxu0 0.0
        %5802 = vmatprep.subr.mxu0 0.0
        %5803 = vmatpush1.msra.mxu0 0.0
        %5804 = vmatprep.subr.mxu0 0.0
        %5805 = vmatpush1.msra.mxu0 0.0
        %5806 = vmatprep.subr.mxu0 0.0
        %5807 = vmatpush1.msra.mxu0 0.0
        %5808 = vmatprep.mubr.f32.mxu0 0.0
        %5809 = vmatmul.mubr.f32.gmra.mrb[0].mxu0 %v5644
        %v5810 = vpop.f32.mrb[0].mxu0
        %v5811 = vadd.f32 %v5626, %v5810
        %v5812 = vpop.f32.mrb[0].mxu0
        %v5813 = vadd.f32 %v5626, %v5812
        %5814 = vmatprep.mubr.f32.mxu0 0.0
        %5815 = vmatmul.mubr.f32.gmra.mrb[0].mxu0 %v5647
        %v5816 = vpop.f32.mrb[0].mxu0
        %v5817 = vadd.f32 %v5631, %v5816
        %v5818 = vpop.f32.mrb[0].mxu0
        %v5819 = vadd.f32 %v5631, %v5818
        %5820 = vmatprep.mubr.f32.mxu0 0.0
        %5821 = vmatmul.mubr.f32.gmra.mrb[0].mxu0 %v5650
        %v5822 = vpop.f32.mrb[0].mxu0
        %v5823 = vadd.f32 %v5636, %v5822
        %v5824 = vpop.f32.mrb[0].mxu0
        %v5825 = vadd.f32 %v5636, %v5824
        %5826 = vmatprep.mubr.f32.mxu0 0.0
        %5827 = vmatmul.mubr.f32.gmra.mrb[0].mxu0 %v5653
        %v5828 = vpop.f32.mrb[0].mxu0
        %v5829 = vadd.f32 %v5641, %v5828
        %v5830 = vpop.f32.mrb[0].mxu0
        %v5831 = vadd.f32 %v5641, %v5830
        %5832 = vdwg.mxu0
        %5833 = vmatprep.subr.mxu0 %v5586
        %5834 = vmatpush1.msra.mxu0 %v5585
        %5835 = vmatprep.subr.mxu0 %v5594
        %5836 = vmatpush1.msra.mxu0 %v5593
        %5837 = vmatprep.subr.mxu0 %v5602
        %5838 = vmatpush1.msra.mxu0 %v5601
        %5839 = vmatprep.subr.mxu0 %v5610
        %5840 = vmatpush1.msra.mxu0 %v5609
        %5841 = vmatprep.subr.mxu0 0.0
        %5842 = vmatpush1.msra.mxu0 0.0
        %5843 = vmatprep.subr.mxu0 0.0
        %5844 = vmatpush1.msra.mxu0 0.0
        %5845 = vmatprep.subr.mxu0 0.0
        %5846 = vmatpush1.msra.mxu0 0.0
        %5847 = vmatprep.subr.mxu0 0.0
        %5848 = vmatpush1.msra.mxu0 0.0
        %5849 = vmatprep.subr.mxu0 0.0
        %5850 = vmatpush1.msra.mxu0 0.0
        %5851 = vmatprep.subr.mxu0 0.0
        %5852 = vmatpush1.msra.mxu0 0.0
        %5853 = vmatprep.subr.mxu0 0.0
        %5854 = vmatpush1.msra.mxu0 0.0
        %5855 = vmatprep.subr.mxu0 0.0
        %5856 = vmatpush1.msra.mxu0 0.0
        %5857 = vmatprep.subr.mxu0 0.0
        %5858 = vmatpush1.msra.mxu0 0.0
        %5859 = vmatprep.subr.mxu0 0.0
        %5860 = vmatpush1.msra.mxu0 0.0
        %5861 = vmatprep.subr.mxu0 0.0
        %5862 = vmatpush1.msra.mxu0 0.0
        %5863 = vmatprep.subr.mxu0 0.0
        %5864 = vmatpush1.msra.mxu0 0.0
        %5865 = vmatprep.subr.mxu0 0.0
        %5866 = vmatpush1.msra.mxu0 0.0
        %5867 = vmatprep.subr.mxu0 0.0
        %5868 = vmatpush1.msra.mxu0 0.0
        %5869 = vmatprep.subr.mxu0 0.0
        %5870 = vmatpush1.msra.mxu0 0.0
        %5871 = vmatprep.subr.mxu0 0.0
        %5872 = vmatpush1.msra.mxu0 0.0
        %5873 = vmatprep.subr.mxu0 0.0
        %5874 = vmatpush1.msra.mxu0 0.0
        %5875 = vmatprep.subr.mxu0 0.0
        %5876 = vmatpush1.msra.mxu0 0.0
        %5877 = vmatprep.subr.mxu0 0.0
        %5878 = vmatpush1.msra.mxu0 0.0
        %5879 = vmatprep.subr.mxu0 0.0
        %5880 = vmatpush1.msra.mxu0 0.0
        %5881 = vmatprep.subr.mxu0 0.0
        %5882 = vmatpush1.msra.mxu0 0.0
        %5883 = vmatprep.subr.mxu0 0.0
        %5884 = vmatpush1.msra.mxu0 0.0
        %5885 = vmatprep.subr.mxu0 0.0
        %5886 = vmatpush1.msra.mxu0 0.0
        %5887 = vmatprep.subr.mxu0 0.0
        %5888 = vmatpush1.msra.mxu0 0.0
        %5889 = vmatprep.subr.mxu0 0.0
        %5890 = vmatpush1.msra.mxu0 0.0
        %5891 = vmatprep.subr.mxu0 0.0
        %5892 = vmatpush1.msra.mxu0 0.0
        %5893 = vmatprep.subr.mxu0 0.0
        %5894 = vmatpush1.msra.mxu0 0.0
        %5895 = vmatprep.subr.mxu0 0.0
        %5896 = vmatpush1.msra.mxu0 0.0
        %5897 = vmatprep.mubr.f32.mxu0 0.0
        %5898 = vmatmul.mubr.f32.gmra.mrb[0].mxu0 %v5644
        %v5899 = vpop.f32.mrb[0].mxu0
        %v5900 = vadd.f32 %v5626, %v5899
        %v5901 = vpop.f32.mrb[0].mxu0
        %v5902 = vadd.f32 %v5626, %v5901
        %5903 = vmatprep.mubr.f32.mxu0 0.0
        %5904 = vmatmul.mubr.f32.gmra.mrb[0].mxu0 %v5647
        %v5905 = vpop.f32.mrb[0].mxu0
        %v5906 = vadd.f32 %v5631, %v5905
        %v5907 = vpop.f32.mrb[0].mxu0
        %v5908 = vadd.f32 %v5631, %v5907
        %5909 = vmatprep.mubr.f32.mxu0 0.0
        %5910 = vmatmul.mubr.f32.gmra.mrb[0].mxu0 %v5650
        %v5911 = vpop.f32.mrb[0].mxu0
        %v5912 = vadd.f32 %v5636, %v5911
        %v5913 = vpop.f32.mrb[0].mxu0
        %v5914 = vadd.f32 %v5636, %v5913
        %5915 = vmatprep.mubr.f32.mxu0 0.0
        %5916 = vmatmul.mubr.f32.gmra.mrb[0].mxu0 %v5653
        %v5917 = vpop.f32.mrb[0].mxu0
        %v5918 = vadd.f32 %v5641, %v5917
        %v5919 = vpop.f32.mrb[0].mxu0
        %v5920 = vadd.f32 %v5641, %v5919
        %5921 = vdwg.mxu0
        %5922 = vmatprep.subr.mxu0 %v5588
        %5923 = vmatpush1.msra.mxu0 %v5587
        %5924 = vmatprep.subr.mxu0 %v5596
        %5925 = vmatpush1.msra.mxu0 %v5595
        %5926 = vmatprep.subr.mxu0 %v5604
        %5927 = vmatpush1.msra.mxu0 %v5603
        %5928 = vmatprep.subr.mxu0 %v5612
        %5929 = vmatpush1.msra.mxu0 %v5611
        %5930 = vmatprep.subr.mxu0 0.0
        %5931 = vmatpush1.msra.mxu0 0.0
        %5932 = vmatprep.subr.mxu0 0.0
        %5933 = vmatpush1.msra.mxu0 0.0
        %5934 = vmatprep.subr.mxu0 0.0
        %5935 = vmatpush1.msra.mxu0 0.0
        %5936 = vmatprep.subr.mxu0 0.0
        %5937 = vmatpush1.msra.mxu0 0.0
        %5938 = vmatprep.subr.mxu0 0.0
        %5939 = vmatpush1.msra.mxu0 0.0
        %5940 = vmatprep.subr.mxu0 0.0
        %5941 = vmatpush1.msra.mxu0 0.0
        %5942 = vmatprep.subr.mxu0 0.0
        %5943 = vmatpush1.msra.mxu0 0.0
        %5944 = vmatprep.subr.mxu0 0.0
        %5945 = vmatpush1.msra.mxu0 0.0
        %5946 = vmatprep.subr.mxu0 0.0
        %5947 = vmatpush1.msra.mxu0 0.0
        %5948 = vmatprep.subr.mxu0 0.0
        %5949 = vmatpush1.msra.mxu0 0.0
        %5950 = vmatprep.subr.mxu0 0.0
        %5951 = vmatpush1.msra.mxu0 0.0
        %5952 = vmatprep.subr.mxu0 0.0
        %5953 = vmatpush1.msra.mxu0 0.0
        %5954 = vmatprep.subr.mxu0 0.0
        %5955 = vmatpush1.msra.mxu0 0.0
        %5956 = vmatprep.subr.mxu0 0.0
        %5957 = vmatpush1.msra.mxu0 0.0
        %5958 = vmatprep.subr.mxu0 0.0
        %5959 = vmatpush1.msra.mxu0 0.0
        %5960 = vmatprep.subr.mxu0 0.0
        %5961 = vmatpush1.msra.mxu0 0.0
        %5962 = vmatprep.subr.mxu0 0.0
        %5963 = vmatpush1.msra.mxu0 0.0
        %5964 = vmatprep.subr.mxu0 0.0
        %5965 = vmatpush1.msra.mxu0 0.0
        %5966 = vmatprep.subr.mxu0 0.0
        %5967 = vmatpush1.msra.mxu0 0.0
        %5968 = vmatprep.subr.mxu0 0.0
        %5969 = vmatpush1.msra.mxu0 0.0
        %5970 = vmatprep.subr.mxu0 0.0
        %5971 = vmatpush1.msra.mxu0 0.0
        %5972 = vmatprep.subr.mxu0 0.0
        %5973 = vmatpush1.msra.mxu0 0.0
        %5974 = vmatprep.subr.mxu0 0.0
        %5975 = vmatpush1.msra.mxu0 0.0
        %5976 = vmatprep.subr.mxu0 0.0
        %5977 = vmatpush1.msra.mxu0 0.0
        %5978 = vmatprep.subr.mxu0 0.0
        %5979 = vmatpush1.msra.mxu0 0.0
        %5980 = vmatprep.subr.mxu0 0.0
        %5981 = vmatpush1.msra.mxu0 0.0
        %5982 = vmatprep.subr.mxu0 0.0
        %5983 = vmatpush1.msra.mxu0 0.0
        %5984 = vmatprep.subr.mxu0 0.0
        %5985 = vmatpush1.msra.mxu0 0.0
        %5986 = vmatprep.mubr.f32.mxu0 0.0
        %5987 = vmatmul.mubr.f32.gmra.mrb[0].mxu0 %v5644
        %v5988 = vpop.f32.mrb[0].mxu0
        %v5989 = vadd.f32 %v5626, %v5988
        %v5990 = vpop.f32.mrb[0].mxu0
        %v5991 = vadd.f32 %v5626, %v5990
        %5992 = vmatprep.mubr.f32.mxu0 0.0
        %5993 = vmatmul.mubr.f32.gmra.mrb[0].mxu0 %v5647
        %v5994 = vpop.f32.mrb[0].mxu0
        %v5995 = vadd.f32 %v5631, %v5994
        %v5996 = vpop.f32.mrb[0].mxu0
        %v5997 = vadd.f32 %v5631, %v5996
        %5998 = vmatprep.mubr.f32.mxu0 0.0
        %5999 = vmatmul.mubr.f32.gmra.mrb[0].mxu0 %v5650
        %v6000 = vpop.f32.mrb[0].mxu0
        %v6001 = vadd.f32 %v5636, %v6000
        %v6002 = vpop.f32.mrb[0].mxu0
        %v6003 = vadd.f32 %v5636, %v6002
        %6004 = vmatprep.mubr.f32.mxu0 0.0
        %6005 = vmatmul.mubr.f32.gmra.mrb[0].mxu0 %v5653
        %v6006 = vpop.f32.mrb[0].mxu0
        %v6007 = vadd.f32 %v5641, %v6006
        %v6008 = vpop.f32.mrb[0].mxu0
        %v6009 = vadd.f32 %v5641, %v6008
        %6010 = vdwg.mxu0
        %v6011 = vadd.f32 %v5722, %v3774
        %v6012 = vadd.f32 %v5724, %v3776
        %v6013 = vadd.f32 %v5811, %v3887
        %v6014 = vadd.f32 %v5813, %v3889
        %v6015 = vadd.f32 %v5900, %v4000
        %v6016 = vadd.f32 %v5902, %v4002
        %v6017 = vadd.f32 %v5989, %v4113
        %v6018 = vadd.f32 %v5991, %v4115
        %v6019 = vadd.f32 %v5728, %v3780
        %v6020 = vadd.f32 %v5730, %v3782
        %v6021 = vadd.f32 %v5817, %v3893
        %v6022 = vadd.f32 %v5819, %v3895
        %v6023 = vadd.f32 %v5906, %v4006
        %v6024 = vadd.f32 %v5908, %v4008
        %v6025 = vadd.f32 %v5995, %v4119
        %v6026 = vadd.f32 %v5997, %v4121
        %v6027 = vadd.f32 %v5734, %v3786
        %v6028 = vadd.f32 %v5736, %v3788
        %v6029 = vadd.f32 %v5823, %v3899
        %v6030 = vadd.f32 %v5825, %v3901
        %v6031 = vadd.f32 %v5912, %v4012
        %v6032 = vadd.f32 %v5914, %v4014
        %v6033 = vadd.f32 %v6001, %v4125
        %v6034 = vadd.f32 %v6003, %v4127
        %v6035 = vadd.f32 %v5740, %v3792
        %v6036 = vadd.f32 %v5742, %v3794
        %v6037 = vadd.f32 %v5829, %v3905
        %v6038 = vadd.f32 %v5831, %v3907
        %v6039 = vadd.f32 %v5918, %v4018
        %v6040 = vadd.f32 %v5920, %v4020
        %v6041 = vadd.f32 %v6007, %v4131
        %v6042 = vadd.f32 %v6009, %v4133
        %v6043 = vmul.f32 %v6011, 100.0
        %v6044 = vmul.f32 %v6012, 100.0
        %v6045 = vmul.f32 %v6013, 100.0
        %v6046 = vmul.f32 %v6014, 100.0
        %v6047 = vmul.f32 %v6015, 100.0
        %v6048 = vmul.f32 %v6016, 100.0
        %v6049 = vmul.f32 %v6017, 100.0
        %v6050 = vmul.f32 %v6018, 100.0
        %v6051 = vmul.f32 %v6019, 100.0
        %v6052 = vmul.f32 %v6020, 100.0
        %v6053 = vmul.f32 %v6021, 100.0
        %v6054 = vmul.f32 %v6022, 100.0
        %v6055 = vmul.f32 %v6023, 100.0
        %v6056 = vmul.f32 %v6024, 100.0
        %v6057 = vmul.f32 %v6025, 100.0
        %v6058 = vmul.f32 %v6026, 100.0
        %v6059 = vmul.f32 %v6027, 100.0
        %v6060 = vmul.f32 %v6028, 100.0
        %v6061 = vmul.f32 %v6029, 100.0
        %v6062 = vmul.f32 %v6030, 100.0
        %v6063 = vmul.f32 %v6031, 100.0
        %v6064 = vmul.f32 %v6032, 100.0
        %v6065 = vmul.f32 %v6033, 100.0
        %v6066 = vmul.f32 %v6034, 100.0
        %v6067 = vmul.f32 %v6035, 100.0
        %v6068 = vmul.f32 %v6036, 100.0
        %v6069 = vmul.f32 %v6037, 100.0
        %v6070 = vmul.f32 %v6038, 100.0
        %v6071 = vmul.f32 %v6039, 100.0
        %v6072 = vmul.f32 %v6040, 100.0
        %v6073 = vmul.f32 %v6041, 100.0
        %v6074 = vmul.f32 %v6042, 100.0
        %v6075 = vmin.f32 %v6043, 20.0
        %v6076 = vmin.f32 %v6044, 20.0
        %v6077 = vmin.f32 %v6045, 20.0
        %v6078 = vmin.f32 %v6046, 20.0
        %v6079 = vmin.f32 %v6047, 20.0
        %v6080 = vmin.f32 %v6048, 20.0
        %v6081 = vmin.f32 %v6049, 20.0
        %v6082 = vmin.f32 %v6050, 20.0
        %v6083 = vmin.f32 %v6051, 20.0
        %v6084 = vmin.f32 %v6052, 20.0
        %v6085 = vmin.f32 %v6053, 20.0
        %v6086 = vmin.f32 %v6054, 20.0
        %v6087 = vmin.f32 %v6055, 20.0
        %v6088 = vmin.f32 %v6056, 20.0
        %v6089 = vmin.f32 %v6057, 20.0
        %v6090 = vmin.f32 %v6058, 20.0
        %v6091 = vmin.f32 %v6059, 20.0
        %v6092 = vmin.f32 %v6060, 20.0
        %v6093 = vmin.f32 %v6061, 20.0
        %v6094 = vmin.f32 %v6062, 20.0
        %v6095 = vmin.f32 %v6063, 20.0
        %v6096 = vmin.f32 %v6064, 20.0
        %v6097 = vmin.f32 %v6065, 20.0
        %v6098 = vmin.f32 %v6066, 20.0
        %v6099 = vmin.f32 %v6067, 20.0
        %v6100 = vmin.f32 %v6068, 20.0
        %v6101 = vmin.f32 %v6069, 20.0
        %v6102 = vmin.f32 %v6070, 20.0
        %v6103 = vmin.f32 %v6071, 20.0
        %v6104 = vmin.f32 %v6072, 20.0
        %v6105 = vmin.f32 %v6073, 20.0
        %v6106 = vmin.f32 %v6074, 20.0
        %v6107 = vmul.f32 %v6075, 1.442695
        %v6108 = vpow.pop %v6107
        %v6109 = vmul.f32 %v6076, 1.442695
        %v6110 = vpow.pop %v6109
        %v6111 = vmul.f32 %v6077, 1.442695
        %v6112 = vpow.pop %v6111
        %v6113 = vmul.f32 %v6078, 1.442695
        %v6114 = vpow.pop %v6113
        %v6115 = vmul.f32 %v6079, 1.442695
        %v6116 = vpow.pop %v6115
        %v6117 = vmul.f32 %v6080, 1.442695
        %v6118 = vpow.pop %v6117
        %v6119 = vmul.f32 %v6081, 1.442695
        %v6120 = vpow.pop %v6119
        %v6121 = vmul.f32 %v6082, 1.442695
        %v6122 = vpow.pop %v6121
        %v6123 = vmul.f32 %v6083, 1.442695
        %v6124 = vpow.pop %v6123
        %v6125 = vmul.f32 %v6084, 1.442695
        %v6126 = vpow.pop %v6125
        %v6127 = vmul.f32 %v6085, 1.442695
        %v6128 = vpow.pop %v6127
        %v6129 = vmul.f32 %v6086, 1.442695
        %v6130 = vpow.pop %v6129
        %v6131 = vmul.f32 %v6087, 1.442695
        %v6132 = vpow.pop %v6131
        %v6133 = vmul.f32 %v6088, 1.442695
        %v6134 = vpow.pop %v6133
        %v6135 = vmul.f32 %v6089, 1.442695
        %v6136 = vpow.pop %v6135
        %v6137 = vmul.f32 %v6090, 1.442695
        %v6138 = vpow.pop %v6137
        %v6139 = vmul.f32 %v6091, 1.442695
        %v6140 = vpow.pop %v6139
        %v6141 = vmul.f32 %v6092, 1.442695
        %v6142 = vpow.pop %v6141
        %v6143 = vmul.f32 %v6093, 1.442695
        %v6144 = vpow.pop %v6143
        %v6145 = vmul.f32 %v6094, 1.442695
        %v6146 = vpow.pop %v6145
        %v6147 = vmul.f32 %v6095, 1.442695
        %v6148 = vpow.pop %v6147
        %v6149 = vmul.f32 %v6096, 1.442695
        %v6150 = vpow.pop %v6149
        %v6151 = vmul.f32 %v6097, 1.442695
        %v6152 = vpow.pop %v6151
        %v6153 = vmul.f32 %v6098, 1.442695
        %v6154 = vpow.pop %v6153
        %v6155 = vmul.f32 %v6099, 1.442695
        %v6156 = vpow.pop %v6155
        %v6157 = vmul.f32 %v6100, 1.442695
        %v6158 = vpow.pop %v6157
        %v6159 = vmul.f32 %v6101, 1.442695
        %v6160 = vpow.pop %v6159
        %v6161 = vmul.f32 %v6102, 1.442695
        %v6162 = vpow.pop %v6161
        %v6163 = vmul.f32 %v6103, 1.442695
        %v6164 = vpow.pop %v6163
        %v6165 = vmul.f32 %v6104, 1.442695
        %v6166 = vpow.pop %v6165
        %v6167 = vmul.f32 %v6105, 1.442695
        %v6168 = vpow.pop %v6167
        %v6169 = vmul.f32 %v6106, 1.442695
        %v6170 = vpow.pop %v6169
        %v6171 = vadd.f32 %v6108, 1.0
        %v6172 = vlog2.pop %v6171
        %v6173 = vmul.f32 %v6172, 0.6931472
        %v6174 = vmul.f32 -0.5, %v6108
        %v6175 = vadd.f32 %v6174, 1.0
        %v6176 = vmul.f32 %v6175, %v6108
        %v6177 = vand.u32 2147483647, %v6108
        %vm6178 = vcmp.lt.f32.partialorder %v6177, 0.0004427343
        %v6179 = vsel %vm6178, %v6176, %v6173
        %v6180 = vadd.f32 %v6110, 1.0
        %v6181 = vlog2.pop %v6180
        %v6182 = vmul.f32 %v6181, 0.6931472
        %v6183 = vmul.f32 -0.5, %v6110
        %v6184 = vadd.f32 %v6183, 1.0
        %v6185 = vmul.f32 %v6184, %v6110
        %v6186 = vand.u32 2147483647, %v6110
        %vm6187 = vcmp.lt.f32.partialorder %v6186, 0.0004427343
        %v6188 = vsel %vm6187, %v6185, %v6182
        %v6189 = vadd.f32 %v6112, 1.0
        %v6190 = vlog2.pop %v6189
        %v6191 = vmul.f32 %v6190, 0.6931472
        %v6192 = vmul.f32 -0.5, %v6112
        %v6193 = vadd.f32 %v6192, 1.0
        %v6194 = vmul.f32 %v6193, %v6112
        %v6195 = vand.u32 2147483647, %v6112
        %vm6196 = vcmp.lt.f32.partialorder %v6195, 0.0004427343
        %v6197 = vsel %vm6196, %v6194, %v6191
        %v6198 = vadd.f32 %v6114, 1.0
        %v6199 = vlog2.pop %v6198
        %v6200 = vmul.f32 %v6199, 0.6931472
        %v6201 = vmul.f32 -0.5, %v6114
        %v6202 = vadd.f32 %v6201, 1.0
        %v6203 = vmul.f32 %v6202, %v6114
        %v6204 = vand.u32 2147483647, %v6114
        %vm6205 = vcmp.lt.f32.partialorder %v6204, 0.0004427343
        %v6206 = vsel %vm6205, %v6203, %v6200
        %v6207 = vadd.f32 %v6116, 1.0
        %v6208 = vlog2.pop %v6207
        %v6209 = vmul.f32 %v6208, 0.6931472
        %v6210 = vmul.f32 -0.5, %v6116
        %v6211 = vadd.f32 %v6210, 1.0
        %v6212 = vmul.f32 %v6211, %v6116
        %v6213 = vand.u32 2147483647, %v6116
        %vm6214 = vcmp.lt.f32.partialorder %v6213, 0.0004427343
        %v6215 = vsel %vm6214, %v6212, %v6209
        %v6216 = vadd.f32 %v6118, 1.0
        %v6217 = vlog2.pop %v6216
        %v6218 = vmul.f32 %v6217, 0.6931472
        %v6219 = vmul.f32 -0.5, %v6118
        %v6220 = vadd.f32 %v6219, 1.0
        %v6221 = vmul.f32 %v6220, %v6118
        %v6222 = vand.u32 2147483647, %v6118
        %vm6223 = vcmp.lt.f32.partialorder %v6222, 0.0004427343
        %v6224 = vsel %vm6223, %v6221, %v6218
        %v6225 = vadd.f32 %v6120, 1.0
        %v6226 = vlog2.pop %v6225
        %v6227 = vmul.f32 %v6226, 0.6931472
        %v6228 = vmul.f32 -0.5, %v6120
        %v6229 = vadd.f32 %v6228, 1.0
        %v6230 = vmul.f32 %v6229, %v6120
        %v6231 = vand.u32 2147483647, %v6120
        %vm6232 = vcmp.lt.f32.partialorder %v6231, 0.0004427343
        %v6233 = vsel %vm6232, %v6230, %v6227
        %v6234 = vadd.f32 %v6122, 1.0
        %v6235 = vlog2.pop %v6234
        %v6236 = vmul.f32 %v6235, 0.6931472
        %v6237 = vmul.f32 -0.5, %v6122
        %v6238 = vadd.f32 %v6237, 1.0
        %v6239 = vmul.f32 %v6238, %v6122
        %v6240 = vand.u32 2147483647, %v6122
        %vm6241 = vcmp.lt.f32.partialorder %v6240, 0.0004427343
        %v6242 = vsel %vm6241, %v6239, %v6236
        %v6243 = vadd.f32 %v6124, 1.0
        %v6244 = vlog2.pop %v6243
        %v6245 = vmul.f32 %v6244, 0.6931472
        %v6246 = vmul.f32 -0.5, %v6124
        %v6247 = vadd.f32 %v6246, 1.0
        %v6248 = vmul.f32 %v6247, %v6124
        %v6249 = vand.u32 2147483647, %v6124
        %vm6250 = vcmp.lt.f32.partialorder %v6249, 0.0004427343
        %v6251 = vsel %vm6250, %v6248, %v6245
        %v6252 = vadd.f32 %v6126, 1.0
        %v6253 = vlog2.pop %v6252
        %v6254 = vmul.f32 %v6253, 0.6931472
        %v6255 = vmul.f32 -0.5, %v6126
        %v6256 = vadd.f32 %v6255, 1.0
        %v6257 = vmul.f32 %v6256, %v6126
        %v6258 = vand.u32 2147483647, %v6126
        %vm6259 = vcmp.lt.f32.partialorder %v6258, 0.0004427343
        %v6260 = vsel %vm6259, %v6257, %v6254
        %v6261 = vadd.f32 %v6128, 1.0
        %v6262 = vlog2.pop %v6261
        %v6263 = vmul.f32 %v6262, 0.6931472
        %v6264 = vmul.f32 -0.5, %v6128
        %v6265 = vadd.f32 %v6264, 1.0
        %v6266 = vmul.f32 %v6265, %v6128
        %v6267 = vand.u32 2147483647, %v6128
        %vm6268 = vcmp.lt.f32.partialorder %v6267, 0.0004427343
        %v6269 = vsel %vm6268, %v6266, %v6263
        %v6270 = vadd.f32 %v6130, 1.0
        %v6271 = vlog2.pop %v6270
        %v6272 = vmul.f32 %v6271, 0.6931472
        %v6273 = vmul.f32 -0.5, %v6130
        %v6274 = vadd.f32 %v6273, 1.0
        %v6275 = vmul.f32 %v6274, %v6130
        %v6276 = vand.u32 2147483647, %v6130
        %vm6277 = vcmp.lt.f32.partialorder %v6276, 0.0004427343
        %v6278 = vsel %vm6277, %v6275, %v6272
        %v6279 = vadd.f32 %v6132, 1.0
        %v6280 = vlog2.pop %v6279
        %v6281 = vmul.f32 %v6280, 0.6931472
        %v6282 = vmul.f32 -0.5, %v6132
        %v6283 = vadd.f32 %v6282, 1.0
        %v6284 = vmul.f32 %v6283, %v6132
        %v6285 = vand.u32 2147483647, %v6132
        %vm6286 = vcmp.lt.f32.partialorder %v6285, 0.0004427343
        %v6287 = vsel %vm6286, %v6284, %v6281
        %v6288 = vadd.f32 %v6134, 1.0
        %v6289 = vlog2.pop %v6288
        %v6290 = vmul.f32 %v6289, 0.6931472
        %v6291 = vmul.f32 -0.5, %v6134
        %v6292 = vadd.f32 %v6291, 1.0
        %v6293 = vmul.f32 %v6292, %v6134
        %v6294 = vand.u32 2147483647, %v6134
        %vm6295 = vcmp.lt.f32.partialorder %v6294, 0.0004427343
        %v6296 = vsel %vm6295, %v6293, %v6290
        %v6297 = vadd.f32 %v6136, 1.0
        %v6298 = vlog2.pop %v6297
        %v6299 = vmul.f32 %v6298, 0.6931472
        %v6300 = vmul.f32 -0.5, %v6136
        %v6301 = vadd.f32 %v6300, 1.0
        %v6302 = vmul.f32 %v6301, %v6136
        %v6303 = vand.u32 2147483647, %v6136
        %vm6304 = vcmp.lt.f32.partialorder %v6303, 0.0004427343
        %v6305 = vsel %vm6304, %v6302, %v6299
        %v6306 = vadd.f32 %v6138, 1.0
        %v6307 = vlog2.pop %v6306
        %v6308 = vmul.f32 %v6307, 0.6931472
        %v6309 = vmul.f32 -0.5, %v6138
        %v6310 = vadd.f32 %v6309, 1.0
        %v6311 = vmul.f32 %v6310, %v6138
        %v6312 = vand.u32 2147483647, %v6138
        %vm6313 = vcmp.lt.f32.partialorder %v6312, 0.0004427343
        %v6314 = vsel %vm6313, %v6311, %v6308
        %v6315 = vadd.f32 %v6140, 1.0
        %v6316 = vlog2.pop %v6315
        %v6317 = vmul.f32 %v6316, 0.6931472
        %v6318 = vmul.f32 -0.5, %v6140
        %v6319 = vadd.f32 %v6318, 1.0
        %v6320 = vmul.f32 %v6319, %v6140
        %v6321 = vand.u32 2147483647, %v6140
        %vm6322 = vcmp.lt.f32.partialorder %v6321, 0.0004427343
        %v6323 = vsel %vm6322, %v6320, %v6317
        %v6324 = vadd.f32 %v6142, 1.0
        %v6325 = vlog2.pop %v6324
        %v6326 = vmul.f32 %v6325, 0.6931472
        %v6327 = vmul.f32 -0.5, %v6142
        %v6328 = vadd.f32 %v6327, 1.0
        %v6329 = vmul.f32 %v6328, %v6142
        %v6330 = vand.u32 2147483647, %v6142
        %vm6331 = vcmp.lt.f32.partialorder %v6330, 0.0004427343
        %v6332 = vsel %vm6331, %v6329, %v6326
        %v6333 = vadd.f32 %v6144, 1.0
        %v6334 = vlog2.pop %v6333
        %v6335 = vmul.f32 %v6334, 0.6931472
        %v6336 = vmul.f32 -0.5, %v6144
        %v6337 = vadd.f32 %v6336, 1.0
        %v6338 = vmul.f32 %v6337, %v6144
        %v6339 = vand.u32 2147483647, %v6144
        %vm6340 = vcmp.lt.f32.partialorder %v6339, 0.0004427343
        %v6341 = vsel %vm6340, %v6338, %v6335
        %v6342 = vadd.f32 %v6146, 1.0
        %v6343 = vlog2.pop %v6342
        %v6344 = vmul.f32 %v6343, 0.6931472
        %v6345 = vmul.f32 -0.5, %v6146
        %v6346 = vadd.f32 %v6345, 1.0
        %v6347 = vmul.f32 %v6346, %v6146
        %v6348 = vand.u32 2147483647, %v6146
        %vm6349 = vcmp.lt.f32.partialorder %v6348, 0.0004427343
        %v6350 = vsel %vm6349, %v6347, %v6344
        %v6351 = vadd.f32 %v6148, 1.0
        %v6352 = vlog2.pop %v6351
        %v6353 = vmul.f32 %v6352, 0.6931472
        %v6354 = vmul.f32 -0.5, %v6148
        %v6355 = vadd.f32 %v6354, 1.0
        %v6356 = vmul.f32 %v6355, %v6148
        %v6357 = vand.u32 2147483647, %v6148
        %vm6358 = vcmp.lt.f32.partialorder %v6357, 0.0004427343
        %v6359 = vsel %vm6358, %v6356, %v6353
        %v6360 = vadd.f32 %v6150, 1.0
        %v6361 = vlog2.pop %v6360
        %v6362 = vmul.f32 %v6361, 0.6931472
        %v6363 = vmul.f32 -0.5, %v6150
        %v6364 = vadd.f32 %v6363, 1.0
        %v6365 = vmul.f32 %v6364, %v6150
        %v6366 = vand.u32 2147483647, %v6150
        %vm6367 = vcmp.lt.f32.partialorder %v6366, 0.0004427343
        %v6368 = vsel %vm6367, %v6365, %v6362
        %v6369 = vadd.f32 %v6152, 1.0
        %v6370 = vlog2.pop %v6369
        %v6371 = vmul.f32 %v6370, 0.6931472
        %v6372 = vmul.f32 -0.5, %v6152
        %v6373 = vadd.f32 %v6372, 1.0
        %v6374 = vmul.f32 %v6373, %v6152
        %v6375 = vand.u32 2147483647, %v6152
        %vm6376 = vcmp.lt.f32.partialorder %v6375, 0.0004427343
        %v6377 = vsel %vm6376, %v6374, %v6371
        %v6378 = vadd.f32 %v6154, 1.0
        %v6379 = vlog2.pop %v6378
        %v6380 = vmul.f32 %v6379, 0.6931472
        %v6381 = vmul.f32 -0.5, %v6154
        %v6382 = vadd.f32 %v6381, 1.0
        %v6383 = vmul.f32 %v6382, %v6154
        %v6384 = vand.u32 2147483647, %v6154
        %vm6385 = vcmp.lt.f32.partialorder %v6384, 0.0004427343
        %v6386 = vsel %vm6385, %v6383, %v6380
        %v6387 = vadd.f32 %v6156, 1.0
        %v6388 = vlog2.pop %v6387
        %v6389 = vmul.f32 %v6388, 0.6931472
        %v6390 = vmul.f32 -0.5, %v6156
        %v6391 = vadd.f32 %v6390, 1.0
        %v6392 = vmul.f32 %v6391, %v6156
        %v6393 = vand.u32 2147483647, %v6156
        %vm6394 = vcmp.lt.f32.partialorder %v6393, 0.0004427343
        %v6395 = vsel %vm6394, %v6392, %v6389
        %v6396 = vadd.f32 %v6158, 1.0
        %v6397 = vlog2.pop %v6396
        %v6398 = vmul.f32 %v6397, 0.6931472
        %v6399 = vmul.f32 -0.5, %v6158
        %v6400 = vadd.f32 %v6399, 1.0
        %v6401 = vmul.f32 %v6400, %v6158
        %v6402 = vand.u32 2147483647, %v6158
        %vm6403 = vcmp.lt.f32.partialorder %v6402, 0.0004427343
        %v6404 = vsel %vm6403, %v6401, %v6398
        %v6405 = vadd.f32 %v6160, 1.0
        %v6406 = vlog2.pop %v6405
        %v6407 = vmul.f32 %v6406, 0.6931472
        %v6408 = vmul.f32 -0.5, %v6160
        %v6409 = vadd.f32 %v6408, 1.0
        %v6410 = vmul.f32 %v6409, %v6160
        %v6411 = vand.u32 2147483647, %v6160
        %vm6412 = vcmp.lt.f32.partialorder %v6411, 0.0004427343
        %v6413 = vsel %vm6412, %v6410, %v6407
        %v6414 = vadd.f32 %v6162, 1.0
        %v6415 = vlog2.pop %v6414
        %v6416 = vmul.f32 %v6415, 0.6931472
        %v6417 = vmul.f32 -0.5, %v6162
        %v6418 = vadd.f32 %v6417, 1.0
        %v6419 = vmul.f32 %v6418, %v6162
        %v6420 = vand.u32 2147483647, %v6162
        %vm6421 = vcmp.lt.f32.partialorder %v6420, 0.0004427343
        %v6422 = vsel %vm6421, %v6419, %v6416
        %v6423 = vadd.f32 %v6164, 1.0
        %v6424 = vlog2.pop %v6423
        %v6425 = vmul.f32 %v6424, 0.6931472
        %v6426 = vmul.f32 -0.5, %v6164
        %v6427 = vadd.f32 %v6426, 1.0
        %v6428 = vmul.f32 %v6427, %v6164
        %v6429 = vand.u32 2147483647, %v6164
        %vm6430 = vcmp.lt.f32.partialorder %v6429, 0.0004427343
        %v6431 = vsel %vm6430, %v6428, %v6425
        %v6432 = vadd.f32 %v6166, 1.0
        %v6433 = vlog2.pop %v6432
        %v6434 = vmul.f32 %v6433, 0.6931472
        %v6435 = vmul.f32 -0.5, %v6166
        %v6436 = vadd.f32 %v6435, 1.0
        %v6437 = vmul.f32 %v6436, %v6166
        %v6438 = vand.u32 2147483647, %v6166
        %vm6439 = vcmp.lt.f32.partialorder %v6438, 0.0004427343
        %v6440 = vsel %vm6439, %v6437, %v6434
        %v6441 = vadd.f32 %v6168, 1.0
        %v6442 = vlog2.pop %v6441
        %v6443 = vmul.f32 %v6442, 0.6931472
        %v6444 = vmul.f32 -0.5, %v6168
        %v6445 = vadd.f32 %v6444, 1.0
        %v6446 = vmul.f32 %v6445, %v6168
        %v6447 = vand.u32 2147483647, %v6168
        %vm6448 = vcmp.lt.f32.partialorder %v6447, 0.0004427343
        %v6449 = vsel %vm6448, %v6446, %v6443
        %v6450 = vadd.f32 %v6170, 1.0
        %v6451 = vlog2.pop %v6450
        %v6452 = vmul.f32 %v6451, 0.6931472
        %v6453 = vmul.f32 -0.5, %v6170
        %v6454 = vadd.f32 %v6453, 1.0
        %v6455 = vmul.f32 %v6454, %v6170
        %v6456 = vand.u32 2147483647, %v6170
        %vm6457 = vcmp.lt.f32.partialorder %v6456, 0.0004427343
        %v6458 = vsel %vm6457, %v6455, %v6452
        %v6459 = vmul.f32 %v6179, 0.01
        %v6460 = vmul.f32 %v6188, 0.01
        %v6461 = vmul.f32 %v6197, 0.01
        %v6462 = vmul.f32 %v6206, 0.01
        %v6463 = vmul.f32 %v6215, 0.01
        %v6464 = vmul.f32 %v6224, 0.01
        %v6465 = vmul.f32 %v6233, 0.01
        %v6466 = vmul.f32 %v6242, 0.01
        %v6467 = vmul.f32 %v6251, 0.01
        %v6468 = vmul.f32 %v6260, 0.01
        %v6469 = vmul.f32 %v6269, 0.01
        %v6470 = vmul.f32 %v6278, 0.01
        %v6471 = vmul.f32 %v6287, 0.01
        %v6472 = vmul.f32 %v6296, 0.01
        %v6473 = vmul.f32 %v6305, 0.01
        %v6474 = vmul.f32 %v6314, 0.01
        %v6475 = vmul.f32 %v6323, 0.01
        %v6476 = vmul.f32 %v6332, 0.01
        %v6477 = vmul.f32 %v6341, 0.01
        %v6478 = vmul.f32 %v6350, 0.01
        %v6479 = vmul.f32 %v6359, 0.01
        %v6480 = vmul.f32 %v6368, 0.01
        %v6481 = vmul.f32 %v6377, 0.01
        %v6482 = vmul.f32 %v6386, 0.01
        %v6483 = vmul.f32 %v6395, 0.01
        %v6484 = vmul.f32 %v6404, 0.01
        %v6485 = vmul.f32 %v6413, 0.01
        %v6486 = vmul.f32 %v6422, 0.01
        %v6487 = vmul.f32 %v6431, 0.01
        %v6488 = vmul.f32 %v6440, 0.01
        %v6489 = vmul.f32 %v6449, 0.01
        %v6490 = vmul.f32 %v6458, 0.01
        %vm6491 = vcmp.gt.f32.partialorder %v6043, 20.0
        %vm6492 = vcmp.gt.f32.partialorder %v6044, 20.0
        %vm6493 = vcmp.gt.f32.partialorder %v6045, 20.0
        %vm6494 = vcmp.gt.f32.partialorder %v6046, 20.0
        %vm6495 = vcmp.gt.f32.partialorder %v6047, 20.0
        %vm6496 = vcmp.gt.f32.partialorder %v6048, 20.0
        %vm6497 = vcmp.gt.f32.partialorder %v6049, 20.0
        %vm6498 = vcmp.gt.f32.partialorder %v6050, 20.0
        %vm6499 = vcmp.gt.f32.partialorder %v6051, 20.0
        %vm6500 = vcmp.gt.f32.partialorder %v6052, 20.0
        %vm6501 = vcmp.gt.f32.partialorder %v6053, 20.0
        %vm6502 = vcmp.gt.f32.partialorder %v6054, 20.0
        %vm6503 = vcmp.gt.f32.partialorder %v6055, 20.0
        %vm6504 = vcmp.gt.f32.partialorder %v6056, 20.0
        %vm6505 = vcmp.gt.f32.partialorder %v6057, 20.0
        %vm6506 = vcmp.gt.f32.partialorder %v6058, 20.0
        %vm6507 = vcmp.gt.f32.partialorder %v6059, 20.0
        %vm6508 = vcmp.gt.f32.partialorder %v6060, 20.0
        %vm6509 = vcmp.gt.f32.partialorder %v6061, 20.0
        %vm6510 = vcmp.gt.f32.partialorder %v6062, 20.0
        %vm6511 = vcmp.gt.f32.partialorder %v6063, 20.0
        %vm6512 = vcmp.gt.f32.partialorder %v6064, 20.0
        %vm6513 = vcmp.gt.f32.partialorder %v6065, 20.0
        %vm6514 = vcmp.gt.f32.partialorder %v6066, 20.0
        %vm6515 = vcmp.gt.f32.partialorder %v6067, 20.0
        %vm6516 = vcmp.gt.f32.partialorder %v6068, 20.0
        %vm6517 = vcmp.gt.f32.partialorder %v6069, 20.0
        %vm6518 = vcmp.gt.f32.partialorder %v6070, 20.0
        %vm6519 = vcmp.gt.f32.partialorder %v6071, 20.0
        %vm6520 = vcmp.gt.f32.partialorder %v6072, 20.0
        %vm6521 = vcmp.gt.f32.partialorder %v6073, 20.0
        %vm6522 = vcmp.gt.f32.partialorder %v6074, 20.0
        %v6523 = vsel %vm6491, %v6011, %v6459
        %v6524 = vsel %vm6492, %v6012, %v6460
        %v6525 = vsel %vm6493, %v6013, %v6461
        %v6526 = vsel %vm6494, %v6014, %v6462
        %v6527 = vsel %vm6495, %v6015, %v6463
        %v6528 = vsel %vm6496, %v6016, %v6464
        %v6529 = vsel %vm6497, %v6017, %v6465
        %v6530 = vsel %vm6498, %v6018, %v6466
        %v6531 = vsel %vm6499, %v6019, %v6467
        %v6532 = vsel %vm6500, %v6020, %v6468
        %v6533 = vsel %vm6501, %v6021, %v6469
        %v6534 = vsel %vm6502, %v6022, %v6470
        %v6535 = vsel %vm6503, %v6023, %v6471
        %v6536 = vsel %vm6504, %v6024, %v6472
        %v6537 = vsel %vm6505, %v6025, %v6473
        %v6538 = vsel %vm6506, %v6026, %v6474
        %v6539 = vsel %vm6507, %v6027, %v6475
        %v6540 = vsel %vm6508, %v6028, %v6476
        %v6541 = vsel %vm6509, %v6029, %v6477
        %v6542 = vsel %vm6510, %v6030, %v6478
        %v6543 = vsel %vm6511, %v6031, %v6479
        %v6544 = vsel %vm6512, %v6032, %v6480
        %v6545 = vsel %vm6513, %v6033, %v6481
        %v6546 = vsel %vm6514, %v6034, %v6482
        %v6547 = vsel %vm6515, %v6035, %v6483
        %v6548 = vsel %vm6516, %v6036, %v6484
        %v6549 = vsel %vm6517, %v6037, %v6485
        %v6550 = vsel %vm6518, %v6038, %v6486
        %v6551 = vsel %vm6519, %v6039, %v6487
        %v6552 = vsel %vm6520, %v6040, %v6488
        %v6553 = vsel %vm6521, %v6041, %v6489
        %v6554 = vsel %vm6522, %v6042, %v6490
        %s6555 = scalar_lea.vmem %s2, 64
        %v6556 = vld [vmem:[%s6555] sm:$0xff]
        %v6557 = vld [vmem:[%s6555 + $0x8] sm:$0xff]
        %v6558 = vld [vmem:[%s6555 + $0x10] sm:$0xff]
        %v6559 = vld [vmem:[%s6555 + $0x18] sm:$0xff]
        %s6560 = scalar_lea.vmem %s4, 96
        %v6561 = vld [vmem:[%s6560] sm:$0xff]
        %v6562 = vld [vmem:[%s6560 + $0x8] sm:$0xff]
        %v6563 = vld [vmem:[%s6560 + $0x10] sm:$0xff]
        %v6564 = vld [vmem:[%s6560 + $0x18] sm:$0xff]
        %6566 = vset.pattern.permute.xlu0 0
        %6567 = vperm.xlu0 %6566, %v6561
        %v6568 = vpop.permute.xlu0 %6567
        %6571 = vset.pattern.permute.xlu0 0
        %6572 = vperm.xlu0 %6571, %v6562
        %v6573 = vpop.permute.xlu0 %6572
        %6576 = vset.pattern.permute.xlu0 0
        %6577 = vperm.xlu0 %6576, %v6563
        %v6578 = vpop.permute.xlu0 %6577
        %6581 = vset.pattern.permute.xlu0 0
        %6582 = vperm.xlu0 %6581, %v6564
        %v6583 = vpop.permute.xlu0 %6582
        %v6586 = vsel %vm4732, %v6556, 0
        %v6589 = vsel %vm4732, %v6557, 0
        %v6592 = vsel %vm4732, %v6558, 0
        %v6595 = vsel %vm4732, %v6559, 0
        %6597 = vmatprep.subr.mxu0 %v6524
        %6598 = vmatpush1.msra.mxu0 %v6523
        %6599 = vmatprep.subr.mxu0 %v6532
        %6600 = vmatpush1.msra.mxu0 %v6531
        %6601 = vmatprep.subr.mxu0 %v6540
        %6602 = vmatpush1.msra.mxu0 %v6539
        %6603 = vmatprep.subr.mxu0 %v6548
        %6604 = vmatpush1.msra.mxu0 %v6547
        %6605 = vmatprep.subr.mxu0 0.0
        %6606 = vmatpush1.msra.mxu0 0.0
        %6607 = vmatprep.subr.mxu0 0.0
        %6608 = vmatpush1.msra.mxu0 0.0
        %6609 = vmatprep.subr.mxu0 0.0
        %6610 = vmatpush1.msra.mxu0 0.0
        %6611 = vmatprep.subr.mxu0 0.0
        %6612 = vmatpush1.msra.mxu0 0.0
        %6613 = vmatprep.subr.mxu0 0.0
        %6614 = vmatpush1.msra.mxu0 0.0
        %6615 = vmatprep.subr.mxu0 0.0
        %6616 = vmatpush1.msra.mxu0 0.0
        %6617 = vmatprep.subr.mxu0 0.0
        %6618 = vmatpush1.msra.mxu0 0.0
        %6619 = vmatprep.subr.mxu0 0.0
        %6620 = vmatpush1.msra.mxu0 0.0
        %6621 = vmatprep.subr.mxu0 0.0
        %6622 = vmatpush1.msra.mxu0 0.0
        %6623 = vmatprep.subr.mxu0 0.0
        %6624 = vmatpush1.msra.mxu0 0.0
        %6625 = vmatprep.subr.mxu0 0.0
        %6626 = vmatpush1.msra.mxu0 0.0
        %6627 = vmatprep.subr.mxu0 0.0
        %6628 = vmatpush1.msra.mxu0 0.0
        %6629 = vmatprep.subr.mxu0 0.0
        %6630 = vmatpush1.msra.mxu0 0.0
        %6631 = vmatprep.subr.mxu0 0.0
        %6632 = vmatpush1.msra.mxu0 0.0
        %6633 = vmatprep.subr.mxu0 0.0
        %6634 = vmatpush1.msra.mxu0 0.0
        %6635 = vmatprep.subr.mxu0 0.0
        %6636 = vmatpush1.msra.mxu0 0.0
        %6637 = vmatprep.subr.mxu0 0.0
        %6638 = vmatpush1.msra.mxu0 0.0
        %6639 = vmatprep.subr.mxu0 0.0
        %6640 = vmatpush1.msra.mxu0 0.0
        %6641 = vmatprep.subr.mxu0 0.0
        %6642 = vmatpush1.msra.mxu0 0.0
        %6643 = vmatprep.subr.mxu0 0.0
        %6644 = vmatpush1.msra.mxu0 0.0
        %6645 = vmatprep.subr.mxu0 0.0
        %6646 = vmatpush1.msra.mxu0 0.0
        %6647 = vmatprep.subr.mxu0 0.0
        %6648 = vmatpush1.msra.mxu0 0.0
        %6649 = vmatprep.subr.mxu0 0.0
        %6650 = vmatpush1.msra.mxu0 0.0
        %6651 = vmatprep.subr.mxu0 0.0
        %6652 = vmatpush1.msra.mxu0 0.0
        %6653 = vmatprep.subr.mxu0 0.0
        %6654 = vmatpush1.msra.mxu0 0.0
        %6655 = vmatprep.subr.mxu0 0.0
        %6656 = vmatpush1.msra.mxu0 0.0
        %6657 = vmatprep.subr.mxu0 0.0
        %6658 = vmatpush1.msra.mxu0 0.0
        %6659 = vmatprep.subr.mxu0 0.0
        %6660 = vmatpush1.msra.mxu0 0.0
        %6661 = vmatprep.mubr.f32.mxu0 0.0
        %6662 = vmatmul.mubr.f32.gmra.mrb[0].mxu0 %v6586
        %v6663 = vpop.f32.mrb[0].mxu0
        %v6664 = vadd.f32 %v6568, %v6663
        %v6665 = vpop.f32.mrb[0].mxu0
        %v6666 = vadd.f32 %v6568, %v6665
        %6667 = vmatprep.mubr.f32.mxu0 0.0
        %6668 = vmatmul.mubr.f32.gmra.mrb[0].mxu0 %v6589
        %v6669 = vpop.f32.mrb[0].mxu0
        %v6670 = vadd.f32 %v6573, %v6669
        %v6671 = vpop.f32.mrb[0].mxu0
        %v6672 = vadd.f32 %v6573, %v6671
        %6673 = vmatprep.mubr.f32.mxu0 0.0
        %6674 = vmatmul.mubr.f32.gmra.mrb[0].mxu0 %v6592
        %v6675 = vpop.f32.mrb[0].mxu0
        %v6676 = vadd.f32 %v6578, %v6675
        %v6677 = vpop.f32.mrb[0].mxu0
        %v6678 = vadd.f32 %v6578, %v6677
        %6679 = vmatprep.mubr.f32.mxu0 0.0
        %6680 = vmatmul.mubr.f32.gmra.mrb[0].mxu0 %v6595
        %v6681 = vpop.f32.mrb[0].mxu0
        %v6682 = vadd.f32 %v6583, %v6681
        %v6683 = vpop.f32.mrb[0].mxu0
        %v6684 = vadd.f32 %v6583, %v6683
        %6685 = vdwg.mxu0
        %6686 = vmatprep.subr.mxu0 %v6526
        %6687 = vmatpush1.msra.mxu0 %v6525
        %6688 = vmatprep.subr.mxu0 %v6534
        %6689 = vmatpush1.msra.mxu0 %v6533
        %6690 = vmatprep.subr.mxu0 %v6542
        %6691 = vmatpush1.msra.mxu0 %v6541
        %6692 = vmatprep.subr.mxu0 %v6550
        %6693 = vmatpush1.msra.mxu0 %v6549
        %6694 = vmatprep.subr.mxu0 0.0
        %6695 = vmatpush1.msra.mxu0 0.0
        %6696 = vmatprep.subr.mxu0 0.0
        %6697 = vmatpush1.msra.mxu0 0.0
        %6698 = vmatprep.subr.mxu0 0.0
        %6699 = vmatpush1.msra.mxu0 0.0
        %6700 = vmatprep.subr.mxu0 0.0
        %6701 = vmatpush1.msra.mxu0 0.0
        %6702 = vmatprep.subr.mxu0 0.0
        %6703 = vmatpush1.msra.mxu0 0.0
        %6704 = vmatprep.subr.mxu0 0.0
        %6705 = vmatpush1.msra.mxu0 0.0
        %6706 = vmatprep.subr.mxu0 0.0
        %6707 = vmatpush1.msra.mxu0 0.0
        %6708 = vmatprep.subr.mxu0 0.0
        %6709 = vmatpush1.msra.mxu0 0.0
        %6710 = vmatprep.subr.mxu0 0.0
        %6711 = vmatpush1.msra.mxu0 0.0
        %6712 = vmatprep.subr.mxu0 0.0
        %6713 = vmatpush1.msra.mxu0 0.0
        %6714 = vmatprep.subr.mxu0 0.0
        %6715 = vmatpush1.msra.mxu0 0.0
        %6716 = vmatprep.subr.mxu0 0.0
        %6717 = vmatpush1.msra.mxu0 0.0
        %6718 = vmatprep.subr.mxu0 0.0
        %6719 = vmatpush1.msra.mxu0 0.0
        %6720 = vmatprep.subr.mxu0 0.0
        %6721 = vmatpush1.msra.mxu0 0.0
        %6722 = vmatprep.subr.mxu0 0.0
        %6723 = vmatpush1.msra.mxu0 0.0
        %6724 = vmatprep.subr.mxu0 0.0
        %6725 = vmatpush1.msra.mxu0 0.0
        %6726 = vmatprep.subr.mxu0 0.0
        %6727 = vmatpush1.msra.mxu0 0.0
        %6728 = vmatprep.subr.mxu0 0.0
        %6729 = vmatpush1.msra.mxu0 0.0
        %6730 = vmatprep.subr.mxu0 0.0
        %6731 = vmatpush1.msra.mxu0 0.0
        %6732 = vmatprep.subr.mxu0 0.0
        %6733 = vmatpush1.msra.mxu0 0.0
        %6734 = vmatprep.subr.mxu0 0.0
        %6735 = vmatpush1.msra.mxu0 0.0
        %6736 = vmatprep.subr.mxu0 0.0
        %6737 = vmatpush1.msra.mxu0 0.0
        %6738 = vmatprep.subr.mxu0 0.0
        %6739 = vmatpush1.msra.mxu0 0.0
        %6740 = vmatprep.subr.mxu0 0.0
        %6741 = vmatpush1.msra.mxu0 0.0
        %6742 = vmatprep.subr.mxu0 0.0
        %6743 = vmatpush1.msra.mxu0 0.0
        %6744 = vmatprep.subr.mxu0 0.0
        %6745 = vmatpush1.msra.mxu0 0.0
        %6746 = vmatprep.subr.mxu0 0.0
        %6747 = vmatpush1.msra.mxu0 0.0
        %6748 = vmatprep.subr.mxu0 0.0
        %6749 = vmatpush1.msra.mxu0 0.0
        %6750 = vmatprep.mubr.f32.mxu0 0.0
        %6751 = vmatmul.mubr.f32.gmra.mrb[0].mxu0 %v6586
        %v6752 = vpop.f32.mrb[0].mxu0
        %v6753 = vadd.f32 %v6568, %v6752
        %v6754 = vpop.f32.mrb[0].mxu0
        %v6755 = vadd.f32 %v6568, %v6754
        %6756 = vmatprep.mubr.f32.mxu0 0.0
        %6757 = vmatmul.mubr.f32.gmra.mrb[0].mxu0 %v6589
        %v6758 = vpop.f32.mrb[0].mxu0
        %v6759 = vadd.f32 %v6573, %v6758
        %v6760 = vpop.f32.mrb[0].mxu0
        %v6761 = vadd.f32 %v6573, %v6760
        %6762 = vmatprep.mubr.f32.mxu0 0.0
        %6763 = vmatmul.mubr.f32.gmra.mrb[0].mxu0 %v6592
        %v6764 = vpop.f32.mrb[0].mxu0
        %v6765 = vadd.f32 %v6578, %v6764
        %v6766 = vpop.f32.mrb[0].mxu0
        %v6767 = vadd.f32 %v6578, %v6766
        %6768 = vmatprep.mubr.f32.mxu0 0.0
        %6769 = vmatmul.mubr.f32.gmra.mrb[0].mxu0 %v6595
        %v6770 = vpop.f32.mrb[0].mxu0
        %v6771 = vadd.f32 %v6583, %v6770
        %v6772 = vpop.f32.mrb[0].mxu0
        %v6773 = vadd.f32 %v6583, %v6772
        %6774 = vdwg.mxu0
        %6775 = vmatprep.subr.mxu0 %v6528
        %6776 = vmatpush1.msra.mxu0 %v6527
        %6777 = vmatprep.subr.mxu0 %v6536
        %6778 = vmatpush1.msra.mxu0 %v6535
        %6779 = vmatprep.subr.mxu0 %v6544
        %6780 = vmatpush1.msra.mxu0 %v6543
        %6781 = vmatprep.subr.mxu0 %v6552
        %6782 = vmatpush1.msra.mxu0 %v6551
        %6783 = vmatprep.subr.mxu0 0.0
        %6784 = vmatpush1.msra.mxu0 0.0
        %6785 = vmatprep.subr.mxu0 0.0
        %6786 = vmatpush1.msra.mxu0 0.0
        %6787 = vmatprep.subr.mxu0 0.0
        %6788 = vmatpush1.msra.mxu0 0.0
        %6789 = vmatprep.subr.mxu0 0.0
        %6790 = vmatpush1.msra.mxu0 0.0
        %6791 = vmatprep.subr.mxu0 0.0
        %6792 = vmatpush1.msra.mxu0 0.0
        %6793 = vmatprep.subr.mxu0 0.0
        %6794 = vmatpush1.msra.mxu0 0.0
        %6795 = vmatprep.subr.mxu0 0.0
        %6796 = vmatpush1.msra.mxu0 0.0
        %6797 = vmatprep.subr.mxu0 0.0
        %6798 = vmatpush1.msra.mxu0 0.0
        %6799 = vmatprep.subr.mxu0 0.0
        %6800 = vmatpush1.msra.mxu0 0.0
        %6801 = vmatprep.subr.mxu0 0.0
        %6802 = vmatpush1.msra.mxu0 0.0
        %6803 = vmatprep.subr.mxu0 0.0
        %6804 = vmatpush1.msra.mxu0 0.0
        %6805 = vmatprep.subr.mxu0 0.0
        %6806 = vmatpush1.msra.mxu0 0.0
        %6807 = vmatprep.subr.mxu0 0.0
        %6808 = vmatpush1.msra.mxu0 0.0
        %6809 = vmatprep.subr.mxu0 0.0
        %6810 = vmatpush1.msra.mxu0 0.0
        %6811 = vmatprep.subr.mxu0 0.0
        %6812 = vmatpush1.msra.mxu0 0.0
        %6813 = vmatprep.subr.mxu0 0.0
        %6814 = vmatpush1.msra.mxu0 0.0
        %6815 = vmatprep.subr.mxu0 0.0
        %6816 = vmatpush1.msra.mxu0 0.0
        %6817 = vmatprep.subr.mxu0 0.0
        %6818 = vmatpush1.msra.mxu0 0.0
        %6819 = vmatprep.subr.mxu0 0.0
        %6820 = vmatpush1.msra.mxu0 0.0
        %6821 = vmatprep.subr.mxu0 0.0
        %6822 = vmatpush1.msra.mxu0 0.0
        %6823 = vmatprep.subr.mxu0 0.0
        %6824 = vmatpush1.msra.mxu0 0.0
        %6825 = vmatprep.subr.mxu0 0.0
        %6826 = vmatpush1.msra.mxu0 0.0
        %6827 = vmatprep.subr.mxu0 0.0
        %6828 = vmatpush1.msra.mxu0 0.0
        %6829 = vmatprep.subr.mxu0 0.0
        %6830 = vmatpush1.msra.mxu0 0.0
        %6831 = vmatprep.subr.mxu0 0.0
        %6832 = vmatpush1.msra.mxu0 0.0
        %6833 = vmatprep.subr.mxu0 0.0
        %6834 = vmatpush1.msra.mxu0 0.0
        %6835 = vmatprep.subr.mxu0 0.0
        %6836 = vmatpush1.msra.mxu0 0.0
        %6837 = vmatprep.subr.mxu0 0.0
        %6838 = vmatpush1.msra.mxu0 0.0
        %6839 = vmatprep.mubr.f32.mxu0 0.0
        %6840 = vmatmul.mubr.f32.gmra.mrb[0].mxu0 %v6586
        %v6841 = vpop.f32.mrb[0].mxu0
        %v6842 = vadd.f32 %v6568, %v6841
        %v6843 = vpop.f32.mrb[0].mxu0
        %v6844 = vadd.f32 %v6568, %v6843
        %6845 = vmatprep.mubr.f32.mxu0 0.0
        %6846 = vmatmul.mubr.f32.gmra.mrb[0].mxu0 %v6589
        %v6847 = vpop.f32.mrb[0].mxu0
        %v6848 = vadd.f32 %v6573, %v6847
        %v6849 = vpop.f32.mrb[0].mxu0
        %v6850 = vadd.f32 %v6573, %v6849
        %6851 = vmatprep.mubr.f32.mxu0 0.0
        %6852 = vmatmul.mubr.f32.gmra.mrb[0].mxu0 %v6592
        %v6853 = vpop.f32.mrb[0].mxu0
        %v6854 = vadd.f32 %v6578, %v6853
        %v6855 = vpop.f32.mrb[0].mxu0
        %v6856 = vadd.f32 %v6578, %v6855
        %6857 = vmatprep.mubr.f32.mxu0 0.0
        %6858 = vmatmul.mubr.f32.gmra.mrb[0].mxu0 %v6595
        %v6859 = vpop.f32.mrb[0].mxu0
        %v6860 = vadd.f32 %v6583, %v6859
        %v6861 = vpop.f32.mrb[0].mxu0
        %v6862 = vadd.f32 %v6583, %v6861
        %6863 = vdwg.mxu0
        %6864 = vmatprep.subr.mxu0 %v6530
        %6865 = vmatpush1.msra.mxu0 %v6529
        %6866 = vmatprep.subr.mxu0 %v6538
        %6867 = vmatpush1.msra.mxu0 %v6537
        %6868 = vmatprep.subr.mxu0 %v6546
        %6869 = vmatpush1.msra.mxu0 %v6545
        %6870 = vmatprep.subr.mxu0 %v6554
        %6871 = vmatpush1.msra.mxu0 %v6553
        %6872 = vmatprep.subr.mxu0 0.0
        %6873 = vmatpush1.msra.mxu0 0.0
        %6874 = vmatprep.subr.mxu0 0.0
        %6875 = vmatpush1.msra.mxu0 0.0
        %6876 = vmatprep.subr.mxu0 0.0
        %6877 = vmatpush1.msra.mxu0 0.0
        %6878 = vmatprep.subr.mxu0 0.0
        %6879 = vmatpush1.msra.mxu0 0.0
        %6880 = vmatprep.subr.mxu0 0.0
        %6881 = vmatpush1.msra.mxu0 0.0
        %6882 = vmatprep.subr.mxu0 0.0
        %6883 = vmatpush1.msra.mxu0 0.0
        %6884 = vmatprep.subr.mxu0 0.0
        %6885 = vmatpush1.msra.mxu0 0.0
        %6886 = vmatprep.subr.mxu0 0.0
        %6887 = vmatpush1.msra.mxu0 0.0
        %6888 = vmatprep.subr.mxu0 0.0
        %6889 = vmatpush1.msra.mxu0 0.0
        %6890 = vmatprep.subr.mxu0 0.0
        %6891 = vmatpush1.msra.mxu0 0.0
        %6892 = vmatprep.subr.mxu0 0.0
        %6893 = vmatpush1.msra.mxu0 0.0
        %6894 = vmatprep.subr.mxu0 0.0
        %6895 = vmatpush1.msra.mxu0 0.0
        %6896 = vmatprep.subr.mxu0 0.0
        %6897 = vmatpush1.msra.mxu0 0.0
        %6898 = vmatprep.subr.mxu0 0.0
        %6899 = vmatpush1.msra.mxu0 0.0
        %6900 = vmatprep.subr.mxu0 0.0
        %6901 = vmatpush1.msra.mxu0 0.0
        %6902 = vmatprep.subr.mxu0 0.0
        %6903 = vmatpush1.msra.mxu0 0.0
        %6904 = vmatprep.subr.mxu0 0.0
        %6905 = vmatpush1.msra.mxu0 0.0
        %6906 = vmatprep.subr.mxu0 0.0
        %6907 = vmatpush1.msra.mxu0 0.0
        %6908 = vmatprep.subr.mxu0 0.0
        %6909 = vmatpush1.msra.mxu0 0.0
        %6910 = vmatprep.subr.mxu0 0.0
        %6911 = vmatpush1.msra.mxu0 0.0
        %6912 = vmatprep.subr.mxu0 0.0
        %6913 = vmatpush1.msra.mxu0 0.0
        %6914 = vmatprep.subr.mxu0 0.0
        %6915 = vmatpush1.msra.mxu0 0.0
        %6916 = vmatprep.subr.mxu0 0.0
        %6917 = vmatpush1.msra.mxu0 0.0
        %6918 = vmatprep.subr.mxu0 0.0
        %6919 = vmatpush1.msra.mxu0 0.0
        %6920 = vmatprep.subr.mxu0 0.0
        %6921 = vmatpush1.msra.mxu0 0.0
        %6922 = vmatprep.subr.mxu0 0.0
        %6923 = vmatpush1.msra.mxu0 0.0
        %6924 = vmatprep.subr.mxu0 0.0
        %6925 = vmatpush1.msra.mxu0 0.0
        %6926 = vmatprep.subr.mxu0 0.0
        %6927 = vmatpush1.msra.mxu0 0.0
        %6928 = vmatprep.mubr.f32.mxu0 0.0
        %6929 = vmatmul.mubr.f32.gmra.mrb[0].mxu0 %v6586
        %v6930 = vpop.f32.mrb[0].mxu0
        %v6931 = vadd.f32 %v6568, %v6930
        %v6932 = vpop.f32.mrb[0].mxu0
        %v6933 = vadd.f32 %v6568, %v6932
        %6934 = vmatprep.mubr.f32.mxu0 0.0
        %6935 = vmatmul.mubr.f32.gmra.mrb[0].mxu0 %v6589
        %v6936 = vpop.f32.mrb[0].mxu0
        %v6937 = vadd.f32 %v6573, %v6936
        %v6938 = vpop.f32.mrb[0].mxu0
        %v6939 = vadd.f32 %v6573, %v6938
        %6940 = vmatprep.mubr.f32.mxu0 0.0
        %6941 = vmatmul.mubr.f32.gmra.mrb[0].mxu0 %v6592
        %v6942 = vpop.f32.mrb[0].mxu0
        %v6943 = vadd.f32 %v6578, %v6942
        %v6944 = vpop.f32.mrb[0].mxu0
        %v6945 = vadd.f32 %v6578, %v6944
        %6946 = vmatprep.mubr.f32.mxu0 0.0
        %6947 = vmatmul.mubr.f32.gmra.mrb[0].mxu0 %v6595
        %v6948 = vpop.f32.mrb[0].mxu0
        %v6949 = vadd.f32 %v6583, %v6948
        %v6950 = vpop.f32.mrb[0].mxu0
        %v6951 = vadd.f32 %v6583, %v6950
        %6952 = vdwg.mxu0
        %v6953 = vmul.f32 %v6664, 100.0
        %v6954 = vmul.f32 %v6666, 100.0
        %v6955 = vmul.f32 %v6753, 100.0
        %v6956 = vmul.f32 %v6755, 100.0
        %v6957 = vmul.f32 %v6842, 100.0
        %v6958 = vmul.f32 %v6844, 100.0
        %v6959 = vmul.f32 %v6931, 100.0
        %v6960 = vmul.f32 %v6933, 100.0
        %v6961 = vmul.f32 %v6670, 100.0
        %v6962 = vmul.f32 %v6672, 100.0
        %v6963 = vmul.f32 %v6759, 100.0
        %v6964 = vmul.f32 %v6761, 100.0
        %v6965 = vmul.f32 %v6848, 100.0
        %v6966 = vmul.f32 %v6850, 100.0
        %v6967 = vmul.f32 %v6937, 100.0
        %v6968 = vmul.f32 %v6939, 100.0
        %v6969 = vmul.f32 %v6676, 100.0
        %v6970 = vmul.f32 %v6678, 100.0
        %v6971 = vmul.f32 %v6765, 100.0
        %v6972 = vmul.f32 %v6767, 100.0
        %v6973 = vmul.f32 %v6854, 100.0
        %v6974 = vmul.f32 %v6856, 100.0
        %v6975 = vmul.f32 %v6943, 100.0
        %v6976 = vmul.f32 %v6945, 100.0
        %v6977 = vmul.f32 %v6682, 100.0
        %v6978 = vmul.f32 %v6684, 100.0
        %v6979 = vmul.f32 %v6771, 100.0
        %v6980 = vmul.f32 %v6773, 100.0
        %v6981 = vmul.f32 %v6860, 100.0
        %v6982 = vmul.f32 %v6862, 100.0
        %v6983 = vmul.f32 %v6949, 100.0
        %v6984 = vmul.f32 %v6951, 100.0
        %v6985 = vmin.f32 %v6953, 20.0
        %v6986 = vmin.f32 %v6954, 20.0
        %v6987 = vmin.f32 %v6955, 20.0
        %v6988 = vmin.f32 %v6956, 20.0
        %v6989 = vmin.f32 %v6957, 20.0
        %v6990 = vmin.f32 %v6958, 20.0
        %v6991 = vmin.f32 %v6959, 20.0
        %v6992 = vmin.f32 %v6960, 20.0
        %v6993 = vmin.f32 %v6961, 20.0
        %v6994 = vmin.f32 %v6962, 20.0
        %v6995 = vmin.f32 %v6963, 20.0
        %v6996 = vmin.f32 %v6964, 20.0
        %v6997 = vmin.f32 %v6965, 20.0
        %v6998 = vmin.f32 %v6966, 20.0
        %v6999 = vmin.f32 %v6967, 20.0
        %v7000 = vmin.f32 %v6968, 20.0
        %v7001 = vmin.f32 %v6969, 20.0
        %v7002 = vmin.f32 %v6970, 20.0
        %v7003 = vmin.f32 %v6971, 20.0
        %v7004 = vmin.f32 %v6972, 20.0
        %v7005 = vmin.f32 %v6973, 20.0
        %v7006 = vmin.f32 %v6974, 20.0
        %v7007 = vmin.f32 %v6975, 20.0
        %v7008 = vmin.f32 %v6976, 20.0
        %v7009 = vmin.f32 %v6977, 20.0
        %v7010 = vmin.f32 %v6978, 20.0
        %v7011 = vmin.f32 %v6979, 20.0
        %v7012 = vmin.f32 %v6980, 20.0
        %v7013 = vmin.f32 %v6981, 20.0
        %v7014 = vmin.f32 %v6982, 20.0
        %v7015 = vmin.f32 %v6983, 20.0
        %v7016 = vmin.f32 %v6984, 20.0
        %v7017 = vmul.f32 %v6985, 1.442695
        %v7018 = vpow.pop %v7017
        %v7019 = vmul.f32 %v6986, 1.442695
        %v7020 = vpow.pop %v7019
        %v7021 = vmul.f32 %v6987, 1.442695
        %v7022 = vpow.pop %v7021
        %v7023 = vmul.f32 %v6988, 1.442695
        %v7024 = vpow.pop %v7023
        %v7025 = vmul.f32 %v6989, 1.442695
        %v7026 = vpow.pop %v7025
        %v7027 = vmul.f32 %v6990, 1.442695
        %v7028 = vpow.pop %v7027
        %v7029 = vmul.f32 %v6991, 1.442695
        %v7030 = vpow.pop %v7029
        %v7031 = vmul.f32 %v6992, 1.442695
        %v7032 = vpow.pop %v7031
        %v7033 = vmul.f32 %v6993, 1.442695
        %v7034 = vpow.pop %v7033
        %v7035 = vmul.f32 %v6994, 1.442695
        %v7036 = vpow.pop %v7035
        %v7037 = vmul.f32 %v6995, 1.442695
        %v7038 = vpow.pop %v7037
        %v7039 = vmul.f32 %v6996, 1.442695
        %v7040 = vpow.pop %v7039
        %v7041 = vmul.f32 %v6997, 1.442695
        %v7042 = vpow.pop %v7041
        %v7043 = vmul.f32 %v6998, 1.442695
        %v7044 = vpow.pop %v7043
        %v7045 = vmul.f32 %v6999, 1.442695
        %v7046 = vpow.pop %v7045
        %v7047 = vmul.f32 %v7000, 1.442695
        %v7048 = vpow.pop %v7047
        %v7049 = vmul.f32 %v7001, 1.442695
        %v7050 = vpow.pop %v7049
        %v7051 = vmul.f32 %v7002, 1.442695
        %v7052 = vpow.pop %v7051
        %v7053 = vmul.f32 %v7003, 1.442695
        %v7054 = vpow.pop %v7053
        %v7055 = vmul.f32 %v7004, 1.442695
        %v7056 = vpow.pop %v7055
        %v7057 = vmul.f32 %v7005, 1.442695
        %v7058 = vpow.pop %v7057
        %v7059 = vmul.f32 %v7006, 1.442695
        %v7060 = vpow.pop %v7059
        %v7061 = vmul.f32 %v7007, 1.442695
        %v7062 = vpow.pop %v7061
        %v7063 = vmul.f32 %v7008, 1.442695
        %v7064 = vpow.pop %v7063
        %v7065 = vmul.f32 %v7009, 1.442695
        %v7066 = vpow.pop %v7065
        %v7067 = vmul.f32 %v7010, 1.442695
        %v7068 = vpow.pop %v7067
        %v7069 = vmul.f32 %v7011, 1.442695
        %v7070 = vpow.pop %v7069
        %v7071 = vmul.f32 %v7012, 1.442695
        %v7072 = vpow.pop %v7071
        %v7073 = vmul.f32 %v7013, 1.442695
        %v7074 = vpow.pop %v7073
        %v7075 = vmul.f32 %v7014, 1.442695
        %v7076 = vpow.pop %v7075
        %v7077 = vmul.f32 %v7015, 1.442695
        %v7078 = vpow.pop %v7077
        %v7079 = vmul.f32 %v7016, 1.442695
        %v7080 = vpow.pop %v7079
        %v7081 = vadd.f32 %v7018, 1.0
        %v7082 = vlog2.pop %v7081
        %v7083 = vmul.f32 %v7082, 0.6931472
        %v7084 = vmul.f32 -0.5, %v7018
        %v7085 = vadd.f32 %v7084, 1.0
        %v7086 = vmul.f32 %v7085, %v7018
        %v7087 = vand.u32 2147483647, %v7018
        %vm7088 = vcmp.lt.f32.partialorder %v7087, 0.0004427343
        %v7089 = vsel %vm7088, %v7086, %v7083
        %v7090 = vadd.f32 %v7020, 1.0
        %v7091 = vlog2.pop %v7090
        %v7092 = vmul.f32 %v7091, 0.6931472
        %v7093 = vmul.f32 -0.5, %v7020
        %v7094 = vadd.f32 %v7093, 1.0
        %v7095 = vmul.f32 %v7094, %v7020
        %v7096 = vand.u32 2147483647, %v7020
        %vm7097 = vcmp.lt.f32.partialorder %v7096, 0.0004427343
        %v7098 = vsel %vm7097, %v7095, %v7092
        %v7099 = vadd.f32 %v7022, 1.0
        %v7100 = vlog2.pop %v7099
        %v7101 = vmul.f32 %v7100, 0.6931472
        %v7102 = vmul.f32 -0.5, %v7022
        %v7103 = vadd.f32 %v7102, 1.0
        %v7104 = vmul.f32 %v7103, %v7022
        %v7105 = vand.u32 2147483647, %v7022
        %vm7106 = vcmp.lt.f32.partialorder %v7105, 0.0004427343
        %v7107 = vsel %vm7106, %v7104, %v7101
        %v7108 = vadd.f32 %v7024, 1.0
        %v7109 = vlog2.pop %v7108
        %v7110 = vmul.f32 %v7109, 0.6931472
        %v7111 = vmul.f32 -0.5, %v7024
        %v7112 = vadd.f32 %v7111, 1.0
        %v7113 = vmul.f32 %v7112, %v7024
        %v7114 = vand.u32 2147483647, %v7024
        %vm7115 = vcmp.lt.f32.partialorder %v7114, 0.0004427343
        %v7116 = vsel %vm7115, %v7113, %v7110
        %v7117 = vadd.f32 %v7026, 1.0
        %v7118 = vlog2.pop %v7117
        %v7119 = vmul.f32 %v7118, 0.6931472
        %v7120 = vmul.f32 -0.5, %v7026
        %v7121 = vadd.f32 %v7120, 1.0
        %v7122 = vmul.f32 %v7121, %v7026
        %v7123 = vand.u32 2147483647, %v7026
        %vm7124 = vcmp.lt.f32.partialorder %v7123, 0.0004427343
        %v7125 = vsel %vm7124, %v7122, %v7119
        %v7126 = vadd.f32 %v7028, 1.0
        %v7127 = vlog2.pop %v7126
        %v7128 = vmul.f32 %v7127, 0.6931472
        %v7129 = vmul.f32 -0.5, %v7028
        %v7130 = vadd.f32 %v7129, 1.0
        %v7131 = vmul.f32 %v7130, %v7028
        %v7132 = vand.u32 2147483647, %v7028
        %vm7133 = vcmp.lt.f32.partialorder %v7132, 0.0004427343
        %v7134 = vsel %vm7133, %v7131, %v7128
        %v7135 = vadd.f32 %v7030, 1.0
        %v7136 = vlog2.pop %v7135
        %v7137 = vmul.f32 %v7136, 0.6931472
        %v7138 = vmul.f32 -0.5, %v7030
        %v7139 = vadd.f32 %v7138, 1.0
        %v7140 = vmul.f32 %v7139, %v7030
        %v7141 = vand.u32 2147483647, %v7030
        %vm7142 = vcmp.lt.f32.partialorder %v7141, 0.0004427343
        %v7143 = vsel %vm7142, %v7140, %v7137
        %v7144 = vadd.f32 %v7032, 1.0
        %v7145 = vlog2.pop %v7144
        %v7146 = vmul.f32 %v7145, 0.6931472
        %v7147 = vmul.f32 -0.5, %v7032
        %v7148 = vadd.f32 %v7147, 1.0
        %v7149 = vmul.f32 %v7148, %v7032
        %v7150 = vand.u32 2147483647, %v7032
        %vm7151 = vcmp.lt.f32.partialorder %v7150, 0.0004427343
        %v7152 = vsel %vm7151, %v7149, %v7146
        %v7153 = vadd.f32 %v7034, 1.0
        %v7154 = vlog2.pop %v7153
        %v7155 = vmul.f32 %v7154, 0.6931472
        %v7156 = vmul.f32 -0.5, %v7034
        %v7157 = vadd.f32 %v7156, 1.0
        %v7158 = vmul.f32 %v7157, %v7034
        %v7159 = vand.u32 2147483647, %v7034
        %vm7160 = vcmp.lt.f32.partialorder %v7159, 0.0004427343
        %v7161 = vsel %vm7160, %v7158, %v7155
        %v7162 = vadd.f32 %v7036, 1.0
        %v7163 = vlog2.pop %v7162
        %v7164 = vmul.f32 %v7163, 0.6931472
        %v7165 = vmul.f32 -0.5, %v7036
        %v7166 = vadd.f32 %v7165, 1.0
        %v7167 = vmul.f32 %v7166, %v7036
        %v7168 = vand.u32 2147483647, %v7036
        %vm7169 = vcmp.lt.f32.partialorder %v7168, 0.0004427343
        %v7170 = vsel %vm7169, %v7167, %v7164
        %v7171 = vadd.f32 %v7038, 1.0
        %v7172 = vlog2.pop %v7171
        %v7173 = vmul.f32 %v7172, 0.6931472
        %v7174 = vmul.f32 -0.5, %v7038
        %v7175 = vadd.f32 %v7174, 1.0
        %v7176 = vmul.f32 %v7175, %v7038
        %v7177 = vand.u32 2147483647, %v7038
        %vm7178 = vcmp.lt.f32.partialorder %v7177, 0.0004427343
        %v7179 = vsel %vm7178, %v7176, %v7173
        %v7180 = vadd.f32 %v7040, 1.0
        %v7181 = vlog2.pop %v7180
        %v7182 = vmul.f32 %v7181, 0.6931472
        %v7183 = vmul.f32 -0.5, %v7040
        %v7184 = vadd.f32 %v7183, 1.0
        %v7185 = vmul.f32 %v7184, %v7040
        %v7186 = vand.u32 2147483647, %v7040
        %vm7187 = vcmp.lt.f32.partialorder %v7186, 0.0004427343
        %v7188 = vsel %vm7187, %v7185, %v7182
        %v7189 = vadd.f32 %v7042, 1.0
        %v7190 = vlog2.pop %v7189
        %v7191 = vmul.f32 %v7190, 0.6931472
        %v7192 = vmul.f32 -0.5, %v7042
        %v7193 = vadd.f32 %v7192, 1.0
        %v7194 = vmul.f32 %v7193, %v7042
        %v7195 = vand.u32 2147483647, %v7042
        %vm7196 = vcmp.lt.f32.partialorder %v7195, 0.0004427343
        %v7197 = vsel %vm7196, %v7194, %v7191
        %v7198 = vadd.f32 %v7044, 1.0
        %v7199 = vlog2.pop %v7198
        %v7200 = vmul.f32 %v7199, 0.6931472
        %v7201 = vmul.f32 -0.5, %v7044
        %v7202 = vadd.f32 %v7201, 1.0
        %v7203 = vmul.f32 %v7202, %v7044
        %v7204 = vand.u32 2147483647, %v7044
        %vm7205 = vcmp.lt.f32.partialorder %v7204, 0.0004427343
        %v7206 = vsel %vm7205, %v7203, %v7200
        %v7207 = vadd.f32 %v7046, 1.0
        %v7208 = vlog2.pop %v7207
        %v7209 = vmul.f32 %v7208, 0.6931472
        %v7210 = vmul.f32 -0.5, %v7046
        %v7211 = vadd.f32 %v7210, 1.0
        %v7212 = vmul.f32 %v7211, %v7046
        %v7213 = vand.u32 2147483647, %v7046
        %vm7214 = vcmp.lt.f32.partialorder %v7213, 0.0004427343
        %v7215 = vsel %vm7214, %v7212, %v7209
        %v7216 = vadd.f32 %v7048, 1.0
        %v7217 = vlog2.pop %v7216
        %v7218 = vmul.f32 %v7217, 0.6931472
        %v7219 = vmul.f32 -0.5, %v7048
        %v7220 = vadd.f32 %v7219, 1.0
        %v7221 = vmul.f32 %v7220, %v7048
        %v7222 = vand.u32 2147483647, %v7048
        %vm7223 = vcmp.lt.f32.partialorder %v7222, 0.0004427343
        %v7224 = vsel %vm7223, %v7221, %v7218
        %v7225 = vadd.f32 %v7050, 1.0
        %v7226 = vlog2.pop %v7225
        %v7227 = vmul.f32 %v7226, 0.6931472
        %v7228 = vmul.f32 -0.5, %v7050
        %v7229 = vadd.f32 %v7228, 1.0
        %v7230 = vmul.f32 %v7229, %v7050
        %v7231 = vand.u32 2147483647, %v7050
        %vm7232 = vcmp.lt.f32.partialorder %v7231, 0.0004427343
        %v7233 = vsel %vm7232, %v7230, %v7227
        %v7234 = vadd.f32 %v7052, 1.0
        %v7235 = vlog2.pop %v7234
        %v7236 = vmul.f32 %v7235, 0.6931472
        %v7237 = vmul.f32 -0.5, %v7052
        %v7238 = vadd.f32 %v7237, 1.0
        %v7239 = vmul.f32 %v7238, %v7052
        %v7240 = vand.u32 2147483647, %v7052
        %vm7241 = vcmp.lt.f32.partialorder %v7240, 0.0004427343
        %v7242 = vsel %vm7241, %v7239, %v7236
        %v7243 = vadd.f32 %v7054, 1.0
        %v7244 = vlog2.pop %v7243
        %v7245 = vmul.f32 %v7244, 0.6931472
        %v7246 = vmul.f32 -0.5, %v7054
        %v7247 = vadd.f32 %v7246, 1.0
        %v7248 = vmul.f32 %v7247, %v7054
        %v7249 = vand.u32 2147483647, %v7054
        %vm7250 = vcmp.lt.f32.partialorder %v7249, 0.0004427343
        %v7251 = vsel %vm7250, %v7248, %v7245
        %v7252 = vadd.f32 %v7056, 1.0
        %v7253 = vlog2.pop %v7252
        %v7254 = vmul.f32 %v7253, 0.6931472
        %v7255 = vmul.f32 -0.5, %v7056
        %v7256 = vadd.f32 %v7255, 1.0
        %v7257 = vmul.f32 %v7256, %v7056
        %v7258 = vand.u32 2147483647, %v7056
        %vm7259 = vcmp.lt.f32.partialorder %v7258, 0.0004427343
        %v7260 = vsel %vm7259, %v7257, %v7254
        %v7261 = vadd.f32 %v7058, 1.0
        %v7262 = vlog2.pop %v7261
        %v7263 = vmul.f32 %v7262, 0.6931472
        %v7264 = vmul.f32 -0.5, %v7058
        %v7265 = vadd.f32 %v7264, 1.0
        %v7266 = vmul.f32 %v7265, %v7058
        %v7267 = vand.u32 2147483647, %v7058
        %vm7268 = vcmp.lt.f32.partialorder %v7267, 0.0004427343
        %v7269 = vsel %vm7268, %v7266, %v7263
        %v7270 = vadd.f32 %v7060, 1.0
        %v7271 = vlog2.pop %v7270
        %v7272 = vmul.f32 %v7271, 0.6931472
        %v7273 = vmul.f32 -0.5, %v7060
        %v7274 = vadd.f32 %v7273, 1.0
        %v7275 = vmul.f32 %v7274, %v7060
        %v7276 = vand.u32 2147483647, %v7060
        %vm7277 = vcmp.lt.f32.partialorder %v7276, 0.0004427343
        %v7278 = vsel %vm7277, %v7275, %v7272
        %v7279 = vadd.f32 %v7062, 1.0
        %v7280 = vlog2.pop %v7279
        %v7281 = vmul.f32 %v7280, 0.6931472
        %v7282 = vmul.f32 -0.5, %v7062
        %v7283 = vadd.f32 %v7282, 1.0
        %v7284 = vmul.f32 %v7283, %v7062
        %v7285 = vand.u32 2147483647, %v7062
        %vm7286 = vcmp.lt.f32.partialorder %v7285, 0.0004427343
        %v7287 = vsel %vm7286, %v7284, %v7281
        %v7288 = vadd.f32 %v7064, 1.0
        %v7289 = vlog2.pop %v7288
        %v7290 = vmul.f32 %v7289, 0.6931472
        %v7291 = vmul.f32 -0.5, %v7064
        %v7292 = vadd.f32 %v7291, 1.0
        %v7293 = vmul.f32 %v7292, %v7064
        %v7294 = vand.u32 2147483647, %v7064
        %vm7295 = vcmp.lt.f32.partialorder %v7294, 0.0004427343
        %v7296 = vsel %vm7295, %v7293, %v7290
        %v7297 = vadd.f32 %v7066, 1.0
        %v7298 = vlog2.pop %v7297
        %v7299 = vmul.f32 %v7298, 0.6931472
        %v7300 = vmul.f32 -0.5, %v7066
        %v7301 = vadd.f32 %v7300, 1.0
        %v7302 = vmul.f32 %v7301, %v7066
        %v7303 = vand.u32 2147483647, %v7066
        %vm7304 = vcmp.lt.f32.partialorder %v7303, 0.0004427343
        %v7305 = vsel %vm7304, %v7302, %v7299
        %v7306 = vadd.f32 %v7068, 1.0
        %v7307 = vlog2.pop %v7306
        %v7308 = vmul.f32 %v7307, 0.6931472
        %v7309 = vmul.f32 -0.5, %v7068
        %v7310 = vadd.f32 %v7309, 1.0
        %v7311 = vmul.f32 %v7310, %v7068
        %v7312 = vand.u32 2147483647, %v7068
        %vm7313 = vcmp.lt.f32.partialorder %v7312, 0.0004427343
        %v7314 = vsel %vm7313, %v7311, %v7308
        %v7315 = vadd.f32 %v7070, 1.0
        %v7316 = vlog2.pop %v7315
        %v7317 = vmul.f32 %v7316, 0.6931472
        %v7318 = vmul.f32 -0.5, %v7070
        %v7319 = vadd.f32 %v7318, 1.0
        %v7320 = vmul.f32 %v7319, %v7070
        %v7321 = vand.u32 2147483647, %v7070
        %vm7322 = vcmp.lt.f32.partialorder %v7321, 0.0004427343
        %v7323 = vsel %vm7322, %v7320, %v7317
        %v7324 = vadd.f32 %v7072, 1.0
        %v7325 = vlog2.pop %v7324
        %v7326 = vmul.f32 %v7325, 0.6931472
        %v7327 = vmul.f32 -0.5, %v7072
        %v7328 = vadd.f32 %v7327, 1.0
        %v7329 = vmul.f32 %v7328, %v7072
        %v7330 = vand.u32 2147483647, %v7072
        %vm7331 = vcmp.lt.f32.partialorder %v7330, 0.0004427343
        %v7332 = vsel %vm7331, %v7329, %v7326
        %v7333 = vadd.f32 %v7074, 1.0
        %v7334 = vlog2.pop %v7333
        %v7335 = vmul.f32 %v7334, 0.6931472
        %v7336 = vmul.f32 -0.5, %v7074
        %v7337 = vadd.f32 %v7336, 1.0
        %v7338 = vmul.f32 %v7337, %v7074
        %v7339 = vand.u32 2147483647, %v7074
        %vm7340 = vcmp.lt.f32.partialorder %v7339, 0.0004427343
        %v7341 = vsel %vm7340, %v7338, %v7335
        %v7342 = vadd.f32 %v7076, 1.0
        %v7343 = vlog2.pop %v7342
        %v7344 = vmul.f32 %v7343, 0.6931472
        %v7345 = vmul.f32 -0.5, %v7076
        %v7346 = vadd.f32 %v7345, 1.0
        %v7347 = vmul.f32 %v7346, %v7076
        %v7348 = vand.u32 2147483647, %v7076
        %vm7349 = vcmp.lt.f32.partialorder %v7348, 0.0004427343
        %v7350 = vsel %vm7349, %v7347, %v7344
        %v7351 = vadd.f32 %v7078, 1.0
        %v7352 = vlog2.pop %v7351
        %v7353 = vmul.f32 %v7352, 0.6931472
        %v7354 = vmul.f32 -0.5, %v7078
        %v7355 = vadd.f32 %v7354, 1.0
        %v7356 = vmul.f32 %v7355, %v7078
        %v7357 = vand.u32 2147483647, %v7078
        %vm7358 = vcmp.lt.f32.partialorder %v7357, 0.0004427343
        %v7359 = vsel %vm7358, %v7356, %v7353
        %v7360 = vadd.f32 %v7080, 1.0
        %v7361 = vlog2.pop %v7360
        %v7362 = vmul.f32 %v7361, 0.6931472
        %v7363 = vmul.f32 -0.5, %v7080
        %v7364 = vadd.f32 %v7363, 1.0
        %v7365 = vmul.f32 %v7364, %v7080
        %v7366 = vand.u32 2147483647, %v7080
        %vm7367 = vcmp.lt.f32.partialorder %v7366, 0.0004427343
        %v7368 = vsel %vm7367, %v7365, %v7362
        %v7369 = vmul.f32 %v7089, 0.01
        %v7370 = vmul.f32 %v7098, 0.01
        %v7371 = vmul.f32 %v7107, 0.01
        %v7372 = vmul.f32 %v7116, 0.01
        %v7373 = vmul.f32 %v7125, 0.01
        %v7374 = vmul.f32 %v7134, 0.01
        %v7375 = vmul.f32 %v7143, 0.01
        %v7376 = vmul.f32 %v7152, 0.01
        %v7377 = vmul.f32 %v7161, 0.01
        %v7378 = vmul.f32 %v7170, 0.01
        %v7379 = vmul.f32 %v7179, 0.01
        %v7380 = vmul.f32 %v7188, 0.01
        %v7381 = vmul.f32 %v7197, 0.01
        %v7382 = vmul.f32 %v7206, 0.01
        %v7383 = vmul.f32 %v7215, 0.01
        %v7384 = vmul.f32 %v7224, 0.01
        %v7385 = vmul.f32 %v7233, 0.01
        %v7386 = vmul.f32 %v7242, 0.01
        %v7387 = vmul.f32 %v7251, 0.01
        %v7388 = vmul.f32 %v7260, 0.01
        %v7389 = vmul.f32 %v7269, 0.01
        %v7390 = vmul.f32 %v7278, 0.01
        %v7391 = vmul.f32 %v7287, 0.01
        %v7392 = vmul.f32 %v7296, 0.01
        %v7393 = vmul.f32 %v7305, 0.01
        %v7394 = vmul.f32 %v7314, 0.01
        %v7395 = vmul.f32 %v7323, 0.01
        %v7396 = vmul.f32 %v7332, 0.01
        %v7397 = vmul.f32 %v7341, 0.01
        %v7398 = vmul.f32 %v7350, 0.01
        %v7399 = vmul.f32 %v7359, 0.01
        %v7400 = vmul.f32 %v7368, 0.01
        %vm7401 = vcmp.gt.f32.partialorder %v6953, 20.0
        %vm7402 = vcmp.gt.f32.partialorder %v6954, 20.0
        %vm7403 = vcmp.gt.f32.partialorder %v6955, 20.0
        %vm7404 = vcmp.gt.f32.partialorder %v6956, 20.0
        %vm7405 = vcmp.gt.f32.partialorder %v6957, 20.0
        %vm7406 = vcmp.gt.f32.partialorder %v6958, 20.0
        %vm7407 = vcmp.gt.f32.partialorder %v6959, 20.0
        %vm7408 = vcmp.gt.f32.partialorder %v6960, 20.0
        %vm7409 = vcmp.gt.f32.partialorder %v6961, 20.0
        %vm7410 = vcmp.gt.f32.partialorder %v6962, 20.0
        %vm7411 = vcmp.gt.f32.partialorder %v6963, 20.0
        %vm7412 = vcmp.gt.f32.partialorder %v6964, 20.0
        %vm7413 = vcmp.gt.f32.partialorder %v6965, 20.0
        %vm7414 = vcmp.gt.f32.partialorder %v6966, 20.0
        %vm7415 = vcmp.gt.f32.partialorder %v6967, 20.0
        %vm7416 = vcmp.gt.f32.partialorder %v6968, 20.0
        %vm7417 = vcmp.gt.f32.partialorder %v6969, 20.0
        %vm7418 = vcmp.gt.f32.partialorder %v6970, 20.0
        %vm7419 = vcmp.gt.f32.partialorder %v6971, 20.0
        %vm7420 = vcmp.gt.f32.partialorder %v6972, 20.0
        %vm7421 = vcmp.gt.f32.partialorder %v6973, 20.0
        %vm7422 = vcmp.gt.f32.partialorder %v6974, 20.0
        %vm7423 = vcmp.gt.f32.partialorder %v6975, 20.0
        %vm7424 = vcmp.gt.f32.partialorder %v6976, 20.0
        %vm7425 = vcmp.gt.f32.partialorder %v6977, 20.0
        %vm7426 = vcmp.gt.f32.partialorder %v6978, 20.0
        %vm7427 = vcmp.gt.f32.partialorder %v6979, 20.0
        %vm7428 = vcmp.gt.f32.partialorder %v6980, 20.0
        %vm7429 = vcmp.gt.f32.partialorder %v6981, 20.0
        %vm7430 = vcmp.gt.f32.partialorder %v6982, 20.0
        %vm7431 = vcmp.gt.f32.partialorder %v6983, 20.0
        %vm7432 = vcmp.gt.f32.partialorder %v6984, 20.0
        %v7433 = vsel %vm7401, %v6664, %v7369
        %v7434 = vsel %vm7402, %v6666, %v7370
        %v7435 = vsel %vm7403, %v6753, %v7371
        %v7436 = vsel %vm7404, %v6755, %v7372
        %v7437 = vsel %vm7405, %v6842, %v7373
        %v7438 = vsel %vm7406, %v6844, %v7374
        %v7439 = vsel %vm7407, %v6931, %v7375
        %v7440 = vsel %vm7408, %v6933, %v7376
        %v7441 = vsel %vm7409, %v6670, %v7377
        %v7442 = vsel %vm7410, %v6672, %v7378
        %v7443 = vsel %vm7411, %v6759, %v7379
        %v7444 = vsel %vm7412, %v6761, %v7380
        %v7445 = vsel %vm7413, %v6848, %v7381
        %v7446 = vsel %vm7414, %v6850, %v7382
        %v7447 = vsel %vm7415, %v6937, %v7383
        %v7448 = vsel %vm7416, %v6939, %v7384
        %v7449 = vsel %vm7417, %v6676, %v7385
        %v7450 = vsel %vm7418, %v6678, %v7386
        %v7451 = vsel %vm7419, %v6765, %v7387
        %v7452 = vsel %vm7420, %v6767, %v7388
        %v7453 = vsel %vm7421, %v6854, %v7389
        %v7454 = vsel %vm7422, %v6856, %v7390
        %v7455 = vsel %vm7423, %v6943, %v7391
        %v7456 = vsel %vm7424, %v6945, %v7392
        %v7457 = vsel %vm7425, %v6682, %v7393
        %v7458 = vsel %vm7426, %v6684, %v7394
        %v7459 = vsel %vm7427, %v6771, %v7395
        %v7460 = vsel %vm7428, %v6773, %v7396
        %v7461 = vsel %vm7429, %v6860, %v7397
        %v7462 = vsel %vm7430, %v6862, %v7398
        %v7463 = vsel %vm7431, %v6949, %v7399
        %v7464 = vsel %vm7432, %v6951, %v7400
        %v7465 = vld [vmem:[%s3] sm:$0xff]
        %v7466 = vld [vmem:[%s3 + $0x8] sm:$0xff]
        %s7467 = scalar_lea.vmem %s4, 128
        %v7468 = vld [vmem:[%s7467] sm:$0xff]
        %v7469 = vld [vmem:[%s7467 + $0x8] sm:$0xff]
        %7471 = vset.pattern.permute.xlu0 0
        %7472 = vperm.xlu0 %7471, %v7468
        %v7473 = vpop.permute.xlu0 %7472
        %7476 = vset.pattern.permute.xlu0 0
        %7477 = vperm.xlu0 %7476, %v7469
        %v7478 = vpop.permute.xlu0 %7477
        %v7480 = vsel %vm4732, %v7465, 0
        %v7483 = vsel %vm4732, %v7466, 0
        %7485 = vmatprep.subr.mxu0 %v7434
        %7486 = vmatpush1.msra.mxu0 %v7433
        %7487 = vmatprep.subr.mxu0 %v7442
        %7488 = vmatpush1.msra.mxu0 %v7441
        %7489 = vmatprep.subr.mxu0 %v7450
        %7490 = vmatpush1.msra.mxu0 %v7449
        %7491 = vmatprep.subr.mxu0 %v7458
        %7492 = vmatpush1.msra.mxu0 %v7457
        %7493 = vmatprep.subr.mxu0 0.0
        %7494 = vmatpush1.msra.mxu0 0.0
        %7495 = vmatprep.subr.mxu0 0.0
        %7496 = vmatpush1.msra.mxu0 0.0
        %7497 = vmatprep.subr.mxu0 0.0
        %7498 = vmatpush1.msra.mxu0 0.0
        %7499 = vmatprep.subr.mxu0 0.0
        %7500 = vmatpush1.msra.mxu0 0.0
        %7501 = vmatprep.subr.mxu0 0.0
        %7502 = vmatpush1.msra.mxu0 0.0
        %7503 = vmatprep.subr.mxu0 0.0
        %7504 = vmatpush1.msra.mxu0 0.0
        %7505 = vmatprep.subr.mxu0 0.0
        %7506 = vmatpush1.msra.mxu0 0.0
        %7507 = vmatprep.subr.mxu0 0.0
        %7508 = vmatpush1.msra.mxu0 0.0
        %7509 = vmatprep.subr.mxu0 0.0
        %7510 = vmatpush1.msra.mxu0 0.0
        %7511 = vmatprep.subr.mxu0 0.0
        %7512 = vmatpush1.msra.mxu0 0.0
        %7513 = vmatprep.subr.mxu0 0.0
        %7514 = vmatpush1.msra.mxu0 0.0
        %7515 = vmatprep.subr.mxu0 0.0
        %7516 = vmatpush1.msra.mxu0 0.0
        %7517 = vmatprep.subr.mxu0 0.0
        %7518 = vmatpush1.msra.mxu0 0.0
        %7519 = vmatprep.subr.mxu0 0.0
        %7520 = vmatpush1.msra.mxu0 0.0
        %7521 = vmatprep.subr.mxu0 0.0
        %7522 = vmatpush1.msra.mxu0 0.0
        %7523 = vmatprep.subr.mxu0 0.0
        %7524 = vmatpush1.msra.mxu0 0.0
        %7525 = vmatprep.subr.mxu0 0.0
        %7526 = vmatpush1.msra.mxu0 0.0
        %7527 = vmatprep.subr.mxu0 0.0
        %7528 = vmatpush1.msra.mxu0 0.0
        %7529 = vmatprep.subr.mxu0 0.0
        %7530 = vmatpush1.msra.mxu0 0.0
        %7531 = vmatprep.subr.mxu0 0.0
        %7532 = vmatpush1.msra.mxu0 0.0
        %7533 = vmatprep.subr.mxu0 0.0
        %7534 = vmatpush1.msra.mxu0 0.0
        %7535 = vmatprep.subr.mxu0 0.0
        %7536 = vmatpush1.msra.mxu0 0.0
        %7537 = vmatprep.subr.mxu0 0.0
        %7538 = vmatpush1.msra.mxu0 0.0
        %7539 = vmatprep.subr.mxu0 0.0
        %7540 = vmatpush1.msra.mxu0 0.0
        %7541 = vmatprep.subr.mxu0 0.0
        %7542 = vmatpush1.msra.mxu0 0.0
        %7543 = vmatprep.subr.mxu0 0.0
        %7544 = vmatpush1.msra.mxu0 0.0
        %7545 = vmatprep.subr.mxu0 0.0
        %7546 = vmatpush1.msra.mxu0 0.0
        %7547 = vmatprep.subr.mxu0 0.0
        %7548 = vmatpush1.msra.mxu0 0.0
        %7549 = vmatprep.mubr.f32.mxu0 0.0
        %7550 = vmatmul.mubr.f32.gmra.mrb[0].mxu0 %v7480
        %v7551 = vpop.f32.mrb[0].mxu0
        %v7552 = vadd.f32 %v7473, %v7551
        %v7553 = vpop.f32.mrb[0].mxu0
        %v7554 = vadd.f32 %v7473, %v7553
        %7555 = vmatprep.mubr.f32.mxu0 0.0
        %7556 = vmatmul.mubr.f32.gmra.mrb[0].mxu0 %v7483
        %v7557 = vpop.f32.mrb[0].mxu0
        %v7558 = vpop.f32.mrb[0].mxu0
        %7559 = vdwg.mxu0
        %7560 = vmatprep.subr.mxu0 %v7436
        %7561 = vmatpush1.msra.mxu0 %v7435
        %7562 = vmatprep.subr.mxu0 %v7444
        %7563 = vmatpush1.msra.mxu0 %v7443
        %7564 = vmatprep.subr.mxu0 %v7452
        %7565 = vmatpush1.msra.mxu0 %v7451
        %7566 = vmatprep.subr.mxu0 %v7460
        %7567 = vmatpush1.msra.mxu0 %v7459
        %7568 = vmatprep.subr.mxu0 0.0
        %7569 = vmatpush1.msra.mxu0 0.0
        %7570 = vmatprep.subr.mxu0 0.0
        %7571 = vmatpush1.msra.mxu0 0.0
        %7572 = vmatprep.subr.mxu0 0.0
        %7573 = vmatpush1.msra.mxu0 0.0
        %7574 = vmatprep.subr.mxu0 0.0
        %7575 = vmatpush1.msra.mxu0 0.0
        %7576 = vmatprep.subr.mxu0 0.0
        %7577 = vmatpush1.msra.mxu0 0.0
        %7578 = vmatprep.subr.mxu0 0.0
        %7579 = vmatpush1.msra.mxu0 0.0
        %7580 = vmatprep.subr.mxu0 0.0
        %7581 = vmatpush1.msra.mxu0 0.0
        %7582 = vmatprep.subr.mxu0 0.0
        %7583 = vmatpush1.msra.mxu0 0.0
        %7584 = vmatprep.subr.mxu0 0.0
        %7585 = vmatpush1.msra.mxu0 0.0
        %7586 = vmatprep.subr.mxu0 0.0
        %7587 = vmatpush1.msra.mxu0 0.0
        %7588 = vmatprep.subr.mxu0 0.0
        %7589 = vmatpush1.msra.mxu0 0.0
        %7590 = vmatprep.subr.mxu0 0.0
        %7591 = vmatpush1.msra.mxu0 0.0
        %7592 = vmatprep.subr.mxu0 0.0
        %7593 = vmatpush1.msra.mxu0 0.0
        %7594 = vmatprep.subr.mxu0 0.0
        %7595 = vmatpush1.msra.mxu0 0.0
        %7596 = vmatprep.subr.mxu0 0.0
        %7597 = vmatpush1.msra.mxu0 0.0
        %7598 = vmatprep.subr.mxu0 0.0
        %7599 = vmatpush1.msra.mxu0 0.0
        %7600 = vmatprep.subr.mxu0 0.0
        %7601 = vmatpush1.msra.mxu0 0.0
        %7602 = vmatprep.subr.mxu0 0.0
        %7603 = vmatpush1.msra.mxu0 0.0
        %7604 = vmatprep.subr.mxu0 0.0
        %7605 = vmatpush1.msra.mxu0 0.0
        %7606 = vmatprep.subr.mxu0 0.0
        %7607 = vmatpush1.msra.mxu0 0.0
        %7608 = vmatprep.subr.mxu0 0.0
        %7609 = vmatpush1.msra.mxu0 0.0
        %7610 = vmatprep.subr.mxu0 0.0
        %7611 = vmatpush1.msra.mxu0 0.0
        %7612 = vmatprep.subr.mxu0 0.0
        %7613 = vmatpush1.msra.mxu0 0.0
        %7614 = vmatprep.subr.mxu0 0.0
        %7615 = vmatpush1.msra.mxu0 0.0
        %7616 = vmatprep.subr.mxu0 0.0
        %7617 = vmatpush1.msra.mxu0 0.0
        %7618 = vmatprep.subr.mxu0 0.0
        %7619 = vmatpush1.msra.mxu0 0.0
        %7620 = vmatprep.subr.mxu0 0.0
        %7621 = vmatpush1.msra.mxu0 0.0
        %7622 = vmatprep.subr.mxu0 0.0
        %7623 = vmatpush1.msra.mxu0 0.0
        %7624 = vmatprep.mubr.f32.mxu0 0.0
        %7625 = vmatmul.mubr.f32.gmra.mrb[0].mxu0 %v7480
        %v7626 = vpop.f32.mrb[0].mxu0
        %v7627 = vadd.f32 %v7473, %v7626
        %v7628 = vpop.f32.mrb[0].mxu0
        %v7629 = vadd.f32 %v7473, %v7628
        %7630 = vmatprep.mubr.f32.mxu0 0.0
        %7631 = vmatmul.mubr.f32.gmra.mrb[0].mxu0 %v7483
        %v7632 = vpop.f32.mrb[0].mxu0
        %v7633 = vpop.f32.mrb[0].mxu0
        %7634 = vdwg.mxu0
        %7635 = vmatprep.subr.mxu0 %v7438
        %7636 = vmatpush1.msra.mxu0 %v7437
        %7637 = vmatprep.subr.mxu0 %v7446
        %7638 = vmatpush1.msra.mxu0 %v7445
        %7639 = vmatprep.subr.mxu0 %v7454
        %7640 = vmatpush1.msra.mxu0 %v7453
        %7641 = vmatprep.subr.mxu0 %v7462
        %7642 = vmatpush1.msra.mxu0 %v7461
        %7643 = vmatprep.subr.mxu0 0.0
        %7644 = vmatpush1.msra.mxu0 0.0
        %7645 = vmatprep.subr.mxu0 0.0
        %7646 = vmatpush1.msra.mxu0 0.0
        %7647 = vmatprep.subr.mxu0 0.0
        %7648 = vmatpush1.msra.mxu0 0.0
        %7649 = vmatprep.subr.mxu0 0.0
        %7650 = vmatpush1.msra.mxu0 0.0
        %7651 = vmatprep.subr.mxu0 0.0
        %7652 = vmatpush1.msra.mxu0 0.0
        %7653 = vmatprep.subr.mxu0 0.0
        %7654 = vmatpush1.msra.mxu0 0.0
        %7655 = vmatprep.subr.mxu0 0.0
        %7656 = vmatpush1.msra.mxu0 0.0
        %7657 = vmatprep.subr.mxu0 0.0
        %7658 = vmatpush1.msra.mxu0 0.0
        %7659 = vmatprep.subr.mxu0 0.0
        %7660 = vmatpush1.msra.mxu0 0.0
        %7661 = vmatprep.subr.mxu0 0.0
        %7662 = vmatpush1.msra.mxu0 0.0
        %7663 = vmatprep.subr.mxu0 0.0
        %7664 = vmatpush1.msra.mxu0 0.0
        %7665 = vmatprep.subr.mxu0 0.0
        %7666 = vmatpush1.msra.mxu0 0.0
        %7667 = vmatprep.subr.mxu0 0.0
        %7668 = vmatpush1.msra.mxu0 0.0
        %7669 = vmatprep.subr.mxu0 0.0
        %7670 = vmatpush1.msra.mxu0 0.0
        %7671 = vmatprep.subr.mxu0 0.0
        %7672 = vmatpush1.msra.mxu0 0.0
        %7673 = vmatprep.subr.mxu0 0.0
        %7674 = vmatpush1.msra.mxu0 0.0
        %7675 = vmatprep.subr.mxu0 0.0
        %7676 = vmatpush1.msra.mxu0 0.0
        %7677 = vmatprep.subr.mxu0 0.0
        %7678 = vmatpush1.msra.mxu0 0.0
        %7679 = vmatprep.subr.mxu0 0.0
        %7680 = vmatpush1.msra.mxu0 0.0
        %7681 = vmatprep.subr.mxu0 0.0
        %7682 = vmatpush1.msra.mxu0 0.0
        %7683 = vmatprep.subr.mxu0 0.0
        %7684 = vmatpush1.msra.mxu0 0.0
        %7685 = vmatprep.subr.mxu0 0.0
        %7686 = vmatpush1.msra.mxu0 0.0
        %7687 = vmatprep.subr.mxu0 0.0
        %7688 = vmatpush1.msra.mxu0 0.0
        %7689 = vmatprep.subr.mxu0 0.0
        %7690 = vmatpush1.msra.mxu0 0.0
        %7691 = vmatprep.subr.mxu0 0.0
        %7692 = vmatpush1.msra.mxu0 0.0
        %7693 = vmatprep.subr.mxu0 0.0
        %7694 = vmatpush1.msra.mxu0 0.0
        %7695 = vmatprep.subr.mxu0 0.0
        %7696 = vmatpush1.msra.mxu0 0.0
        %7697 = vmatprep.subr.mxu0 0.0
        %7698 = vmatpush1.msra.mxu0 0.0
        %7699 = vmatprep.mubr.f32.mxu0 0.0
        %7700 = vmatmul.mubr.f32.gmra.mrb[0].mxu0 %v7480
        %v7701 = vpop.f32.mrb[0].mxu0
        %v7702 = vadd.f32 %v7473, %v7701
        %v7703 = vpop.f32.mrb[0].mxu0
        %v7704 = vadd.f32 %v7473, %v7703
        %7705 = vmatprep.mubr.f32.mxu0 0.0
        %7706 = vmatmul.mubr.f32.gmra.mrb[0].mxu0 %v7483
        %v7707 = vpop.f32.mrb[0].mxu0
        %v7708 = vpop.f32.mrb[0].mxu0
        %7709 = vdwg.mxu0
        %7710 = vmatprep.subr.mxu0 %v7440
        %7711 = vmatpush1.msra.mxu0 %v7439
        %7712 = vmatprep.subr.mxu0 %v7448
        %7713 = vmatpush1.msra.mxu0 %v7447
        %7714 = vmatprep.subr.mxu0 %v7456
        %7715 = vmatpush1.msra.mxu0 %v7455
        %7716 = vmatprep.subr.mxu0 %v7464
        %7717 = vmatpush1.msra.mxu0 %v7463
        %7718 = vmatprep.subr.mxu0 0.0
        %7719 = vmatpush1.msra.mxu0 0.0
        %7720 = vmatprep.subr.mxu0 0.0
        %7721 = vmatpush1.msra.mxu0 0.0
        %7722 = vmatprep.subr.mxu0 0.0
        %7723 = vmatpush1.msra.mxu0 0.0
        %7724 = vmatprep.subr.mxu0 0.0
        %7725 = vmatpush1.msra.mxu0 0.0
        %7726 = vmatprep.subr.mxu0 0.0
        %7727 = vmatpush1.msra.mxu0 0.0
        %7728 = vmatprep.subr.mxu0 0.0
        %7729 = vmatpush1.msra.mxu0 0.0
        %7730 = vmatprep.subr.mxu0 0.0
        %7731 = vmatpush1.msra.mxu0 0.0
        %7732 = vmatprep.subr.mxu0 0.0
        %7733 = vmatpush1.msra.mxu0 0.0
        %7734 = vmatprep.subr.mxu0 0.0
        %7735 = vmatpush1.msra.mxu0 0.0
        %7736 = vmatprep.subr.mxu0 0.0
        %7737 = vmatpush1.msra.mxu0 0.0
        %7738 = vmatprep.subr.mxu0 0.0
        %7739 = vmatpush1.msra.mxu0 0.0
        %7740 = vmatprep.subr.mxu0 0.0
        %7741 = vmatpush1.msra.mxu0 0.0
        %7742 = vmatprep.subr.mxu0 0.0
        %7743 = vmatpush1.msra.mxu0 0.0
        %7744 = vmatprep.subr.mxu0 0.0
        %7745 = vmatpush1.msra.mxu0 0.0
        %7746 = vmatprep.subr.mxu0 0.0
        %7747 = vmatpush1.msra.mxu0 0.0
        %7748 = vmatprep.subr.mxu0 0.0
        %7749 = vmatpush1.msra.mxu0 0.0
        %7750 = vmatprep.subr.mxu0 0.0
        %7751 = vmatpush1.msra.mxu0 0.0
        %7752 = vmatprep.subr.mxu0 0.0
        %7753 = vmatpush1.msra.mxu0 0.0
        %7754 = vmatprep.subr.mxu0 0.0
        %7755 = vmatpush1.msra.mxu0 0.0
        %7756 = vmatprep.subr.mxu0 0.0
        %7757 = vmatpush1.msra.mxu0 0.0
        %7758 = vmatprep.subr.mxu0 0.0
        %7759 = vmatpush1.msra.mxu0 0.0
        %7760 = vmatprep.subr.mxu0 0.0
        %7761 = vmatpush1.msra.mxu0 0.0
        %7762 = vmatprep.subr.mxu0 0.0
        %7763 = vmatpush1.msra.mxu0 0.0
        %7764 = vmatprep.subr.mxu0 0.0
        %7765 = vmatpush1.msra.mxu0 0.0
        %7766 = vmatprep.subr.mxu0 0.0
        %7767 = vmatpush1.msra.mxu0 0.0
        %7768 = vmatprep.subr.mxu0 0.0
        %7769 = vmatpush1.msra.mxu0 0.0
        %7770 = vmatprep.subr.mxu0 0.0
        %7771 = vmatpush1.msra.mxu0 0.0
        %7772 = vmatprep.subr.mxu0 0.0
        %7773 = vmatpush1.msra.mxu0 0.0
        %7774 = vmatprep.mubr.f32.mxu0 0.0
        %7775 = vmatmul.mubr.f32.gmra.mrb[0].mxu0 %v7480
        %v7776 = vpop.f32.mrb[0].mxu0
        %v7777 = vadd.f32 %v7473, %v7776
        %v7778 = vpop.f32.mrb[0].mxu0
        %v7779 = vadd.f32 %v7473, %v7778
        %7780 = vmatprep.mubr.f32.mxu0 0.0
        %7781 = vmatmul.mubr.f32.gmra.mrb[0].mxu0 %v7483
        %v7782 = vpop.f32.mrb[0].mxu0
        %v7783 = vpop.f32.mrb[0].mxu0
        %7784 = vdwg.mxu0
        %7785 = vst [vmem:[%s218] sm:$0xff] %v7552
        %7786 = vst [vmem:[%s218 + $0x8] sm:$0xff] %v7554
        %7787 = vst [vmem:[%s218 + $0x10] sm:$0xff] %v7627
        %7788 = vst [vmem:[%s218 + $0x18] sm:$0xff] %v7629
        %7789 = vst [vmem:[%s218 + $0x20] sm:$0xff] %v7702
        %7790 = vst [vmem:[%s218 + $0x28] sm:$0xff] %v7704
        %7791 = vst [vmem:[%s218 + $0x30] sm:$0xff] %v7777
        %7792 = vst [vmem:[%s218 + $0x38] sm:$0xff] %v7779
        %s7793 = sand.u32 %s137, 1
        %s7794 = scalar_lea.sflag [#allocation4], %s7793
        %s7795 = sand.u32 %s137, 1
        %s7796 = smul.addr %s7795, 64
        %s7797 = scalar_lea.vmem [#allocation3], %s7796
        // Predicated region
        $region41: #{implicit_network_forward_fm.1} parent=39 // pred_check
          %p7798 = pneg %p147
        $region42: #{implicit_network_forward_fm.1} parent=39 // pred_check_branch
          %7800 = sbr.rel (%p7798) target = $region44
        $region43: #{implicit_network_forward_fm.1} parent=39 // pred_region
          %s7801 = smul.u32 8, %s19
          %s7803 = ssub.s32 1024, 1024
          %7804 = vsyncadd %s7794, %s7803
          %s7805 = smul.addr %s7801, 128
          %s7806 = scalar_lea.hbm %s5, %s7805
          %s7808 = sshll.u32 %s7797, 4
          %s7809 = int_to_ptr.vmem [resolvable:$true] %s7808
          %7811 = dma.vmem_to_hbm [thread:$0]  %s7809, 1024, %s7806, %s7794
        $region44: #{implicit_network_forward_fm.1} parent=39 // pred_fallthru
          _
      $region40: #{implicit_network_forward_fm.1} parent=5 // pred_fallthru
        _
      %p7812 = scmp.le.s32.totalorder 2, %s14
      // Predicated region
      $region45: #{implicit_network_forward_fm.1} parent=5 // pred_check
        %p7813 = pneg %p7812
      $region46: #{implicit_network_forward_fm.1} parent=5 // pred_check_branch
        %7815 = sbr.rel (%p7813) target = $region48
      $region47: #{implicit_network_forward_fm.1} parent=5 // pred_region
        %s7816 = ssub.s32 %s14, 2
        // Predicated region
        $region49: #{implicit_network_forward_fm.1} parent=47 // pred_check
          %p7817 = pneg %p153
        $region50: #{implicit_network_forward_fm.1} parent=47 // pred_check_branch
          %7819 = sbr.rel (%p7817) target = $region52
        $region51: #{implicit_network_forward_fm.1} parent=47 // pred_region
          %s7820 = sand.u32 %s138, 1
          %s7821 = scalar_lea.sflag [#allocation4], %s7820
          %s7822 = sand.u32 %s138, 1
          %s7823 = smul.addr %s7822, 64
          %s7824 = scalar_lea.vmem [#allocation3], %s7823
          %7825 = dma.done %s7821, 1024
        $region52: #{implicit_network_forward_fm.1} parent=47 // pred_fallthru
          _
      $region48: #{implicit_network_forward_fm.1} parent=5 // pred_fallthru
        _
    $region6: #{implicit_network_forward_fm.1} parent=1 // loop_footer
      %s18 = sadd.s32 1, %s14
    $region7: #{implicit_network_forward_fm.1} parent=1 // loop_footer_branch
      %13 = sbr.rel target = $region3
    $region8: #{implicit_network_forward_fm.1} parent=1 // loop_exit
      _
    %7826 = vsyncpa [#allocation4], 1
    %s7827 = scalar_lea.sflag [#allocation4], 1
    %7828 = vsyncpa %s7827, 1

</llo_original>
